<compile_context>
chip_gen: v7x
topology: tpu7x:2x2x1
jax: 0.10.0
libtpu: 0.0.40
codegen_flags: <defaults>
</compile_context>

<pallas_src>
import functools

import jax
import jax.numpy as jnp
from jax import lax
from jax.experimental import pallas as pl
from jax.experimental.pallas import tpu as pltpu


def _round_up(v, m):
    return ((v + m - 1) // m) * m


# --------------------------- kernel bodies ----------------------------------


def _csr_mean_aggregate(rowptr_ref, src_ref, feat_all_ref, agg_ref,
                        row_base, tile_m, fdim):
    """CSR segmented sum of incoming-edge source features for this node tile.

    Edges are sorted by destination; rowptr[n]..rowptr[n+1] is node n's
    incoming-edge range.  The per-row partial sum is carried in vregs and
    stored once per row (no per-edge VMEM read-modify-write chain)."""
    f32 = jnp.float32

    def row_body(r, carry):
        node = row_base + r
        lo = rowptr_ref[node]
        hi = rowptr_ref[node + 1]

        def edge_body(e, acc):
            s = src_ref[e]                               # SMEM scalar (source id)
            return acc + feat_all_ref[pl.ds(s, 1), :]    # (1, fdim) gather + add

        acc = lax.fori_loop(lo, hi, edge_body, jnp.zeros((1, fdim), f32))
        agg_ref[pl.ds(r, 1), :] = acc                    # one store per node
        return carry

    lax.fori_loop(0, tile_m, row_body, 0)


def _sage1_kernel(rowptr_ref, src_ref,
                  x_all_ref, invdeg_ref, wl_ref, wr_ref, b_ref,
                  h_ref, agg_ref, *, tile_m, fdim):
    f32 = jnp.float32
    row_base = pl.multiple_of(pl.program_id(0) * tile_m, tile_m)

    # Root-term matmul first (staged in the output ref) so the MXU work
    # overlaps the serial gather loop below.
    x_rows = x_all_ref[pl.ds(row_base, tile_m), :]
    h_ref[...] = (jnp.dot(x_rows, wr_ref[...], preferred_element_type=f32)
                  + b_ref[...])

    _csr_mean_aggregate(rowptr_ref, src_ref, x_all_ref, agg_ref,
                        row_base, tile_m, fdim)

    mean = agg_ref[...] * invdeg_ref[...]
    h = jnp.dot(mean, wl_ref[...], preferred_element_type=f32) + h_ref[...]
    h_ref[...] = jnp.maximum(h, 0.0)


def _sage2_heads_kernel(rowptr_ref, src_ref,
                        h_all_ref, invdeg_ref,
                        wl_ref, wr_ref, b_ref,
                        wheads_ref, bheads_ref, wv2_ref, bv2_ref,
                        pos_ref, ps_ref, pd_ref, agg_ref, *, tile_m, hdim):
    f32 = jnp.float32
    row_base = pl.multiple_of(pl.program_id(0) * tile_m, tile_m)

    # Root-term matmul first, staged in pd_ref (overwritten at the end), so the
    # MXU work overlaps the serial gather loop.
    h_rows = h_all_ref[pl.ds(row_base, tile_m), :]
    pd_ref[...] = (jnp.dot(h_rows, wr_ref[...], preferred_element_type=f32)
                   + b_ref[...])

    _csr_mean_aggregate(rowptr_ref, src_ref, h_all_ref, agg_ref,
                        row_base, tile_m, hdim)

    mean = agg_ref[...] * invdeg_ref[...]
    h2 = jnp.dot(mean, wl_ref[...], preferred_element_type=f32) + pd_ref[...]

    # One fused (H, 3H) matmul: [vertex_update.0 | edge_update.0(src) | edge_update.0(dst)]
    heads = (jnp.dot(h2, wheads_ref[...], preferred_element_type=f32)
             + bheads_ref[...])
    v = jnp.maximum(heads[:, :hdim], 0.0)
    pos_ref[...] = (jnp.dot(v, wv2_ref[...], preferred_element_type=f32)
                    + bv2_ref[...])                      # lane-dense padded positions
    ps_ref[...] = heads[:, hdim:2 * hdim]                # includes edge bias be1
    pd_ref[...] = heads[:, 2 * hdim:3 * hdim]


def _edge_kernel(src_ref, dst_ref,
                 ps_ref, pd_ref, w2_ref, b2_ref,
                 conn_ref, gath_ref, *, tile_e):
    f32 = jnp.float32
    base = pl.multiple_of(pl.program_id(0) * tile_e, tile_e)

    # Row-gather ps[src] + pd[dst], manually unrolled 8x so the scheduler can
    # overlap the independent single-row load latencies.
    # TODO(synk): switch to a vectorized jnp.take row-gather once Mosaic's
    # dynamic row-gather lowering covers arbitrary (Np, H) sources.
    def blk_body(blk, carry):
        k0 = pl.multiple_of(blk * 8, 8)
        for u in range(8):
            k = k0 + u
            s = src_ref[base + k]
            d = dst_ref[base + k]
            gath_ref[pl.ds(k, 1), :] = (ps_ref[pl.ds(s, 1), :]
                                        + pd_ref[pl.ds(d, 1), :])
        return carry

    lax.fori_loop(0, tile_e // 8, blk_body, 0)

    feat = jnp.maximum(gath_ref[...], 0.0)   # relu(h2[s]@W1s + h2[d]@W1d + be1)
    logits = jnp.dot(feat, w2_ref[...], preferred_element_type=f32) + b2_ref[...]
    # TODO(synk): for v5e mem-bound graphs, pack conn into 128-wide rows (or
    # emit bf16 slabs) to cut the lane-padding writeback amplification.
    conn_ref[...] = jax.nn.sigmoid(logits)   # lane-dense (tile_e, 128) slab


# ----------------------------- host-side prep --------------------------------


def prepare_graph(edge_index, num_nodes, *, tile_m=256, tile_e=256):
    """Edge sorting / CSR row pointers / degrees / padding.

    Pure XLA glue that only depends on the topology — hoist (or jit once) for
    a static graph so it is not recomputed on every forward call."""
    f32, i32 = jnp.float32, jnp.int32
    n = int(num_nodes)
    e = int(edge_index.shape[1])
    src = jnp.clip(edge_index[0].astype(i32), 0, n - 1)   # guard OOB gathers
    dst = jnp.clip(edge_index[1].astype(i32), 0, n - 1)

    n_pad = _round_up(n, tile_m)
    e_pad = _round_up(e, tile_e)

    deg = jnp.zeros((n_pad,), f32).at[dst].add(1.0)
    invdeg = (1.0 / jnp.maximum(deg, 1.0)).reshape(n_pad, 1)

    order = jnp.argsort(dst)                      # group edges by destination
    src_sorted = src[order]
    dst_sorted = dst[order]
    rowptr = jnp.searchsorted(                    # CSR row pointers, one per node
        dst_sorted, jnp.arange(n_pad + 1, dtype=i32)).astype(i32)

    src_pad = jnp.zeros((e_pad,), i32).at[:e].set(src)
    dst_pad = jnp.zeros((e_pad,), i32).at[:e].set(dst)

    return dict(n=n, e=e, n_pad=n_pad, e_pad=e_pad, invdeg=invdeg,
                rowptr=rowptr, src_sorted=src_sorted,
                src_pad=src_pad, dst_pad=dst_pad)


def pack_params(params, f_in):
    """Pad / fuse the weight matrices (hoistable; depends only on params)."""
    f32 = jnp.float32
    h = params["wl1"].shape[1]
    fp = _round_up(max(f_in, 8), 8)               # sublane-align input features

    def pad_rows(w, rows):
        w = w.astype(f32)
        return jnp.zeros((rows, w.shape[1]), f32).at[:w.shape[0], :].set(w)

    def pad_cols(w, cols):
        w = w.astype(f32)
        return jnp.zeros((w.shape[0], cols), f32).at[:, :w.shape[1]].set(w)

    we1 = params["we1"].astype(f32)
    # Fused head weight (H, 3H): vertex_update.0 | edge_update.0 src half | dst half.
    w_heads = jnp.concatenate(
        [params["wv1"].astype(f32), we1[:h, :], we1[h:, :]], axis=1)
    b_heads = jnp.concatenate(
        [params["bv1"].astype(f32), params["be1"].astype(f32),
         jnp.zeros((1, h), f32)], axis=1)

    return dict(
        h=h, fp=fp,
        wl1=pad_rows(params["wl1"], fp), wr1=pad_rows(params["wr1"], fp),
        b1=params["b1"].astype(f32),
        wl2=params["wl2"].astype(f32), wr2=params["wr2"].astype(f32),
        b2=params["b2"].astype(f32),
        w_heads=w_heads, b_heads=b_heads,
        wv2=pad_cols(params["wv2"], 128), bv2=pad_cols(params["bv2"], 128),
        we2=pad_cols(params["we2"], 128), be2=pad_cols(params["be2"], 128),
    )


def _cparams(est_bytes):
    # Explicit scoped-VMEM budget (v5e default is only 16 MiB); stays below the
    # v7x per-core physical 64 MiB for the shapes used here.
    limit = int(min(max(2 * est_bytes + (16 << 20), 32 << 20), 96 << 20))
    return pltpu.CompilerParams(dimension_semantics=("parallel",),
                                vmem_limit_bytes=limit)


# --------------------------------- wrapper -----------------------------------


def adaptive_graph_network(x, edge_index, params, *, tile_m=256, tile_e=256,
                           single_buffer_consts=True):
    """x: (N, F) float32, edge_index: (2, E) int32, params: (in, out) matrices."""
    if tile_m % 8 or tile_e % 8:
        raise ValueError("tile_m and tile_e must be multiples of 8")
    f32 = jnp.float32
    n, f_in = x.shape
    graph = prepare_graph(edge_index, n, tile_m=tile_m, tile_e=tile_e)
    pp = pack_params(params, f_in)
    h, fp = pp["h"], pp["fp"]
    n_pad, e_pad, e = graph["n_pad"], graph["e_pad"], graph["e"]
    n_node_tiles = n_pad // tile_m
    n_edge_tiles = e_pad // tile_e

    x_p = jnp.zeros((n_pad, fp), f32).at[:n, :f_in].set(x.astype(f32))

    # Index maps: scalar-prefetch refs arrive as trailing positional args.
    def tiled(i, *_):
        return (i, 0)

    def whole(i, *_):
        return (0, 0)

    def const_spec(shape):
        # Whole-array / weight blocks never change across grid steps; request a
        # single buffer so they are not double-buffered in VMEM (matters most
        # on v7x's 64 MiB per-core VMEM).
        if single_buffer_consts:
            return pl.BlockSpec(shape, whole, pipeline_mode=pl.Buffered(1))
        return pl.BlockSpec(shape, whole)

    # ---------------- layer 1: h1 = relu(SAGEConv(x)) ------------------------
    est1 = 4 * (n_pad * fp + 2 * fp * h + h + n_pad + tile_m * fp
                + 2 * tile_m * h)
    sage1 = pl.pallas_call(
        functools.partial(_sage1_kernel, tile_m=tile_m, fdim=fp),
        out_shape=jax.ShapeDtypeStruct((n_pad, h), f32),
        grid_spec=pltpu.PrefetchScalarGridSpec(
            num_scalar_prefetch=2,               # CSR rowptr, src (sorted by dst)
            grid=(n_node_tiles,),
            in_specs=[
                const_spec((n_pad, fp)),                # all node features (gather src)
                pl.BlockSpec((tile_m, 1), tiled),       # 1 / deg
                const_spec((fp, h)),                    # W_l
                const_spec((fp, h)),                    # W_r
                const_spec((1, h)),                     # bias
            ],
            out_specs=pl.BlockSpec((tile_m, h), tiled),
            scratch_shapes=[pltpu.VMEM((tile_m, fp), f32)]),
        compiler_params=_cparams(est1),
        cost_estimate=pl.CostEstimate(
            flops=4 * n_pad * fp * h + 2 * e * fp,
            transcendentals=0,
            bytes_accessed=4 * (2 * n_pad * fp + n_pad * h + 2 * fp * h)),
    )
    h1 = sage1(graph["rowptr"], graph["src_sorted"], x_p, graph["invdeg"],
               pp["wl1"], pp["wr1"], pp["b1"])

    # ----- layer 2 + vertex head + hoisted edge-MLP first layer (fused) ------
    est2 = 4 * (n_pad * h + n_pad + 5 * h * h + h * 128 + 5 * h + 256
                + tile_m * h + 2 * tile_m * (128 + 2 * h))
    sage2 = pl.pallas_call(
        functools.partial(_sage2_heads_kernel, tile_m=tile_m, hdim=h),
        out_shape=(jax.ShapeDtypeStruct((n_pad, 128), f32),  # padded positions
                   jax.ShapeDtypeStruct((n_pad, h), f32),    # ps = h2 @ We1[:H] + be1
                   jax.ShapeDtypeStruct((n_pad, h), f32)),   # pd = h2 @ We1[H:]
        grid_spec=pltpu.PrefetchScalarGridSpec(
            num_scalar_prefetch=2,
            grid=(n_node_tiles,),
            in_specs=[
                const_spec((n_pad, h)),                 # h1 (gather source)
                pl.BlockSpec((tile_m, 1), tiled),       # 1 / deg
                const_spec((h, h)),                     # wl2
                const_spec((h, h)),                     # wr2
                const_spec((1, h)),                     # b2
                const_spec((h, 3 * h)),                 # fused heads weight
                const_spec((1, 3 * h)),                 # fused heads bias
                const_spec((h, 128)),                   # wv2 (lane-padded)
                const_spec((1, 128)),                   # bv2 (lane-padded)
            ],
            out_specs=(pl.BlockSpec((tile_m, 128), tiled),
                       pl.BlockSpec((tile_m, h), tiled),
                       pl.BlockSpec((tile_m, h), tiled)),
            scratch_shapes=[pltpu.VMEM((tile_m, h), f32)]),
        compiler_params=_cparams(est2),
        cost_estimate=pl.CostEstimate(
            flops=2 * n_pad * h * (6 * h + 128) + 2 * e * h,
            transcendentals=0,
            bytes_accessed=4 * (n_pad * h + n_pad * (128 + 2 * h) + 6 * h * h)),
    )
    pos_pad, ps, pd = sage2(graph["rowptr"], graph["src_sorted"], h1,
                            graph["invdeg"], pp["wl2"], pp["wr2"], pp["b2"],
                            pp["w_heads"], pp["b_heads"], pp["wv2"], pp["bv2"])

    # --------- per-edge: conn = sigmoid(relu(ps[src] + pd[dst]) @ We2) --------
    est3 = 4 * (2 * n_pad * h + h * 128 + 128 + tile_e * h + 2 * tile_e * 128)
    edge = pl.pallas_call(
        functools.partial(_edge_kernel, tile_e=tile_e),
        out_shape=jax.ShapeDtypeStruct((e_pad, 128), f32),
        grid_spec=pltpu.PrefetchScalarGridSpec(
            num_scalar_prefetch=2,               # src, dst (original edge order)
            grid=(n_edge_tiles,),
            in_specs=[
                const_spec((n_pad, h)),                 # ps (gather source)
                const_spec((n_pad, h)),                 # pd (gather source)
                const_spec((h, 128)),                   # we2 (lane-padded)
                const_spec((1, 128)),                   # be2 (lane-padded)
            ],
            out_specs=pl.BlockSpec((tile_e, 128), tiled),
            scratch_shapes=[pltpu.VMEM((tile_e, h), f32)]),
        compiler_params=_cparams(est3),
        cost_estimate=pl.CostEstimate(
            flops=2 * e_pad * h * 128 + 2 * e_pad * h,
            transcendentals=e_pad * 128,
            bytes_accessed=4 * (2 * n_pad * h + e_pad * 128 + h * 128)),
    )
    conn_pad = edge(graph["src_pad"], graph["dst_pad"], ps, pd,
                    pp["we2"], pp["be2"])

    # slice off lane / row padding (pure layout plumbing)
    return pos_pad[:n, :3], conn_pad[:e, :1]


# ---------------------------- pure-JAX reference -----------------------------


def _reference(x, edge_index, p):
    """Mirrors the PyTorch/PyG forward semantics."""
    src, dst = edge_index
    n = x.shape[0]

    def sage(feats, wl, wr, b):
        msg = feats[src]
        summed = jnp.zeros((n, feats.shape[1]), feats.dtype).at[dst].add(msg)
        cnt = jnp.zeros((n, 1), feats.dtype).at[dst].add(1.0)
        mean = summed / jnp.maximum(cnt, 1.0)
        return mean @ wl + feats @ wr + b

    hid = jax.nn.relu(sage(x, p["wl1"], p["wr1"], p["b1"]))
    hid = sage(hid, p["wl2"], p["wr2"], p["b2"])
    pos = jax.nn.relu(hid @ p["wv1"] + p["bv1"]) @ p["wv2"] + p["bv2"]
    ef = jnp.concatenate([hid[src], hid[dst]], axis=1)
    conn = jax.nn.sigmoid(jax.nn.relu(ef @ p["we1"] + p["be1"]) @ p["we2"]
                          + p["be2"])
    return pos, conn


if __name__ == "__main__":
    jax.config.update("jax_default_matmul_precision", "highest")

    # small synthetic graph; module defaults: input_dim=7, hidden_dim=128
    N, E, F_IN, H = 256, 512, 7, 128

    key = jax.random.PRNGKey(0)
    keys = jax.random.split(key, 20)

    x = jax.random.normal(keys[0], (N, F_IN), jnp.float32)
    src = jax.random.randint(keys[1], (E,), 0, N, dtype=jnp.int32)
    dst = jax.random.randint(keys[2], (E,), 0, N, dtype=jnp.int32)
    edge_index = jnp.stack([src, dst])

    def init(k, shape, scale=0.1):
        return scale * jax.random.normal(k, shape, jnp.float32)

    params = {
        # SAGEConv(F_IN -> H): lin_l (aggregated neighbors), lin_r (root), bias
        "wl1": init(keys[3], (F_IN, H)), "wr1": init(keys[4], (F_IN, H)), "b1": init(keys[5], (1, H)),
        # SAGEConv(H -> H)
        "wl2": init(keys[6], (H, H)), "wr2": init(keys[7], (H, H)), "b2": init(keys[8], (1, H)),
        # vertex_update: Linear(H,H) -> ReLU -> Linear(H,3)
        "wv1": init(keys[9], (H, H)), "bv1": init(keys[10], (1, H)),
        "wv2": init(keys[11], (H, 3)), "bv2": init(keys[12], (1, 3)),
        # edge_update: Linear(2H,H) -> ReLU -> Linear(H,1) -> Sigmoid
        "we1": init(keys[13], (2 * H, H)), "be1": init(keys[14], (1, H)),
        "we2": init(keys[15], (H, 1)), "be2": init(keys[16], (1, 1)),
    }

    try:
        pos, conn = adaptive_graph_network(x, edge_index, params)
    except Exception:
        # pipeline_mode=pl.Buffered(1) may be unsupported by the installed
        # jax/Mosaic; fall back to default double-buffered constant blocks.
        pos, conn = adaptive_graph_network(x, edge_index, params,
                                           single_buffer_consts=False)
    jax.block_until_ready((pos, conn))

    pos_ref, conn_ref = _reference(x, edge_index, params)
    assert pos.shape == (N, 3) and conn.shape == (E, 1)
    assert jnp.allclose(pos, pos_ref, atol=1e-4, rtol=1e-4), (
        float(jnp.max(jnp.abs(pos - pos_ref))))
    assert jnp.allclose(conn, conn_ref, atol=1e-4, rtol=1e-4), (
        float(jnp.max(jnp.abs(conn - conn_ref))))

    print("KERNEL_OK")
</pallas_src>

<mosaic_0001>
module attributes {stable_mosaic.version = 11 : i64} {
  func.func @_sage1_kernel(%arg0: i32, %arg1: memref<257xi32, #tpu.memory_space<smem>>, %arg2: memref<512xi32, #tpu.memory_space<smem>>, %arg3: memref<256x8xf32, #tpu.memory_space<vmem>>, %arg4: memref<256x1xf32, #tpu.memory_space<vmem>>, %arg5: memref<8x128xf32, #tpu.memory_space<vmem>>, %arg6: memref<8x128xf32, #tpu.memory_space<vmem>>, %arg7: memref<1x128xf32, #tpu.memory_space<vmem>>, %arg8: memref<256x128xf32, #tpu.memory_space<vmem>>, %arg9: memref<256x8xf32, #tpu.memory_space<vmem>>) attributes {dimension_semantics = [#tpu.dimension_semantics<parallel>], iteration_bounds = array<i64: 1>, scalar_prefetch = 2 : i64, scratch_operands = 1 : i64, tpu.core_type = #tpu.core_type<tc>, window_params = [{pipeline_mode = #tpu.pipeline_mode<synchronous>, transform_indices = @transform_0, window_bounds = array<i64: 256, 8>}, {transform_indices = @transform_1, window_bounds = array<i64: 256, 1>}, {pipeline_mode = #tpu.pipeline_mode<synchronous>, transform_indices = @transform_2, window_bounds = array<i64: 8, 128>}, {pipeline_mode = #tpu.pipeline_mode<synchronous>, transform_indices = @transform_3, window_bounds = array<i64: 8, 128>}, {pipeline_mode = #tpu.pipeline_mode<synchronous>, transform_indices = @transform_4, window_bounds = array<i64: 1, 128>}, {transform_indices = @transform_5, window_bounds = array<i64: 256, 128>}]} {
    %c256_i32 = arith.constant 256 : i32
    %0 = arith.muli %arg0, %c256_i32 : i32
    %1 = tpu.assume_multiple %0, 256 : i32
    %2 = arith.index_cast %1 : i32 to index
    %c0 = arith.constant 0 : index
    %3 = vector.load %arg3[%2, %c0] : memref<256x8xf32, #tpu.memory_space<vmem>>, vector<256x8xf32>
    %c0_0 = arith.constant 0 : index
    %c0_1 = arith.constant 0 : index
    %4 = vector.load %arg6[%c0_0, %c0_1] : memref<8x128xf32, #tpu.memory_space<vmem>>, vector<8x128xf32>
    %cst = arith.constant dense<0.000000e+00> : vector<256x128xf32>
    %5 = tpu.matmul %3, %4, %cst {dimension_numbers = #tpu.dot_dimension_numbers<[1], [0], [0], [1], [0, 0, 1, 1], [], []>, precision = #tpu.contract_precision<fp32>} : vector<256x8xf32>, vector<8x128xf32>, vector<256x128xf32> -> vector<256x128xf32>
    %c0_2 = arith.constant 0 : index
    %c0_3 = arith.constant 0 : index
    %6 = vector.load %arg7[%c0_2, %c0_3] : memref<1x128xf32, #tpu.memory_space<vmem>>, vector<1x128xf32>
    %7 = vector.broadcast %6 : vector<1x128xf32> to vector<256x128xf32>
    %8 = arith.addf %5, %7 : vector<256x128xf32>
    %c0_4 = arith.constant 0 : index
    %c0_5 = arith.constant 0 : index
    %9 = vector.load %arg8[%c0_4, %c0_5] : memref<256x128xf32, #tpu.memory_space<vmem>>, vector<256x128xf32>
    tpu.vector_store %arg8[%c0_4, %c0_5], %8 {strides = array<i32>} : memref<256x128xf32, #tpu.memory_space<vmem>>, vector<256x128xf32>,
    %c0_i32 = arith.constant 0 : i32
    %c256_i32_6 = arith.constant 256 : i32
    %10 = arith.addi %c0_i32, %c256_i32_6 : i32
    %c1_i32 = arith.constant 1 : i32
    scf.for %arg10 = %c0_i32 to %10 step %c1_i32  : i32 {
      %22 = arith.addi %1, %arg10 : i32
      %23 = arith.index_cast %22 : i32 to index
      %24 = memref.load %arg1[%23] : memref<257xi32, #tpu.memory_space<smem>>
      %c1_i32_20 = arith.constant 1 : i32
      %25 = arith.addi %22, %c1_i32_20 : i32
      %26 = arith.index_cast %25 : i32 to index
      %27 = memref.load %arg1[%26] : memref<257xi32, #tpu.memory_space<smem>>
      %cst_21 = arith.constant 0.000000e+00 : f32
      %28 = vector.broadcast %cst_21 : f32 to vector<1x8xf32>
      %29 = arith.subi %27, %24 : i32
      %30 = arith.addi %24, %29 : i32
      %c1_i32_22 = arith.constant 1 : i32
      %31 = scf.for %arg11 = %24 to %30 step %c1_i32_22 iter_args(%arg12 = %28) -> (vector<1x8xf32>)  : i32 {
        %34 = arith.index_cast %arg11 : i32 to index
        %35 = memref.load %arg2[%34] : memref<512xi32, #tpu.memory_space<smem>>
        %36 = arith.index_cast %35 : i32 to index
        %c0_24 = arith.constant 0 : index
        %37 = vector.load %arg3[%36, %c0_24] : memref<256x8xf32, #tpu.memory_space<vmem>>, vector<1x8xf32>
        %38 = arith.addf %arg12, %37 : vector<1x8xf32>
        scf.yield %38 : vector<1x8xf32>
      }
      %32 = arith.index_cast %arg10 : i32 to index
      %c0_23 = arith.constant 0 : index
      %33 = vector.load %arg9[%32, %c0_23] : memref<256x8xf32, #tpu.memory_space<vmem>>, vector<1x8xf32>
      tpu.vector_store %arg9[%32, %c0_23], %31 {strides = array<i32>} : memref<256x8xf32, #tpu.memory_space<vmem>>, vector<1x8xf32>,
    }
    %c256_i32_7 = arith.constant 256 : i32
    %c0_8 = arith.constant 0 : index
    %c0_9 = arith.constant 0 : index
    %11 = vector.load %arg9[%c0_8, %c0_9] : memref<256x8xf32, #tpu.memory_space<vmem>>, vector<256x8xf32>
    %c0_10 = arith.constant 0 : index
    %c0_11 = arith.constant 0 : index
    %12 = vector.load %arg4[%c0_10, %c0_11] : memref<256x1xf32, #tpu.memory_space<vmem>>, vector<256x1xf32>
    %13 = vector.broadcast %12 : vector<256x1xf32> to vector<256x8xf32>
    %14 = arith.mulf %11, %13 : vector<256x8xf32>
    %c0_12 = arith.constant 0 : index
    %c0_13 = arith.constant 0 : index
    %15 = vector.load %arg5[%c0_12, %c0_13] : memref<8x128xf32, #tpu.memory_space<vmem>>, vector<8x128xf32>
    %cst_14 = arith.constant dense<0.000000e+00> : vector<256x128xf32>
    %16 = tpu.matmul %14, %15, %cst_14 {dimension_numbers = #tpu.dot_dimension_numbers<[1], [0], [0], [1], [0, 0, 1, 1], [], []>, precision = #tpu.contract_precision<fp32>} : vector<256x8xf32>, vector<8x128xf32>, vector<256x128xf32> -> vector<256x128xf32>
    %c0_15 = arith.constant 0 : index
    %c0_16 = arith.constant 0 : index
    %17 = vector.load %arg8[%c0_15, %c0_16] : memref<256x128xf32, #tpu.memory_space<vmem>>, vector<256x128xf32>
    %18 = arith.addf %16, %17 : vector<256x128xf32>
    %cst_17 = arith.constant 0.000000e+00 : f32
    %19 = vector.broadcast %cst_17 : f32 to vector<256x128xf32>
    %20 = arith.maximumf %18, %19 : vector<256x128xf32>
    %c0_18 = arith.constant 0 : index
    %c0_19 = arith.constant 0 : index
    %21 = vector.load %arg8[%c0_18, %c0_19] : memref<256x128xf32, #tpu.memory_space<vmem>>, vector<256x128xf32>
    tpu.vector_store %arg8[%c0_18, %c0_19], %20 {strides = array<i32>} : memref<256x128xf32, #tpu.memory_space<vmem>>, vector<256x128xf32>,
    return
  }
  func.func @transform_0(%arg0: i32, %arg1: memref<257xi32, #tpu.memory_space<smem>>, %arg2: memref<512xi32, #tpu.memory_space<smem>>) -> (i32, i32) {
    %c0_i32 = arith.constant 0 : i32
    %c0_i32_0 = arith.constant 0 : i32
    %c0_i32_1 = arith.constant 0 : i32
    return %c0_i32, %c0_i32_0 : i32, i32
  }
  func.func @transform_1(%arg0: i32, %arg1: memref<257xi32, #tpu.memory_space<smem>>, %arg2: memref<512xi32, #tpu.memory_space<smem>>) -> (i32, i32) {
    %c0_i32 = arith.constant 0 : i32
    %c0_i32_0 = arith.constant 0 : i32
    return %arg0, %c0_i32 : i32, i32
  }
  func.func @transform_2(%arg0: i32, %arg1: memref<257xi32, #tpu.memory_space<smem>>, %arg2: memref<512xi32, #tpu.memory_space<smem>>) -> (i32, i32) {
    %c0_i32 = arith.constant 0 : i32
    %c0_i32_0 = arith.constant 0 : i32
    %c0_i32_1 = arith.constant 0 : i32
    return %c0_i32, %c0_i32_0 : i32, i32
  }
  func.func @transform_3(%arg0: i32, %arg1: memref<257xi32, #tpu.memory_space<smem>>, %arg2: memref<512xi32, #tpu.memory_space<smem>>) -> (i32, i32) {
    %c0_i32 = arith.constant 0 : i32
    %c0_i32_0 = arith.constant 0 : i32
    %c0_i32_1 = arith.constant 0 : i32
    return %c0_i32, %c0_i32_0 : i32, i32
  }
  func.func @transform_4(%arg0: i32, %arg1: memref<257xi32, #tpu.memory_space<smem>>, %arg2: memref<512xi32, #tpu.memory_space<smem>>) -> (i32, i32) {
    %c0_i32 = arith.constant 0 : i32
    %c0_i32_0 = arith.constant 0 : i32
    %c0_i32_1 = arith.constant 0 : i32
    return %c0_i32, %c0_i32_0 : i32, i32
  }
  func.func @transform_5(%arg0: i32, %arg1: memref<257xi32, #tpu.memory_space<smem>>, %arg2: memref<512xi32, #tpu.memory_space<smem>>) -> (i32, i32) {
    %c0_i32 = arith.constant 0 : i32
    %c0_i32_0 = arith.constant 0 : i32
    return %arg0, %c0_i32 : i32, i32
  }
}

module attributes {stable_mosaic.version = 11 : i64} {
  func.func @_sage1_kernel(%arg0: i32, %arg1: memref<257xi32, #tpu.memory_space<smem>>, %arg2: memref<512xi32, #tpu.memory_space<smem>>, %arg3: memref<256x8xf32, #tpu.memory_space<vmem>>, %arg4: memref<256x1xf32, #tpu.memory_space<vmem>>, %arg5: memref<8x128xf32, #tpu.memory_space<vmem>>, %arg6: memref<8x128xf32, #tpu.memory_space<vmem>>, %arg7: memref<1x128xf32, #tpu.memory_space<vmem>>, %arg8: memref<256x128xf32, #tpu.memory_space<vmem>>, %arg9: memref<256x8xf32, #tpu.memory_space<vmem>>) attributes {dimension_semantics = [#tpu.dimension_semantics<parallel>], iteration_bounds = array<i64: 1>, scalar_prefetch = 2 : i64, scratch_operands = 1 : i64, tpu.core_type = #tpu.core_type<tc>, window_params = [{pipeline_mode = #tpu.pipeline_mode<synchronous>, transform_indices = @transform_0, window_bounds = array<i64: 256, 8>}, {transform_indices = @transform_1, window_bounds = array<i64: 256, 1>}, {pipeline_mode = #tpu.pipeline_mode<synchronous>, transform_indices = @transform_2, window_bounds = array<i64: 8, 128>}, {pipeline_mode = #tpu.pipeline_mode<synchronous>, transform_indices = @transform_3, window_bounds = array<i64: 8, 128>}, {pipeline_mode = #tpu.pipeline_mode<synchronous>, transform_indices = @transform_4, window_bounds = array<i64: 1, 128>}, {transform_indices = @transform_5, window_bounds = array<i64: 256, 128>}]} {
    %c256_i32 = arith.constant 256 : i32
    %0 = arith.muli %arg0, %c256_i32 : i32
    %1 = tpu.assume_multiple %0, 256 : i32
    %2 = arith.index_cast %1 : i32 to index
    %c0 = arith.constant 0 : index
    %3 = vector.load %arg3[%2, %c0] : memref<256x8xf32, #tpu.memory_space<vmem>>, vector<256x8xf32>
    %c0_0 = arith.constant 0 : index
    %c0_1 = arith.constant 0 : index
    %4 = vector.load %arg6[%c0_0, %c0_1] : memref<8x128xf32, #tpu.memory_space<vmem>>, vector<8x128xf32>
    %cst = arith.constant dense<0.000000e+00> : vector<256x128xf32>
    %5 = tpu.matmul %3, %4, %cst {dimension_numbers = #tpu.dot_dimension_numbers<[1], [0], [0], [1], [0, 0, 1, 1], [], []>, precision = #tpu.contract_precision<fp32>} : vector<256x8xf32>, vector<8x128xf32>, vector<256x128xf32> -> vector<256x128xf32>
    %c0_2 = arith.constant 0 : index
    %c0_3 = arith.constant 0 : index
    %6 = vector.load %arg7[%c0_2, %c0_3] : memref<1x128xf32, #tpu.memory_space<vmem>>, vector<1x128xf32>
    %7 = vector.broadcast %6 : vector<1x128xf32> to vector<256x128xf32>
    %8 = arith.addf %5, %7 : vector<256x128xf32>
    %c0_4 = arith.constant 0 : index
    %c0_5 = arith.constant 0 : index
    %9 = vector.load %arg8[%c0_4, %c0_5] : memref<256x128xf32, #tpu.memory_space<vmem>>, vector<256x128xf32>
    tpu.vector_store %arg8[%c0_4, %c0_5], %8 {strides = array<i32>} : memref<256x128xf32, #tpu.memory_space<vmem>>, vector<256x128xf32>,
    %c0_i32 = arith.constant 0 : i32
    %c256_i32_6 = arith.constant 256 : i32
    %10 = arith.addi %c0_i32, %c256_i32_6 : i32
    %c1_i32 = arith.constant 1 : i32
    scf.for %arg10 = %c0_i32 to %10 step %c1_i32  : i32 {
      %22 = arith.addi %1, %arg10 : i32
      %23 = arith.index_cast %22 : i32 to index
      %24 = memref.load %arg1[%23] : memref<257xi32, #tpu.memory_space<smem>>
      %c1_i32_20 = arith.constant 1 : i32
      %25 = arith.addi %22, %c1_i32_20 : i32
      %26 = arith.index_cast %25 : i32 to index
      %27 = memref.load %arg1[%26] : memref<257xi32, #tpu.memory_space<smem>>
      %cst_21 = arith.constant 0.000000e+00 : f32
      %28 = vector.broadcast %cst_21 : f32 to vector<1x8xf32>
      %29 = arith.subi %27, %24 : i32
      %30 = arith.addi %24, %29 : i32
      %c1_i32_22 = arith.constant 1 : i32
      %31 = scf.for %arg11 = %24 to %30 step %c1_i32_22 iter_args(%arg12 = %28) -> (vector<1x8xf32>)  : i32 {
        %34 = arith.index_cast %arg11 : i32 to index
        %35 = memref.load %arg2[%34] : memref<512xi32, #tpu.memory_space<smem>>
        %36 = arith.index_cast %35 : i32 to index
        %c0_24 = arith.constant 0 : index
        %37 = vector.load %arg3[%36, %c0_24] : memref<256x8xf32, #tpu.memory_space<vmem>>, vector<1x8xf32>
        %38 = arith.addf %arg12, %37 : vector<1x8xf32>
        scf.yield %38 : vector<1x8xf32>
      }
      %32 = arith.index_cast %arg10 : i32 to index
      %c0_23 = arith.constant 0 : index
      %33 = vector.load %arg9[%32, %c0_23] : memref<256x8xf32, #tpu.memory_space<vmem>>, vector<1x8xf32>
      tpu.vector_store %arg9[%32, %c0_23], %31 {strides = array<i32>} : memref<256x8xf32, #tpu.memory_space<vmem>>, vector<1x8xf32>,
    }
    %c256_i32_7 = arith.constant 256 : i32
    %c0_8 = arith.constant 0 : index
    %c0_9 = arith.constant 0 : index
    %11 = vector.load %arg9[%c0_8, %c0_9] : memref<256x8xf32, #tpu.memory_space<vmem>>, vector<256x8xf32>
    %c0_10 = arith.constant 0 : index
    %c0_11 = arith.constant 0 : index
    %12 = vector.load %arg4[%c0_10, %c0_11] : memref<256x1xf32, #tpu.memory_space<vmem>>, vector<256x1xf32>
    %13 = vector.broadcast %12 : vector<256x1xf32> to vector<256x8xf32>
    %14 = arith.mulf %11, %13 : vector<256x8xf32>
    %c0_12 = arith.constant 0 : index
    %c0_13 = arith.constant 0 : index
    %15 = vector.load %arg5[%c0_12, %c0_13] : memref<8x128xf32, #tpu.memory_space<vmem>>, vector<8x128xf32>
    %cst_14 = arith.constant dense<0.000000e+00> : vector<256x128xf32>
    %16 = tpu.matmul %14, %15, %cst_14 {dimension_numbers = #tpu.dot_dimension_numbers<[1], [0], [0], [1], [0, 0, 1, 1], [], []>, precision = #tpu.contract_precision<fp32>} : vector<256x8xf32>, vector<8x128xf32>, vector<256x128xf32> -> vector<256x128xf32>
    %c0_15 = arith.constant 0 : index
    %c0_16 = arith.constant 0 : index
    %17 = vector.load %arg8[%c0_15, %c0_16] : memref<256x128xf32, #tpu.memory_space<vmem>>, vector<256x128xf32>
    %18 = arith.addf %16, %17 : vector<256x128xf32>
    %cst_17 = arith.constant 0.000000e+00 : f32
    %19 = vector.broadcast %cst_17 : f32 to vector<256x128xf32>
    %20 = arith.maximumf %18, %19 : vector<256x128xf32>
    %c0_18 = arith.constant 0 : index
    %c0_19 = arith.constant 0 : index
    %21 = vector.load %arg8[%c0_18, %c0_19] : memref<256x128xf32, #tpu.memory_space<vmem>>, vector<256x128xf32>
    tpu.vector_store %arg8[%c0_18, %c0_19], %20 {strides = array<i32>} : memref<256x128xf32, #tpu.memory_space<vmem>>, vector<256x128xf32>,
    return
  }
  func.func @transform_0(%arg0: i32, %arg1: memref<257xi32, #tpu.memory_space<smem>>, %arg2: memref<512xi32, #tpu.memory_space<smem>>) -> (i32, i32) {
    %c0_i32 = arith.constant 0 : i32
    %c0_i32_0 = arith.constant 0 : i32
    %c0_i32_1 = arith.constant 0 : i32
    return %c0_i32, %c0_i32_0 : i32, i32
  }
  func.func @transform_1(%arg0: i32, %arg1: memref<257xi32, #tpu.memory_space<smem>>, %arg2: memref<512xi32, #tpu.memory_space<smem>>) -> (i32, i32) {
    %c0_i32 = arith.constant 0 : i32
    %c0_i32_0 = arith.constant 0 : i32
    return %arg0, %c0_i32 : i32, i32
  }
  func.func @transform_2(%arg0: i32, %arg1: memref<257xi32, #tpu.memory_space<smem>>, %arg2: memref<512xi32, #tpu.memory_space<smem>>) -> (i32, i32) {
    %c0_i32 = arith.constant 0 : i32
    %c0_i32_0 = arith.constant 0 : i32
    %c0_i32_1 = arith.constant 0 : i32
    return %c0_i32, %c0_i32_0 : i32, i32
  }
  func.func @transform_3(%arg0: i32, %arg1: memref<257xi32, #tpu.memory_space<smem>>, %arg2: memref<512xi32, #tpu.memory_space<smem>>) -> (i32, i32) {
    %c0_i32 = arith.constant 0 : i32
    %c0_i32_0 = arith.constant 0 : i32
    %c0_i32_1 = arith.constant 0 : i32
    return %c0_i32, %c0_i32_0 : i32, i32
  }
  func.func @transform_4(%arg0: i32, %arg1: memref<257xi32, #tpu.memory_space<smem>>, %arg2: memref<512xi32, #tpu.memory_space<smem>>) -> (i32, i32) {
    %c0_i32 = arith.constant 0 : i32
    %c0_i32_0 = arith.constant 0 : i32
    %c0_i32_1 = arith.constant 0 : i32
    return %c0_i32, %c0_i32_0 : i32, i32
  }
  func.func @transform_5(%arg0: i32, %arg1: memref<257xi32, #tpu.memory_space<smem>>, %arg2: memref<512xi32, #tpu.memory_space<smem>>) -> (i32, i32) {
    %c0_i32 = arith.constant 0 : i32
    %c0_i32_0 = arith.constant 0 : i32
    return %arg0, %c0_i32 : i32, i32
  }
}

</mosaic_0001>

<llo_original>
// kernel: tpu_custom_call.1
$region0: #{tpu_custom_call.1}
  #allocation0 [shape = 'u32[]', space=smem, size = 0x4, offset = 0x4, fixed_abs, tag = 'smem constant byte address 0x4 - core index']
  #allocation1 [shape = 'u32[144,128]{1,0:T(1,128)}', space=vmem, size = 0x12000, scoped, tag = 'internal scratch']
  #allocation2 [shape = 'f32[256,8]{1,0:T(8,128)}', space=vmem, size = 0x20000, scoped, tag = 'scratch operand']
  #allocation3 [shape = 's32[1]{0}', space=sflag, size = 0x4, scoped, tag = 'scoped memory for tpu_custom_call.1']
  #allocation4 [shape = 'u8[1536]{0}', space=smem, size = 0x600, scoped, tag = 'prefetched SMEM operand 0']
  #allocation5 [shape = 'u8[2048]{0}', space=smem, size = 0x800, scoped, tag = 'prefetched SMEM operand 1']
  %s0 = inlined_call_operand.vmem [shape: s32[257], index: 0, kind: input, shape index: {}]
  %s1 = inlined_call_operand.vmem [shape: s32[512], index: 1, kind: input, shape index: {}]
  %s2 = inlined_call_operand.vmem [shape: f32[256,8], index: 2, kind: input, shape index: {}]
  %s3 = inlined_call_operand.vmem [shape: f32[256,1], index: 3, kind: input, shape index: {}]
  %s4 = inlined_call_operand.vmem [shape: f32[8,128], index: 4, kind: input, shape index: {}]
  %s5 = inlined_call_operand.vmem [shape: f32[8,128], index: 5, kind: input, shape index: {}]
  %s6 = inlined_call_operand.vmem [shape: f32[1,128], index: 6, kind: input, shape index: {}]
  %s7 = inlined_call_operand.hbm [shape: f32[256,128], index: 7, kind: output, shape index: {}]
  %s8 = sld [smem:[#allocation0]]
  $region44: #{tpu_custom_call.1} parent=0
    _
  %s10 = ssub.s32 1, %s8
  %s11 = scalar_select 0, %s10, %s8
  %s12 = sshll.u32 %s0, 4
  %s13 = int_to_ptr.vmem [resolvable:$true] %s12
  %15 = dma.vmem_to_smem %s13, 48, [#allocation4], [#allocation3]
  %s16 = sshll.u32 %s1, 4
  %s17 = int_to_ptr.vmem [resolvable:$true] %s16
  %19 = dma.vmem_to_smem %s17, 64, [#allocation5], [#allocation3]
  %20 = dma.done [#allocation3], 112
  %21 = sfence
  $region1: #{tpu_custom_call.1} parent=0
    #allocation6 [shape = 'u8[131072]{0}', space=vmem, size = 0x20000, scoped, tag = 'output window, operand 0, single buffered']
    #allocation7 [shape = 's32[1]{0}', space=sflag, size = 0x4, scoped, tag = 'scoped memory for tpu_custom_call.1']
    %22 = vsyncpa [#allocation7], 0
    // Predicated region
    $region2: #{tpu_custom_call.1} parent=1 // pred_check
      _
    $region3: #{tpu_custom_call.1} parent=1 // pred_check_branch
      %24 = sbr.rel (0) target = $region5
    $region4: #{tpu_custom_call.1} parent=1 // pred_region
      _
    $region5: #{tpu_custom_call.1} parent=1 // pred_fallthru
      _
    // Predicated region
    $region6: #{tpu_custom_call.1} parent=1 // pred_check
      _
    $region7: #{tpu_custom_call.1} parent=1 // pred_check_branch
      %26 = sbr.rel (0) target = $region9
    $region8: #{tpu_custom_call.1} parent=1 // pred_region
      _
    $region9: #{tpu_custom_call.1} parent=1 // pred_fallthru
      _
    // Predicated region
    $region10: #{tpu_custom_call.1} parent=1 // pred_check
      _
    $region11: #{tpu_custom_call.1} parent=1 // pred_check_branch
      %28 = sbr.rel (0) target = $region13
    $region12: #{tpu_custom_call.1} parent=1 // pred_region
      _
    $region13: #{tpu_custom_call.1} parent=1 // pred_fallthru
      _
    // Predicated region
    $region14: #{tpu_custom_call.1} parent=1 // pred_check
      _
    $region15: #{tpu_custom_call.1} parent=1 // pred_check_branch
      %30 = sbr.rel (0) target = $region17
    $region16: #{tpu_custom_call.1} parent=1 // pred_region
      _
    $region17: #{tpu_custom_call.1} parent=1 // pred_fallthru
      _
    // Predicated region
    $region18: #{tpu_custom_call.1} parent=1 // pred_check
      _
    $region19: #{tpu_custom_call.1} parent=1 // pred_check_branch
      %32 = sbr.rel (0) target = $region21
    $region20: #{tpu_custom_call.1} parent=1 // pred_region
      _
    $region21: #{tpu_custom_call.1} parent=1 // pred_fallthru
      _
    %s33 = smul.u32 0, 256
    %s34 = scalar_lea.vmem %s2, %s33
    %v35 = vld [vmem:[%s34] sm:$0xff]
    %v36 = vld [vmem:[%s34 + $0x8] sm:$0xff]
    %v37 = vld [vmem:[%s34 + $0x10] sm:$0xff]
    %v38 = vld [vmem:[%s34 + $0x18] sm:$0xff]
    %v39 = vld [vmem:[%s34 + $0x20] sm:$0xff]
    %v40 = vld [vmem:[%s34 + $0x28] sm:$0xff]
    %v41 = vld [vmem:[%s34 + $0x30] sm:$0xff]
    %v42 = vld [vmem:[%s34 + $0x38] sm:$0xff]
    %v43 = vld [vmem:[%s34 + $0x40] sm:$0xff]
    %v44 = vld [vmem:[%s34 + $0x48] sm:$0xff]
    %v45 = vld [vmem:[%s34 + $0x50] sm:$0xff]
    %v46 = vld [vmem:[%s34 + $0x58] sm:$0xff]
    %v47 = vld [vmem:[%s34 + $0x60] sm:$0xff]
    %v48 = vld [vmem:[%s34 + $0x68] sm:$0xff]
    %v49 = vld [vmem:[%s34 + $0x70] sm:$0xff]
    %v50 = vld [vmem:[%s34 + $0x78] sm:$0xff]
    %v51 = vld [vmem:[%s34 + $0x80] sm:$0xff]
    %v52 = vld [vmem:[%s34 + $0x88] sm:$0xff]
    %v53 = vld [vmem:[%s34 + $0x90] sm:$0xff]
    %v54 = vld [vmem:[%s34 + $0x98] sm:$0xff]
    %v55 = vld [vmem:[%s34 + $0xa0] sm:$0xff]
    %v56 = vld [vmem:[%s34 + $0xa8] sm:$0xff]
    %v57 = vld [vmem:[%s34 + $0xb0] sm:$0xff]
    %v58 = vld [vmem:[%s34 + $0xb8] sm:$0xff]
    %v59 = vld [vmem:[%s34 + $0xc0] sm:$0xff]
    %v60 = vld [vmem:[%s34 + $0xc8] sm:$0xff]
    %v61 = vld [vmem:[%s34 + $0xd0] sm:$0xff]
    %v62 = vld [vmem:[%s34 + $0xd8] sm:$0xff]
    %v63 = vld [vmem:[%s34 + $0xe0] sm:$0xff]
    %v64 = vld [vmem:[%s34 + $0xe8] sm:$0xff]
    %v65 = vld [vmem:[%s34 + $0xf0] sm:$0xff]
    %v66 = vld [vmem:[%s34 + $0xf8] sm:$0xff]
    %v67 = vld [vmem:[%s5] sm:$0xff]
    %v68 = vld [vmem:[%s6] sm:$0x1]
    %v70 = vlaneseq
    %v71 = vshrl.u32 %v70, 7
    %v72 = vsub.s32 0, %v71
    %v73 = vrot.slane %v68, %v72
    %vm75 = vcmask 64512
    %v77 = vsel %vm75, %v35, 0
    %v80 = vsel %vm75, %v36, 0
    %v83 = vsel %vm75, %v37, 0
    %v86 = vsel %vm75, %v38, 0
    %v89 = vsel %vm75, %v39, 0
    %v92 = vsel %vm75, %v40, 0
    %v95 = vsel %vm75, %v41, 0
    %v98 = vsel %vm75, %v42, 0
    %v101 = vsel %vm75, %v43, 0
    %v104 = vsel %vm75, %v44, 0
    %v107 = vsel %vm75, %v45, 0
    %v110 = vsel %vm75, %v46, 0
    %v113 = vsel %vm75, %v47, 0
    %v116 = vsel %vm75, %v48, 0
    %v119 = vsel %vm75, %v49, 0
    %v122 = vsel %vm75, %v50, 0
    %v125 = vsel %vm75, %v51, 0
    %v128 = vsel %vm75, %v52, 0
    %v131 = vsel %vm75, %v53, 0
    %v134 = vsel %vm75, %v54, 0
    %v137 = vsel %vm75, %v55, 0
    %v140 = vsel %vm75, %v56, 0
    %v143 = vsel %vm75, %v57, 0
    %v146 = vsel %vm75, %v58, 0
    %v149 = vsel %vm75, %v59, 0
    %v152 = vsel %vm75, %v60, 0
    %v155 = vsel %vm75, %v61, 0
    %v158 = vsel %vm75, %v62, 0
    %v161 = vsel %vm75, %v63, 0
    %v164 = vsel %vm75, %v64, 0
    %v167 = vsel %vm75, %v65, 0
    %v170 = vsel %vm75, %v66, 0
    %172 = vmatprep.subr.mxu0 0.0
    %v173 = vand.u32 %v67, 4294901760
    %174 = vmatpush1.msra.mxu0 %v173
    %175 = vmatprep.subr.mxu0 0.0
    %176 = vmatpush1.msra.mxu0 0.0
    %177 = vmatprep.subr.mxu0 0.0
    %178 = vmatpush1.msra.mxu0 0.0
    %179 = vmatprep.subr.mxu0 0.0
    %180 = vmatpush1.msra.mxu0 0.0
    %181 = vmatprep.subr.mxu0 0.0
    %182 = vmatpush1.msra.mxu0 0.0
    %183 = vmatprep.subr.mxu0 0.0
    %184 = vmatpush1.msra.mxu0 0.0
    %185 = vmatprep.subr.mxu0 0.0
    %186 = vmatpush1.msra.mxu0 0.0
    %187 = vmatprep.subr.mxu0 0.0
    %188 = vmatpush1.msra.mxu0 0.0
    %189 = vmatprep.subr.mxu0 0.0
    %190 = vmatpush1.msra.mxu0 0.0
    %191 = vmatprep.subr.mxu0 0.0
    %192 = vmatpush1.msra.mxu0 0.0
    %193 = vmatprep.subr.mxu0 0.0
    %194 = vmatpush1.msra.mxu0 0.0
    %195 = vmatprep.subr.mxu0 0.0
    %196 = vmatpush1.msra.mxu0 0.0
    %197 = vmatprep.subr.mxu0 0.0
    %198 = vmatpush1.msra.mxu0 0.0
    %199 = vmatprep.subr.mxu0 0.0
    %200 = vmatpush1.msra.mxu0 0.0
    %201 = vmatprep.subr.mxu0 0.0
    %202 = vmatpush1.msra.mxu0 0.0
    %203 = vmatprep.subr.mxu0 0.0
    %204 = vmatpush1.msra.mxu0 0.0
    %205 = vmatprep.subr.mxu0 0.0
    %206 = vmatpush1.msra.mxu0 0.0
    %207 = vmatprep.subr.mxu0 0.0
    %208 = vmatpush1.msra.mxu0 0.0
    %209 = vmatprep.subr.mxu0 0.0
    %210 = vmatpush1.msra.mxu0 0.0
    %211 = vmatprep.subr.mxu0 0.0
    %212 = vmatpush1.msra.mxu0 0.0
    %213 = vmatprep.subr.mxu0 0.0
    %214 = vmatpush1.msra.mxu0 0.0
    %215 = vmatprep.subr.mxu0 0.0
    %216 = vmatpush1.msra.mxu0 0.0
    %217 = vmatprep.subr.mxu0 0.0
    %218 = vmatpush1.msra.mxu0 0.0
    %219 = vmatprep.subr.mxu0 0.0
    %220 = vmatpush1.msra.mxu0 0.0
    %221 = vmatprep.subr.mxu0 0.0
    %222 = vmatpush1.msra.mxu0 0.0
    %223 = vmatprep.subr.mxu0 0.0
    %224 = vmatpush1.msra.mxu0 0.0
    %225 = vmatprep.subr.mxu0 0.0
    %226 = vmatpush1.msra.mxu0 0.0
    %227 = vmatprep.subr.mxu0 0.0
    %228 = vmatpush1.msra.mxu0 0.0
    %229 = vmatprep.subr.mxu0 0.0
    %230 = vmatpush1.msra.mxu0 0.0
    %231 = vmatprep.subr.mxu0 0.0
    %232 = vmatpush1.msra.mxu0 0.0
    %233 = vmatprep.subr.mxu0 0.0
    %234 = vmatpush1.msra.mxu0 0.0
    %235 = vmatprep.subr.mxu0 0.0
    %236 = vmatpush1.msra.mxu0 0.0
    %237 = vmatprep.mubr.f32.mxu0 0.0
    %v238 = vand.u32 %v77, 4294901760
    %v239 = vsub.f32 %v77, %v238
    %v240 = vand.u32 %v239, 4294901760
    %v241 = vsub.f32 %v239, %v240
    %v242 = vand.u32 %v241, 4294901760
    %243 = vmatmul.mubr.f32.gmra.mrb[0].mxu0 %v242
    %v244 = vpop.f32.mrb[0].mxu0
    %v245 = vadd.f32 %v73, %v244
    %v246 = vpop.f32.mrb[0].mxu0
    %247 = vmatprep.mubr.f32.mxu0 0.0
    %v248 = vand.u32 %v80, 4294901760
    %v249 = vsub.f32 %v80, %v248
    %v250 = vand.u32 %v249, 4294901760
    %v251 = vsub.f32 %v249, %v250
    %v252 = vand.u32 %v251, 4294901760
    %253 = vmatmul.mubr.f32.gmra.mrb[0].mxu0 %v252
    %v254 = vpop.f32.mrb[0].mxu0
    %v255 = vadd.f32 %v73, %v254
    %v256 = vpop.f32.mrb[0].mxu0
    %257 = vmatprep.mubr.f32.mxu0 0.0
    %v258 = vand.u32 %v83, 4294901760
    %v259 = vsub.f32 %v83, %v258
    %v260 = vand.u32 %v259, 4294901760
    %v261 = vsub.f32 %v259, %v260
    %v262 = vand.u32 %v261, 4294901760
    %263 = vmatmul.mubr.f32.gmra.mrb[0].mxu0 %v262
    %v264 = vpop.f32.mrb[0].mxu0
    %v265 = vadd.f32 %v73, %v264
    %v266 = vpop.f32.mrb[0].mxu0
    %267 = vmatprep.mubr.f32.mxu0 0.0
    %v268 = vand.u32 %v86, 4294901760
    %v269 = vsub.f32 %v86, %v268
    %v270 = vand.u32 %v269, 4294901760
    %v271 = vsub.f32 %v269, %v270
    %v272 = vand.u32 %v271, 4294901760
    %273 = vmatmul.mubr.f32.gmra.mrb[0].mxu0 %v272
    %v274 = vpop.f32.mrb[0].mxu0
    %v275 = vadd.f32 %v73, %v274
    %v276 = vpop.f32.mrb[0].mxu0
    %277 = vmatprep.mubr.f32.mxu0 0.0
    %v278 = vand.u32 %v89, 4294901760
    %v279 = vsub.f32 %v89, %v278
    %v280 = vand.u32 %v279, 4294901760
    %v281 = vsub.f32 %v279, %v280
    %v282 = vand.u32 %v281, 4294901760
    %283 = vmatmul.mubr.f32.gmra.mrb[0].mxu0 %v282
    %v284 = vpop.f32.mrb[0].mxu0
    %v285 = vadd.f32 %v73, %v284
    %v286 = vpop.f32.mrb[0].mxu0
    %287 = vmatprep.mubr.f32.mxu0 0.0
    %v288 = vand.u32 %v92, 4294901760
    %v289 = vsub.f32 %v92, %v288
    %v290 = vand.u32 %v289, 4294901760
    %v291 = vsub.f32 %v289, %v290
    %v292 = vand.u32 %v291, 4294901760
    %293 = vmatmul.mubr.f32.gmra.mrb[0].mxu0 %v292
    %v294 = vpop.f32.mrb[0].mxu0
    %v295 = vadd.f32 %v73, %v294
    %v296 = vpop.f32.mrb[0].mxu0
    %297 = vmatprep.mubr.f32.mxu0 0.0
    %v298 = vand.u32 %v95, 4294901760
    %v299 = vsub.f32 %v95, %v298
    %v300 = vand.u32 %v299, 4294901760
    %v301 = vsub.f32 %v299, %v300
    %v302 = vand.u32 %v301, 4294901760
    %303 = vmatmul.mubr.f32.gmra.mrb[0].mxu0 %v302
    %v304 = vpop.f32.mrb[0].mxu0
    %v305 = vadd.f32 %v73, %v304
    %v306 = vpop.f32.mrb[0].mxu0
    %307 = vmatprep.mubr.f32.mxu0 0.0
    %v308 = vand.u32 %v98, 4294901760
    %v309 = vsub.f32 %v98, %v308
    %v310 = vand.u32 %v309, 4294901760
    %v311 = vsub.f32 %v309, %v310
    %v312 = vand.u32 %v311, 4294901760
    %313 = vmatmul.mubr.f32.gmra.mrb[0].mxu0 %v312
    %v314 = vpop.f32.mrb[0].mxu0
    %v315 = vadd.f32 %v73, %v314
    %v316 = vpop.f32.mrb[0].mxu0
    %317 = vmatprep.mubr.f32.mxu0 0.0
    %v318 = vand.u32 %v101, 4294901760
    %v319 = vsub.f32 %v101, %v318
    %v320 = vand.u32 %v319, 4294901760
    %v321 = vsub.f32 %v319, %v320
    %v322 = vand.u32 %v321, 4294901760
    %323 = vmatmul.mubr.f32.gmra.mrb[0].mxu0 %v322
    %v324 = vpop.f32.mrb[0].mxu0
    %v325 = vadd.f32 %v73, %v324
    %v326 = vpop.f32.mrb[0].mxu0
    %327 = vmatprep.mubr.f32.mxu0 0.0
    %v328 = vand.u32 %v104, 4294901760
    %v329 = vsub.f32 %v104, %v328
    %v330 = vand.u32 %v329, 4294901760
    %v331 = vsub.f32 %v329, %v330
    %v332 = vand.u32 %v331, 4294901760
    %333 = vmatmul.mubr.f32.gmra.mrb[0].mxu0 %v332
    %v334 = vpop.f32.mrb[0].mxu0
    %v335 = vadd.f32 %v73, %v334
    %v336 = vpop.f32.mrb[0].mxu0
    %337 = vmatprep.mubr.f32.mxu0 0.0
    %v338 = vand.u32 %v107, 4294901760
    %v339 = vsub.f32 %v107, %v338
    %v340 = vand.u32 %v339, 4294901760
    %v341 = vsub.f32 %v339, %v340
    %v342 = vand.u32 %v341, 4294901760
    %343 = vmatmul.mubr.f32.gmra.mrb[0].mxu0 %v342
    %v344 = vpop.f32.mrb[0].mxu0
    %v345 = vadd.f32 %v73, %v344
    %v346 = vpop.f32.mrb[0].mxu0
    %347 = vmatprep.mubr.f32.mxu0 0.0
    %v348 = vand.u32 %v110, 4294901760
    %v349 = vsub.f32 %v110, %v348
    %v350 = vand.u32 %v349, 4294901760
    %v351 = vsub.f32 %v349, %v350
    %v352 = vand.u32 %v351, 4294901760
    %353 = vmatmul.mubr.f32.gmra.mrb[0].mxu0 %v352
    %v354 = vpop.f32.mrb[0].mxu0
    %v355 = vadd.f32 %v73, %v354
    %v356 = vpop.f32.mrb[0].mxu0
    %357 = vmatprep.mubr.f32.mxu0 0.0
    %v358 = vand.u32 %v113, 4294901760
    %v359 = vsub.f32 %v113, %v358
    %v360 = vand.u32 %v359, 4294901760
    %v361 = vsub.f32 %v359, %v360
    %v362 = vand.u32 %v361, 4294901760
    %363 = vmatmul.mubr.f32.gmra.mrb[0].mxu0 %v362
    %v364 = vpop.f32.mrb[0].mxu0
    %v365 = vadd.f32 %v73, %v364
    %v366 = vpop.f32.mrb[0].mxu0
    %367 = vmatprep.mubr.f32.mxu0 0.0
    %v368 = vand.u32 %v116, 4294901760
    %v369 = vsub.f32 %v116, %v368
    %v370 = vand.u32 %v369, 4294901760
    %v371 = vsub.f32 %v369, %v370
    %v372 = vand.u32 %v371, 4294901760
    %373 = vmatmul.mubr.f32.gmra.mrb[0].mxu0 %v372
    %v374 = vpop.f32.mrb[0].mxu0
    %v375 = vadd.f32 %v73, %v374
    %v376 = vpop.f32.mrb[0].mxu0
    %377 = vmatprep.mubr.f32.mxu0 0.0
    %v378 = vand.u32 %v119, 4294901760
    %v379 = vsub.f32 %v119, %v378
    %v380 = vand.u32 %v379, 4294901760
    %v381 = vsub.f32 %v379, %v380
    %v382 = vand.u32 %v381, 4294901760
    %383 = vmatmul.mubr.f32.gmra.mrb[0].mxu0 %v382
    %v384 = vpop.f32.mrb[0].mxu0
    %v385 = vadd.f32 %v73, %v384
    %v386 = vpop.f32.mrb[0].mxu0
    %387 = vmatprep.mubr.f32.mxu0 0.0
    %v388 = vand.u32 %v122, 4294901760
    %v389 = vsub.f32 %v122, %v388
    %v390 = vand.u32 %v389, 4294901760
    %v391 = vsub.f32 %v389, %v390
    %v392 = vand.u32 %v391, 4294901760
    %393 = vmatmul.mubr.f32.gmra.mrb[0].mxu0 %v392
    %v394 = vpop.f32.mrb[0].mxu0
    %v395 = vadd.f32 %v73, %v394
    %v396 = vpop.f32.mrb[0].mxu0
    %397 = vmatprep.mubr.f32.mxu0 0.0
    %v398 = vand.u32 %v125, 4294901760
    %v399 = vsub.f32 %v125, %v398
    %v400 = vand.u32 %v399, 4294901760
    %v401 = vsub.f32 %v399, %v400
    %v402 = vand.u32 %v401, 4294901760
    %403 = vmatmul.mubr.f32.gmra.mrb[0].mxu0 %v402
    %v404 = vpop.f32.mrb[0].mxu0
    %v405 = vadd.f32 %v73, %v404
    %v406 = vpop.f32.mrb[0].mxu0
    %407 = vmatprep.mubr.f32.mxu0 0.0
    %v408 = vand.u32 %v128, 4294901760
    %v409 = vsub.f32 %v128, %v408
    %v410 = vand.u32 %v409, 4294901760
    %v411 = vsub.f32 %v409, %v410
    %v412 = vand.u32 %v411, 4294901760
    %413 = vmatmul.mubr.f32.gmra.mrb[0].mxu0 %v412
    %v414 = vpop.f32.mrb[0].mxu0
    %v415 = vadd.f32 %v73, %v414
    %v416 = vpop.f32.mrb[0].mxu0
    %417 = vmatprep.mubr.f32.mxu0 0.0
    %v418 = vand.u32 %v131, 4294901760
    %v419 = vsub.f32 %v131, %v418
    %v420 = vand.u32 %v419, 4294901760
    %v421 = vsub.f32 %v419, %v420
    %v422 = vand.u32 %v421, 4294901760
    %423 = vmatmul.mubr.f32.gmra.mrb[0].mxu0 %v422
    %v424 = vpop.f32.mrb[0].mxu0
    %v425 = vadd.f32 %v73, %v424
    %v426 = vpop.f32.mrb[0].mxu0
    %427 = vmatprep.mubr.f32.mxu0 0.0
    %v428 = vand.u32 %v134, 4294901760
    %v429 = vsub.f32 %v134, %v428
    %v430 = vand.u32 %v429, 4294901760
    %v431 = vsub.f32 %v429, %v430
    %v432 = vand.u32 %v431, 4294901760
    %433 = vmatmul.mubr.f32.gmra.mrb[0].mxu0 %v432
    %v434 = vpop.f32.mrb[0].mxu0
    %v435 = vadd.f32 %v73, %v434
    %v436 = vpop.f32.mrb[0].mxu0
    %437 = vmatprep.mubr.f32.mxu0 0.0
    %v438 = vand.u32 %v137, 4294901760
    %v439 = vsub.f32 %v137, %v438
    %v440 = vand.u32 %v439, 4294901760
    %v441 = vsub.f32 %v439, %v440
    %v442 = vand.u32 %v441, 4294901760
    %443 = vmatmul.mubr.f32.gmra.mrb[0].mxu0 %v442
    %v444 = vpop.f32.mrb[0].mxu0
    %v445 = vadd.f32 %v73, %v444
    %v446 = vpop.f32.mrb[0].mxu0
    %447 = vmatprep.mubr.f32.mxu0 0.0
    %v448 = vand.u32 %v140, 4294901760
    %v449 = vsub.f32 %v140, %v448
    %v450 = vand.u32 %v449, 4294901760
    %v451 = vsub.f32 %v449, %v450
    %v452 = vand.u32 %v451, 4294901760
    %453 = vmatmul.mubr.f32.gmra.mrb[0].mxu0 %v452
    %v454 = vpop.f32.mrb[0].mxu0
    %v455 = vadd.f32 %v73, %v454
    %v456 = vpop.f32.mrb[0].mxu0
    %457 = vmatprep.mubr.f32.mxu0 0.0
    %v458 = vand.u32 %v143, 4294901760
    %v459 = vsub.f32 %v143, %v458
    %v460 = vand.u32 %v459, 4294901760
    %v461 = vsub.f32 %v459, %v460
    %v462 = vand.u32 %v461, 4294901760
    %463 = vmatmul.mubr.f32.gmra.mrb[0].mxu0 %v462
    %v464 = vpop.f32.mrb[0].mxu0
    %v465 = vadd.f32 %v73, %v464
    %v466 = vpop.f32.mrb[0].mxu0
    %467 = vmatprep.mubr.f32.mxu0 0.0
    %v468 = vand.u32 %v146, 4294901760
    %v469 = vsub.f32 %v146, %v468
    %v470 = vand.u32 %v469, 4294901760
    %v471 = vsub.f32 %v469, %v470
    %v472 = vand.u32 %v471, 4294901760
    %473 = vmatmul.mubr.f32.gmra.mrb[0].mxu0 %v472
    %v474 = vpop.f32.mrb[0].mxu0
    %v475 = vadd.f32 %v73, %v474
    %v476 = vpop.f32.mrb[0].mxu0
    %477 = vmatprep.mubr.f32.mxu0 0.0
    %v478 = vand.u32 %v149, 4294901760
    %v479 = vsub.f32 %v149, %v478
    %v480 = vand.u32 %v479, 4294901760
    %v481 = vsub.f32 %v479, %v480
    %v482 = vand.u32 %v481, 4294901760
    %483 = vmatmul.mubr.f32.gmra.mrb[0].mxu0 %v482
    %v484 = vpop.f32.mrb[0].mxu0
    %v485 = vadd.f32 %v73, %v484
    %v486 = vpop.f32.mrb[0].mxu0
    %487 = vmatprep.mubr.f32.mxu0 0.0
    %v488 = vand.u32 %v152, 4294901760
    %v489 = vsub.f32 %v152, %v488
    %v490 = vand.u32 %v489, 4294901760
    %v491 = vsub.f32 %v489, %v490
    %v492 = vand.u32 %v491, 4294901760
    %493 = vmatmul.mubr.f32.gmra.mrb[0].mxu0 %v492
    %v494 = vpop.f32.mrb[0].mxu0
    %v495 = vadd.f32 %v73, %v494
    %v496 = vpop.f32.mrb[0].mxu0
    %497 = vmatprep.mubr.f32.mxu0 0.0
    %v498 = vand.u32 %v155, 4294901760
    %v499 = vsub.f32 %v155, %v498
    %v500 = vand.u32 %v499, 4294901760
    %v501 = vsub.f32 %v499, %v500
    %v502 = vand.u32 %v501, 4294901760
    %503 = vmatmul.mubr.f32.gmra.mrb[0].mxu0 %v502
    %v504 = vpop.f32.mrb[0].mxu0
    %v505 = vadd.f32 %v73, %v504
    %v506 = vpop.f32.mrb[0].mxu0
    %507 = vmatprep.mubr.f32.mxu0 0.0
    %v508 = vand.u32 %v158, 4294901760
    %v509 = vsub.f32 %v158, %v508
    %v510 = vand.u32 %v509, 4294901760
    %v511 = vsub.f32 %v509, %v510
    %v512 = vand.u32 %v511, 4294901760
    %513 = vmatmul.mubr.f32.gmra.mrb[0].mxu0 %v512
    %v514 = vpop.f32.mrb[0].mxu0
    %v515 = vadd.f32 %v73, %v514
    %v516 = vpop.f32.mrb[0].mxu0
    %517 = vmatprep.mubr.f32.mxu0 0.0
    %v518 = vand.u32 %v161, 4294901760
    %v519 = vsub.f32 %v161, %v518
    %v520 = vand.u32 %v519, 4294901760
    %v521 = vsub.f32 %v519, %v520
    %v522 = vand.u32 %v521, 4294901760
    %523 = vmatmul.mubr.f32.gmra.mrb[0].mxu0 %v522
    %v524 = vpop.f32.mrb[0].mxu0
    %v525 = vadd.f32 %v73, %v524
    %v526 = vpop.f32.mrb[0].mxu0
    %527 = vmatprep.mubr.f32.mxu0 0.0
    %v528 = vand.u32 %v164, 4294901760
    %v529 = vsub.f32 %v164, %v528
    %v530 = vand.u32 %v529, 4294901760
    %v531 = vsub.f32 %v529, %v530
    %v532 = vand.u32 %v531, 4294901760
    %533 = vmatmul.mubr.f32.gmra.mrb[0].mxu0 %v532
    %v534 = vpop.f32.mrb[0].mxu0
    %v535 = vadd.f32 %v73, %v534
    %v536 = vpop.f32.mrb[0].mxu0
    %537 = vmatprep.mubr.f32.mxu0 0.0
    %v538 = vand.u32 %v167, 4294901760
    %v539 = vsub.f32 %v167, %v538
    %v540 = vand.u32 %v539, 4294901760
    %v541 = vsub.f32 %v539, %v540
    %v542 = vand.u32 %v541, 4294901760
    %543 = vmatmul.mubr.f32.gmra.mrb[0].mxu0 %v542
    %v544 = vpop.f32.mrb[0].mxu0
    %v545 = vadd.f32 %v73, %v544
    %v546 = vpop.f32.mrb[0].mxu0
    %547 = vmatprep.mubr.f32.mxu0 0.0
    %v548 = vand.u32 %v170, 4294901760
    %v549 = vsub.f32 %v170, %v548
    %v550 = vand.u32 %v549, 4294901760
    %v551 = vsub.f32 %v549, %v550
    %v552 = vand.u32 %v551, 4294901760
    %553 = vmatmul.mubr.f32.gmra.mrb[0].mxu0 %v552
    %v554 = vpop.f32.mrb[0].mxu0
    %v555 = vadd.f32 %v73, %v554
    %v556 = vpop.f32.mrb[0].mxu0
    %557 = vdwg.mxu0
    %558 = vmatprep.subr.mxu0 0.0
    %v559 = vand.u32 %v67, 4294901760
    %v560 = vsub.f32 %v67, %v559
    %v561 = vand.u32 %v560, 4294901760
    %v562 = vsub.f32 %v560, %v561
    %v563 = vand.u32 %v562, 4294901760
    %564 = vmatpush1.msra.mxu0 %v563
    %565 = vmatprep.subr.mxu0 0.0
    %566 = vmatpush1.msra.mxu0 0.0
    %567 = vmatprep.subr.mxu0 0.0
    %568 = vmatpush1.msra.mxu0 0.0
    %569 = vmatprep.subr.mxu0 0.0
    %570 = vmatpush1.msra.mxu0 0.0
    %571 = vmatprep.subr.mxu0 0.0
    %572 = vmatpush1.msra.mxu0 0.0
    %573 = vmatprep.subr.mxu0 0.0
    %574 = vmatpush1.msra.mxu0 0.0
    %575 = vmatprep.subr.mxu0 0.0
    %576 = vmatpush1.msra.mxu0 0.0
    %577 = vmatprep.subr.mxu0 0.0
    %578 = vmatpush1.msra.mxu0 0.0
    %579 = vmatprep.subr.mxu0 0.0
    %580 = vmatpush1.msra.mxu0 0.0
    %581 = vmatprep.subr.mxu0 0.0
    %582 = vmatpush1.msra.mxu0 0.0
    %583 = vmatprep.subr.mxu0 0.0
    %584 = vmatpush1.msra.mxu0 0.0
    %585 = vmatprep.subr.mxu0 0.0
    %586 = vmatpush1.msra.mxu0 0.0
    %587 = vmatprep.subr.mxu0 0.0
    %588 = vmatpush1.msra.mxu0 0.0
    %589 = vmatprep.subr.mxu0 0.0
    %590 = vmatpush1.msra.mxu0 0.0
    %591 = vmatprep.subr.mxu0 0.0
    %592 = vmatpush1.msra.mxu0 0.0
    %593 = vmatprep.subr.mxu0 0.0
    %594 = vmatpush1.msra.mxu0 0.0
    %595 = vmatprep.subr.mxu0 0.0
    %596 = vmatpush1.msra.mxu0 0.0
    %597 = vmatprep.subr.mxu0 0.0
    %598 = vmatpush1.msra.mxu0 0.0
    %599 = vmatprep.subr.mxu0 0.0
    %600 = vmatpush1.msra.mxu0 0.0
    %601 = vmatprep.subr.mxu0 0.0
    %602 = vmatpush1.msra.mxu0 0.0
    %603 = vmatprep.subr.mxu0 0.0
    %604 = vmatpush1.msra.mxu0 0.0
    %605 = vmatprep.subr.mxu0 0.0
    %606 = vmatpush1.msra.mxu0 0.0
    %607 = vmatprep.subr.mxu0 0.0
    %608 = vmatpush1.msra.mxu0 0.0
    %609 = vmatprep.subr.mxu0 0.0
    %610 = vmatpush1.msra.mxu0 0.0
    %611 = vmatprep.subr.mxu0 0.0
    %612 = vmatpush1.msra.mxu0 0.0
    %613 = vmatprep.subr.mxu0 0.0
    %614 = vmatpush1.msra.mxu0 0.0
    %615 = vmatprep.subr.mxu0 0.0
    %616 = vmatpush1.msra.mxu0 0.0
    %617 = vmatprep.subr.mxu0 0.0
    %618 = vmatpush1.msra.mxu0 0.0
    %619 = vmatprep.subr.mxu0 0.0
    %620 = vmatpush1.msra.mxu0 0.0
    %621 = vmatprep.subr.mxu0 0.0
    %622 = vmatpush1.msra.mxu0 0.0
    %623 = vmatprep.subr.mxu0 0.0
    %624 = vmatpush1.msra.mxu0 0.0
    %625 = vmatprep.subr.mxu0 0.0
    %626 = vmatpush1.msra.mxu0 0.0
    %627 = vmatprep.mubr.f32.mxu0 0.0
    %v628 = vand.u32 %v77, 4294901760
    %629 = vmatmul.mubr.f32.gmra.mrb[0].mxu0 %v628
    %v630 = vpop.f32.mrb[0].mxu0
    %v631 = vadd.f32 %v245, %v630
    %v632 = vpop.f32.mrb[0].mxu0
    %633 = vmatprep.mubr.f32.mxu0 0.0
    %v634 = vand.u32 %v80, 4294901760
    %635 = vmatmul.mubr.f32.gmra.mrb[0].mxu0 %v634
    %v636 = vpop.f32.mrb[0].mxu0
    %v637 = vadd.f32 %v255, %v636
    %v638 = vpop.f32.mrb[0].mxu0
    %639 = vmatprep.mubr.f32.mxu0 0.0
    %v640 = vand.u32 %v83, 4294901760
    %641 = vmatmul.mubr.f32.gmra.mrb[0].mxu0 %v640
    %v642 = vpop.f32.mrb[0].mxu0
    %v643 = vadd.f32 %v265, %v642
    %v644 = vpop.f32.mrb[0].mxu0
    %645 = vmatprep.mubr.f32.mxu0 0.0
    %v646 = vand.u32 %v86, 4294901760
    %647 = vmatmul.mubr.f32.gmra.mrb[0].mxu0 %v646
    %v648 = vpop.f32.mrb[0].mxu0
    %v649 = vadd.f32 %v275, %v648
    %v650 = vpop.f32.mrb[0].mxu0
    %651 = vmatprep.mubr.f32.mxu0 0.0
    %v652 = vand.u32 %v89, 4294901760
    %653 = vmatmul.mubr.f32.gmra.mrb[0].mxu0 %v652
    %v654 = vpop.f32.mrb[0].mxu0
    %v655 = vadd.f32 %v285, %v654
    %v656 = vpop.f32.mrb[0].mxu0
    %657 = vmatprep.mubr.f32.mxu0 0.0
    %v658 = vand.u32 %v92, 4294901760
    %659 = vmatmul.mubr.f32.gmra.mrb[0].mxu0 %v658
    %v660 = vpop.f32.mrb[0].mxu0
    %v661 = vadd.f32 %v295, %v660
    %v662 = vpop.f32.mrb[0].mxu0
    %663 = vmatprep.mubr.f32.mxu0 0.0
    %v664 = vand.u32 %v95, 4294901760
    %665 = vmatmul.mubr.f32.gmra.mrb[0].mxu0 %v664
    %v666 = vpop.f32.mrb[0].mxu0
    %v667 = vadd.f32 %v305, %v666
    %v668 = vpop.f32.mrb[0].mxu0
    %669 = vmatprep.mubr.f32.mxu0 0.0
    %v670 = vand.u32 %v98, 4294901760
    %671 = vmatmul.mubr.f32.gmra.mrb[0].mxu0 %v670
    %v672 = vpop.f32.mrb[0].mxu0
    %v673 = vadd.f32 %v315, %v672
    %v674 = vpop.f32.mrb[0].mxu0
    %675 = vmatprep.mubr.f32.mxu0 0.0
    %v676 = vand.u32 %v101, 4294901760
    %677 = vmatmul.mubr.f32.gmra.mrb[0].mxu0 %v676
    %v678 = vpop.f32.mrb[0].mxu0
    %v679 = vadd.f32 %v325, %v678
    %v680 = vpop.f32.mrb[0].mxu0
    %681 = vmatprep.mubr.f32.mxu0 0.0
    %v682 = vand.u32 %v104, 4294901760
    %683 = vmatmul.mubr.f32.gmra.mrb[0].mxu0 %v682
    %v684 = vpop.f32.mrb[0].mxu0
    %v685 = vadd.f32 %v335, %v684
    %v686 = vpop.f32.mrb[0].mxu0
    %687 = vmatprep.mubr.f32.mxu0 0.0
    %v688 = vand.u32 %v107, 4294901760
    %689 = vmatmul.mubr.f32.gmra.mrb[0].mxu0 %v688
    %v690 = vpop.f32.mrb[0].mxu0
    %v691 = vadd.f32 %v345, %v690
    %v692 = vpop.f32.mrb[0].mxu0
    %693 = vmatprep.mubr.f32.mxu0 0.0
    %v694 = vand.u32 %v110, 4294901760
    %695 = vmatmul.mubr.f32.gmra.mrb[0].mxu0 %v694
    %v696 = vpop.f32.mrb[0].mxu0
    %v697 = vadd.f32 %v355, %v696
    %v698 = vpop.f32.mrb[0].mxu0
    %699 = vmatprep.mubr.f32.mxu0 0.0
    %v700 = vand.u32 %v113, 4294901760
    %701 = vmatmul.mubr.f32.gmra.mrb[0].mxu0 %v700
    %v702 = vpop.f32.mrb[0].mxu0
    %v703 = vadd.f32 %v365, %v702
    %v704 = vpop.f32.mrb[0].mxu0
    %705 = vmatprep.mubr.f32.mxu0 0.0
    %v706 = vand.u32 %v116, 4294901760
    %707 = vmatmul.mubr.f32.gmra.mrb[0].mxu0 %v706
    %v708 = vpop.f32.mrb[0].mxu0
    %v709 = vadd.f32 %v375, %v708
    %v710 = vpop.f32.mrb[0].mxu0
    %711 = vmatprep.mubr.f32.mxu0 0.0
    %v712 = vand.u32 %v119, 4294901760
    %713 = vmatmul.mubr.f32.gmra.mrb[0].mxu0 %v712
    %v714 = vpop.f32.mrb[0].mxu0
    %v715 = vadd.f32 %v385, %v714
    %v716 = vpop.f32.mrb[0].mxu0
    %717 = vmatprep.mubr.f32.mxu0 0.0
    %v718 = vand.u32 %v122, 4294901760
    %719 = vmatmul.mubr.f32.gmra.mrb[0].mxu0 %v718
    %v720 = vpop.f32.mrb[0].mxu0
    %v721 = vadd.f32 %v395, %v720
    %v722 = vpop.f32.mrb[0].mxu0
    %723 = vmatprep.mubr.f32.mxu0 0.0
    %v724 = vand.u32 %v125, 4294901760
    %725 = vmatmul.mubr.f32.gmra.mrb[0].mxu0 %v724
    %v726 = vpop.f32.mrb[0].mxu0
    %v727 = vadd.f32 %v405, %v726
    %v728 = vpop.f32.mrb[0].mxu0
    %729 = vmatprep.mubr.f32.mxu0 0.0
    %v730 = vand.u32 %v128, 4294901760
    %731 = vmatmul.mubr.f32.gmra.mrb[0].mxu0 %v730
    %v732 = vpop.f32.mrb[0].mxu0
    %v733 = vadd.f32 %v415, %v732
    %v734 = vpop.f32.mrb[0].mxu0
    %735 = vmatprep.mubr.f32.mxu0 0.0
    %v736 = vand.u32 %v131, 4294901760
    %737 = vmatmul.mubr.f32.gmra.mrb[0].mxu0 %v736
    %v738 = vpop.f32.mrb[0].mxu0
    %v739 = vadd.f32 %v425, %v738
    %v740 = vpop.f32.mrb[0].mxu0
    %741 = vmatprep.mubr.f32.mxu0 0.0
    %v742 = vand.u32 %v134, 4294901760
    %743 = vmatmul.mubr.f32.gmra.mrb[0].mxu0 %v742
    %v744 = vpop.f32.mrb[0].mxu0
    %v745 = vadd.f32 %v435, %v744
    %v746 = vpop.f32.mrb[0].mxu0
    %747 = vmatprep.mubr.f32.mxu0 0.0
    %v748 = vand.u32 %v137, 4294901760
    %749 = vmatmul.mubr.f32.gmra.mrb[0].mxu0 %v748
    %v750 = vpop.f32.mrb[0].mxu0
    %v751 = vadd.f32 %v445, %v750
    %v752 = vpop.f32.mrb[0].mxu0
    %753 = vmatprep.mubr.f32.mxu0 0.0
    %v754 = vand.u32 %v140, 4294901760
    %755 = vmatmul.mubr.f32.gmra.mrb[0].mxu0 %v754
    %v756 = vpop.f32.mrb[0].mxu0
    %v757 = vadd.f32 %v455, %v756
    %v758 = vpop.f32.mrb[0].mxu0
    %759 = vmatprep.mubr.f32.mxu0 0.0
    %v760 = vand.u32 %v143, 4294901760
    %761 = vmatmul.mubr.f32.gmra.mrb[0].mxu0 %v760
    %v762 = vpop.f32.mrb[0].mxu0
    %v763 = vadd.f32 %v465, %v762
    %v764 = vpop.f32.mrb[0].mxu0
    %765 = vmatprep.mubr.f32.mxu0 0.0
    %v766 = vand.u32 %v146, 4294901760
    %767 = vmatmul.mubr.f32.gmra.mrb[0].mxu0 %v766
    %v768 = vpop.f32.mrb[0].mxu0
    %v769 = vadd.f32 %v475, %v768
    %v770 = vpop.f32.mrb[0].mxu0
    %771 = vmatprep.mubr.f32.mxu0 0.0
    %v772 = vand.u32 %v149, 4294901760
    %773 = vmatmul.mubr.f32.gmra.mrb[0].mxu0 %v772
    %v774 = vpop.f32.mrb[0].mxu0
    %v775 = vadd.f32 %v485, %v774
    %v776 = vpop.f32.mrb[0].mxu0
    %777 = vmatprep.mubr.f32.mxu0 0.0
    %v778 = vand.u32 %v152, 4294901760
    %779 = vmatmul.mubr.f32.gmra.mrb[0].mxu0 %v778
    %v780 = vpop.f32.mrb[0].mxu0
    %v781 = vadd.f32 %v495, %v780
    %v782 = vpop.f32.mrb[0].mxu0
    %783 = vmatprep.mubr.f32.mxu0 0.0
    %v784 = vand.u32 %v155, 4294901760
    %785 = vmatmul.mubr.f32.gmra.mrb[0].mxu0 %v784
    %v786 = vpop.f32.mrb[0].mxu0
    %v787 = vadd.f32 %v505, %v786
    %v788 = vpop.f32.mrb[0].mxu0
    %789 = vmatprep.mubr.f32.mxu0 0.0
    %v790 = vand.u32 %v158, 4294901760
    %791 = vmatmul.mubr.f32.gmra.mrb[0].mxu0 %v790
    %v792 = vpop.f32.mrb[0].mxu0
    %v793 = vadd.f32 %v515, %v792
    %v794 = vpop.f32.mrb[0].mxu0
    %795 = vmatprep.mubr.f32.mxu0 0.0
    %v796 = vand.u32 %v161, 4294901760
    %797 = vmatmul.mubr.f32.gmra.mrb[0].mxu0 %v796
    %v798 = vpop.f32.mrb[0].mxu0
    %v799 = vadd.f32 %v525, %v798
    %v800 = vpop.f32.mrb[0].mxu0
    %801 = vmatprep.mubr.f32.mxu0 0.0
    %v802 = vand.u32 %v164, 4294901760
    %803 = vmatmul.mubr.f32.gmra.mrb[0].mxu0 %v802
    %v804 = vpop.f32.mrb[0].mxu0
    %v805 = vadd.f32 %v535, %v804
    %v806 = vpop.f32.mrb[0].mxu0
    %807 = vmatprep.mubr.f32.mxu0 0.0
    %v808 = vand.u32 %v167, 4294901760
    %809 = vmatmul.mubr.f32.gmra.mrb[0].mxu0 %v808
    %v810 = vpop.f32.mrb[0].mxu0
    %v811 = vadd.f32 %v545, %v810
    %v812 = vpop.f32.mrb[0].mxu0
    %813 = vmatprep.mubr.f32.mxu0 0.0
    %v814 = vand.u32 %v170, 4294901760
    %815 = vmatmul.mubr.f32.gmra.mrb[0].mxu0 %v814
    %v816 = vpop.f32.mrb[0].mxu0
    %v817 = vadd.f32 %v555, %v816
    %v818 = vpop.f32.mrb[0].mxu0
    %819 = vdwg.mxu0
    %820 = vmatprep.subr.mxu0 0.0
    %v821 = vand.u32 %v67, 4294901760
    %v822 = vsub.f32 %v67, %v821
    %823 = vmatpush1.msra.mxu0 %v822
    %824 = vmatprep.subr.mxu0 0.0
    %825 = vmatpush1.msra.mxu0 0.0
    %826 = vmatprep.subr.mxu0 0.0
    %827 = vmatpush1.msra.mxu0 0.0
    %828 = vmatprep.subr.mxu0 0.0
    %829 = vmatpush1.msra.mxu0 0.0
    %830 = vmatprep.subr.mxu0 0.0
    %831 = vmatpush1.msra.mxu0 0.0
    %832 = vmatprep.subr.mxu0 0.0
    %833 = vmatpush1.msra.mxu0 0.0
    %834 = vmatprep.subr.mxu0 0.0
    %835 = vmatpush1.msra.mxu0 0.0
    %836 = vmatprep.subr.mxu0 0.0
    %837 = vmatpush1.msra.mxu0 0.0
    %838 = vmatprep.subr.mxu0 0.0
    %839 = vmatpush1.msra.mxu0 0.0
    %840 = vmatprep.subr.mxu0 0.0
    %841 = vmatpush1.msra.mxu0 0.0
    %842 = vmatprep.subr.mxu0 0.0
    %843 = vmatpush1.msra.mxu0 0.0
    %844 = vmatprep.subr.mxu0 0.0
    %845 = vmatpush1.msra.mxu0 0.0
    %846 = vmatprep.subr.mxu0 0.0
    %847 = vmatpush1.msra.mxu0 0.0
    %848 = vmatprep.subr.mxu0 0.0
    %849 = vmatpush1.msra.mxu0 0.0
    %850 = vmatprep.subr.mxu0 0.0
    %851 = vmatpush1.msra.mxu0 0.0
    %852 = vmatprep.subr.mxu0 0.0
    %853 = vmatpush1.msra.mxu0 0.0
    %854 = vmatprep.subr.mxu0 0.0
    %855 = vmatpush1.msra.mxu0 0.0
    %856 = vmatprep.subr.mxu0 0.0
    %857 = vmatpush1.msra.mxu0 0.0
    %858 = vmatprep.subr.mxu0 0.0
    %859 = vmatpush1.msra.mxu0 0.0
    %860 = vmatprep.subr.mxu0 0.0
    %861 = vmatpush1.msra.mxu0 0.0
    %862 = vmatprep.subr.mxu0 0.0
    %863 = vmatpush1.msra.mxu0 0.0
    %864 = vmatprep.subr.mxu0 0.0
    %865 = vmatpush1.msra.mxu0 0.0
    %866 = vmatprep.subr.mxu0 0.0
    %867 = vmatpush1.msra.mxu0 0.0
    %868 = vmatprep.subr.mxu0 0.0
    %869 = vmatpush1.msra.mxu0 0.0
    %870 = vmatprep.subr.mxu0 0.0
    %871 = vmatpush1.msra.mxu0 0.0
    %872 = vmatprep.subr.mxu0 0.0
    %873 = vmatpush1.msra.mxu0 0.0
    %874 = vmatprep.subr.mxu0 0.0
    %875 = vmatpush1.msra.mxu0 0.0
    %876 = vmatprep.subr.mxu0 0.0
    %877 = vmatpush1.msra.mxu0 0.0
    %878 = vmatprep.subr.mxu0 0.0
    %879 = vmatpush1.msra.mxu0 0.0
    %880 = vmatprep.subr.mxu0 0.0
    %881 = vmatpush1.msra.mxu0 0.0
    %882 = vmatprep.subr.mxu0 0.0
    %883 = vmatpush1.msra.mxu0 0.0
    %884 = vmatprep.subr.mxu0 0.0
    %885 = vmatpush1.msra.mxu0 0.0
    %886 = vmatprep.mubr.f32.mxu0 0.0
    %v887 = vand.u32 %v77, 4294901760
    %v888 = vsub.f32 %v77, %v887
    %889 = vmatmul.mubr.f32.gmra.mrb[0].mxu0 %v888
    %v890 = vpop.f32.mrb[0].mxu0
    %v891 = vadd.f32 %v631, %v890
    %v892 = vpop.f32.mrb[0].mxu0
    %893 = vmatprep.mubr.f32.mxu0 0.0
    %v894 = vand.u32 %v80, 4294901760
    %v895 = vsub.f32 %v80, %v894
    %896 = vmatmul.mubr.f32.gmra.mrb[0].mxu0 %v895
    %v897 = vpop.f32.mrb[0].mxu0
    %v898 = vadd.f32 %v637, %v897
    %v899 = vpop.f32.mrb[0].mxu0
    %900 = vmatprep.mubr.f32.mxu0 0.0
    %v901 = vand.u32 %v83, 4294901760
    %v902 = vsub.f32 %v83, %v901
    %903 = vmatmul.mubr.f32.gmra.mrb[0].mxu0 %v902
    %v904 = vpop.f32.mrb[0].mxu0
    %v905 = vadd.f32 %v643, %v904
    %v906 = vpop.f32.mrb[0].mxu0
    %907 = vmatprep.mubr.f32.mxu0 0.0
    %v908 = vand.u32 %v86, 4294901760
    %v909 = vsub.f32 %v86, %v908
    %910 = vmatmul.mubr.f32.gmra.mrb[0].mxu0 %v909
    %v911 = vpop.f32.mrb[0].mxu0
    %v912 = vadd.f32 %v649, %v911
    %v913 = vpop.f32.mrb[0].mxu0
    %914 = vmatprep.mubr.f32.mxu0 0.0
    %v915 = vand.u32 %v89, 4294901760
    %v916 = vsub.f32 %v89, %v915
    %917 = vmatmul.mubr.f32.gmra.mrb[0].mxu0 %v916
    %v918 = vpop.f32.mrb[0].mxu0
    %v919 = vadd.f32 %v655, %v918
    %v920 = vpop.f32.mrb[0].mxu0
    %921 = vmatprep.mubr.f32.mxu0 0.0
    %v922 = vand.u32 %v92, 4294901760
    %v923 = vsub.f32 %v92, %v922
    %924 = vmatmul.mubr.f32.gmra.mrb[0].mxu0 %v923
    %v925 = vpop.f32.mrb[0].mxu0
    %v926 = vadd.f32 %v661, %v925
    %v927 = vpop.f32.mrb[0].mxu0
    %928 = vmatprep.mubr.f32.mxu0 0.0
    %v929 = vand.u32 %v95, 4294901760
    %v930 = vsub.f32 %v95, %v929
    %931 = vmatmul.mubr.f32.gmra.mrb[0].mxu0 %v930
    %v932 = vpop.f32.mrb[0].mxu0
    %v933 = vadd.f32 %v667, %v932
    %v934 = vpop.f32.mrb[0].mxu0
    %935 = vmatprep.mubr.f32.mxu0 0.0
    %v936 = vand.u32 %v98, 4294901760
    %v937 = vsub.f32 %v98, %v936
    %938 = vmatmul.mubr.f32.gmra.mrb[0].mxu0 %v937
    %v939 = vpop.f32.mrb[0].mxu0
    %v940 = vadd.f32 %v673, %v939
    %v941 = vpop.f32.mrb[0].mxu0
    %942 = vmatprep.mubr.f32.mxu0 0.0
    %v943 = vand.u32 %v101, 4294901760
    %v944 = vsub.f32 %v101, %v943
    %945 = vmatmul.mubr.f32.gmra.mrb[0].mxu0 %v944
    %v946 = vpop.f32.mrb[0].mxu0
    %v947 = vadd.f32 %v679, %v946
    %v948 = vpop.f32.mrb[0].mxu0
    %949 = vmatprep.mubr.f32.mxu0 0.0
    %v950 = vand.u32 %v104, 4294901760
    %v951 = vsub.f32 %v104, %v950
    %952 = vmatmul.mubr.f32.gmra.mrb[0].mxu0 %v951
    %v953 = vpop.f32.mrb[0].mxu0
    %v954 = vadd.f32 %v685, %v953
    %v955 = vpop.f32.mrb[0].mxu0
    %956 = vmatprep.mubr.f32.mxu0 0.0
    %v957 = vand.u32 %v107, 4294901760
    %v958 = vsub.f32 %v107, %v957
    %959 = vmatmul.mubr.f32.gmra.mrb[0].mxu0 %v958
    %v960 = vpop.f32.mrb[0].mxu0
    %v961 = vadd.f32 %v691, %v960
    %v962 = vpop.f32.mrb[0].mxu0
    %963 = vmatprep.mubr.f32.mxu0 0.0
    %v964 = vand.u32 %v110, 4294901760
    %v965 = vsub.f32 %v110, %v964
    %966 = vmatmul.mubr.f32.gmra.mrb[0].mxu0 %v965
    %v967 = vpop.f32.mrb[0].mxu0
    %v968 = vadd.f32 %v697, %v967
    %v969 = vpop.f32.mrb[0].mxu0
    %970 = vmatprep.mubr.f32.mxu0 0.0
    %v971 = vand.u32 %v113, 4294901760
    %v972 = vsub.f32 %v113, %v971
    %973 = vmatmul.mubr.f32.gmra.mrb[0].mxu0 %v972
    %v974 = vpop.f32.mrb[0].mxu0
    %v975 = vadd.f32 %v703, %v974
    %v976 = vpop.f32.mrb[0].mxu0
    %977 = vmatprep.mubr.f32.mxu0 0.0
    %v978 = vand.u32 %v116, 4294901760
    %v979 = vsub.f32 %v116, %v978
    %980 = vmatmul.mubr.f32.gmra.mrb[0].mxu0 %v979
    %v981 = vpop.f32.mrb[0].mxu0
    %v982 = vadd.f32 %v709, %v981
    %v983 = vpop.f32.mrb[0].mxu0
    %984 = vmatprep.mubr.f32.mxu0 0.0
    %v985 = vand.u32 %v119, 4294901760
    %v986 = vsub.f32 %v119, %v985
    %987 = vmatmul.mubr.f32.gmra.mrb[0].mxu0 %v986
    %v988 = vpop.f32.mrb[0].mxu0
    %v989 = vadd.f32 %v715, %v988
    %v990 = vpop.f32.mrb[0].mxu0
    %991 = vmatprep.mubr.f32.mxu0 0.0
    %v992 = vand.u32 %v122, 4294901760
    %v993 = vsub.f32 %v122, %v992
    %994 = vmatmul.mubr.f32.gmra.mrb[0].mxu0 %v993
    %v995 = vpop.f32.mrb[0].mxu0
    %v996 = vadd.f32 %v721, %v995
    %v997 = vpop.f32.mrb[0].mxu0
    %998 = vmatprep.mubr.f32.mxu0 0.0
    %v999 = vand.u32 %v125, 4294901760
    %v1000 = vsub.f32 %v125, %v999
    %1001 = vmatmul.mubr.f32.gmra.mrb[0].mxu0 %v1000
    %v1002 = vpop.f32.mrb[0].mxu0
    %v1003 = vadd.f32 %v727, %v1002
    %v1004 = vpop.f32.mrb[0].mxu0
    %1005 = vmatprep.mubr.f32.mxu0 0.0
    %v1006 = vand.u32 %v128, 4294901760
    %v1007 = vsub.f32 %v128, %v1006
    %1008 = vmatmul.mubr.f32.gmra.mrb[0].mxu0 %v1007
    %v1009 = vpop.f32.mrb[0].mxu0
    %v1010 = vadd.f32 %v733, %v1009
    %v1011 = vpop.f32.mrb[0].mxu0
    %1012 = vmatprep.mubr.f32.mxu0 0.0
    %v1013 = vand.u32 %v131, 4294901760
    %v1014 = vsub.f32 %v131, %v1013
    %1015 = vmatmul.mubr.f32.gmra.mrb[0].mxu0 %v1014
    %v1016 = vpop.f32.mrb[0].mxu0
    %v1017 = vadd.f32 %v739, %v1016
    %v1018 = vpop.f32.mrb[0].mxu0
    %1019 = vmatprep.mubr.f32.mxu0 0.0
    %v1020 = vand.u32 %v134, 4294901760
    %v1021 = vsub.f32 %v134, %v1020
    %1022 = vmatmul.mubr.f32.gmra.mrb[0].mxu0 %v1021
    %v1023 = vpop.f32.mrb[0].mxu0
    %v1024 = vadd.f32 %v745, %v1023
    %v1025 = vpop.f32.mrb[0].mxu0
    %1026 = vmatprep.mubr.f32.mxu0 0.0
    %v1027 = vand.u32 %v137, 4294901760
    %v1028 = vsub.f32 %v137, %v1027
    %1029 = vmatmul.mubr.f32.gmra.mrb[0].mxu0 %v1028
    %v1030 = vpop.f32.mrb[0].mxu0
    %v1031 = vadd.f32 %v751, %v1030
    %v1032 = vpop.f32.mrb[0].mxu0
    %1033 = vmatprep.mubr.f32.mxu0 0.0
    %v1034 = vand.u32 %v140, 4294901760
    %v1035 = vsub.f32 %v140, %v1034
    %1036 = vmatmul.mubr.f32.gmra.mrb[0].mxu0 %v1035
    %v1037 = vpop.f32.mrb[0].mxu0
    %v1038 = vadd.f32 %v757, %v1037
    %v1039 = vpop.f32.mrb[0].mxu0
    %1040 = vmatprep.mubr.f32.mxu0 0.0
    %v1041 = vand.u32 %v143, 4294901760
    %v1042 = vsub.f32 %v143, %v1041
    %1043 = vmatmul.mubr.f32.gmra.mrb[0].mxu0 %v1042
    %v1044 = vpop.f32.mrb[0].mxu0
    %v1045 = vadd.f32 %v763, %v1044
    %v1046 = vpop.f32.mrb[0].mxu0
    %1047 = vmatprep.mubr.f32.mxu0 0.0
    %v1048 = vand.u32 %v146, 4294901760
    %v1049 = vsub.f32 %v146, %v1048
    %1050 = vmatmul.mubr.f32.gmra.mrb[0].mxu0 %v1049
    %v1051 = vpop.f32.mrb[0].mxu0
    %v1052 = vadd.f32 %v769, %v1051
    %v1053 = vpop.f32.mrb[0].mxu0
    %1054 = vmatprep.mubr.f32.mxu0 0.0
    %v1055 = vand.u32 %v149, 4294901760
    %v1056 = vsub.f32 %v149, %v1055
    %1057 = vmatmul.mubr.f32.gmra.mrb[0].mxu0 %v1056
    %v1058 = vpop.f32.mrb[0].mxu0
    %v1059 = vadd.f32 %v775, %v1058
    %v1060 = vpop.f32.mrb[0].mxu0
    %1061 = vmatprep.mubr.f32.mxu0 0.0
    %v1062 = vand.u32 %v152, 4294901760
    %v1063 = vsub.f32 %v152, %v1062
    %1064 = vmatmul.mubr.f32.gmra.mrb[0].mxu0 %v1063
    %v1065 = vpop.f32.mrb[0].mxu0
    %v1066 = vadd.f32 %v781, %v1065
    %v1067 = vpop.f32.mrb[0].mxu0
    %1068 = vmatprep.mubr.f32.mxu0 0.0
    %v1069 = vand.u32 %v155, 4294901760
    %v1070 = vsub.f32 %v155, %v1069
    %1071 = vmatmul.mubr.f32.gmra.mrb[0].mxu0 %v1070
    %v1072 = vpop.f32.mrb[0].mxu0
    %v1073 = vadd.f32 %v787, %v1072
    %v1074 = vpop.f32.mrb[0].mxu0
    %1075 = vmatprep.mubr.f32.mxu0 0.0
    %v1076 = vand.u32 %v158, 4294901760
    %v1077 = vsub.f32 %v158, %v1076
    %1078 = vmatmul.mubr.f32.gmra.mrb[0].mxu0 %v1077
    %v1079 = vpop.f32.mrb[0].mxu0
    %v1080 = vadd.f32 %v793, %v1079
    %v1081 = vpop.f32.mrb[0].mxu0
    %1082 = vmatprep.mubr.f32.mxu0 0.0
    %v1083 = vand.u32 %v161, 4294901760
    %v1084 = vsub.f32 %v161, %v1083
    %1085 = vmatmul.mubr.f32.gmra.mrb[0].mxu0 %v1084
    %v1086 = vpop.f32.mrb[0].mxu0
    %v1087 = vadd.f32 %v799, %v1086
    %v1088 = vpop.f32.mrb[0].mxu0
    %1089 = vmatprep.mubr.f32.mxu0 0.0
    %v1090 = vand.u32 %v164, 4294901760
    %v1091 = vsub.f32 %v164, %v1090
    %1092 = vmatmul.mubr.f32.gmra.mrb[0].mxu0 %v1091
    %v1093 = vpop.f32.mrb[0].mxu0
    %v1094 = vadd.f32 %v805, %v1093
    %v1095 = vpop.f32.mrb[0].mxu0
    %1096 = vmatprep.mubr.f32.mxu0 0.0
    %v1097 = vand.u32 %v167, 4294901760
    %v1098 = vsub.f32 %v167, %v1097
    %1099 = vmatmul.mubr.f32.gmra.mrb[0].mxu0 %v1098
    %v1100 = vpop.f32.mrb[0].mxu0
    %v1101 = vadd.f32 %v811, %v1100
    %v1102 = vpop.f32.mrb[0].mxu0
    %1103 = vmatprep.mubr.f32.mxu0 0.0
    %v1104 = vand.u32 %v170, 4294901760
    %v1105 = vsub.f32 %v170, %v1104
    %1106 = vmatmul.mubr.f32.gmra.mrb[0].mxu0 %v1105
    %v1107 = vpop.f32.mrb[0].mxu0
    %v1108 = vadd.f32 %v817, %v1107
    %v1109 = vpop.f32.mrb[0].mxu0
    %1110 = vdwg.mxu0
    %1111 = vmatprep.subr.mxu0 0.0
    %v1112 = vand.u32 %v67, 4294901760
    %1113 = vmatpush1.msra.mxu0 %v1112
    %1114 = vmatprep.subr.mxu0 0.0
    %1115 = vmatpush1.msra.mxu0 0.0
    %1116 = vmatprep.subr.mxu0 0.0
    %1117 = vmatpush1.msra.mxu0 0.0
    %1118 = vmatprep.subr.mxu0 0.0
    %1119 = vmatpush1.msra.mxu0 0.0
    %1120 = vmatprep.subr.mxu0 0.0
    %1121 = vmatpush1.msra.mxu0 0.0
    %1122 = vmatprep.subr.mxu0 0.0
    %1123 = vmatpush1.msra.mxu0 0.0
    %1124 = vmatprep.subr.mxu0 0.0
    %1125 = vmatpush1.msra.mxu0 0.0
    %1126 = vmatprep.subr.mxu0 0.0
    %1127 = vmatpush1.msra.mxu0 0.0
    %1128 = vmatprep.subr.mxu0 0.0
    %1129 = vmatpush1.msra.mxu0 0.0
    %1130 = vmatprep.subr.mxu0 0.0
    %1131 = vmatpush1.msra.mxu0 0.0
    %1132 = vmatprep.subr.mxu0 0.0
    %1133 = vmatpush1.msra.mxu0 0.0
    %1134 = vmatprep.subr.mxu0 0.0
    %1135 = vmatpush1.msra.mxu0 0.0
    %1136 = vmatprep.subr.mxu0 0.0
    %1137 = vmatpush1.msra.mxu0 0.0
    %1138 = vmatprep.subr.mxu0 0.0
    %1139 = vmatpush1.msra.mxu0 0.0
    %1140 = vmatprep.subr.mxu0 0.0
    %1141 = vmatpush1.msra.mxu0 0.0
    %1142 = vmatprep.subr.mxu0 0.0
    %1143 = vmatpush1.msra.mxu0 0.0
    %1144 = vmatprep.subr.mxu0 0.0
    %1145 = vmatpush1.msra.mxu0 0.0
    %1146 = vmatprep.subr.mxu0 0.0
    %1147 = vmatpush1.msra.mxu0 0.0
    %1148 = vmatprep.subr.mxu0 0.0
    %1149 = vmatpush1.msra.mxu0 0.0
    %1150 = vmatprep.subr.mxu0 0.0
    %1151 = vmatpush1.msra.mxu0 0.0
    %1152 = vmatprep.subr.mxu0 0.0
    %1153 = vmatpush1.msra.mxu0 0.0
    %1154 = vmatprep.subr.mxu0 0.0
    %1155 = vmatpush1.msra.mxu0 0.0
    %1156 = vmatprep.subr.mxu0 0.0
    %1157 = vmatpush1.msra.mxu0 0.0
    %1158 = vmatprep.subr.mxu0 0.0
    %1159 = vmatpush1.msra.mxu0 0.0
    %1160 = vmatprep.subr.mxu0 0.0
    %1161 = vmatpush1.msra.mxu0 0.0
    %1162 = vmatprep.subr.mxu0 0.0
    %1163 = vmatpush1.msra.mxu0 0.0
    %1164 = vmatprep.subr.mxu0 0.0
    %1165 = vmatpush1.msra.mxu0 0.0
    %1166 = vmatprep.subr.mxu0 0.0
    %1167 = vmatpush1.msra.mxu0 0.0
    %1168 = vmatprep.subr.mxu0 0.0
    %1169 = vmatpush1.msra.mxu0 0.0
    %1170 = vmatprep.subr.mxu0 0.0
    %1171 = vmatpush1.msra.mxu0 0.0
    %1172 = vmatprep.subr.mxu0 0.0
    %1173 = vmatpush1.msra.mxu0 0.0
    %1174 = vmatprep.subr.mxu0 0.0
    %1175 = vmatpush1.msra.mxu0 0.0
    %1176 = vmatprep.mubr.f32.mxu0 0.0
    %v1177 = vand.u32 %v77, 4294901760
    %v1178 = vsub.f32 %v77, %v1177
    %v1179 = vand.u32 %v1178, 4294901760
    %1180 = vmatmul.mubr.f32.gmra.mrb[0].mxu0 %v1179
    %v1181 = vpop.f32.mrb[0].mxu0
    %v1182 = vadd.f32 %v891, %v1181
    %v1183 = vpop.f32.mrb[0].mxu0
    %1184 = vmatprep.mubr.f32.mxu0 0.0
    %v1185 = vand.u32 %v80, 4294901760
    %v1186 = vsub.f32 %v80, %v1185
    %v1187 = vand.u32 %v1186, 4294901760
    %1188 = vmatmul.mubr.f32.gmra.mrb[0].mxu0 %v1187
    %v1189 = vpop.f32.mrb[0].mxu0
    %v1190 = vadd.f32 %v898, %v1189
    %v1191 = vpop.f32.mrb[0].mxu0
    %1192 = vmatprep.mubr.f32.mxu0 0.0
    %v1193 = vand.u32 %v83, 4294901760
    %v1194 = vsub.f32 %v83, %v1193
    %v1195 = vand.u32 %v1194, 4294901760
    %1196 = vmatmul.mubr.f32.gmra.mrb[0].mxu0 %v1195
    %v1197 = vpop.f32.mrb[0].mxu0
    %v1198 = vadd.f32 %v905, %v1197
    %v1199 = vpop.f32.mrb[0].mxu0
    %1200 = vmatprep.mubr.f32.mxu0 0.0
    %v1201 = vand.u32 %v86, 4294901760
    %v1202 = vsub.f32 %v86, %v1201
    %v1203 = vand.u32 %v1202, 4294901760
    %1204 = vmatmul.mubr.f32.gmra.mrb[0].mxu0 %v1203
    %v1205 = vpop.f32.mrb[0].mxu0
    %v1206 = vadd.f32 %v912, %v1205
    %v1207 = vpop.f32.mrb[0].mxu0
    %1208 = vmatprep.mubr.f32.mxu0 0.0
    %v1209 = vand.u32 %v89, 4294901760
    %v1210 = vsub.f32 %v89, %v1209
    %v1211 = vand.u32 %v1210, 4294901760
    %1212 = vmatmul.mubr.f32.gmra.mrb[0].mxu0 %v1211
    %v1213 = vpop.f32.mrb[0].mxu0
    %v1214 = vadd.f32 %v919, %v1213
    %v1215 = vpop.f32.mrb[0].mxu0
    %1216 = vmatprep.mubr.f32.mxu0 0.0
    %v1217 = vand.u32 %v92, 4294901760
    %v1218 = vsub.f32 %v92, %v1217
    %v1219 = vand.u32 %v1218, 4294901760
    %1220 = vmatmul.mubr.f32.gmra.mrb[0].mxu0 %v1219
    %v1221 = vpop.f32.mrb[0].mxu0
    %v1222 = vadd.f32 %v926, %v1221
    %v1223 = vpop.f32.mrb[0].mxu0
    %1224 = vmatprep.mubr.f32.mxu0 0.0
    %v1225 = vand.u32 %v95, 4294901760
    %v1226 = vsub.f32 %v95, %v1225
    %v1227 = vand.u32 %v1226, 4294901760
    %1228 = vmatmul.mubr.f32.gmra.mrb[0].mxu0 %v1227
    %v1229 = vpop.f32.mrb[0].mxu0
    %v1230 = vadd.f32 %v933, %v1229
    %v1231 = vpop.f32.mrb[0].mxu0
    %1232 = vmatprep.mubr.f32.mxu0 0.0
    %v1233 = vand.u32 %v98, 4294901760
    %v1234 = vsub.f32 %v98, %v1233
    %v1235 = vand.u32 %v1234, 4294901760
    %1236 = vmatmul.mubr.f32.gmra.mrb[0].mxu0 %v1235
    %v1237 = vpop.f32.mrb[0].mxu0
    %v1238 = vadd.f32 %v940, %v1237
    %v1239 = vpop.f32.mrb[0].mxu0
    %1240 = vmatprep.mubr.f32.mxu0 0.0
    %v1241 = vand.u32 %v101, 4294901760
    %v1242 = vsub.f32 %v101, %v1241
    %v1243 = vand.u32 %v1242, 4294901760
    %1244 = vmatmul.mubr.f32.gmra.mrb[0].mxu0 %v1243
    %v1245 = vpop.f32.mrb[0].mxu0
    %v1246 = vadd.f32 %v947, %v1245
    %v1247 = vpop.f32.mrb[0].mxu0
    %1248 = vmatprep.mubr.f32.mxu0 0.0
    %v1249 = vand.u32 %v104, 4294901760
    %v1250 = vsub.f32 %v104, %v1249
    %v1251 = vand.u32 %v1250, 4294901760
    %1252 = vmatmul.mubr.f32.gmra.mrb[0].mxu0 %v1251
    %v1253 = vpop.f32.mrb[0].mxu0
    %v1254 = vadd.f32 %v954, %v1253
    %v1255 = vpop.f32.mrb[0].mxu0
    %1256 = vmatprep.mubr.f32.mxu0 0.0
    %v1257 = vand.u32 %v107, 4294901760
    %v1258 = vsub.f32 %v107, %v1257
    %v1259 = vand.u32 %v1258, 4294901760
    %1260 = vmatmul.mubr.f32.gmra.mrb[0].mxu0 %v1259
    %v1261 = vpop.f32.mrb[0].mxu0
    %v1262 = vadd.f32 %v961, %v1261
    %v1263 = vpop.f32.mrb[0].mxu0
    %1264 = vmatprep.mubr.f32.mxu0 0.0
    %v1265 = vand.u32 %v110, 4294901760
    %v1266 = vsub.f32 %v110, %v1265
    %v1267 = vand.u32 %v1266, 4294901760
    %1268 = vmatmul.mubr.f32.gmra.mrb[0].mxu0 %v1267
    %v1269 = vpop.f32.mrb[0].mxu0
    %v1270 = vadd.f32 %v968, %v1269
    %v1271 = vpop.f32.mrb[0].mxu0
    %1272 = vmatprep.mubr.f32.mxu0 0.0
    %v1273 = vand.u32 %v113, 4294901760
    %v1274 = vsub.f32 %v113, %v1273
    %v1275 = vand.u32 %v1274, 4294901760
    %1276 = vmatmul.mubr.f32.gmra.mrb[0].mxu0 %v1275
    %v1277 = vpop.f32.mrb[0].mxu0
    %v1278 = vadd.f32 %v975, %v1277
    %v1279 = vpop.f32.mrb[0].mxu0
    %1280 = vmatprep.mubr.f32.mxu0 0.0
    %v1281 = vand.u32 %v116, 4294901760
    %v1282 = vsub.f32 %v116, %v1281
    %v1283 = vand.u32 %v1282, 4294901760
    %1284 = vmatmul.mubr.f32.gmra.mrb[0].mxu0 %v1283
    %v1285 = vpop.f32.mrb[0].mxu0
    %v1286 = vadd.f32 %v982, %v1285
    %v1287 = vpop.f32.mrb[0].mxu0
    %1288 = vmatprep.mubr.f32.mxu0 0.0
    %v1289 = vand.u32 %v119, 4294901760
    %v1290 = vsub.f32 %v119, %v1289
    %v1291 = vand.u32 %v1290, 4294901760
    %1292 = vmatmul.mubr.f32.gmra.mrb[0].mxu0 %v1291
    %v1293 = vpop.f32.mrb[0].mxu0
    %v1294 = vadd.f32 %v989, %v1293
    %v1295 = vpop.f32.mrb[0].mxu0
    %1296 = vmatprep.mubr.f32.mxu0 0.0
    %v1297 = vand.u32 %v122, 4294901760
    %v1298 = vsub.f32 %v122, %v1297
    %v1299 = vand.u32 %v1298, 4294901760
    %1300 = vmatmul.mubr.f32.gmra.mrb[0].mxu0 %v1299
    %v1301 = vpop.f32.mrb[0].mxu0
    %v1302 = vadd.f32 %v996, %v1301
    %v1303 = vpop.f32.mrb[0].mxu0
    %1304 = vmatprep.mubr.f32.mxu0 0.0
    %v1305 = vand.u32 %v125, 4294901760
    %v1306 = vsub.f32 %v125, %v1305
    %v1307 = vand.u32 %v1306, 4294901760
    %1308 = vmatmul.mubr.f32.gmra.mrb[0].mxu0 %v1307
    %v1309 = vpop.f32.mrb[0].mxu0
    %v1310 = vadd.f32 %v1003, %v1309
    %v1311 = vpop.f32.mrb[0].mxu0
    %1312 = vmatprep.mubr.f32.mxu0 0.0
    %v1313 = vand.u32 %v128, 4294901760
    %v1314 = vsub.f32 %v128, %v1313
    %v1315 = vand.u32 %v1314, 4294901760
    %1316 = vmatmul.mubr.f32.gmra.mrb[0].mxu0 %v1315
    %v1317 = vpop.f32.mrb[0].mxu0
    %v1318 = vadd.f32 %v1010, %v1317
    %v1319 = vpop.f32.mrb[0].mxu0
    %1320 = vmatprep.mubr.f32.mxu0 0.0
    %v1321 = vand.u32 %v131, 4294901760
    %v1322 = vsub.f32 %v131, %v1321
    %v1323 = vand.u32 %v1322, 4294901760
    %1324 = vmatmul.mubr.f32.gmra.mrb[0].mxu0 %v1323
    %v1325 = vpop.f32.mrb[0].mxu0
    %v1326 = vadd.f32 %v1017, %v1325
    %v1327 = vpop.f32.mrb[0].mxu0
    %1328 = vmatprep.mubr.f32.mxu0 0.0
    %v1329 = vand.u32 %v134, 4294901760
    %v1330 = vsub.f32 %v134, %v1329
    %v1331 = vand.u32 %v1330, 4294901760
    %1332 = vmatmul.mubr.f32.gmra.mrb[0].mxu0 %v1331
    %v1333 = vpop.f32.mrb[0].mxu0
    %v1334 = vadd.f32 %v1024, %v1333
    %v1335 = vpop.f32.mrb[0].mxu0
    %1336 = vmatprep.mubr.f32.mxu0 0.0
    %v1337 = vand.u32 %v137, 4294901760
    %v1338 = vsub.f32 %v137, %v1337
    %v1339 = vand.u32 %v1338, 4294901760
    %1340 = vmatmul.mubr.f32.gmra.mrb[0].mxu0 %v1339
    %v1341 = vpop.f32.mrb[0].mxu0
    %v1342 = vadd.f32 %v1031, %v1341
    %v1343 = vpop.f32.mrb[0].mxu0
    %1344 = vmatprep.mubr.f32.mxu0 0.0
    %v1345 = vand.u32 %v140, 4294901760
    %v1346 = vsub.f32 %v140, %v1345
    %v1347 = vand.u32 %v1346, 4294901760
    %1348 = vmatmul.mubr.f32.gmra.mrb[0].mxu0 %v1347
    %v1349 = vpop.f32.mrb[0].mxu0
    %v1350 = vadd.f32 %v1038, %v1349
    %v1351 = vpop.f32.mrb[0].mxu0
    %1352 = vmatprep.mubr.f32.mxu0 0.0
    %v1353 = vand.u32 %v143, 4294901760
    %v1354 = vsub.f32 %v143, %v1353
    %v1355 = vand.u32 %v1354, 4294901760
    %1356 = vmatmul.mubr.f32.gmra.mrb[0].mxu0 %v1355
    %v1357 = vpop.f32.mrb[0].mxu0
    %v1358 = vadd.f32 %v1045, %v1357
    %v1359 = vpop.f32.mrb[0].mxu0
    %1360 = vmatprep.mubr.f32.mxu0 0.0
    %v1361 = vand.u32 %v146, 4294901760
    %v1362 = vsub.f32 %v146, %v1361
    %v1363 = vand.u32 %v1362, 4294901760
    %1364 = vmatmul.mubr.f32.gmra.mrb[0].mxu0 %v1363
    %v1365 = vpop.f32.mrb[0].mxu0
    %v1366 = vadd.f32 %v1052, %v1365
    %v1367 = vpop.f32.mrb[0].mxu0
    %1368 = vmatprep.mubr.f32.mxu0 0.0
    %v1369 = vand.u32 %v149, 4294901760
    %v1370 = vsub.f32 %v149, %v1369
    %v1371 = vand.u32 %v1370, 4294901760
    %1372 = vmatmul.mubr.f32.gmra.mrb[0].mxu0 %v1371
    %v1373 = vpop.f32.mrb[0].mxu0
    %v1374 = vadd.f32 %v1059, %v1373
    %v1375 = vpop.f32.mrb[0].mxu0
    %1376 = vmatprep.mubr.f32.mxu0 0.0
    %v1377 = vand.u32 %v152, 4294901760
    %v1378 = vsub.f32 %v152, %v1377
    %v1379 = vand.u32 %v1378, 4294901760
    %1380 = vmatmul.mubr.f32.gmra.mrb[0].mxu0 %v1379
    %v1381 = vpop.f32.mrb[0].mxu0
    %v1382 = vadd.f32 %v1066, %v1381
    %v1383 = vpop.f32.mrb[0].mxu0
    %1384 = vmatprep.mubr.f32.mxu0 0.0
    %v1385 = vand.u32 %v155, 4294901760
    %v1386 = vsub.f32 %v155, %v1385
    %v1387 = vand.u32 %v1386, 4294901760
    %1388 = vmatmul.mubr.f32.gmra.mrb[0].mxu0 %v1387
    %v1389 = vpop.f32.mrb[0].mxu0
    %v1390 = vadd.f32 %v1073, %v1389
    %v1391 = vpop.f32.mrb[0].mxu0
    %1392 = vmatprep.mubr.f32.mxu0 0.0
    %v1393 = vand.u32 %v158, 4294901760
    %v1394 = vsub.f32 %v158, %v1393
    %v1395 = vand.u32 %v1394, 4294901760
    %1396 = vmatmul.mubr.f32.gmra.mrb[0].mxu0 %v1395
    %v1397 = vpop.f32.mrb[0].mxu0
    %v1398 = vadd.f32 %v1080, %v1397
    %v1399 = vpop.f32.mrb[0].mxu0
    %1400 = vmatprep.mubr.f32.mxu0 0.0
    %v1401 = vand.u32 %v161, 4294901760
    %v1402 = vsub.f32 %v161, %v1401
    %v1403 = vand.u32 %v1402, 4294901760
    %1404 = vmatmul.mubr.f32.gmra.mrb[0].mxu0 %v1403
    %v1405 = vpop.f32.mrb[0].mxu0
    %v1406 = vadd.f32 %v1087, %v1405
    %v1407 = vpop.f32.mrb[0].mxu0
    %1408 = vmatprep.mubr.f32.mxu0 0.0
    %v1409 = vand.u32 %v164, 4294901760
    %v1410 = vsub.f32 %v164, %v1409
    %v1411 = vand.u32 %v1410, 4294901760
    %1412 = vmatmul.mubr.f32.gmra.mrb[0].mxu0 %v1411
    %v1413 = vpop.f32.mrb[0].mxu0
    %v1414 = vadd.f32 %v1094, %v1413
    %v1415 = vpop.f32.mrb[0].mxu0
    %1416 = vmatprep.mubr.f32.mxu0 0.0
    %v1417 = vand.u32 %v167, 4294901760
    %v1418 = vsub.f32 %v167, %v1417
    %v1419 = vand.u32 %v1418, 4294901760
    %1420 = vmatmul.mubr.f32.gmra.mrb[0].mxu0 %v1419
    %v1421 = vpop.f32.mrb[0].mxu0
    %v1422 = vadd.f32 %v1101, %v1421
    %v1423 = vpop.f32.mrb[0].mxu0
    %1424 = vmatprep.mubr.f32.mxu0 0.0
    %v1425 = vand.u32 %v170, 4294901760
    %v1426 = vsub.f32 %v170, %v1425
    %v1427 = vand.u32 %v1426, 4294901760
    %1428 = vmatmul.mubr.f32.gmra.mrb[0].mxu0 %v1427
    %v1429 = vpop.f32.mrb[0].mxu0
    %v1430 = vadd.f32 %v1108, %v1429
    %v1431 = vpop.f32.mrb[0].mxu0
    %1432 = vdwg.mxu0
    %1433 = vmatprep.subr.mxu0 0.0
    %v1434 = vand.u32 %v67, 4294901760
    %v1435 = vsub.f32 %v67, %v1434
    %v1436 = vand.u32 %v1435, 4294901760
    %1437 = vmatpush1.msra.mxu0 %v1436
    %1438 = vmatprep.subr.mxu0 0.0
    %1439 = vmatpush1.msra.mxu0 0.0
    %1440 = vmatprep.subr.mxu0 0.0
    %1441 = vmatpush1.msra.mxu0 0.0
    %1442 = vmatprep.subr.mxu0 0.0
    %1443 = vmatpush1.msra.mxu0 0.0
    %1444 = vmatprep.subr.mxu0 0.0
    %1445 = vmatpush1.msra.mxu0 0.0
    %1446 = vmatprep.subr.mxu0 0.0
    %1447 = vmatpush1.msra.mxu0 0.0
    %1448 = vmatprep.subr.mxu0 0.0
    %1449 = vmatpush1.msra.mxu0 0.0
    %1450 = vmatprep.subr.mxu0 0.0
    %1451 = vmatpush1.msra.mxu0 0.0
    %1452 = vmatprep.subr.mxu0 0.0
    %1453 = vmatpush1.msra.mxu0 0.0
    %1454 = vmatprep.subr.mxu0 0.0
    %1455 = vmatpush1.msra.mxu0 0.0
    %1456 = vmatprep.subr.mxu0 0.0
    %1457 = vmatpush1.msra.mxu0 0.0
    %1458 = vmatprep.subr.mxu0 0.0
    %1459 = vmatpush1.msra.mxu0 0.0
    %1460 = vmatprep.subr.mxu0 0.0
    %1461 = vmatpush1.msra.mxu0 0.0
    %1462 = vmatprep.subr.mxu0 0.0
    %1463 = vmatpush1.msra.mxu0 0.0
    %1464 = vmatprep.subr.mxu0 0.0
    %1465 = vmatpush1.msra.mxu0 0.0
    %1466 = vmatprep.subr.mxu0 0.0
    %1467 = vmatpush1.msra.mxu0 0.0
    %1468 = vmatprep.subr.mxu0 0.0
    %1469 = vmatpush1.msra.mxu0 0.0
    %1470 = vmatprep.subr.mxu0 0.0
    %1471 = vmatpush1.msra.mxu0 0.0
    %1472 = vmatprep.subr.mxu0 0.0
    %1473 = vmatpush1.msra.mxu0 0.0
    %1474 = vmatprep.subr.mxu0 0.0
    %1475 = vmatpush1.msra.mxu0 0.0
    %1476 = vmatprep.subr.mxu0 0.0
    %1477 = vmatpush1.msra.mxu0 0.0
    %1478 = vmatprep.subr.mxu0 0.0
    %1479 = vmatpush1.msra.mxu0 0.0
    %1480 = vmatprep.subr.mxu0 0.0
    %1481 = vmatpush1.msra.mxu0 0.0
    %1482 = vmatprep.subr.mxu0 0.0
    %1483 = vmatpush1.msra.mxu0 0.0
    %1484 = vmatprep.subr.mxu0 0.0
    %1485 = vmatpush1.msra.mxu0 0.0
    %1486 = vmatprep.subr.mxu0 0.0
    %1487 = vmatpush1.msra.mxu0 0.0
    %1488 = vmatprep.subr.mxu0 0.0
    %1489 = vmatpush1.msra.mxu0 0.0
    %1490 = vmatprep.subr.mxu0 0.0
    %1491 = vmatpush1.msra.mxu0 0.0
    %1492 = vmatprep.subr.mxu0 0.0
    %1493 = vmatpush1.msra.mxu0 0.0
    %1494 = vmatprep.subr.mxu0 0.0
    %1495 = vmatpush1.msra.mxu0 0.0
    %1496 = vmatprep.subr.mxu0 0.0
    %1497 = vmatpush1.msra.mxu0 0.0
    %1498 = vmatprep.subr.mxu0 0.0
    %1499 = vmatpush1.msra.mxu0 0.0
    %1500 = vmatprep.mubr.f32.mxu0 0.0
    %v1501 = vand.u32 %v77, 4294901760
    %1502 = vmatmul.mubr.f32.gmra.mrb[0].mxu0 %v1501
    %v1503 = vpop.f32.mrb[0].mxu0
    %v1504 = vadd.f32 %v1182, %v1503
    %v1505 = vpop.f32.mrb[0].mxu0
    %1506 = vmatprep.mubr.f32.mxu0 0.0
    %v1507 = vand.u32 %v80, 4294901760
    %1508 = vmatmul.mubr.f32.gmra.mrb[0].mxu0 %v1507
    %v1509 = vpop.f32.mrb[0].mxu0
    %v1510 = vadd.f32 %v1190, %v1509
    %v1511 = vpop.f32.mrb[0].mxu0
    %1512 = vmatprep.mubr.f32.mxu0 0.0
    %v1513 = vand.u32 %v83, 4294901760
    %1514 = vmatmul.mubr.f32.gmra.mrb[0].mxu0 %v1513
    %v1515 = vpop.f32.mrb[0].mxu0
    %v1516 = vadd.f32 %v1198, %v1515
    %v1517 = vpop.f32.mrb[0].mxu0
    %1518 = vmatprep.mubr.f32.mxu0 0.0
    %v1519 = vand.u32 %v86, 4294901760
    %1520 = vmatmul.mubr.f32.gmra.mrb[0].mxu0 %v1519
    %v1521 = vpop.f32.mrb[0].mxu0
    %v1522 = vadd.f32 %v1206, %v1521
    %v1523 = vpop.f32.mrb[0].mxu0
    %1524 = vmatprep.mubr.f32.mxu0 0.0
    %v1525 = vand.u32 %v89, 4294901760
    %1526 = vmatmul.mubr.f32.gmra.mrb[0].mxu0 %v1525
    %v1527 = vpop.f32.mrb[0].mxu0
    %v1528 = vadd.f32 %v1214, %v1527
    %v1529 = vpop.f32.mrb[0].mxu0
    %1530 = vmatprep.mubr.f32.mxu0 0.0
    %v1531 = vand.u32 %v92, 4294901760
    %1532 = vmatmul.mubr.f32.gmra.mrb[0].mxu0 %v1531
    %v1533 = vpop.f32.mrb[0].mxu0
    %v1534 = vadd.f32 %v1222, %v1533
    %v1535 = vpop.f32.mrb[0].mxu0
    %1536 = vmatprep.mubr.f32.mxu0 0.0
    %v1537 = vand.u32 %v95, 4294901760
    %1538 = vmatmul.mubr.f32.gmra.mrb[0].mxu0 %v1537
    %v1539 = vpop.f32.mrb[0].mxu0
    %v1540 = vadd.f32 %v1230, %v1539
    %v1541 = vpop.f32.mrb[0].mxu0
    %1542 = vmatprep.mubr.f32.mxu0 0.0
    %v1543 = vand.u32 %v98, 4294901760
    %1544 = vmatmul.mubr.f32.gmra.mrb[0].mxu0 %v1543
    %v1545 = vpop.f32.mrb[0].mxu0
    %v1546 = vadd.f32 %v1238, %v1545
    %v1547 = vpop.f32.mrb[0].mxu0
    %1548 = vmatprep.mubr.f32.mxu0 0.0
    %v1549 = vand.u32 %v101, 4294901760
    %1550 = vmatmul.mubr.f32.gmra.mrb[0].mxu0 %v1549
    %v1551 = vpop.f32.mrb[0].mxu0
    %v1552 = vadd.f32 %v1246, %v1551
    %v1553 = vpop.f32.mrb[0].mxu0
    %1554 = vmatprep.mubr.f32.mxu0 0.0
    %v1555 = vand.u32 %v104, 4294901760
    %1556 = vmatmul.mubr.f32.gmra.mrb[0].mxu0 %v1555
    %v1557 = vpop.f32.mrb[0].mxu0
    %v1558 = vadd.f32 %v1254, %v1557
    %v1559 = vpop.f32.mrb[0].mxu0
    %1560 = vmatprep.mubr.f32.mxu0 0.0
    %v1561 = vand.u32 %v107, 4294901760
    %1562 = vmatmul.mubr.f32.gmra.mrb[0].mxu0 %v1561
    %v1563 = vpop.f32.mrb[0].mxu0
    %v1564 = vadd.f32 %v1262, %v1563
    %v1565 = vpop.f32.mrb[0].mxu0
    %1566 = vmatprep.mubr.f32.mxu0 0.0
    %v1567 = vand.u32 %v110, 4294901760
    %1568 = vmatmul.mubr.f32.gmra.mrb[0].mxu0 %v1567
    %v1569 = vpop.f32.mrb[0].mxu0
    %v1570 = vadd.f32 %v1270, %v1569
    %v1571 = vpop.f32.mrb[0].mxu0
    %1572 = vmatprep.mubr.f32.mxu0 0.0
    %v1573 = vand.u32 %v113, 4294901760
    %1574 = vmatmul.mubr.f32.gmra.mrb[0].mxu0 %v1573
    %v1575 = vpop.f32.mrb[0].mxu0
    %v1576 = vadd.f32 %v1278, %v1575
    %v1577 = vpop.f32.mrb[0].mxu0
    %1578 = vmatprep.mubr.f32.mxu0 0.0
    %v1579 = vand.u32 %v116, 4294901760
    %1580 = vmatmul.mubr.f32.gmra.mrb[0].mxu0 %v1579
    %v1581 = vpop.f32.mrb[0].mxu0
    %v1582 = vadd.f32 %v1286, %v1581
    %v1583 = vpop.f32.mrb[0].mxu0
    %1584 = vmatprep.mubr.f32.mxu0 0.0
    %v1585 = vand.u32 %v119, 4294901760
    %1586 = vmatmul.mubr.f32.gmra.mrb[0].mxu0 %v1585
    %v1587 = vpop.f32.mrb[0].mxu0
    %v1588 = vadd.f32 %v1294, %v1587
    %v1589 = vpop.f32.mrb[0].mxu0
    %1590 = vmatprep.mubr.f32.mxu0 0.0
    %v1591 = vand.u32 %v122, 4294901760
    %1592 = vmatmul.mubr.f32.gmra.mrb[0].mxu0 %v1591
    %v1593 = vpop.f32.mrb[0].mxu0
    %v1594 = vadd.f32 %v1302, %v1593
    %v1595 = vpop.f32.mrb[0].mxu0
    %1596 = vmatprep.mubr.f32.mxu0 0.0
    %v1597 = vand.u32 %v125, 4294901760
    %1598 = vmatmul.mubr.f32.gmra.mrb[0].mxu0 %v1597
    %v1599 = vpop.f32.mrb[0].mxu0
    %v1600 = vadd.f32 %v1310, %v1599
    %v1601 = vpop.f32.mrb[0].mxu0
    %1602 = vmatprep.mubr.f32.mxu0 0.0
    %v1603 = vand.u32 %v128, 4294901760
    %1604 = vmatmul.mubr.f32.gmra.mrb[0].mxu0 %v1603
    %v1605 = vpop.f32.mrb[0].mxu0
    %v1606 = vadd.f32 %v1318, %v1605
    %v1607 = vpop.f32.mrb[0].mxu0
    %1608 = vmatprep.mubr.f32.mxu0 0.0
    %v1609 = vand.u32 %v131, 4294901760
    %1610 = vmatmul.mubr.f32.gmra.mrb[0].mxu0 %v1609
    %v1611 = vpop.f32.mrb[0].mxu0
    %v1612 = vadd.f32 %v1326, %v1611
    %v1613 = vpop.f32.mrb[0].mxu0
    %1614 = vmatprep.mubr.f32.mxu0 0.0
    %v1615 = vand.u32 %v134, 4294901760
    %1616 = vmatmul.mubr.f32.gmra.mrb[0].mxu0 %v1615
    %v1617 = vpop.f32.mrb[0].mxu0
    %v1618 = vadd.f32 %v1334, %v1617
    %v1619 = vpop.f32.mrb[0].mxu0
    %1620 = vmatprep.mubr.f32.mxu0 0.0
    %v1621 = vand.u32 %v137, 4294901760
    %1622 = vmatmul.mubr.f32.gmra.mrb[0].mxu0 %v1621
    %v1623 = vpop.f32.mrb[0].mxu0
    %v1624 = vadd.f32 %v1342, %v1623
    %v1625 = vpop.f32.mrb[0].mxu0
    %1626 = vmatprep.mubr.f32.mxu0 0.0
    %v1627 = vand.u32 %v140, 4294901760
    %1628 = vmatmul.mubr.f32.gmra.mrb[0].mxu0 %v1627
    %v1629 = vpop.f32.mrb[0].mxu0
    %v1630 = vadd.f32 %v1350, %v1629
    %v1631 = vpop.f32.mrb[0].mxu0
    %1632 = vmatprep.mubr.f32.mxu0 0.0
    %v1633 = vand.u32 %v143, 4294901760
    %1634 = vmatmul.mubr.f32.gmra.mrb[0].mxu0 %v1633
    %v1635 = vpop.f32.mrb[0].mxu0
    %v1636 = vadd.f32 %v1358, %v1635
    %v1637 = vpop.f32.mrb[0].mxu0
    %1638 = vmatprep.mubr.f32.mxu0 0.0
    %v1639 = vand.u32 %v146, 4294901760
    %1640 = vmatmul.mubr.f32.gmra.mrb[0].mxu0 %v1639
    %v1641 = vpop.f32.mrb[0].mxu0
    %v1642 = vadd.f32 %v1366, %v1641
    %v1643 = vpop.f32.mrb[0].mxu0
    %1644 = vmatprep.mubr.f32.mxu0 0.0
    %v1645 = vand.u32 %v149, 4294901760
    %1646 = vmatmul.mubr.f32.gmra.mrb[0].mxu0 %v1645
    %v1647 = vpop.f32.mrb[0].mxu0
    %v1648 = vadd.f32 %v1374, %v1647
    %v1649 = vpop.f32.mrb[0].mxu0
    %1650 = vmatprep.mubr.f32.mxu0 0.0
    %v1651 = vand.u32 %v152, 4294901760
    %1652 = vmatmul.mubr.f32.gmra.mrb[0].mxu0 %v1651
    %v1653 = vpop.f32.mrb[0].mxu0
    %v1654 = vadd.f32 %v1382, %v1653
    %v1655 = vpop.f32.mrb[0].mxu0
    %1656 = vmatprep.mubr.f32.mxu0 0.0
    %v1657 = vand.u32 %v155, 4294901760
    %1658 = vmatmul.mubr.f32.gmra.mrb[0].mxu0 %v1657
    %v1659 = vpop.f32.mrb[0].mxu0
    %v1660 = vadd.f32 %v1390, %v1659
    %v1661 = vpop.f32.mrb[0].mxu0
    %1662 = vmatprep.mubr.f32.mxu0 0.0
    %v1663 = vand.u32 %v158, 4294901760
    %1664 = vmatmul.mubr.f32.gmra.mrb[0].mxu0 %v1663
    %v1665 = vpop.f32.mrb[0].mxu0
    %v1666 = vadd.f32 %v1398, %v1665
    %v1667 = vpop.f32.mrb[0].mxu0
    %1668 = vmatprep.mubr.f32.mxu0 0.0
    %v1669 = vand.u32 %v161, 4294901760
    %1670 = vmatmul.mubr.f32.gmra.mrb[0].mxu0 %v1669
    %v1671 = vpop.f32.mrb[0].mxu0
    %v1672 = vadd.f32 %v1406, %v1671
    %v1673 = vpop.f32.mrb[0].mxu0
    %1674 = vmatprep.mubr.f32.mxu0 0.0
    %v1675 = vand.u32 %v164, 4294901760
    %1676 = vmatmul.mubr.f32.gmra.mrb[0].mxu0 %v1675
    %v1677 = vpop.f32.mrb[0].mxu0
    %v1678 = vadd.f32 %v1414, %v1677
    %v1679 = vpop.f32.mrb[0].mxu0
    %1680 = vmatprep.mubr.f32.mxu0 0.0
    %v1681 = vand.u32 %v167, 4294901760
    %1682 = vmatmul.mubr.f32.gmra.mrb[0].mxu0 %v1681
    %v1683 = vpop.f32.mrb[0].mxu0
    %v1684 = vadd.f32 %v1422, %v1683
    %v1685 = vpop.f32.mrb[0].mxu0
    %1686 = vmatprep.mubr.f32.mxu0 0.0
    %v1687 = vand.u32 %v170, 4294901760
    %1688 = vmatmul.mubr.f32.gmra.mrb[0].mxu0 %v1687
    %v1689 = vpop.f32.mrb[0].mxu0
    %v1690 = vadd.f32 %v1430, %v1689
    %v1691 = vpop.f32.mrb[0].mxu0
    %1692 = vdwg.mxu0
    %1693 = vmatprep.subr.mxu0 0.0
    %v1694 = vand.u32 %v67, 4294901760
    %1695 = vmatpush1.msra.mxu0 %v1694
    %1696 = vmatprep.subr.mxu0 0.0
    %1697 = vmatpush1.msra.mxu0 0.0
    %1698 = vmatprep.subr.mxu0 0.0
    %1699 = vmatpush1.msra.mxu0 0.0
    %1700 = vmatprep.subr.mxu0 0.0
    %1701 = vmatpush1.msra.mxu0 0.0
    %1702 = vmatprep.subr.mxu0 0.0
    %1703 = vmatpush1.msra.mxu0 0.0
    %1704 = vmatprep.subr.mxu0 0.0
    %1705 = vmatpush1.msra.mxu0 0.0
    %1706 = vmatprep.subr.mxu0 0.0
    %1707 = vmatpush1.msra.mxu0 0.0
    %1708 = vmatprep.subr.mxu0 0.0
    %1709 = vmatpush1.msra.mxu0 0.0
    %1710 = vmatprep.subr.mxu0 0.0
    %1711 = vmatpush1.msra.mxu0 0.0
    %1712 = vmatprep.subr.mxu0 0.0
    %1713 = vmatpush1.msra.mxu0 0.0
    %1714 = vmatprep.subr.mxu0 0.0
    %1715 = vmatpush1.msra.mxu0 0.0
    %1716 = vmatprep.subr.mxu0 0.0
    %1717 = vmatpush1.msra.mxu0 0.0
    %1718 = vmatprep.subr.mxu0 0.0
    %1719 = vmatpush1.msra.mxu0 0.0
    %1720 = vmatprep.subr.mxu0 0.0
    %1721 = vmatpush1.msra.mxu0 0.0
    %1722 = vmatprep.subr.mxu0 0.0
    %1723 = vmatpush1.msra.mxu0 0.0
    %1724 = vmatprep.subr.mxu0 0.0
    %1725 = vmatpush1.msra.mxu0 0.0
    %1726 = vmatprep.subr.mxu0 0.0
    %1727 = vmatpush1.msra.mxu0 0.0
    %1728 = vmatprep.subr.mxu0 0.0
    %1729 = vmatpush1.msra.mxu0 0.0
    %1730 = vmatprep.subr.mxu0 0.0
    %1731 = vmatpush1.msra.mxu0 0.0
    %1732 = vmatprep.subr.mxu0 0.0
    %1733 = vmatpush1.msra.mxu0 0.0
    %1734 = vmatprep.subr.mxu0 0.0
    %1735 = vmatpush1.msra.mxu0 0.0
    %1736 = vmatprep.subr.mxu0 0.0
    %1737 = vmatpush1.msra.mxu0 0.0
    %1738 = vmatprep.subr.mxu0 0.0
    %1739 = vmatpush1.msra.mxu0 0.0
    %1740 = vmatprep.subr.mxu0 0.0
    %1741 = vmatpush1.msra.mxu0 0.0
    %1742 = vmatprep.subr.mxu0 0.0
    %1743 = vmatpush1.msra.mxu0 0.0
    %1744 = vmatprep.subr.mxu0 0.0
    %1745 = vmatpush1.msra.mxu0 0.0
    %1746 = vmatprep.subr.mxu0 0.0
    %1747 = vmatpush1.msra.mxu0 0.0
    %1748 = vmatprep.subr.mxu0 0.0
    %1749 = vmatpush1.msra.mxu0 0.0
    %1750 = vmatprep.subr.mxu0 0.0
    %1751 = vmatpush1.msra.mxu0 0.0
    %1752 = vmatprep.subr.mxu0 0.0
    %1753 = vmatpush1.msra.mxu0 0.0
    %1754 = vmatprep.subr.mxu0 0.0
    %1755 = vmatpush1.msra.mxu0 0.0
    %1756 = vmatprep.subr.mxu0 0.0
    %1757 = vmatpush1.msra.mxu0 0.0
    %1758 = vmatprep.mubr.f32.mxu0 0.0
    %v1759 = vand.u32 %v77, 4294901760
    %1760 = vmatmul.mubr.f32.gmra.mrb[0].mxu0 %v1759
    %v1761 = vpop.f32.mrb[0].mxu0
    %v1762 = vadd.f32 %v1504, %v1761
    %v1763 = vpop.f32.mrb[0].mxu0
    %1764 = vmatprep.mubr.f32.mxu0 0.0
    %v1765 = vand.u32 %v80, 4294901760
    %1766 = vmatmul.mubr.f32.gmra.mrb[0].mxu0 %v1765
    %v1767 = vpop.f32.mrb[0].mxu0
    %v1768 = vadd.f32 %v1510, %v1767
    %v1769 = vpop.f32.mrb[0].mxu0
    %1770 = vmatprep.mubr.f32.mxu0 0.0
    %v1771 = vand.u32 %v83, 4294901760
    %1772 = vmatmul.mubr.f32.gmra.mrb[0].mxu0 %v1771
    %v1773 = vpop.f32.mrb[0].mxu0
    %v1774 = vadd.f32 %v1516, %v1773
    %v1775 = vpop.f32.mrb[0].mxu0
    %1776 = vmatprep.mubr.f32.mxu0 0.0
    %v1777 = vand.u32 %v86, 4294901760
    %1778 = vmatmul.mubr.f32.gmra.mrb[0].mxu0 %v1777
    %v1779 = vpop.f32.mrb[0].mxu0
    %v1780 = vadd.f32 %v1522, %v1779
    %v1781 = vpop.f32.mrb[0].mxu0
    %1782 = vmatprep.mubr.f32.mxu0 0.0
    %v1783 = vand.u32 %v89, 4294901760
    %1784 = vmatmul.mubr.f32.gmra.mrb[0].mxu0 %v1783
    %v1785 = vpop.f32.mrb[0].mxu0
    %v1786 = vadd.f32 %v1528, %v1785
    %v1787 = vpop.f32.mrb[0].mxu0
    %1788 = vmatprep.mubr.f32.mxu0 0.0
    %v1789 = vand.u32 %v92, 4294901760
    %1790 = vmatmul.mubr.f32.gmra.mrb[0].mxu0 %v1789
    %v1791 = vpop.f32.mrb[0].mxu0
    %v1792 = vadd.f32 %v1534, %v1791
    %v1793 = vpop.f32.mrb[0].mxu0
    %1794 = vmatprep.mubr.f32.mxu0 0.0
    %v1795 = vand.u32 %v95, 4294901760
    %1796 = vmatmul.mubr.f32.gmra.mrb[0].mxu0 %v1795
    %v1797 = vpop.f32.mrb[0].mxu0
    %v1798 = vadd.f32 %v1540, %v1797
    %v1799 = vpop.f32.mrb[0].mxu0
    %1800 = vmatprep.mubr.f32.mxu0 0.0
    %v1801 = vand.u32 %v98, 4294901760
    %1802 = vmatmul.mubr.f32.gmra.mrb[0].mxu0 %v1801
    %v1803 = vpop.f32.mrb[0].mxu0
    %v1804 = vadd.f32 %v1546, %v1803
    %v1805 = vpop.f32.mrb[0].mxu0
    %1806 = vmatprep.mubr.f32.mxu0 0.0
    %v1807 = vand.u32 %v101, 4294901760
    %1808 = vmatmul.mubr.f32.gmra.mrb[0].mxu0 %v1807
    %v1809 = vpop.f32.mrb[0].mxu0
    %v1810 = vadd.f32 %v1552, %v1809
    %v1811 = vpop.f32.mrb[0].mxu0
    %1812 = vmatprep.mubr.f32.mxu0 0.0
    %v1813 = vand.u32 %v104, 4294901760
    %1814 = vmatmul.mubr.f32.gmra.mrb[0].mxu0 %v1813
    %v1815 = vpop.f32.mrb[0].mxu0
    %v1816 = vadd.f32 %v1558, %v1815
    %v1817 = vpop.f32.mrb[0].mxu0
    %1818 = vmatprep.mubr.f32.mxu0 0.0
    %v1819 = vand.u32 %v107, 4294901760
    %1820 = vmatmul.mubr.f32.gmra.mrb[0].mxu0 %v1819
    %v1821 = vpop.f32.mrb[0].mxu0
    %v1822 = vadd.f32 %v1564, %v1821
    %v1823 = vpop.f32.mrb[0].mxu0
    %1824 = vmatprep.mubr.f32.mxu0 0.0
    %v1825 = vand.u32 %v110, 4294901760
    %1826 = vmatmul.mubr.f32.gmra.mrb[0].mxu0 %v1825
    %v1827 = vpop.f32.mrb[0].mxu0
    %v1828 = vadd.f32 %v1570, %v1827
    %v1829 = vpop.f32.mrb[0].mxu0
    %1830 = vmatprep.mubr.f32.mxu0 0.0
    %v1831 = vand.u32 %v113, 4294901760
    %1832 = vmatmul.mubr.f32.gmra.mrb[0].mxu0 %v1831
    %v1833 = vpop.f32.mrb[0].mxu0
    %v1834 = vadd.f32 %v1576, %v1833
    %v1835 = vpop.f32.mrb[0].mxu0
    %1836 = vmatprep.mubr.f32.mxu0 0.0
    %v1837 = vand.u32 %v116, 4294901760
    %1838 = vmatmul.mubr.f32.gmra.mrb[0].mxu0 %v1837
    %v1839 = vpop.f32.mrb[0].mxu0
    %v1840 = vadd.f32 %v1582, %v1839
    %v1841 = vpop.f32.mrb[0].mxu0
    %1842 = vmatprep.mubr.f32.mxu0 0.0
    %v1843 = vand.u32 %v119, 4294901760
    %1844 = vmatmul.mubr.f32.gmra.mrb[0].mxu0 %v1843
    %v1845 = vpop.f32.mrb[0].mxu0
    %v1846 = vadd.f32 %v1588, %v1845
    %v1847 = vpop.f32.mrb[0].mxu0
    %1848 = vmatprep.mubr.f32.mxu0 0.0
    %v1849 = vand.u32 %v122, 4294901760
    %1850 = vmatmul.mubr.f32.gmra.mrb[0].mxu0 %v1849
    %v1851 = vpop.f32.mrb[0].mxu0
    %v1852 = vadd.f32 %v1594, %v1851
    %v1853 = vpop.f32.mrb[0].mxu0
    %1854 = vmatprep.mubr.f32.mxu0 0.0
    %v1855 = vand.u32 %v125, 4294901760
    %1856 = vmatmul.mubr.f32.gmra.mrb[0].mxu0 %v1855
    %v1857 = vpop.f32.mrb[0].mxu0
    %v1858 = vadd.f32 %v1600, %v1857
    %v1859 = vpop.f32.mrb[0].mxu0
    %1860 = vmatprep.mubr.f32.mxu0 0.0
    %v1861 = vand.u32 %v128, 4294901760
    %1862 = vmatmul.mubr.f32.gmra.mrb[0].mxu0 %v1861
    %v1863 = vpop.f32.mrb[0].mxu0
    %v1864 = vadd.f32 %v1606, %v1863
    %v1865 = vpop.f32.mrb[0].mxu0
    %1866 = vmatprep.mubr.f32.mxu0 0.0
    %v1867 = vand.u32 %v131, 4294901760
    %1868 = vmatmul.mubr.f32.gmra.mrb[0].mxu0 %v1867
    %v1869 = vpop.f32.mrb[0].mxu0
    %v1870 = vadd.f32 %v1612, %v1869
    %v1871 = vpop.f32.mrb[0].mxu0
    %1872 = vmatprep.mubr.f32.mxu0 0.0
    %v1873 = vand.u32 %v134, 4294901760
    %1874 = vmatmul.mubr.f32.gmra.mrb[0].mxu0 %v1873
    %v1875 = vpop.f32.mrb[0].mxu0
    %v1876 = vadd.f32 %v1618, %v1875
    %v1877 = vpop.f32.mrb[0].mxu0
    %1878 = vmatprep.mubr.f32.mxu0 0.0
    %v1879 = vand.u32 %v137, 4294901760
    %1880 = vmatmul.mubr.f32.gmra.mrb[0].mxu0 %v1879
    %v1881 = vpop.f32.mrb[0].mxu0
    %v1882 = vadd.f32 %v1624, %v1881
    %v1883 = vpop.f32.mrb[0].mxu0
    %1884 = vmatprep.mubr.f32.mxu0 0.0
    %v1885 = vand.u32 %v140, 4294901760
    %1886 = vmatmul.mubr.f32.gmra.mrb[0].mxu0 %v1885
    %v1887 = vpop.f32.mrb[0].mxu0
    %v1888 = vadd.f32 %v1630, %v1887
    %v1889 = vpop.f32.mrb[0].mxu0
    %1890 = vmatprep.mubr.f32.mxu0 0.0
    %v1891 = vand.u32 %v143, 4294901760
    %1892 = vmatmul.mubr.f32.gmra.mrb[0].mxu0 %v1891
    %v1893 = vpop.f32.mrb[0].mxu0
    %v1894 = vadd.f32 %v1636, %v1893
    %v1895 = vpop.f32.mrb[0].mxu0
    %1896 = vmatprep.mubr.f32.mxu0 0.0
    %v1897 = vand.u32 %v146, 4294901760
    %1898 = vmatmul.mubr.f32.gmra.mrb[0].mxu0 %v1897
    %v1899 = vpop.f32.mrb[0].mxu0
    %v1900 = vadd.f32 %v1642, %v1899
    %v1901 = vpop.f32.mrb[0].mxu0
    %1902 = vmatprep.mubr.f32.mxu0 0.0
    %v1903 = vand.u32 %v149, 4294901760
    %1904 = vmatmul.mubr.f32.gmra.mrb[0].mxu0 %v1903
    %v1905 = vpop.f32.mrb[0].mxu0
    %v1906 = vadd.f32 %v1648, %v1905
    %v1907 = vpop.f32.mrb[0].mxu0
    %1908 = vmatprep.mubr.f32.mxu0 0.0
    %v1909 = vand.u32 %v152, 4294901760
    %1910 = vmatmul.mubr.f32.gmra.mrb[0].mxu0 %v1909
    %v1911 = vpop.f32.mrb[0].mxu0
    %v1912 = vadd.f32 %v1654, %v1911
    %v1913 = vpop.f32.mrb[0].mxu0
    %1914 = vmatprep.mubr.f32.mxu0 0.0
    %v1915 = vand.u32 %v155, 4294901760
    %1916 = vmatmul.mubr.f32.gmra.mrb[0].mxu0 %v1915
    %v1917 = vpop.f32.mrb[0].mxu0
    %v1918 = vadd.f32 %v1660, %v1917
    %v1919 = vpop.f32.mrb[0].mxu0
    %1920 = vmatprep.mubr.f32.mxu0 0.0
    %v1921 = vand.u32 %v158, 4294901760
    %1922 = vmatmul.mubr.f32.gmra.mrb[0].mxu0 %v1921
    %v1923 = vpop.f32.mrb[0].mxu0
    %v1924 = vadd.f32 %v1666, %v1923
    %v1925 = vpop.f32.mrb[0].mxu0
    %1926 = vmatprep.mubr.f32.mxu0 0.0
    %v1927 = vand.u32 %v161, 4294901760
    %1928 = vmatmul.mubr.f32.gmra.mrb[0].mxu0 %v1927
    %v1929 = vpop.f32.mrb[0].mxu0
    %v1930 = vadd.f32 %v1672, %v1929
    %v1931 = vpop.f32.mrb[0].mxu0
    %1932 = vmatprep.mubr.f32.mxu0 0.0
    %v1933 = vand.u32 %v164, 4294901760
    %1934 = vmatmul.mubr.f32.gmra.mrb[0].mxu0 %v1933
    %v1935 = vpop.f32.mrb[0].mxu0
    %v1936 = vadd.f32 %v1678, %v1935
    %v1937 = vpop.f32.mrb[0].mxu0
    %1938 = vmatprep.mubr.f32.mxu0 0.0
    %v1939 = vand.u32 %v167, 4294901760
    %1940 = vmatmul.mubr.f32.gmra.mrb[0].mxu0 %v1939
    %v1941 = vpop.f32.mrb[0].mxu0
    %v1942 = vadd.f32 %v1684, %v1941
    %v1943 = vpop.f32.mrb[0].mxu0
    %1944 = vmatprep.mubr.f32.mxu0 0.0
    %v1945 = vand.u32 %v170, 4294901760
    %1946 = vmatmul.mubr.f32.gmra.mrb[0].mxu0 %v1945
    %v1947 = vpop.f32.mrb[0].mxu0
    %v1948 = vadd.f32 %v1690, %v1947
    %v1949 = vpop.f32.mrb[0].mxu0
    %1950 = vdwg.mxu0
    %1951 = vst [vmem:[#allocation6] sm:$0xff] %v1762
    %1952 = vst [vmem:[#allocation6 + $0x8] sm:$0xff] %v1768
    %1953 = vst [vmem:[#allocation6 + $0x10] sm:$0xff] %v1774
    %1954 = vst [vmem:[#allocation6 + $0x18] sm:$0xff] %v1780
    %1955 = vst [vmem:[#allocation6 + $0x20] sm:$0xff] %v1786
    %1956 = vst [vmem:[#allocation6 + $0x28] sm:$0xff] %v1792
    %1957 = vst [vmem:[#allocation6 + $0x30] sm:$0xff] %v1798
    %1958 = vst [vmem:[#allocation6 + $0x38] sm:$0xff] %v1804
    %1959 = vst [vmem:[#allocation6 + $0x40] sm:$0xff] %v1810
    %1960 = vst [vmem:[#allocation6 + $0x48] sm:$0xff] %v1816
    %1961 = vst [vmem:[#allocation6 + $0x50] sm:$0xff] %v1822
    %1962 = vst [vmem:[#allocation6 + $0x58] sm:$0xff] %v1828
    %1963 = vst [vmem:[#allocation6 + $0x60] sm:$0xff] %v1834
    %1964 = vst [vmem:[#allocation6 + $0x68] sm:$0xff] %v1840
    %1965 = vst [vmem:[#allocation6 + $0x70] sm:$0xff] %v1846
    %1966 = vst [vmem:[#allocation6 + $0x78] sm:$0xff] %v1852
    %1967 = vst [vmem:[#allocation6 + $0x80] sm:$0xff] %v1858
    %1968 = vst [vmem:[#allocation6 + $0x88] sm:$0xff] %v1864
    %1969 = vst [vmem:[#allocation6 + $0x90] sm:$0xff] %v1870
    %1970 = vst [vmem:[#allocation6 + $0x98] sm:$0xff] %v1876
    %1971 = vst [vmem:[#allocation6 + $0xa0] sm:$0xff] %v1882
    %1972 = vst [vmem:[#allocation6 + $0xa8] sm:$0xff] %v1888
    %1973 = vst [vmem:[#allocation6 + $0xb0] sm:$0xff] %v1894
    %1974 = vst [vmem:[#allocation6 + $0xb8] sm:$0xff] %v1900
    %1975 = vst [vmem:[#allocation6 + $0xc0] sm:$0xff] %v1906
    %1976 = vst [vmem:[#allocation6 + $0xc8] sm:$0xff] %v1912
    %1977 = vst [vmem:[#allocation6 + $0xd0] sm:$0xff] %v1918
    %1978 = vst [vmem:[#allocation6 + $0xd8] sm:$0xff] %v1924
    %1979 = vst [vmem:[#allocation6 + $0xe0] sm:$0xff] %v1930
    %1980 = vst [vmem:[#allocation6 + $0xe8] sm:$0xff] %v1936
    %1981 = vst [vmem:[#allocation6 + $0xf0] sm:$0xff] %v1942
    %1982 = vst [vmem:[#allocation6 + $0xf8] sm:$0xff] %v1948
    loop: start=0, step=1, limit=256
    $region22: #{tpu_custom_call.1} parent=1 // loop_pre_header
      _
    $region23: #{tpu_custom_call.1} parent=1 // loop_header
      %s1984 = sphi 0, %s1988
      %p1985 = scmp.ge.s32.totalorder %s1984, 256
    $region24: #{tpu_custom_call.1} parent=1 // loop_header_branch
      %1987 = sbr.rel (%p1985) target = $region28
    $region25: #{tpu_custom_call.1} parent=1 // loop_body
      %s1989 = sadd.s32 %s33, %s1984
      %s1990 = sld [smem:[#allocation4 + %s1989]]
      %s1991 = sadd.s32 %s1989, 1
      %s1992 = sld [smem:[#allocation4 + %s1991]]
      // While loop
      $region29: #{tpu_custom_call.1} parent=25 // loop_pre_header
        _
      $region30: #{tpu_custom_call.1} parent=25 // loop_header
        %s1994 = sphi %s1990, %s1996
        %p1995 = scmp.ge.s32.totalorder %s1994, %s1992
        %v1999 = vphi 0.0, %v2003
      $region31: #{tpu_custom_call.1} parent=25 // loop_header_branch
        %1998 = sbr.rel (%p1995) target = $region35
      $region32: #{tpu_custom_call.1} parent=25 // loop_body
        %s2000 = sld [smem:[#allocation5 + %s1994]]
        %s2001 = scalar_lea.vmem %s2, %s2000
        %v2002 = vld [vmem:[%s2001] sm:$0x1]
        %v2003 = vadd.f32 %v1999, %v2002
      $region33: #{tpu_custom_call.1} parent=25 // loop_footer
        %s1996 = sadd.s32 %s1994, 1
      $region34: #{tpu_custom_call.1} parent=25 // loop_footer_branch
        %1993 = sbr.rel target = $region30
      $region35: #{tpu_custom_call.1} parent=25 // loop_exit
        _
      %s2004 = scalar_lea.vmem [#allocation2], %s1984
      %vm2005 = vcmask 57344
      %2006 = vst.msk [vmem:[%s2004] sm:$0x1] %vm2005, %v1999
    $region26: #{tpu_custom_call.1} parent=1 // loop_footer
      %s1988 = sadd.s32 1, %s1984
    $region27: #{tpu_custom_call.1} parent=1 // loop_footer_branch
      %1983 = sbr.rel target = $region23
    $region28: #{tpu_custom_call.1} parent=1 // loop_exit
      _
    %v2007 = vld [vmem:[#allocation2] sm:$0xff]
    %v2008 = vld [vmem:[#allocation2 + $0x8] sm:$0xff]
    %v2009 = vld [vmem:[#allocation2 + $0x10] sm:$0xff]
    %v2010 = vld [vmem:[#allocation2 + $0x18] sm:$0xff]
    %v2011 = vld [vmem:[#allocation2 + $0x20] sm:$0xff]
    %v2012 = vld [vmem:[#allocation2 + $0x28] sm:$0xff]
    %v2013 = vld [vmem:[#allocation2 + $0x30] sm:$0xff]
    %v2014 = vld [vmem:[#allocation2 + $0x38] sm:$0xff]
    %v2015 = vld [vmem:[#allocation2 + $0x40] sm:$0xff]
    %v2016 = vld [vmem:[#allocation2 + $0x48] sm:$0xff]
    %v2017 = vld [vmem:[#allocation2 + $0x50] sm:$0xff]
    %v2018 = vld [vmem:[#allocation2 + $0x58] sm:$0xff]
    %v2019 = vld [vmem:[#allocation2 + $0x60] sm:$0xff]
    %v2020 = vld [vmem:[#allocation2 + $0x68] sm:$0xff]
    %v2021 = vld [vmem:[#allocation2 + $0x70] sm:$0xff]
    %v2022 = vld [vmem:[#allocation2 + $0x78] sm:$0xff]
    %v2023 = vld [vmem:[#allocation2 + $0x80] sm:$0xff]
    %v2024 = vld [vmem:[#allocation2 + $0x88] sm:$0xff]
    %v2025 = vld [vmem:[#allocation2 + $0x90] sm:$0xff]
    %v2026 = vld [vmem:[#allocation2 + $0x98] sm:$0xff]
    %v2027 = vld [vmem:[#allocation2 + $0xa0] sm:$0xff]
    %v2028 = vld [vmem:[#allocation2 + $0xa8] sm:$0xff]
    %v2029 = vld [vmem:[#allocation2 + $0xb0] sm:$0xff]
    %v2030 = vld [vmem:[#allocation2 + $0xb8] sm:$0xff]
    %v2031 = vld [vmem:[#allocation2 + $0xc0] sm:$0xff]
    %v2032 = vld [vmem:[#allocation2 + $0xc8] sm:$0xff]
    %v2033 = vld [vmem:[#allocation2 + $0xd0] sm:$0xff]
    %v2034 = vld [vmem:[#allocation2 + $0xd8] sm:$0xff]
    %v2035 = vld [vmem:[#allocation2 + $0xe0] sm:$0xff]
    %v2036 = vld [vmem:[#allocation2 + $0xe8] sm:$0xff]
    %v2037 = vld [vmem:[#allocation2 + $0xf0] sm:$0xff]
    %v2038 = vld [vmem:[#allocation2 + $0xf8] sm:$0xff]
    %v2039 = vld [vmem:[%s3] sm:$0xff]
    %v2040 = vld [vmem:[%s3 + $0x8] sm:$0xff]
    %v2041 = vld [vmem:[%s3 + $0x10] sm:$0xff]
    %v2042 = vld [vmem:[%s3 + $0x18] sm:$0xff]
    %v2043 = vld [vmem:[%s3 + $0x20] sm:$0xff]
    %v2044 = vld [vmem:[%s3 + $0x28] sm:$0xff]
    %v2045 = vld [vmem:[%s3 + $0x30] sm:$0xff]
    %v2046 = vld [vmem:[%s3 + $0x38] sm:$0xff]
    %v2047 = vld [vmem:[%s3 + $0x40] sm:$0xff]
    %v2048 = vld [vmem:[%s3 + $0x48] sm:$0xff]
    %v2049 = vld [vmem:[%s3 + $0x50] sm:$0xff]
    %v2050 = vld [vmem:[%s3 + $0x58] sm:$0xff]
    %v2051 = vld [vmem:[%s3 + $0x60] sm:$0xff]
    %v2052 = vld [vmem:[%s3 + $0x68] sm:$0xff]
    %v2053 = vld [vmem:[%s3 + $0x70] sm:$0xff]
    %v2054 = vld [vmem:[%s3 + $0x78] sm:$0xff]
    %v2055 = vld [vmem:[%s3 + $0x80] sm:$0xff]
    %v2056 = vld [vmem:[%s3 + $0x88] sm:$0xff]
    %v2057 = vld [vmem:[%s3 + $0x90] sm:$0xff]
    %v2058 = vld [vmem:[%s3 + $0x98] sm:$0xff]
    %v2059 = vld [vmem:[%s3 + $0xa0] sm:$0xff]
    %v2060 = vld [vmem:[%s3 + $0xa8] sm:$0xff]
    %v2061 = vld [vmem:[%s3 + $0xb0] sm:$0xff]
    %v2062 = vld [vmem:[%s3 + $0xb8] sm:$0xff]
    %v2063 = vld [vmem:[%s3 + $0xc0] sm:$0xff]
    %v2064 = vld [vmem:[%s3 + $0xc8] sm:$0xff]
    %v2065 = vld [vmem:[%s3 + $0xd0] sm:$0xff]
    %v2066 = vld [vmem:[%s3 + $0xd8] sm:$0xff]
    %v2067 = vld [vmem:[%s3 + $0xe0] sm:$0xff]
    %v2068 = vld [vmem:[%s3 + $0xe8] sm:$0xff]
    %v2069 = vld [vmem:[%s3 + $0xf0] sm:$0xff]
    %v2070 = vld [vmem:[%s3 + $0xf8] sm:$0xff]
    %2072 = vset.pattern.permute.xlu0 0
    %2073 = vperm.xlu0 %2072, %v2039
    %v2074 = vpop.permute.xlu0 %2073
    %2077 = vset.pattern.permute.xlu0 0
    %2078 = vperm.xlu0 %2077, %v2040
    %v2079 = vpop.permute.xlu0 %2078
    %2082 = vset.pattern.permute.xlu0 0
    %2083 = vperm.xlu0 %2082, %v2041
    %v2084 = vpop.permute.xlu0 %2083
    %2087 = vset.pattern.permute.xlu0 0
    %2088 = vperm.xlu0 %2087, %v2042
    %v2089 = vpop.permute.xlu0 %2088
    %2092 = vset.pattern.permute.xlu0 0
    %2093 = vperm.xlu0 %2092, %v2043
    %v2094 = vpop.permute.xlu0 %2093
    %2097 = vset.pattern.permute.xlu0 0
    %2098 = vperm.xlu0 %2097, %v2044
    %v2099 = vpop.permute.xlu0 %2098
    %2102 = vset.pattern.permute.xlu0 0
    %2103 = vperm.xlu0 %2102, %v2045
    %v2104 = vpop.permute.xlu0 %2103
    %2107 = vset.pattern.permute.xlu0 0
    %2108 = vperm.xlu0 %2107, %v2046
    %v2109 = vpop.permute.xlu0 %2108
    %2112 = vset.pattern.permute.xlu0 0
    %2113 = vperm.xlu0 %2112, %v2047
    %v2114 = vpop.permute.xlu0 %2113
    %2117 = vset.pattern.permute.xlu0 0
    %2118 = vperm.xlu0 %2117, %v2048
    %v2119 = vpop.permute.xlu0 %2118
    %2122 = vset.pattern.permute.xlu0 0
    %2123 = vperm.xlu0 %2122, %v2049
    %v2124 = vpop.permute.xlu0 %2123
    %2127 = vset.pattern.permute.xlu0 0
    %2128 = vperm.xlu0 %2127, %v2050
    %v2129 = vpop.permute.xlu0 %2128
    %2132 = vset.pattern.permute.xlu0 0
    %2133 = vperm.xlu0 %2132, %v2051
    %v2134 = vpop.permute.xlu0 %2133
    %2137 = vset.pattern.permute.xlu0 0
    %2138 = vperm.xlu0 %2137, %v2052
    %v2139 = vpop.permute.xlu0 %2138
    %2142 = vset.pattern.permute.xlu0 0
    %2143 = vperm.xlu0 %2142, %v2053
    %v2144 = vpop.permute.xlu0 %2143
    %2147 = vset.pattern.permute.xlu0 0
    %2148 = vperm.xlu0 %2147, %v2054
    %v2149 = vpop.permute.xlu0 %2148
    %2152 = vset.pattern.permute.xlu0 0
    %2153 = vperm.xlu0 %2152, %v2055
    %v2154 = vpop.permute.xlu0 %2153
    %2157 = vset.pattern.permute.xlu0 0
    %2158 = vperm.xlu0 %2157, %v2056
    %v2159 = vpop.permute.xlu0 %2158
    %2162 = vset.pattern.permute.xlu0 0
    %2163 = vperm.xlu0 %2162, %v2057
    %v2164 = vpop.permute.xlu0 %2163
    %2167 = vset.pattern.permute.xlu0 0
    %2168 = vperm.xlu0 %2167, %v2058
    %v2169 = vpop.permute.xlu0 %2168
    %2172 = vset.pattern.permute.xlu0 0
    %2173 = vperm.xlu0 %2172, %v2059
    %v2174 = vpop.permute.xlu0 %2173
    %2177 = vset.pattern.permute.xlu0 0
    %2178 = vperm.xlu0 %2177, %v2060
    %v2179 = vpop.permute.xlu0 %2178
    %2182 = vset.pattern.permute.xlu0 0
    %2183 = vperm.xlu0 %2182, %v2061
    %v2184 = vpop.permute.xlu0 %2183
    %2187 = vset.pattern.permute.xlu0 0
    %2188 = vperm.xlu0 %2187, %v2062
    %v2189 = vpop.permute.xlu0 %2188
    %2192 = vset.pattern.permute.xlu0 0
    %2193 = vperm.xlu0 %2192, %v2063
    %v2194 = vpop.permute.xlu0 %2193
    %2197 = vset.pattern.permute.xlu0 0
    %2198 = vperm.xlu0 %2197, %v2064
    %v2199 = vpop.permute.xlu0 %2198
    %2202 = vset.pattern.permute.xlu0 0
    %2203 = vperm.xlu0 %2202, %v2065
    %v2204 = vpop.permute.xlu0 %2203
    %2207 = vset.pattern.permute.xlu0 0
    %2208 = vperm.xlu0 %2207, %v2066
    %v2209 = vpop.permute.xlu0 %2208
    %2212 = vset.pattern.permute.xlu0 0
    %2213 = vperm.xlu0 %2212, %v2067
    %v2214 = vpop.permute.xlu0 %2213
    %2217 = vset.pattern.permute.xlu0 0
    %2218 = vperm.xlu0 %2217, %v2068
    %v2219 = vpop.permute.xlu0 %2218
    %2222 = vset.pattern.permute.xlu0 0
    %2223 = vperm.xlu0 %2222, %v2069
    %v2224 = vpop.permute.xlu0 %2223
    %2227 = vset.pattern.permute.xlu0 0
    %2228 = vperm.xlu0 %2227, %v2070
    %v2229 = vpop.permute.xlu0 %2228
    %v2231 = vmul.f32 %v2007, %v2074
    %v2232 = vmul.f32 %v2008, %v2079
    %v2233 = vmul.f32 %v2009, %v2084
    %v2234 = vmul.f32 %v2010, %v2089
    %v2235 = vmul.f32 %v2011, %v2094
    %v2236 = vmul.f32 %v2012, %v2099
    %v2237 = vmul.f32 %v2013, %v2104
    %v2238 = vmul.f32 %v2014, %v2109
    %v2239 = vmul.f32 %v2015, %v2114
    %v2240 = vmul.f32 %v2016, %v2119
    %v2241 = vmul.f32 %v2017, %v2124
    %v2242 = vmul.f32 %v2018, %v2129
    %v2243 = vmul.f32 %v2019, %v2134
    %v2244 = vmul.f32 %v2020, %v2139
    %v2245 = vmul.f32 %v2021, %v2144
    %v2246 = vmul.f32 %v2022, %v2149
    %v2247 = vmul.f32 %v2023, %v2154
    %v2248 = vmul.f32 %v2024, %v2159
    %v2249 = vmul.f32 %v2025, %v2164
    %v2250 = vmul.f32 %v2026, %v2169
    %v2251 = vmul.f32 %v2027, %v2174
    %v2252 = vmul.f32 %v2028, %v2179
    %v2253 = vmul.f32 %v2029, %v2184
    %v2254 = vmul.f32 %v2030, %v2189
    %v2255 = vmul.f32 %v2031, %v2194
    %v2256 = vmul.f32 %v2032, %v2199
    %v2257 = vmul.f32 %v2033, %v2204
    %v2258 = vmul.f32 %v2034, %v2209
    %v2259 = vmul.f32 %v2035, %v2214
    %v2260 = vmul.f32 %v2036, %v2219
    %v2261 = vmul.f32 %v2037, %v2224
    %v2262 = vmul.f32 %v2038, %v2229
    %v2263 = vld [vmem:[%s4] sm:$0xff]
    %v2264 = vld [vmem:[#allocation6] sm:$0xff]
    %v2265 = vld [vmem:[#allocation6 + $0x8] sm:$0xff]
    %v2266 = vld [vmem:[#allocation6 + $0x10] sm:$0xff]
    %v2267 = vld [vmem:[#allocation6 + $0x18] sm:$0xff]
    %v2268 = vld [vmem:[#allocation6 + $0x20] sm:$0xff]
    %v2269 = vld [vmem:[#allocation6 + $0x28] sm:$0xff]
    %v2270 = vld [vmem:[#allocation6 + $0x30] sm:$0xff]
    %v2271 = vld [vmem:[#allocation6 + $0x38] sm:$0xff]
    %v2272 = vld [vmem:[#allocation6 + $0x40] sm:$0xff]
    %v2273 = vld [vmem:[#allocation6 + $0x48] sm:$0xff]
    %v2274 = vld [vmem:[#allocation6 + $0x50] sm:$0xff]
    %v2275 = vld [vmem:[#allocation6 + $0x58] sm:$0xff]
    %v2276 = vld [vmem:[#allocation6 + $0x60] sm:$0xff]
    %v2277 = vld [vmem:[#allocation6 + $0x68] sm:$0xff]
    %v2278 = vld [vmem:[#allocation6 + $0x70] sm:$0xff]
    %v2279 = vld [vmem:[#allocation6 + $0x78] sm:$0xff]
    %v2280 = vld [vmem:[#allocation6 + $0x80] sm:$0xff]
    %v2281 = vld [vmem:[#allocation6 + $0x88] sm:$0xff]
    %v2282 = vld [vmem:[#allocation6 + $0x90] sm:$0xff]
    %v2283 = vld [vmem:[#allocation6 + $0x98] sm:$0xff]
    %v2284 = vld [vmem:[#allocation6 + $0xa0] sm:$0xff]
    %v2285 = vld [vmem:[#allocation6 + $0xa8] sm:$0xff]
    %v2286 = vld [vmem:[#allocation6 + $0xb0] sm:$0xff]
    %v2287 = vld [vmem:[#allocation6 + $0xb8] sm:$0xff]
    %v2288 = vld [vmem:[#allocation6 + $0xc0] sm:$0xff]
    %v2289 = vld [vmem:[#allocation6 + $0xc8] sm:$0xff]
    %v2290 = vld [vmem:[#allocation6 + $0xd0] sm:$0xff]
    %v2291 = vld [vmem:[#allocation6 + $0xd8] sm:$0xff]
    %v2292 = vld [vmem:[#allocation6 + $0xe0] sm:$0xff]
    %v2293 = vld [vmem:[#allocation6 + $0xe8] sm:$0xff]
    %v2294 = vld [vmem:[#allocation6 + $0xf0] sm:$0xff]
    %v2295 = vld [vmem:[#allocation6 + $0xf8] sm:$0xff]
    %v2297 = vsel %vm75, %v2231, 0
    %v2300 = vsel %vm75, %v2232, 0
    %v2303 = vsel %vm75, %v2233, 0
    %v2306 = vsel %vm75, %v2234, 0
    %v2309 = vsel %vm75, %v2235, 0
    %v2312 = vsel %vm75, %v2236, 0
    %v2315 = vsel %vm75, %v2237, 0
    %v2318 = vsel %vm75, %v2238, 0
    %v2321 = vsel %vm75, %v2239, 0
    %v2324 = vsel %vm75, %v2240, 0
    %v2327 = vsel %vm75, %v2241, 0
    %v2330 = vsel %vm75, %v2242, 0
    %v2333 = vsel %vm75, %v2243, 0
    %v2336 = vsel %vm75, %v2244, 0
    %v2339 = vsel %vm75, %v2245, 0
    %v2342 = vsel %vm75, %v2246, 0
    %v2345 = vsel %vm75, %v2247, 0
    %v2348 = vsel %vm75, %v2248, 0
    %v2351 = vsel %vm75, %v2249, 0
    %v2354 = vsel %vm75, %v2250, 0
    %v2357 = vsel %vm75, %v2251, 0
    %v2360 = vsel %vm75, %v2252, 0
    %v2363 = vsel %vm75, %v2253, 0
    %v2366 = vsel %vm75, %v2254, 0
    %v2369 = vsel %vm75, %v2255, 0
    %v2372 = vsel %vm75, %v2256, 0
    %v2375 = vsel %vm75, %v2257, 0
    %v2378 = vsel %vm75, %v2258, 0
    %v2381 = vsel %vm75, %v2259, 0
    %v2384 = vsel %vm75, %v2260, 0
    %v2387 = vsel %vm75, %v2261, 0
    %v2390 = vsel %vm75, %v2262, 0
    %2392 = vmatprep.subr.mxu0 0.0
    %v2393 = vand.u32 %v2263, 4294901760
    %2394 = vmatpush1.msra.mxu0 %v2393
    %2395 = vmatprep.subr.mxu0 0.0
    %2396 = vmatpush1.msra.mxu0 0.0
    %2397 = vmatprep.subr.mxu0 0.0
    %2398 = vmatpush1.msra.mxu0 0.0
    %2399 = vmatprep.subr.mxu0 0.0
    %2400 = vmatpush1.msra.mxu0 0.0
    %2401 = vmatprep.subr.mxu0 0.0
    %2402 = vmatpush1.msra.mxu0 0.0
    %2403 = vmatprep.subr.mxu0 0.0
    %2404 = vmatpush1.msra.mxu0 0.0
    %2405 = vmatprep.subr.mxu0 0.0
    %2406 = vmatpush1.msra.mxu0 0.0
    %2407 = vmatprep.subr.mxu0 0.0
    %2408 = vmatpush1.msra.mxu0 0.0
    %2409 = vmatprep.subr.mxu0 0.0
    %2410 = vmatpush1.msra.mxu0 0.0
    %2411 = vmatprep.subr.mxu0 0.0
    %2412 = vmatpush1.msra.mxu0 0.0
    %2413 = vmatprep.subr.mxu0 0.0
    %2414 = vmatpush1.msra.mxu0 0.0
    %2415 = vmatprep.subr.mxu0 0.0
    %2416 = vmatpush1.msra.mxu0 0.0
    %2417 = vmatprep.subr.mxu0 0.0
    %2418 = vmatpush1.msra.mxu0 0.0
    %2419 = vmatprep.subr.mxu0 0.0
    %2420 = vmatpush1.msra.mxu0 0.0
    %2421 = vmatprep.subr.mxu0 0.0
    %2422 = vmatpush1.msra.mxu0 0.0
    %2423 = vmatprep.subr.mxu0 0.0
    %2424 = vmatpush1.msra.mxu0 0.0
    %2425 = vmatprep.subr.mxu0 0.0
    %2426 = vmatpush1.msra.mxu0 0.0
    %2427 = vmatprep.subr.mxu0 0.0
    %2428 = vmatpush1.msra.mxu0 0.0
    %2429 = vmatprep.subr.mxu0 0.0
    %2430 = vmatpush1.msra.mxu0 0.0
    %2431 = vmatprep.subr.mxu0 0.0
    %2432 = vmatpush1.msra.mxu0 0.0
    %2433 = vmatprep.subr.mxu0 0.0
    %2434 = vmatpush1.msra.mxu0 0.0
    %2435 = vmatprep.subr.mxu0 0.0
    %2436 = vmatpush1.msra.mxu0 0.0
    %2437 = vmatprep.subr.mxu0 0.0
    %2438 = vmatpush1.msra.mxu0 0.0
    %2439 = vmatprep.subr.mxu0 0.0
    %2440 = vmatpush1.msra.mxu0 0.0
    %2441 = vmatprep.subr.mxu0 0.0
    %2442 = vmatpush1.msra.mxu0 0.0
    %2443 = vmatprep.subr.mxu0 0.0
    %2444 = vmatpush1.msra.mxu0 0.0
    %2445 = vmatprep.subr.mxu0 0.0
    %2446 = vmatpush1.msra.mxu0 0.0
    %2447 = vmatprep.subr.mxu0 0.0
    %2448 = vmatpush1.msra.mxu0 0.0
    %2449 = vmatprep.subr.mxu0 0.0
    %2450 = vmatpush1.msra.mxu0 0.0
    %2451 = vmatprep.subr.mxu0 0.0
    %2452 = vmatpush1.msra.mxu0 0.0
    %2453 = vmatprep.subr.mxu0 0.0
    %2454 = vmatpush1.msra.mxu0 0.0
    %2455 = vmatprep.subr.mxu0 0.0
    %2456 = vmatpush1.msra.mxu0 0.0
    %2457 = vmatprep.mubr.f32.mxu0 0.0
    %v2458 = vand.u32 %v2297, 4294901760
    %v2459 = vsub.f32 %v2297, %v2458
    %v2460 = vand.u32 %v2459, 4294901760
    %v2461 = vsub.f32 %v2459, %v2460
    %v2462 = vand.u32 %v2461, 4294901760
    %2463 = vmatmul.mubr.f32.gmra.mrb[0].mxu0 %v2462
    %v2464 = vpop.f32.mrb[0].mxu0
    %v2465 = vadd.f32 %v2264, %v2464
    %v2466 = vpop.f32.mrb[0].mxu0
    %2467 = vmatprep.mubr.f32.mxu0 0.0
    %v2468 = vand.u32 %v2300, 4294901760
    %v2469 = vsub.f32 %v2300, %v2468
    %v2470 = vand.u32 %v2469, 4294901760
    %v2471 = vsub.f32 %v2469, %v2470
    %v2472 = vand.u32 %v2471, 4294901760
    %2473 = vmatmul.mubr.f32.gmra.mrb[0].mxu0 %v2472
    %v2474 = vpop.f32.mrb[0].mxu0
    %v2475 = vadd.f32 %v2265, %v2474
    %v2476 = vpop.f32.mrb[0].mxu0
    %2477 = vmatprep.mubr.f32.mxu0 0.0
    %v2478 = vand.u32 %v2303, 4294901760
    %v2479 = vsub.f32 %v2303, %v2478
    %v2480 = vand.u32 %v2479, 4294901760
    %v2481 = vsub.f32 %v2479, %v2480
    %v2482 = vand.u32 %v2481, 4294901760
    %2483 = vmatmul.mubr.f32.gmra.mrb[0].mxu0 %v2482
    %v2484 = vpop.f32.mrb[0].mxu0
    %v2485 = vadd.f32 %v2266, %v2484
    %v2486 = vpop.f32.mrb[0].mxu0
    %2487 = vmatprep.mubr.f32.mxu0 0.0
    %v2488 = vand.u32 %v2306, 4294901760
    %v2489 = vsub.f32 %v2306, %v2488
    %v2490 = vand.u32 %v2489, 4294901760
    %v2491 = vsub.f32 %v2489, %v2490
    %v2492 = vand.u32 %v2491, 4294901760
    %2493 = vmatmul.mubr.f32.gmra.mrb[0].mxu0 %v2492
    %v2494 = vpop.f32.mrb[0].mxu0
    %v2495 = vadd.f32 %v2267, %v2494
    %v2496 = vpop.f32.mrb[0].mxu0
    %2497 = vmatprep.mubr.f32.mxu0 0.0
    %v2498 = vand.u32 %v2309, 4294901760
    %v2499 = vsub.f32 %v2309, %v2498
    %v2500 = vand.u32 %v2499, 4294901760
    %v2501 = vsub.f32 %v2499, %v2500
    %v2502 = vand.u32 %v2501, 4294901760
    %2503 = vmatmul.mubr.f32.gmra.mrb[0].mxu0 %v2502
    %v2504 = vpop.f32.mrb[0].mxu0
    %v2505 = vadd.f32 %v2268, %v2504
    %v2506 = vpop.f32.mrb[0].mxu0
    %2507 = vmatprep.mubr.f32.mxu0 0.0
    %v2508 = vand.u32 %v2312, 4294901760
    %v2509 = vsub.f32 %v2312, %v2508
    %v2510 = vand.u32 %v2509, 4294901760
    %v2511 = vsub.f32 %v2509, %v2510
    %v2512 = vand.u32 %v2511, 4294901760
    %2513 = vmatmul.mubr.f32.gmra.mrb[0].mxu0 %v2512
    %v2514 = vpop.f32.mrb[0].mxu0
    %v2515 = vadd.f32 %v2269, %v2514
    %v2516 = vpop.f32.mrb[0].mxu0
    %2517 = vmatprep.mubr.f32.mxu0 0.0
    %v2518 = vand.u32 %v2315, 4294901760
    %v2519 = vsub.f32 %v2315, %v2518
    %v2520 = vand.u32 %v2519, 4294901760
    %v2521 = vsub.f32 %v2519, %v2520
    %v2522 = vand.u32 %v2521, 4294901760
    %2523 = vmatmul.mubr.f32.gmra.mrb[0].mxu0 %v2522
    %v2524 = vpop.f32.mrb[0].mxu0
    %v2525 = vadd.f32 %v2270, %v2524
    %v2526 = vpop.f32.mrb[0].mxu0
    %2527 = vmatprep.mubr.f32.mxu0 0.0
    %v2528 = vand.u32 %v2318, 4294901760
    %v2529 = vsub.f32 %v2318, %v2528
    %v2530 = vand.u32 %v2529, 4294901760
    %v2531 = vsub.f32 %v2529, %v2530
    %v2532 = vand.u32 %v2531, 4294901760
    %2533 = vmatmul.mubr.f32.gmra.mrb[0].mxu0 %v2532
    %v2534 = vpop.f32.mrb[0].mxu0
    %v2535 = vadd.f32 %v2271, %v2534
    %v2536 = vpop.f32.mrb[0].mxu0
    %2537 = vmatprep.mubr.f32.mxu0 0.0
    %v2538 = vand.u32 %v2321, 4294901760
    %v2539 = vsub.f32 %v2321, %v2538
    %v2540 = vand.u32 %v2539, 4294901760
    %v2541 = vsub.f32 %v2539, %v2540
    %v2542 = vand.u32 %v2541, 4294901760
    %2543 = vmatmul.mubr.f32.gmra.mrb[0].mxu0 %v2542
    %v2544 = vpop.f32.mrb[0].mxu0
    %v2545 = vadd.f32 %v2272, %v2544
    %v2546 = vpop.f32.mrb[0].mxu0
    %2547 = vmatprep.mubr.f32.mxu0 0.0
    %v2548 = vand.u32 %v2324, 4294901760
    %v2549 = vsub.f32 %v2324, %v2548
    %v2550 = vand.u32 %v2549, 4294901760
    %v2551 = vsub.f32 %v2549, %v2550
    %v2552 = vand.u32 %v2551, 4294901760
    %2553 = vmatmul.mubr.f32.gmra.mrb[0].mxu0 %v2552
    %v2554 = vpop.f32.mrb[0].mxu0
    %v2555 = vadd.f32 %v2273, %v2554
    %v2556 = vpop.f32.mrb[0].mxu0
    %2557 = vmatprep.mubr.f32.mxu0 0.0
    %v2558 = vand.u32 %v2327, 4294901760
    %v2559 = vsub.f32 %v2327, %v2558
    %v2560 = vand.u32 %v2559, 4294901760
    %v2561 = vsub.f32 %v2559, %v2560
    %v2562 = vand.u32 %v2561, 4294901760
    %2563 = vmatmul.mubr.f32.gmra.mrb[0].mxu0 %v2562
    %v2564 = vpop.f32.mrb[0].mxu0
    %v2565 = vadd.f32 %v2274, %v2564
    %v2566 = vpop.f32.mrb[0].mxu0
    %2567 = vmatprep.mubr.f32.mxu0 0.0
    %v2568 = vand.u32 %v2330, 4294901760
    %v2569 = vsub.f32 %v2330, %v2568
    %v2570 = vand.u32 %v2569, 4294901760
    %v2571 = vsub.f32 %v2569, %v2570
    %v2572 = vand.u32 %v2571, 4294901760
    %2573 = vmatmul.mubr.f32.gmra.mrb[0].mxu0 %v2572
    %v2574 = vpop.f32.mrb[0].mxu0
    %v2575 = vadd.f32 %v2275, %v2574
    %v2576 = vpop.f32.mrb[0].mxu0
    %2577 = vmatprep.mubr.f32.mxu0 0.0
    %v2578 = vand.u32 %v2333, 4294901760
    %v2579 = vsub.f32 %v2333, %v2578
    %v2580 = vand.u32 %v2579, 4294901760
    %v2581 = vsub.f32 %v2579, %v2580
    %v2582 = vand.u32 %v2581, 4294901760
    %2583 = vmatmul.mubr.f32.gmra.mrb[0].mxu0 %v2582
    %v2584 = vpop.f32.mrb[0].mxu0
    %v2585 = vadd.f32 %v2276, %v2584
    %v2586 = vpop.f32.mrb[0].mxu0
    %2587 = vmatprep.mubr.f32.mxu0 0.0
    %v2588 = vand.u32 %v2336, 4294901760
    %v2589 = vsub.f32 %v2336, %v2588
    %v2590 = vand.u32 %v2589, 4294901760
    %v2591 = vsub.f32 %v2589, %v2590
    %v2592 = vand.u32 %v2591, 4294901760
    %2593 = vmatmul.mubr.f32.gmra.mrb[0].mxu0 %v2592
    %v2594 = vpop.f32.mrb[0].mxu0
    %v2595 = vadd.f32 %v2277, %v2594
    %v2596 = vpop.f32.mrb[0].mxu0
    %2597 = vmatprep.mubr.f32.mxu0 0.0
    %v2598 = vand.u32 %v2339, 4294901760
    %v2599 = vsub.f32 %v2339, %v2598
    %v2600 = vand.u32 %v2599, 4294901760
    %v2601 = vsub.f32 %v2599, %v2600
    %v2602 = vand.u32 %v2601, 4294901760
    %2603 = vmatmul.mubr.f32.gmra.mrb[0].mxu0 %v2602
    %v2604 = vpop.f32.mrb[0].mxu0
    %v2605 = vadd.f32 %v2278, %v2604
    %v2606 = vpop.f32.mrb[0].mxu0
    %2607 = vmatprep.mubr.f32.mxu0 0.0
    %v2608 = vand.u32 %v2342, 4294901760
    %v2609 = vsub.f32 %v2342, %v2608
    %v2610 = vand.u32 %v2609, 4294901760
    %v2611 = vsub.f32 %v2609, %v2610
    %v2612 = vand.u32 %v2611, 4294901760
    %2613 = vmatmul.mubr.f32.gmra.mrb[0].mxu0 %v2612
    %v2614 = vpop.f32.mrb[0].mxu0
    %v2615 = vadd.f32 %v2279, %v2614
    %v2616 = vpop.f32.mrb[0].mxu0
    %2617 = vmatprep.mubr.f32.mxu0 0.0
    %v2618 = vand.u32 %v2345, 4294901760
    %v2619 = vsub.f32 %v2345, %v2618
    %v2620 = vand.u32 %v2619, 4294901760
    %v2621 = vsub.f32 %v2619, %v2620
    %v2622 = vand.u32 %v2621, 4294901760
    %2623 = vmatmul.mubr.f32.gmra.mrb[0].mxu0 %v2622
    %v2624 = vpop.f32.mrb[0].mxu0
    %v2625 = vadd.f32 %v2280, %v2624
    %v2626 = vpop.f32.mrb[0].mxu0
    %2627 = vmatprep.mubr.f32.mxu0 0.0
    %v2628 = vand.u32 %v2348, 4294901760
    %v2629 = vsub.f32 %v2348, %v2628
    %v2630 = vand.u32 %v2629, 4294901760
    %v2631 = vsub.f32 %v2629, %v2630
    %v2632 = vand.u32 %v2631, 4294901760
    %2633 = vmatmul.mubr.f32.gmra.mrb[0].mxu0 %v2632
    %v2634 = vpop.f32.mrb[0].mxu0
    %v2635 = vadd.f32 %v2281, %v2634
    %v2636 = vpop.f32.mrb[0].mxu0
    %2637 = vmatprep.mubr.f32.mxu0 0.0
    %v2638 = vand.u32 %v2351, 4294901760
    %v2639 = vsub.f32 %v2351, %v2638
    %v2640 = vand.u32 %v2639, 4294901760
    %v2641 = vsub.f32 %v2639, %v2640
    %v2642 = vand.u32 %v2641, 4294901760
    %2643 = vmatmul.mubr.f32.gmra.mrb[0].mxu0 %v2642
    %v2644 = vpop.f32.mrb[0].mxu0
    %v2645 = vadd.f32 %v2282, %v2644
    %v2646 = vpop.f32.mrb[0].mxu0
    %2647 = vmatprep.mubr.f32.mxu0 0.0
    %v2648 = vand.u32 %v2354, 4294901760
    %v2649 = vsub.f32 %v2354, %v2648
    %v2650 = vand.u32 %v2649, 4294901760
    %v2651 = vsub.f32 %v2649, %v2650
    %v2652 = vand.u32 %v2651, 4294901760
    %2653 = vmatmul.mubr.f32.gmra.mrb[0].mxu0 %v2652
    %v2654 = vpop.f32.mrb[0].mxu0
    %v2655 = vadd.f32 %v2283, %v2654
    %v2656 = vpop.f32.mrb[0].mxu0
    %2657 = vmatprep.mubr.f32.mxu0 0.0
    %v2658 = vand.u32 %v2357, 4294901760
    %v2659 = vsub.f32 %v2357, %v2658
    %v2660 = vand.u32 %v2659, 4294901760
    %v2661 = vsub.f32 %v2659, %v2660
    %v2662 = vand.u32 %v2661, 4294901760
    %2663 = vmatmul.mubr.f32.gmra.mrb[0].mxu0 %v2662
    %v2664 = vpop.f32.mrb[0].mxu0
    %v2665 = vadd.f32 %v2284, %v2664
    %v2666 = vpop.f32.mrb[0].mxu0
    %2667 = vmatprep.mubr.f32.mxu0 0.0
    %v2668 = vand.u32 %v2360, 4294901760
    %v2669 = vsub.f32 %v2360, %v2668
    %v2670 = vand.u32 %v2669, 4294901760
    %v2671 = vsub.f32 %v2669, %v2670
    %v2672 = vand.u32 %v2671, 4294901760
    %2673 = vmatmul.mubr.f32.gmra.mrb[0].mxu0 %v2672
    %v2674 = vpop.f32.mrb[0].mxu0
    %v2675 = vadd.f32 %v2285, %v2674
    %v2676 = vpop.f32.mrb[0].mxu0
    %2677 = vmatprep.mubr.f32.mxu0 0.0
    %v2678 = vand.u32 %v2363, 4294901760
    %v2679 = vsub.f32 %v2363, %v2678
    %v2680 = vand.u32 %v2679, 4294901760
    %v2681 = vsub.f32 %v2679, %v2680
    %v2682 = vand.u32 %v2681, 4294901760
    %2683 = vmatmul.mubr.f32.gmra.mrb[0].mxu0 %v2682
    %v2684 = vpop.f32.mrb[0].mxu0
    %v2685 = vadd.f32 %v2286, %v2684
    %v2686 = vpop.f32.mrb[0].mxu0
    %2687 = vmatprep.mubr.f32.mxu0 0.0
    %v2688 = vand.u32 %v2366, 4294901760
    %v2689 = vsub.f32 %v2366, %v2688
    %v2690 = vand.u32 %v2689, 4294901760
    %v2691 = vsub.f32 %v2689, %v2690
    %v2692 = vand.u32 %v2691, 4294901760
    %2693 = vmatmul.mubr.f32.gmra.mrb[0].mxu0 %v2692
    %v2694 = vpop.f32.mrb[0].mxu0
    %v2695 = vadd.f32 %v2287, %v2694
    %v2696 = vpop.f32.mrb[0].mxu0
    %2697 = vmatprep.mubr.f32.mxu0 0.0
    %v2698 = vand.u32 %v2369, 4294901760
    %v2699 = vsub.f32 %v2369, %v2698
    %v2700 = vand.u32 %v2699, 4294901760
    %v2701 = vsub.f32 %v2699, %v2700
    %v2702 = vand.u32 %v2701, 4294901760
    %2703 = vmatmul.mubr.f32.gmra.mrb[0].mxu0 %v2702
    %v2704 = vpop.f32.mrb[0].mxu0
    %v2705 = vadd.f32 %v2288, %v2704
    %v2706 = vpop.f32.mrb[0].mxu0
    %2707 = vmatprep.mubr.f32.mxu0 0.0
    %v2708 = vand.u32 %v2372, 4294901760
    %v2709 = vsub.f32 %v2372, %v2708
    %v2710 = vand.u32 %v2709, 4294901760
    %v2711 = vsub.f32 %v2709, %v2710
    %v2712 = vand.u32 %v2711, 4294901760
    %2713 = vmatmul.mubr.f32.gmra.mrb[0].mxu0 %v2712
    %v2714 = vpop.f32.mrb[0].mxu0
    %v2715 = vadd.f32 %v2289, %v2714
    %v2716 = vpop.f32.mrb[0].mxu0
    %2717 = vmatprep.mubr.f32.mxu0 0.0
    %v2718 = vand.u32 %v2375, 4294901760
    %v2719 = vsub.f32 %v2375, %v2718
    %v2720 = vand.u32 %v2719, 4294901760
    %v2721 = vsub.f32 %v2719, %v2720
    %v2722 = vand.u32 %v2721, 4294901760
    %2723 = vmatmul.mubr.f32.gmra.mrb[0].mxu0 %v2722
    %v2724 = vpop.f32.mrb[0].mxu0
    %v2725 = vadd.f32 %v2290, %v2724
    %v2726 = vpop.f32.mrb[0].mxu0
    %2727 = vmatprep.mubr.f32.mxu0 0.0
    %v2728 = vand.u32 %v2378, 4294901760
    %v2729 = vsub.f32 %v2378, %v2728
    %v2730 = vand.u32 %v2729, 4294901760
    %v2731 = vsub.f32 %v2729, %v2730
    %v2732 = vand.u32 %v2731, 4294901760
    %2733 = vmatmul.mubr.f32.gmra.mrb[0].mxu0 %v2732
    %v2734 = vpop.f32.mrb[0].mxu0
    %v2735 = vadd.f32 %v2291, %v2734
    %v2736 = vpop.f32.mrb[0].mxu0
    %2737 = vmatprep.mubr.f32.mxu0 0.0
    %v2738 = vand.u32 %v2381, 4294901760
    %v2739 = vsub.f32 %v2381, %v2738
    %v2740 = vand.u32 %v2739, 4294901760
    %v2741 = vsub.f32 %v2739, %v2740
    %v2742 = vand.u32 %v2741, 4294901760
    %2743 = vmatmul.mubr.f32.gmra.mrb[0].mxu0 %v2742
    %v2744 = vpop.f32.mrb[0].mxu0
    %v2745 = vadd.f32 %v2292, %v2744
    %v2746 = vpop.f32.mrb[0].mxu0
    %2747 = vmatprep.mubr.f32.mxu0 0.0
    %v2748 = vand.u32 %v2384, 4294901760
    %v2749 = vsub.f32 %v2384, %v2748
    %v2750 = vand.u32 %v2749, 4294901760
    %v2751 = vsub.f32 %v2749, %v2750
    %v2752 = vand.u32 %v2751, 4294901760
    %2753 = vmatmul.mubr.f32.gmra.mrb[0].mxu0 %v2752
    %v2754 = vpop.f32.mrb[0].mxu0
    %v2755 = vadd.f32 %v2293, %v2754
    %v2756 = vpop.f32.mrb[0].mxu0
    %2757 = vmatprep.mubr.f32.mxu0 0.0
    %v2758 = vand.u32 %v2387, 4294901760
    %v2759 = vsub.f32 %v2387, %v2758
    %v2760 = vand.u32 %v2759, 4294901760
    %v2761 = vsub.f32 %v2759, %v2760
    %v2762 = vand.u32 %v2761, 4294901760
    %2763 = vmatmul.mubr.f32.gmra.mrb[0].mxu0 %v2762
    %v2764 = vpop.f32.mrb[0].mxu0
    %v2765 = vadd.f32 %v2294, %v2764
    %v2766 = vpop.f32.mrb[0].mxu0
    %2767 = vmatprep.mubr.f32.mxu0 0.0
    %v2768 = vand.u32 %v2390, 4294901760
    %v2769 = vsub.f32 %v2390, %v2768
    %v2770 = vand.u32 %v2769, 4294901760
    %v2771 = vsub.f32 %v2769, %v2770
    %v2772 = vand.u32 %v2771, 4294901760
    %2773 = vmatmul.mubr.f32.gmra.mrb[0].mxu0 %v2772
    %v2774 = vpop.f32.mrb[0].mxu0
    %v2775 = vadd.f32 %v2295, %v2774
    %v2776 = vpop.f32.mrb[0].mxu0
    %2777 = vdwg.mxu0
    %2778 = vmatprep.subr.mxu0 0.0
    %v2779 = vand.u32 %v2263, 4294901760
    %v2780 = vsub.f32 %v2263, %v2779
    %v2781 = vand.u32 %v2780, 4294901760
    %v2782 = vsub.f32 %v2780, %v2781
    %v2783 = vand.u32 %v2782, 4294901760
    %2784 = vmatpush1.msra.mxu0 %v2783
    %2785 = vmatprep.subr.mxu0 0.0
    %2786 = vmatpush1.msra.mxu0 0.0
    %2787 = vmatprep.subr.mxu0 0.0
    %2788 = vmatpush1.msra.mxu0 0.0
    %2789 = vmatprep.subr.mxu0 0.0
    %2790 = vmatpush1.msra.mxu0 0.0
    %2791 = vmatprep.subr.mxu0 0.0
    %2792 = vmatpush1.msra.mxu0 0.0
    %2793 = vmatprep.subr.mxu0 0.0
    %2794 = vmatpush1.msra.mxu0 0.0
    %2795 = vmatprep.subr.mxu0 0.0
    %2796 = vmatpush1.msra.mxu0 0.0
    %2797 = vmatprep.subr.mxu0 0.0
    %2798 = vmatpush1.msra.mxu0 0.0
    %2799 = vmatprep.subr.mxu0 0.0
    %2800 = vmatpush1.msra.mxu0 0.0
    %2801 = vmatprep.subr.mxu0 0.0
    %2802 = vmatpush1.msra.mxu0 0.0
    %2803 = vmatprep.subr.mxu0 0.0
    %2804 = vmatpush1.msra.mxu0 0.0
    %2805 = vmatprep.subr.mxu0 0.0
    %2806 = vmatpush1.msra.mxu0 0.0
    %2807 = vmatprep.subr.mxu0 0.0
    %2808 = vmatpush1.msra.mxu0 0.0
    %2809 = vmatprep.subr.mxu0 0.0
    %2810 = vmatpush1.msra.mxu0 0.0
    %2811 = vmatprep.subr.mxu0 0.0
    %2812 = vmatpush1.msra.mxu0 0.0
    %2813 = vmatprep.subr.mxu0 0.0
    %2814 = vmatpush1.msra.mxu0 0.0
    %2815 = vmatprep.subr.mxu0 0.0
    %2816 = vmatpush1.msra.mxu0 0.0
    %2817 = vmatprep.subr.mxu0 0.0
    %2818 = vmatpush1.msra.mxu0 0.0
    %2819 = vmatprep.subr.mxu0 0.0
    %2820 = vmatpush1.msra.mxu0 0.0
    %2821 = vmatprep.subr.mxu0 0.0
    %2822 = vmatpush1.msra.mxu0 0.0
    %2823 = vmatprep.subr.mxu0 0.0
    %2824 = vmatpush1.msra.mxu0 0.0
    %2825 = vmatprep.subr.mxu0 0.0
    %2826 = vmatpush1.msra.mxu0 0.0
    %2827 = vmatprep.subr.mxu0 0.0
    %2828 = vmatpush1.msra.mxu0 0.0
    %2829 = vmatprep.subr.mxu0 0.0
    %2830 = vmatpush1.msra.mxu0 0.0
    %2831 = vmatprep.subr.mxu0 0.0
    %2832 = vmatpush1.msra.mxu0 0.0
    %2833 = vmatprep.subr.mxu0 0.0
    %2834 = vmatpush1.msra.mxu0 0.0
    %2835 = vmatprep.subr.mxu0 0.0
    %2836 = vmatpush1.msra.mxu0 0.0
    %2837 = vmatprep.subr.mxu0 0.0
    %2838 = vmatpush1.msra.mxu0 0.0
    %2839 = vmatprep.subr.mxu0 0.0
    %2840 = vmatpush1.msra.mxu0 0.0
    %2841 = vmatprep.subr.mxu0 0.0
    %2842 = vmatpush1.msra.mxu0 0.0
    %2843 = vmatprep.subr.mxu0 0.0
    %2844 = vmatpush1.msra.mxu0 0.0
    %2845 = vmatprep.subr.mxu0 0.0
    %2846 = vmatpush1.msra.mxu0 0.0
    %2847 = vmatprep.mubr.f32.mxu0 0.0
    %v2848 = vand.u32 %v2297, 4294901760
    %2849 = vmatmul.mubr.f32.gmra.mrb[0].mxu0 %v2848
    %v2850 = vpop.f32.mrb[0].mxu0
    %v2851 = vadd.f32 %v2465, %v2850
    %v2852 = vpop.f32.mrb[0].mxu0
    %2853 = vmatprep.mubr.f32.mxu0 0.0
    %v2854 = vand.u32 %v2300, 4294901760
    %2855 = vmatmul.mubr.f32.gmra.mrb[0].mxu0 %v2854
    %v2856 = vpop.f32.mrb[0].mxu0
    %v2857 = vadd.f32 %v2475, %v2856
    %v2858 = vpop.f32.mrb[0].mxu0
    %2859 = vmatprep.mubr.f32.mxu0 0.0
    %v2860 = vand.u32 %v2303, 4294901760
    %2861 = vmatmul.mubr.f32.gmra.mrb[0].mxu0 %v2860
    %v2862 = vpop.f32.mrb[0].mxu0
    %v2863 = vadd.f32 %v2485, %v2862
    %v2864 = vpop.f32.mrb[0].mxu0
    %2865 = vmatprep.mubr.f32.mxu0 0.0
    %v2866 = vand.u32 %v2306, 4294901760
    %2867 = vmatmul.mubr.f32.gmra.mrb[0].mxu0 %v2866
    %v2868 = vpop.f32.mrb[0].mxu0
    %v2869 = vadd.f32 %v2495, %v2868
    %v2870 = vpop.f32.mrb[0].mxu0
    %2871 = vmatprep.mubr.f32.mxu0 0.0
    %v2872 = vand.u32 %v2309, 4294901760
    %2873 = vmatmul.mubr.f32.gmra.mrb[0].mxu0 %v2872
    %v2874 = vpop.f32.mrb[0].mxu0
    %v2875 = vadd.f32 %v2505, %v2874
    %v2876 = vpop.f32.mrb[0].mxu0
    %2877 = vmatprep.mubr.f32.mxu0 0.0
    %v2878 = vand.u32 %v2312, 4294901760
    %2879 = vmatmul.mubr.f32.gmra.mrb[0].mxu0 %v2878
    %v2880 = vpop.f32.mrb[0].mxu0
    %v2881 = vadd.f32 %v2515, %v2880
    %v2882 = vpop.f32.mrb[0].mxu0
    %2883 = vmatprep.mubr.f32.mxu0 0.0
    %v2884 = vand.u32 %v2315, 4294901760
    %2885 = vmatmul.mubr.f32.gmra.mrb[0].mxu0 %v2884
    %v2886 = vpop.f32.mrb[0].mxu0
    %v2887 = vadd.f32 %v2525, %v2886
    %v2888 = vpop.f32.mrb[0].mxu0
    %2889 = vmatprep.mubr.f32.mxu0 0.0
    %v2890 = vand.u32 %v2318, 4294901760
    %2891 = vmatmul.mubr.f32.gmra.mrb[0].mxu0 %v2890
    %v2892 = vpop.f32.mrb[0].mxu0
    %v2893 = vadd.f32 %v2535, %v2892
    %v2894 = vpop.f32.mrb[0].mxu0
    %2895 = vmatprep.mubr.f32.mxu0 0.0
    %v2896 = vand.u32 %v2321, 4294901760
    %2897 = vmatmul.mubr.f32.gmra.mrb[0].mxu0 %v2896
    %v2898 = vpop.f32.mrb[0].mxu0
    %v2899 = vadd.f32 %v2545, %v2898
    %v2900 = vpop.f32.mrb[0].mxu0
    %2901 = vmatprep.mubr.f32.mxu0 0.0
    %v2902 = vand.u32 %v2324, 4294901760
    %2903 = vmatmul.mubr.f32.gmra.mrb[0].mxu0 %v2902
    %v2904 = vpop.f32.mrb[0].mxu0
    %v2905 = vadd.f32 %v2555, %v2904
    %v2906 = vpop.f32.mrb[0].mxu0
    %2907 = vmatprep.mubr.f32.mxu0 0.0
    %v2908 = vand.u32 %v2327, 4294901760
    %2909 = vmatmul.mubr.f32.gmra.mrb[0].mxu0 %v2908
    %v2910 = vpop.f32.mrb[0].mxu0
    %v2911 = vadd.f32 %v2565, %v2910
    %v2912 = vpop.f32.mrb[0].mxu0
    %2913 = vmatprep.mubr.f32.mxu0 0.0
    %v2914 = vand.u32 %v2330, 4294901760
    %2915 = vmatmul.mubr.f32.gmra.mrb[0].mxu0 %v2914
    %v2916 = vpop.f32.mrb[0].mxu0
    %v2917 = vadd.f32 %v2575, %v2916
    %v2918 = vpop.f32.mrb[0].mxu0
    %2919 = vmatprep.mubr.f32.mxu0 0.0
    %v2920 = vand.u32 %v2333, 4294901760
    %2921 = vmatmul.mubr.f32.gmra.mrb[0].mxu0 %v2920
    %v2922 = vpop.f32.mrb[0].mxu0
    %v2923 = vadd.f32 %v2585, %v2922
    %v2924 = vpop.f32.mrb[0].mxu0
    %2925 = vmatprep.mubr.f32.mxu0 0.0
    %v2926 = vand.u32 %v2336, 4294901760
    %2927 = vmatmul.mubr.f32.gmra.mrb[0].mxu0 %v2926
    %v2928 = vpop.f32.mrb[0].mxu0
    %v2929 = vadd.f32 %v2595, %v2928
    %v2930 = vpop.f32.mrb[0].mxu0
    %2931 = vmatprep.mubr.f32.mxu0 0.0
    %v2932 = vand.u32 %v2339, 4294901760
    %2933 = vmatmul.mubr.f32.gmra.mrb[0].mxu0 %v2932
    %v2934 = vpop.f32.mrb[0].mxu0
    %v2935 = vadd.f32 %v2605, %v2934
    %v2936 = vpop.f32.mrb[0].mxu0
    %2937 = vmatprep.mubr.f32.mxu0 0.0
    %v2938 = vand.u32 %v2342, 4294901760
    %2939 = vmatmul.mubr.f32.gmra.mrb[0].mxu0 %v2938
    %v2940 = vpop.f32.mrb[0].mxu0
    %v2941 = vadd.f32 %v2615, %v2940
    %v2942 = vpop.f32.mrb[0].mxu0
    %2943 = vmatprep.mubr.f32.mxu0 0.0
    %v2944 = vand.u32 %v2345, 4294901760
    %2945 = vmatmul.mubr.f32.gmra.mrb[0].mxu0 %v2944
    %v2946 = vpop.f32.mrb[0].mxu0
    %v2947 = vadd.f32 %v2625, %v2946
    %v2948 = vpop.f32.mrb[0].mxu0
    %2949 = vmatprep.mubr.f32.mxu0 0.0
    %v2950 = vand.u32 %v2348, 4294901760
    %2951 = vmatmul.mubr.f32.gmra.mrb[0].mxu0 %v2950
    %v2952 = vpop.f32.mrb[0].mxu0
    %v2953 = vadd.f32 %v2635, %v2952
    %v2954 = vpop.f32.mrb[0].mxu0
    %2955 = vmatprep.mubr.f32.mxu0 0.0
    %v2956 = vand.u32 %v2351, 4294901760
    %2957 = vmatmul.mubr.f32.gmra.mrb[0].mxu0 %v2956
    %v2958 = vpop.f32.mrb[0].mxu0
    %v2959 = vadd.f32 %v2645, %v2958
    %v2960 = vpop.f32.mrb[0].mxu0
    %2961 = vmatprep.mubr.f32.mxu0 0.0
    %v2962 = vand.u32 %v2354, 4294901760
    %2963 = vmatmul.mubr.f32.gmra.mrb[0].mxu0 %v2962
    %v2964 = vpop.f32.mrb[0].mxu0
    %v2965 = vadd.f32 %v2655, %v2964
    %v2966 = vpop.f32.mrb[0].mxu0
    %2967 = vmatprep.mubr.f32.mxu0 0.0
    %v2968 = vand.u32 %v2357, 4294901760
    %2969 = vmatmul.mubr.f32.gmra.mrb[0].mxu0 %v2968
    %v2970 = vpop.f32.mrb[0].mxu0
    %v2971 = vadd.f32 %v2665, %v2970
    %v2972 = vpop.f32.mrb[0].mxu0
    %2973 = vmatprep.mubr.f32.mxu0 0.0
    %v2974 = vand.u32 %v2360, 4294901760
    %2975 = vmatmul.mubr.f32.gmra.mrb[0].mxu0 %v2974
    %v2976 = vpop.f32.mrb[0].mxu0
    %v2977 = vadd.f32 %v2675, %v2976
    %v2978 = vpop.f32.mrb[0].mxu0
    %2979 = vmatprep.mubr.f32.mxu0 0.0
    %v2980 = vand.u32 %v2363, 4294901760
    %2981 = vmatmul.mubr.f32.gmra.mrb[0].mxu0 %v2980
    %v2982 = vpop.f32.mrb[0].mxu0
    %v2983 = vadd.f32 %v2685, %v2982
    %v2984 = vpop.f32.mrb[0].mxu0
    %2985 = vmatprep.mubr.f32.mxu0 0.0
    %v2986 = vand.u32 %v2366, 4294901760
    %2987 = vmatmul.mubr.f32.gmra.mrb[0].mxu0 %v2986
    %v2988 = vpop.f32.mrb[0].mxu0
    %v2989 = vadd.f32 %v2695, %v2988
    %v2990 = vpop.f32.mrb[0].mxu0
    %2991 = vmatprep.mubr.f32.mxu0 0.0
    %v2992 = vand.u32 %v2369, 4294901760
    %2993 = vmatmul.mubr.f32.gmra.mrb[0].mxu0 %v2992
    %v2994 = vpop.f32.mrb[0].mxu0
    %v2995 = vadd.f32 %v2705, %v2994
    %v2996 = vpop.f32.mrb[0].mxu0
    %2997 = vmatprep.mubr.f32.mxu0 0.0
    %v2998 = vand.u32 %v2372, 4294901760
    %2999 = vmatmul.mubr.f32.gmra.mrb[0].mxu0 %v2998
    %v3000 = vpop.f32.mrb[0].mxu0
    %v3001 = vadd.f32 %v2715, %v3000
    %v3002 = vpop.f32.mrb[0].mxu0
    %3003 = vmatprep.mubr.f32.mxu0 0.0
    %v3004 = vand.u32 %v2375, 4294901760
    %3005 = vmatmul.mubr.f32.gmra.mrb[0].mxu0 %v3004
    %v3006 = vpop.f32.mrb[0].mxu0
    %v3007 = vadd.f32 %v2725, %v3006
    %v3008 = vpop.f32.mrb[0].mxu0
    %3009 = vmatprep.mubr.f32.mxu0 0.0
    %v3010 = vand.u32 %v2378, 4294901760
    %3011 = vmatmul.mubr.f32.gmra.mrb[0].mxu0 %v3010
    %v3012 = vpop.f32.mrb[0].mxu0
    %v3013 = vadd.f32 %v2735, %v3012
    %v3014 = vpop.f32.mrb[0].mxu0
    %3015 = vmatprep.mubr.f32.mxu0 0.0
    %v3016 = vand.u32 %v2381, 4294901760
    %3017 = vmatmul.mubr.f32.gmra.mrb[0].mxu0 %v3016
    %v3018 = vpop.f32.mrb[0].mxu0
    %v3019 = vadd.f32 %v2745, %v3018
    %v3020 = vpop.f32.mrb[0].mxu0
    %3021 = vmatprep.mubr.f32.mxu0 0.0
    %v3022 = vand.u32 %v2384, 4294901760
    %3023 = vmatmul.mubr.f32.gmra.mrb[0].mxu0 %v3022
    %v3024 = vpop.f32.mrb[0].mxu0
    %v3025 = vadd.f32 %v2755, %v3024
    %v3026 = vpop.f32.mrb[0].mxu0
    %3027 = vmatprep.mubr.f32.mxu0 0.0
    %v3028 = vand.u32 %v2387, 4294901760
    %3029 = vmatmul.mubr.f32.gmra.mrb[0].mxu0 %v3028
    %v3030 = vpop.f32.mrb[0].mxu0
    %v3031 = vadd.f32 %v2765, %v3030
    %v3032 = vpop.f32.mrb[0].mxu0
    %3033 = vmatprep.mubr.f32.mxu0 0.0
    %v3034 = vand.u32 %v2390, 4294901760
    %3035 = vmatmul.mubr.f32.gmra.mrb[0].mxu0 %v3034
    %v3036 = vpop.f32.mrb[0].mxu0
    %v3037 = vadd.f32 %v2775, %v3036
    %v3038 = vpop.f32.mrb[0].mxu0
    %3039 = vdwg.mxu0
    %3040 = vmatprep.subr.mxu0 0.0
    %v3041 = vand.u32 %v2263, 4294901760
    %v3042 = vsub.f32 %v2263, %v3041
    %3043 = vmatpush1.msra.mxu0 %v3042
    %3044 = vmatprep.subr.mxu0 0.0
    %3045 = vmatpush1.msra.mxu0 0.0
    %3046 = vmatprep.subr.mxu0 0.0
    %3047 = vmatpush1.msra.mxu0 0.0
    %3048 = vmatprep.subr.mxu0 0.0
    %3049 = vmatpush1.msra.mxu0 0.0
    %3050 = vmatprep.subr.mxu0 0.0
    %3051 = vmatpush1.msra.mxu0 0.0
    %3052 = vmatprep.subr.mxu0 0.0
    %3053 = vmatpush1.msra.mxu0 0.0
    %3054 = vmatprep.subr.mxu0 0.0
    %3055 = vmatpush1.msra.mxu0 0.0
    %3056 = vmatprep.subr.mxu0 0.0
    %3057 = vmatpush1.msra.mxu0 0.0
    %3058 = vmatprep.subr.mxu0 0.0
    %3059 = vmatpush1.msra.mxu0 0.0
    %3060 = vmatprep.subr.mxu0 0.0
    %3061 = vmatpush1.msra.mxu0 0.0
    %3062 = vmatprep.subr.mxu0 0.0
    %3063 = vmatpush1.msra.mxu0 0.0
    %3064 = vmatprep.subr.mxu0 0.0
    %3065 = vmatpush1.msra.mxu0 0.0
    %3066 = vmatprep.subr.mxu0 0.0
    %3067 = vmatpush1.msra.mxu0 0.0
    %3068 = vmatprep.subr.mxu0 0.0
    %3069 = vmatpush1.msra.mxu0 0.0
    %3070 = vmatprep.subr.mxu0 0.0
    %3071 = vmatpush1.msra.mxu0 0.0
    %3072 = vmatprep.subr.mxu0 0.0
    %3073 = vmatpush1.msra.mxu0 0.0
    %3074 = vmatprep.subr.mxu0 0.0
    %3075 = vmatpush1.msra.mxu0 0.0
    %3076 = vmatprep.subr.mxu0 0.0
    %3077 = vmatpush1.msra.mxu0 0.0
    %3078 = vmatprep.subr.mxu0 0.0
    %3079 = vmatpush1.msra.mxu0 0.0
    %3080 = vmatprep.subr.mxu0 0.0
    %3081 = vmatpush1.msra.mxu0 0.0
    %3082 = vmatprep.subr.mxu0 0.0
    %3083 = vmatpush1.msra.mxu0 0.0
    %3084 = vmatprep.subr.mxu0 0.0
    %3085 = vmatpush1.msra.mxu0 0.0
    %3086 = vmatprep.subr.mxu0 0.0
    %3087 = vmatpush1.msra.mxu0 0.0
    %3088 = vmatprep.subr.mxu0 0.0
    %3089 = vmatpush1.msra.mxu0 0.0
    %3090 = vmatprep.subr.mxu0 0.0
    %3091 = vmatpush1.msra.mxu0 0.0
    %3092 = vmatprep.subr.mxu0 0.0
    %3093 = vmatpush1.msra.mxu0 0.0
    %3094 = vmatprep.subr.mxu0 0.0
    %3095 = vmatpush1.msra.mxu0 0.0
    %3096 = vmatprep.subr.mxu0 0.0
    %3097 = vmatpush1.msra.mxu0 0.0
    %3098 = vmatprep.subr.mxu0 0.0
    %3099 = vmatpush1.msra.mxu0 0.0
    %3100 = vmatprep.subr.mxu0 0.0
    %3101 = vmatpush1.msra.mxu0 0.0
    %3102 = vmatprep.subr.mxu0 0.0
    %3103 = vmatpush1.msra.mxu0 0.0
    %3104 = vmatprep.subr.mxu0 0.0
    %3105 = vmatpush1.msra.mxu0 0.0
    %3106 = vmatprep.mubr.f32.mxu0 0.0
    %v3107 = vand.u32 %v2297, 4294901760
    %v3108 = vsub.f32 %v2297, %v3107
    %3109 = vmatmul.mubr.f32.gmra.mrb[0].mxu0 %v3108
    %v3110 = vpop.f32.mrb[0].mxu0
    %v3111 = vadd.f32 %v2851, %v3110
    %v3112 = vpop.f32.mrb[0].mxu0
    %3113 = vmatprep.mubr.f32.mxu0 0.0
    %v3114 = vand.u32 %v2300, 4294901760
    %v3115 = vsub.f32 %v2300, %v3114
    %3116 = vmatmul.mubr.f32.gmra.mrb[0].mxu0 %v3115
    %v3117 = vpop.f32.mrb[0].mxu0
    %v3118 = vadd.f32 %v2857, %v3117
    %v3119 = vpop.f32.mrb[0].mxu0
    %3120 = vmatprep.mubr.f32.mxu0 0.0
    %v3121 = vand.u32 %v2303, 4294901760
    %v3122 = vsub.f32 %v2303, %v3121
    %3123 = vmatmul.mubr.f32.gmra.mrb[0].mxu0 %v3122
    %v3124 = vpop.f32.mrb[0].mxu0
    %v3125 = vadd.f32 %v2863, %v3124
    %v3126 = vpop.f32.mrb[0].mxu0
    %3127 = vmatprep.mubr.f32.mxu0 0.0
    %v3128 = vand.u32 %v2306, 4294901760
    %v3129 = vsub.f32 %v2306, %v3128
    %3130 = vmatmul.mubr.f32.gmra.mrb[0].mxu0 %v3129
    %v3131 = vpop.f32.mrb[0].mxu0
    %v3132 = vadd.f32 %v2869, %v3131
    %v3133 = vpop.f32.mrb[0].mxu0
    %3134 = vmatprep.mubr.f32.mxu0 0.0
    %v3135 = vand.u32 %v2309, 4294901760
    %v3136 = vsub.f32 %v2309, %v3135
    %3137 = vmatmul.mubr.f32.gmra.mrb[0].mxu0 %v3136
    %v3138 = vpop.f32.mrb[0].mxu0
    %v3139 = vadd.f32 %v2875, %v3138
    %v3140 = vpop.f32.mrb[0].mxu0
    %3141 = vmatprep.mubr.f32.mxu0 0.0
    %v3142 = vand.u32 %v2312, 4294901760
    %v3143 = vsub.f32 %v2312, %v3142
    %3144 = vmatmul.mubr.f32.gmra.mrb[0].mxu0 %v3143
    %v3145 = vpop.f32.mrb[0].mxu0
    %v3146 = vadd.f32 %v2881, %v3145
    %v3147 = vpop.f32.mrb[0].mxu0
    %3148 = vmatprep.mubr.f32.mxu0 0.0
    %v3149 = vand.u32 %v2315, 4294901760
    %v3150 = vsub.f32 %v2315, %v3149
    %3151 = vmatmul.mubr.f32.gmra.mrb[0].mxu0 %v3150
    %v3152 = vpop.f32.mrb[0].mxu0
    %v3153 = vadd.f32 %v2887, %v3152
    %v3154 = vpop.f32.mrb[0].mxu0
    %3155 = vmatprep.mubr.f32.mxu0 0.0
    %v3156 = vand.u32 %v2318, 4294901760
    %v3157 = vsub.f32 %v2318, %v3156
    %3158 = vmatmul.mubr.f32.gmra.mrb[0].mxu0 %v3157
    %v3159 = vpop.f32.mrb[0].mxu0
    %v3160 = vadd.f32 %v2893, %v3159
    %v3161 = vpop.f32.mrb[0].mxu0
    %3162 = vmatprep.mubr.f32.mxu0 0.0
    %v3163 = vand.u32 %v2321, 4294901760
    %v3164 = vsub.f32 %v2321, %v3163
    %3165 = vmatmul.mubr.f32.gmra.mrb[0].mxu0 %v3164
    %v3166 = vpop.f32.mrb[0].mxu0
    %v3167 = vadd.f32 %v2899, %v3166
    %v3168 = vpop.f32.mrb[0].mxu0
    %3169 = vmatprep.mubr.f32.mxu0 0.0
    %v3170 = vand.u32 %v2324, 4294901760
    %v3171 = vsub.f32 %v2324, %v3170
    %3172 = vmatmul.mubr.f32.gmra.mrb[0].mxu0 %v3171
    %v3173 = vpop.f32.mrb[0].mxu0
    %v3174 = vadd.f32 %v2905, %v3173
    %v3175 = vpop.f32.mrb[0].mxu0
    %3176 = vmatprep.mubr.f32.mxu0 0.0
    %v3177 = vand.u32 %v2327, 4294901760
    %v3178 = vsub.f32 %v2327, %v3177
    %3179 = vmatmul.mubr.f32.gmra.mrb[0].mxu0 %v3178
    %v3180 = vpop.f32.mrb[0].mxu0
    %v3181 = vadd.f32 %v2911, %v3180
    %v3182 = vpop.f32.mrb[0].mxu0
    %3183 = vmatprep.mubr.f32.mxu0 0.0
    %v3184 = vand.u32 %v2330, 4294901760
    %v3185 = vsub.f32 %v2330, %v3184
    %3186 = vmatmul.mubr.f32.gmra.mrb[0].mxu0 %v3185
    %v3187 = vpop.f32.mrb[0].mxu0
    %v3188 = vadd.f32 %v2917, %v3187
    %v3189 = vpop.f32.mrb[0].mxu0
    %3190 = vmatprep.mubr.f32.mxu0 0.0
    %v3191 = vand.u32 %v2333, 4294901760
    %v3192 = vsub.f32 %v2333, %v3191
    %3193 = vmatmul.mubr.f32.gmra.mrb[0].mxu0 %v3192
    %v3194 = vpop.f32.mrb[0].mxu0
    %v3195 = vadd.f32 %v2923, %v3194
    %v3196 = vpop.f32.mrb[0].mxu0
    %3197 = vmatprep.mubr.f32.mxu0 0.0
    %v3198 = vand.u32 %v2336, 4294901760
    %v3199 = vsub.f32 %v2336, %v3198
    %3200 = vmatmul.mubr.f32.gmra.mrb[0].mxu0 %v3199
    %v3201 = vpop.f32.mrb[0].mxu0
    %v3202 = vadd.f32 %v2929, %v3201
    %v3203 = vpop.f32.mrb[0].mxu0
    %3204 = vmatprep.mubr.f32.mxu0 0.0
    %v3205 = vand.u32 %v2339, 4294901760
    %v3206 = vsub.f32 %v2339, %v3205
    %3207 = vmatmul.mubr.f32.gmra.mrb[0].mxu0 %v3206
    %v3208 = vpop.f32.mrb[0].mxu0
    %v3209 = vadd.f32 %v2935, %v3208
    %v3210 = vpop.f32.mrb[0].mxu0
    %3211 = vmatprep.mubr.f32.mxu0 0.0
    %v3212 = vand.u32 %v2342, 4294901760
    %v3213 = vsub.f32 %v2342, %v3212
    %3214 = vmatmul.mubr.f32.gmra.mrb[0].mxu0 %v3213
    %v3215 = vpop.f32.mrb[0].mxu0
    %v3216 = vadd.f32 %v2941, %v3215
    %v3217 = vpop.f32.mrb[0].mxu0
    %3218 = vmatprep.mubr.f32.mxu0 0.0
    %v3219 = vand.u32 %v2345, 4294901760
    %v3220 = vsub.f32 %v2345, %v3219
    %3221 = vmatmul.mubr.f32.gmra.mrb[0].mxu0 %v3220
    %v3222 = vpop.f32.mrb[0].mxu0
    %v3223 = vadd.f32 %v2947, %v3222
    %v3224 = vpop.f32.mrb[0].mxu0
    %3225 = vmatprep.mubr.f32.mxu0 0.0
    %v3226 = vand.u32 %v2348, 4294901760
    %v3227 = vsub.f32 %v2348, %v3226
    %3228 = vmatmul.mubr.f32.gmra.mrb[0].mxu0 %v3227
    %v3229 = vpop.f32.mrb[0].mxu0
    %v3230 = vadd.f32 %v2953, %v3229
    %v3231 = vpop.f32.mrb[0].mxu0
    %3232 = vmatprep.mubr.f32.mxu0 0.0
    %v3233 = vand.u32 %v2351, 4294901760
    %v3234 = vsub.f32 %v2351, %v3233
    %3235 = vmatmul.mubr.f32.gmra.mrb[0].mxu0 %v3234
    %v3236 = vpop.f32.mrb[0].mxu0
    %v3237 = vadd.f32 %v2959, %v3236
    %v3238 = vpop.f32.mrb[0].mxu0
    %3239 = vmatprep.mubr.f32.mxu0 0.0
    %v3240 = vand.u32 %v2354, 4294901760
    %v3241 = vsub.f32 %v2354, %v3240
    %3242 = vmatmul.mubr.f32.gmra.mrb[0].mxu0 %v3241
    %v3243 = vpop.f32.mrb[0].mxu0
    %v3244 = vadd.f32 %v2965, %v3243
    %v3245 = vpop.f32.mrb[0].mxu0
    %3246 = vmatprep.mubr.f32.mxu0 0.0
    %v3247 = vand.u32 %v2357, 4294901760
    %v3248 = vsub.f32 %v2357, %v3247
    %3249 = vmatmul.mubr.f32.gmra.mrb[0].mxu0 %v3248
    %v3250 = vpop.f32.mrb[0].mxu0
    %v3251 = vadd.f32 %v2971, %v3250
    %v3252 = vpop.f32.mrb[0].mxu0
    %3253 = vmatprep.mubr.f32.mxu0 0.0
    %v3254 = vand.u32 %v2360, 4294901760
    %v3255 = vsub.f32 %v2360, %v3254
    %3256 = vmatmul.mubr.f32.gmra.mrb[0].mxu0 %v3255
    %v3257 = vpop.f32.mrb[0].mxu0
    %v3258 = vadd.f32 %v2977, %v3257
    %v3259 = vpop.f32.mrb[0].mxu0
    %3260 = vmatprep.mubr.f32.mxu0 0.0
    %v3261 = vand.u32 %v2363, 4294901760
    %v3262 = vsub.f32 %v2363, %v3261
    %3263 = vmatmul.mubr.f32.gmra.mrb[0].mxu0 %v3262
    %v3264 = vpop.f32.mrb[0].mxu0
    %v3265 = vadd.f32 %v2983, %v3264
    %v3266 = vpop.f32.mrb[0].mxu0
    %3267 = vmatprep.mubr.f32.mxu0 0.0
    %v3268 = vand.u32 %v2366, 4294901760
    %v3269 = vsub.f32 %v2366, %v3268
    %3270 = vmatmul.mubr.f32.gmra.mrb[0].mxu0 %v3269
    %v3271 = vpop.f32.mrb[0].mxu0
    %v3272 = vadd.f32 %v2989, %v3271
    %v3273 = vpop.f32.mrb[0].mxu0
    %3274 = vmatprep.mubr.f32.mxu0 0.0
    %v3275 = vand.u32 %v2369, 4294901760
    %v3276 = vsub.f32 %v2369, %v3275
    %3277 = vmatmul.mubr.f32.gmra.mrb[0].mxu0 %v3276
    %v3278 = vpop.f32.mrb[0].mxu0
    %v3279 = vadd.f32 %v2995, %v3278
    %v3280 = vpop.f32.mrb[0].mxu0
    %3281 = vmatprep.mubr.f32.mxu0 0.0
    %v3282 = vand.u32 %v2372, 4294901760
    %v3283 = vsub.f32 %v2372, %v3282
    %3284 = vmatmul.mubr.f32.gmra.mrb[0].mxu0 %v3283
    %v3285 = vpop.f32.mrb[0].mxu0
    %v3286 = vadd.f32 %v3001, %v3285
    %v3287 = vpop.f32.mrb[0].mxu0
    %3288 = vmatprep.mubr.f32.mxu0 0.0
    %v3289 = vand.u32 %v2375, 4294901760
    %v3290 = vsub.f32 %v2375, %v3289
    %3291 = vmatmul.mubr.f32.gmra.mrb[0].mxu0 %v3290
    %v3292 = vpop.f32.mrb[0].mxu0
    %v3293 = vadd.f32 %v3007, %v3292
    %v3294 = vpop.f32.mrb[0].mxu0
    %3295 = vmatprep.mubr.f32.mxu0 0.0
    %v3296 = vand.u32 %v2378, 4294901760
    %v3297 = vsub.f32 %v2378, %v3296
    %3298 = vmatmul.mubr.f32.gmra.mrb[0].mxu0 %v3297
    %v3299 = vpop.f32.mrb[0].mxu0
    %v3300 = vadd.f32 %v3013, %v3299
    %v3301 = vpop.f32.mrb[0].mxu0
    %3302 = vmatprep.mubr.f32.mxu0 0.0
    %v3303 = vand.u32 %v2381, 4294901760
    %v3304 = vsub.f32 %v2381, %v3303
    %3305 = vmatmul.mubr.f32.gmra.mrb[0].mxu0 %v3304
    %v3306 = vpop.f32.mrb[0].mxu0
    %v3307 = vadd.f32 %v3019, %v3306
    %v3308 = vpop.f32.mrb[0].mxu0
    %3309 = vmatprep.mubr.f32.mxu0 0.0
    %v3310 = vand.u32 %v2384, 4294901760
    %v3311 = vsub.f32 %v2384, %v3310
    %3312 = vmatmul.mubr.f32.gmra.mrb[0].mxu0 %v3311
    %v3313 = vpop.f32.mrb[0].mxu0
    %v3314 = vadd.f32 %v3025, %v3313
    %v3315 = vpop.f32.mrb[0].mxu0
    %3316 = vmatprep.mubr.f32.mxu0 0.0
    %v3317 = vand.u32 %v2387, 4294901760
    %v3318 = vsub.f32 %v2387, %v3317
    %3319 = vmatmul.mubr.f32.gmra.mrb[0].mxu0 %v3318
    %v3320 = vpop.f32.mrb[0].mxu0
    %v3321 = vadd.f32 %v3031, %v3320
    %v3322 = vpop.f32.mrb[0].mxu0
    %3323 = vmatprep.mubr.f32.mxu0 0.0
    %v3324 = vand.u32 %v2390, 4294901760
    %v3325 = vsub.f32 %v2390, %v3324
    %3326 = vmatmul.mubr.f32.gmra.mrb[0].mxu0 %v3325
    %v3327 = vpop.f32.mrb[0].mxu0
    %v3328 = vadd.f32 %v3037, %v3327
    %v3329 = vpop.f32.mrb[0].mxu0
    %3330 = vdwg.mxu0
    %3331 = vmatprep.subr.mxu0 0.0
    %v3332 = vand.u32 %v2263, 4294901760
    %3333 = vmatpush1.msra.mxu0 %v3332
    %3334 = vmatprep.subr.mxu0 0.0
    %3335 = vmatpush1.msra.mxu0 0.0
    %3336 = vmatprep.subr.mxu0 0.0
    %3337 = vmatpush1.msra.mxu0 0.0
    %3338 = vmatprep.subr.mxu0 0.0
    %3339 = vmatpush1.msra.mxu0 0.0
    %3340 = vmatprep.subr.mxu0 0.0
    %3341 = vmatpush1.msra.mxu0 0.0
    %3342 = vmatprep.subr.mxu0 0.0
    %3343 = vmatpush1.msra.mxu0 0.0
    %3344 = vmatprep.subr.mxu0 0.0
    %3345 = vmatpush1.msra.mxu0 0.0
    %3346 = vmatprep.subr.mxu0 0.0
    %3347 = vmatpush1.msra.mxu0 0.0
    %3348 = vmatprep.subr.mxu0 0.0
    %3349 = vmatpush1.msra.mxu0 0.0
    %3350 = vmatprep.subr.mxu0 0.0
    %3351 = vmatpush1.msra.mxu0 0.0
    %3352 = vmatprep.subr.mxu0 0.0
    %3353 = vmatpush1.msra.mxu0 0.0
    %3354 = vmatprep.subr.mxu0 0.0
    %3355 = vmatpush1.msra.mxu0 0.0
    %3356 = vmatprep.subr.mxu0 0.0
    %3357 = vmatpush1.msra.mxu0 0.0
    %3358 = vmatprep.subr.mxu0 0.0
    %3359 = vmatpush1.msra.mxu0 0.0
    %3360 = vmatprep.subr.mxu0 0.0
    %3361 = vmatpush1.msra.mxu0 0.0
    %3362 = vmatprep.subr.mxu0 0.0
    %3363 = vmatpush1.msra.mxu0 0.0
    %3364 = vmatprep.subr.mxu0 0.0
    %3365 = vmatpush1.msra.mxu0 0.0
    %3366 = vmatprep.subr.mxu0 0.0
    %3367 = vmatpush1.msra.mxu0 0.0
    %3368 = vmatprep.subr.mxu0 0.0
    %3369 = vmatpush1.msra.mxu0 0.0
    %3370 = vmatprep.subr.mxu0 0.0
    %3371 = vmatpush1.msra.mxu0 0.0
    %3372 = vmatprep.subr.mxu0 0.0
    %3373 = vmatpush1.msra.mxu0 0.0
    %3374 = vmatprep.subr.mxu0 0.0
    %3375 = vmatpush1.msra.mxu0 0.0
    %3376 = vmatprep.subr.mxu0 0.0
    %3377 = vmatpush1.msra.mxu0 0.0
    %3378 = vmatprep.subr.mxu0 0.0
    %3379 = vmatpush1.msra.mxu0 0.0
    %3380 = vmatprep.subr.mxu0 0.0
    %3381 = vmatpush1.msra.mxu0 0.0
    %3382 = vmatprep.subr.mxu0 0.0
    %3383 = vmatpush1.msra.mxu0 0.0
    %3384 = vmatprep.subr.mxu0 0.0
    %3385 = vmatpush1.msra.mxu0 0.0
    %3386 = vmatprep.subr.mxu0 0.0
    %3387 = vmatpush1.msra.mxu0 0.0
    %3388 = vmatprep.subr.mxu0 0.0
    %3389 = vmatpush1.msra.mxu0 0.0
    %3390 = vmatprep.subr.mxu0 0.0
    %3391 = vmatpush1.msra.mxu0 0.0
    %3392 = vmatprep.subr.mxu0 0.0
    %3393 = vmatpush1.msra.mxu0 0.0
    %3394 = vmatprep.subr.mxu0 0.0
    %3395 = vmatpush1.msra.mxu0 0.0
    %3396 = vmatprep.mubr.f32.mxu0 0.0
    %v3397 = vand.u32 %v2297, 4294901760
    %v3398 = vsub.f32 %v2297, %v3397
    %v3399 = vand.u32 %v3398, 4294901760
    %3400 = vmatmul.mubr.f32.gmra.mrb[0].mxu0 %v3399
    %v3401 = vpop.f32.mrb[0].mxu0
    %v3402 = vadd.f32 %v3111, %v3401
    %v3403 = vpop.f32.mrb[0].mxu0
    %3404 = vmatprep.mubr.f32.mxu0 0.0
    %v3405 = vand.u32 %v2300, 4294901760
    %v3406 = vsub.f32 %v2300, %v3405
    %v3407 = vand.u32 %v3406, 4294901760
    %3408 = vmatmul.mubr.f32.gmra.mrb[0].mxu0 %v3407
    %v3409 = vpop.f32.mrb[0].mxu0
    %v3410 = vadd.f32 %v3118, %v3409
    %v3411 = vpop.f32.mrb[0].mxu0
    %3412 = vmatprep.mubr.f32.mxu0 0.0
    %v3413 = vand.u32 %v2303, 4294901760
    %v3414 = vsub.f32 %v2303, %v3413
    %v3415 = vand.u32 %v3414, 4294901760
    %3416 = vmatmul.mubr.f32.gmra.mrb[0].mxu0 %v3415
    %v3417 = vpop.f32.mrb[0].mxu0
    %v3418 = vadd.f32 %v3125, %v3417
    %v3419 = vpop.f32.mrb[0].mxu0
    %3420 = vmatprep.mubr.f32.mxu0 0.0
    %v3421 = vand.u32 %v2306, 4294901760
    %v3422 = vsub.f32 %v2306, %v3421
    %v3423 = vand.u32 %v3422, 4294901760
    %3424 = vmatmul.mubr.f32.gmra.mrb[0].mxu0 %v3423
    %v3425 = vpop.f32.mrb[0].mxu0
    %v3426 = vadd.f32 %v3132, %v3425
    %v3427 = vpop.f32.mrb[0].mxu0
    %3428 = vmatprep.mubr.f32.mxu0 0.0
    %v3429 = vand.u32 %v2309, 4294901760
    %v3430 = vsub.f32 %v2309, %v3429
    %v3431 = vand.u32 %v3430, 4294901760
    %3432 = vmatmul.mubr.f32.gmra.mrb[0].mxu0 %v3431
    %v3433 = vpop.f32.mrb[0].mxu0
    %v3434 = vadd.f32 %v3139, %v3433
    %v3435 = vpop.f32.mrb[0].mxu0
    %3436 = vmatprep.mubr.f32.mxu0 0.0
    %v3437 = vand.u32 %v2312, 4294901760
    %v3438 = vsub.f32 %v2312, %v3437
    %v3439 = vand.u32 %v3438, 4294901760
    %3440 = vmatmul.mubr.f32.gmra.mrb[0].mxu0 %v3439
    %v3441 = vpop.f32.mrb[0].mxu0
    %v3442 = vadd.f32 %v3146, %v3441
    %v3443 = vpop.f32.mrb[0].mxu0
    %3444 = vmatprep.mubr.f32.mxu0 0.0
    %v3445 = vand.u32 %v2315, 4294901760
    %v3446 = vsub.f32 %v2315, %v3445
    %v3447 = vand.u32 %v3446, 4294901760
    %3448 = vmatmul.mubr.f32.gmra.mrb[0].mxu0 %v3447
    %v3449 = vpop.f32.mrb[0].mxu0
    %v3450 = vadd.f32 %v3153, %v3449
    %v3451 = vpop.f32.mrb[0].mxu0
    %3452 = vmatprep.mubr.f32.mxu0 0.0
    %v3453 = vand.u32 %v2318, 4294901760
    %v3454 = vsub.f32 %v2318, %v3453
    %v3455 = vand.u32 %v3454, 4294901760
    %3456 = vmatmul.mubr.f32.gmra.mrb[0].mxu0 %v3455
    %v3457 = vpop.f32.mrb[0].mxu0
    %v3458 = vadd.f32 %v3160, %v3457
    %v3459 = vpop.f32.mrb[0].mxu0
    %3460 = vmatprep.mubr.f32.mxu0 0.0
    %v3461 = vand.u32 %v2321, 4294901760
    %v3462 = vsub.f32 %v2321, %v3461
    %v3463 = vand.u32 %v3462, 4294901760
    %3464 = vmatmul.mubr.f32.gmra.mrb[0].mxu0 %v3463
    %v3465 = vpop.f32.mrb[0].mxu0
    %v3466 = vadd.f32 %v3167, %v3465
    %v3467 = vpop.f32.mrb[0].mxu0
    %3468 = vmatprep.mubr.f32.mxu0 0.0
    %v3469 = vand.u32 %v2324, 4294901760
    %v3470 = vsub.f32 %v2324, %v3469
    %v3471 = vand.u32 %v3470, 4294901760
    %3472 = vmatmul.mubr.f32.gmra.mrb[0].mxu0 %v3471
    %v3473 = vpop.f32.mrb[0].mxu0
    %v3474 = vadd.f32 %v3174, %v3473
    %v3475 = vpop.f32.mrb[0].mxu0
    %3476 = vmatprep.mubr.f32.mxu0 0.0
    %v3477 = vand.u32 %v2327, 4294901760
    %v3478 = vsub.f32 %v2327, %v3477
    %v3479 = vand.u32 %v3478, 4294901760
    %3480 = vmatmul.mubr.f32.gmra.mrb[0].mxu0 %v3479
    %v3481 = vpop.f32.mrb[0].mxu0
    %v3482 = vadd.f32 %v3181, %v3481
    %v3483 = vpop.f32.mrb[0].mxu0
    %3484 = vmatprep.mubr.f32.mxu0 0.0
    %v3485 = vand.u32 %v2330, 4294901760
    %v3486 = vsub.f32 %v2330, %v3485
    %v3487 = vand.u32 %v3486, 4294901760
    %3488 = vmatmul.mubr.f32.gmra.mrb[0].mxu0 %v3487
    %v3489 = vpop.f32.mrb[0].mxu0
    %v3490 = vadd.f32 %v3188, %v3489
    %v3491 = vpop.f32.mrb[0].mxu0
    %3492 = vmatprep.mubr.f32.mxu0 0.0
    %v3493 = vand.u32 %v2333, 4294901760
    %v3494 = vsub.f32 %v2333, %v3493
    %v3495 = vand.u32 %v3494, 4294901760
    %3496 = vmatmul.mubr.f32.gmra.mrb[0].mxu0 %v3495
    %v3497 = vpop.f32.mrb[0].mxu0
    %v3498 = vadd.f32 %v3195, %v3497
    %v3499 = vpop.f32.mrb[0].mxu0
    %3500 = vmatprep.mubr.f32.mxu0 0.0
    %v3501 = vand.u32 %v2336, 4294901760
    %v3502 = vsub.f32 %v2336, %v3501
    %v3503 = vand.u32 %v3502, 4294901760
    %3504 = vmatmul.mubr.f32.gmra.mrb[0].mxu0 %v3503
    %v3505 = vpop.f32.mrb[0].mxu0
    %v3506 = vadd.f32 %v3202, %v3505
    %v3507 = vpop.f32.mrb[0].mxu0
    %3508 = vmatprep.mubr.f32.mxu0 0.0
    %v3509 = vand.u32 %v2339, 4294901760
    %v3510 = vsub.f32 %v2339, %v3509
    %v3511 = vand.u32 %v3510, 4294901760
    %3512 = vmatmul.mubr.f32.gmra.mrb[0].mxu0 %v3511
    %v3513 = vpop.f32.mrb[0].mxu0
    %v3514 = vadd.f32 %v3209, %v3513
    %v3515 = vpop.f32.mrb[0].mxu0
    %3516 = vmatprep.mubr.f32.mxu0 0.0
    %v3517 = vand.u32 %v2342, 4294901760
    %v3518 = vsub.f32 %v2342, %v3517
    %v3519 = vand.u32 %v3518, 4294901760
    %3520 = vmatmul.mubr.f32.gmra.mrb[0].mxu0 %v3519
    %v3521 = vpop.f32.mrb[0].mxu0
    %v3522 = vadd.f32 %v3216, %v3521
    %v3523 = vpop.f32.mrb[0].mxu0
    %3524 = vmatprep.mubr.f32.mxu0 0.0
    %v3525 = vand.u32 %v2345, 4294901760
    %v3526 = vsub.f32 %v2345, %v3525
    %v3527 = vand.u32 %v3526, 4294901760
    %3528 = vmatmul.mubr.f32.gmra.mrb[0].mxu0 %v3527
    %v3529 = vpop.f32.mrb[0].mxu0
    %v3530 = vadd.f32 %v3223, %v3529
    %v3531 = vpop.f32.mrb[0].mxu0
    %3532 = vmatprep.mubr.f32.mxu0 0.0
    %v3533 = vand.u32 %v2348, 4294901760
    %v3534 = vsub.f32 %v2348, %v3533
    %v3535 = vand.u32 %v3534, 4294901760
    %3536 = vmatmul.mubr.f32.gmra.mrb[0].mxu0 %v3535
    %v3537 = vpop.f32.mrb[0].mxu0
    %v3538 = vadd.f32 %v3230, %v3537
    %v3539 = vpop.f32.mrb[0].mxu0
    %3540 = vmatprep.mubr.f32.mxu0 0.0
    %v3541 = vand.u32 %v2351, 4294901760
    %v3542 = vsub.f32 %v2351, %v3541
    %v3543 = vand.u32 %v3542, 4294901760
    %3544 = vmatmul.mubr.f32.gmra.mrb[0].mxu0 %v3543
    %v3545 = vpop.f32.mrb[0].mxu0
    %v3546 = vadd.f32 %v3237, %v3545
    %v3547 = vpop.f32.mrb[0].mxu0
    %3548 = vmatprep.mubr.f32.mxu0 0.0
    %v3549 = vand.u32 %v2354, 4294901760
    %v3550 = vsub.f32 %v2354, %v3549
    %v3551 = vand.u32 %v3550, 4294901760
    %3552 = vmatmul.mubr.f32.gmra.mrb[0].mxu0 %v3551
    %v3553 = vpop.f32.mrb[0].mxu0
    %v3554 = vadd.f32 %v3244, %v3553
    %v3555 = vpop.f32.mrb[0].mxu0
    %3556 = vmatprep.mubr.f32.mxu0 0.0
    %v3557 = vand.u32 %v2357, 4294901760
    %v3558 = vsub.f32 %v2357, %v3557
    %v3559 = vand.u32 %v3558, 4294901760
    %3560 = vmatmul.mubr.f32.gmra.mrb[0].mxu0 %v3559
    %v3561 = vpop.f32.mrb[0].mxu0
    %v3562 = vadd.f32 %v3251, %v3561
    %v3563 = vpop.f32.mrb[0].mxu0
    %3564 = vmatprep.mubr.f32.mxu0 0.0
    %v3565 = vand.u32 %v2360, 4294901760
    %v3566 = vsub.f32 %v2360, %v3565
    %v3567 = vand.u32 %v3566, 4294901760
    %3568 = vmatmul.mubr.f32.gmra.mrb[0].mxu0 %v3567
    %v3569 = vpop.f32.mrb[0].mxu0
    %v3570 = vadd.f32 %v3258, %v3569
    %v3571 = vpop.f32.mrb[0].mxu0
    %3572 = vmatprep.mubr.f32.mxu0 0.0
    %v3573 = vand.u32 %v2363, 4294901760
    %v3574 = vsub.f32 %v2363, %v3573
    %v3575 = vand.u32 %v3574, 4294901760
    %3576 = vmatmul.mubr.f32.gmra.mrb[0].mxu0 %v3575
    %v3577 = vpop.f32.mrb[0].mxu0
    %v3578 = vadd.f32 %v3265, %v3577
    %v3579 = vpop.f32.mrb[0].mxu0
    %3580 = vmatprep.mubr.f32.mxu0 0.0
    %v3581 = vand.u32 %v2366, 4294901760
    %v3582 = vsub.f32 %v2366, %v3581
    %v3583 = vand.u32 %v3582, 4294901760
    %3584 = vmatmul.mubr.f32.gmra.mrb[0].mxu0 %v3583
    %v3585 = vpop.f32.mrb[0].mxu0
    %v3586 = vadd.f32 %v3272, %v3585
    %v3587 = vpop.f32.mrb[0].mxu0
    %3588 = vmatprep.mubr.f32.mxu0 0.0
    %v3589 = vand.u32 %v2369, 4294901760
    %v3590 = vsub.f32 %v2369, %v3589
    %v3591 = vand.u32 %v3590, 4294901760
    %3592 = vmatmul.mubr.f32.gmra.mrb[0].mxu0 %v3591
    %v3593 = vpop.f32.mrb[0].mxu0
    %v3594 = vadd.f32 %v3279, %v3593
    %v3595 = vpop.f32.mrb[0].mxu0
    %3596 = vmatprep.mubr.f32.mxu0 0.0
    %v3597 = vand.u32 %v2372, 4294901760
    %v3598 = vsub.f32 %v2372, %v3597
    %v3599 = vand.u32 %v3598, 4294901760
    %3600 = vmatmul.mubr.f32.gmra.mrb[0].mxu0 %v3599
    %v3601 = vpop.f32.mrb[0].mxu0
    %v3602 = vadd.f32 %v3286, %v3601
    %v3603 = vpop.f32.mrb[0].mxu0
    %3604 = vmatprep.mubr.f32.mxu0 0.0
    %v3605 = vand.u32 %v2375, 4294901760
    %v3606 = vsub.f32 %v2375, %v3605
    %v3607 = vand.u32 %v3606, 4294901760
    %3608 = vmatmul.mubr.f32.gmra.mrb[0].mxu0 %v3607
    %v3609 = vpop.f32.mrb[0].mxu0
    %v3610 = vadd.f32 %v3293, %v3609
    %v3611 = vpop.f32.mrb[0].mxu0
    %3612 = vmatprep.mubr.f32.mxu0 0.0
    %v3613 = vand.u32 %v2378, 4294901760
    %v3614 = vsub.f32 %v2378, %v3613
    %v3615 = vand.u32 %v3614, 4294901760
    %3616 = vmatmul.mubr.f32.gmra.mrb[0].mxu0 %v3615
    %v3617 = vpop.f32.mrb[0].mxu0
    %v3618 = vadd.f32 %v3300, %v3617
    %v3619 = vpop.f32.mrb[0].mxu0
    %3620 = vmatprep.mubr.f32.mxu0 0.0
    %v3621 = vand.u32 %v2381, 4294901760
    %v3622 = vsub.f32 %v2381, %v3621
    %v3623 = vand.u32 %v3622, 4294901760
    %3624 = vmatmul.mubr.f32.gmra.mrb[0].mxu0 %v3623
    %v3625 = vpop.f32.mrb[0].mxu0
    %v3626 = vadd.f32 %v3307, %v3625
    %v3627 = vpop.f32.mrb[0].mxu0
    %3628 = vmatprep.mubr.f32.mxu0 0.0
    %v3629 = vand.u32 %v2384, 4294901760
    %v3630 = vsub.f32 %v2384, %v3629
    %v3631 = vand.u32 %v3630, 4294901760
    %3632 = vmatmul.mubr.f32.gmra.mrb[0].mxu0 %v3631
    %v3633 = vpop.f32.mrb[0].mxu0
    %v3634 = vadd.f32 %v3314, %v3633
    %v3635 = vpop.f32.mrb[0].mxu0
    %3636 = vmatprep.mubr.f32.mxu0 0.0
    %v3637 = vand.u32 %v2387, 4294901760
    %v3638 = vsub.f32 %v2387, %v3637
    %v3639 = vand.u32 %v3638, 4294901760
    %3640 = vmatmul.mubr.f32.gmra.mrb[0].mxu0 %v3639
    %v3641 = vpop.f32.mrb[0].mxu0
    %v3642 = vadd.f32 %v3321, %v3641
    %v3643 = vpop.f32.mrb[0].mxu0
    %3644 = vmatprep.mubr.f32.mxu0 0.0
    %v3645 = vand.u32 %v2390, 4294901760
    %v3646 = vsub.f32 %v2390, %v3645
    %v3647 = vand.u32 %v3646, 4294901760
    %3648 = vmatmul.mubr.f32.gmra.mrb[0].mxu0 %v3647
    %v3649 = vpop.f32.mrb[0].mxu0
    %v3650 = vadd.f32 %v3328, %v3649
    %v3651 = vpop.f32.mrb[0].mxu0
    %3652 = vdwg.mxu0
    %3653 = vmatprep.subr.mxu0 0.0
    %v3654 = vand.u32 %v2263, 4294901760
    %v3655 = vsub.f32 %v2263, %v3654
    %v3656 = vand.u32 %v3655, 4294901760
    %3657 = vmatpush1.msra.mxu0 %v3656
    %3658 = vmatprep.subr.mxu0 0.0
    %3659 = vmatpush1.msra.mxu0 0.0
    %3660 = vmatprep.subr.mxu0 0.0
    %3661 = vmatpush1.msra.mxu0 0.0
    %3662 = vmatprep.subr.mxu0 0.0
    %3663 = vmatpush1.msra.mxu0 0.0
    %3664 = vmatprep.subr.mxu0 0.0
    %3665 = vmatpush1.msra.mxu0 0.0
    %3666 = vmatprep.subr.mxu0 0.0
    %3667 = vmatpush1.msra.mxu0 0.0
    %3668 = vmatprep.subr.mxu0 0.0
    %3669 = vmatpush1.msra.mxu0 0.0
    %3670 = vmatprep.subr.mxu0 0.0
    %3671 = vmatpush1.msra.mxu0 0.0
    %3672 = vmatprep.subr.mxu0 0.0
    %3673 = vmatpush1.msra.mxu0 0.0
    %3674 = vmatprep.subr.mxu0 0.0
    %3675 = vmatpush1.msra.mxu0 0.0
    %3676 = vmatprep.subr.mxu0 0.0
    %3677 = vmatpush1.msra.mxu0 0.0
    %3678 = vmatprep.subr.mxu0 0.0
    %3679 = vmatpush1.msra.mxu0 0.0
    %3680 = vmatprep.subr.mxu0 0.0
    %3681 = vmatpush1.msra.mxu0 0.0
    %3682 = vmatprep.subr.mxu0 0.0
    %3683 = vmatpush1.msra.mxu0 0.0
    %3684 = vmatprep.subr.mxu0 0.0
    %3685 = vmatpush1.msra.mxu0 0.0
    %3686 = vmatprep.subr.mxu0 0.0
    %3687 = vmatpush1.msra.mxu0 0.0
    %3688 = vmatprep.subr.mxu0 0.0
    %3689 = vmatpush1.msra.mxu0 0.0
    %3690 = vmatprep.subr.mxu0 0.0
    %3691 = vmatpush1.msra.mxu0 0.0
    %3692 = vmatprep.subr.mxu0 0.0
    %3693 = vmatpush1.msra.mxu0 0.0
    %3694 = vmatprep.subr.mxu0 0.0
    %3695 = vmatpush1.msra.mxu0 0.0
    %3696 = vmatprep.subr.mxu0 0.0
    %3697 = vmatpush1.msra.mxu0 0.0
    %3698 = vmatprep.subr.mxu0 0.0
    %3699 = vmatpush1.msra.mxu0 0.0
    %3700 = vmatprep.subr.mxu0 0.0
    %3701 = vmatpush1.msra.mxu0 0.0
    %3702 = vmatprep.subr.mxu0 0.0
    %3703 = vmatpush1.msra.mxu0 0.0
    %3704 = vmatprep.subr.mxu0 0.0
    %3705 = vmatpush1.msra.mxu0 0.0
    %3706 = vmatprep.subr.mxu0 0.0
    %3707 = vmatpush1.msra.mxu0 0.0
    %3708 = vmatprep.subr.mxu0 0.0
    %3709 = vmatpush1.msra.mxu0 0.0
    %3710 = vmatprep.subr.mxu0 0.0
    %3711 = vmatpush1.msra.mxu0 0.0
    %3712 = vmatprep.subr.mxu0 0.0
    %3713 = vmatpush1.msra.mxu0 0.0
    %3714 = vmatprep.subr.mxu0 0.0
    %3715 = vmatpush1.msra.mxu0 0.0
    %3716 = vmatprep.subr.mxu0 0.0
    %3717 = vmatpush1.msra.mxu0 0.0
    %3718 = vmatprep.subr.mxu0 0.0
    %3719 = vmatpush1.msra.mxu0 0.0
    %3720 = vmatprep.mubr.f32.mxu0 0.0
    %v3721 = vand.u32 %v2297, 4294901760
    %3722 = vmatmul.mubr.f32.gmra.mrb[0].mxu0 %v3721
    %v3723 = vpop.f32.mrb[0].mxu0
    %v3724 = vadd.f32 %v3402, %v3723
    %v3725 = vpop.f32.mrb[0].mxu0
    %3726 = vmatprep.mubr.f32.mxu0 0.0
    %v3727 = vand.u32 %v2300, 4294901760
    %3728 = vmatmul.mubr.f32.gmra.mrb[0].mxu0 %v3727
    %v3729 = vpop.f32.mrb[0].mxu0
    %v3730 = vadd.f32 %v3410, %v3729
    %v3731 = vpop.f32.mrb[0].mxu0
    %3732 = vmatprep.mubr.f32.mxu0 0.0
    %v3733 = vand.u32 %v2303, 4294901760
    %3734 = vmatmul.mubr.f32.gmra.mrb[0].mxu0 %v3733
    %v3735 = vpop.f32.mrb[0].mxu0
    %v3736 = vadd.f32 %v3418, %v3735
    %v3737 = vpop.f32.mrb[0].mxu0
    %3738 = vmatprep.mubr.f32.mxu0 0.0
    %v3739 = vand.u32 %v2306, 4294901760
    %3740 = vmatmul.mubr.f32.gmra.mrb[0].mxu0 %v3739
    %v3741 = vpop.f32.mrb[0].mxu0
    %v3742 = vadd.f32 %v3426, %v3741
    %v3743 = vpop.f32.mrb[0].mxu0
    %3744 = vmatprep.mubr.f32.mxu0 0.0
    %v3745 = vand.u32 %v2309, 4294901760
    %3746 = vmatmul.mubr.f32.gmra.mrb[0].mxu0 %v3745
    %v3747 = vpop.f32.mrb[0].mxu0
    %v3748 = vadd.f32 %v3434, %v3747
    %v3749 = vpop.f32.mrb[0].mxu0
    %3750 = vmatprep.mubr.f32.mxu0 0.0
    %v3751 = vand.u32 %v2312, 4294901760
    %3752 = vmatmul.mubr.f32.gmra.mrb[0].mxu0 %v3751
    %v3753 = vpop.f32.mrb[0].mxu0
    %v3754 = vadd.f32 %v3442, %v3753
    %v3755 = vpop.f32.mrb[0].mxu0
    %3756 = vmatprep.mubr.f32.mxu0 0.0
    %v3757 = vand.u32 %v2315, 4294901760
    %3758 = vmatmul.mubr.f32.gmra.mrb[0].mxu0 %v3757
    %v3759 = vpop.f32.mrb[0].mxu0
    %v3760 = vadd.f32 %v3450, %v3759
    %v3761 = vpop.f32.mrb[0].mxu0
    %3762 = vmatprep.mubr.f32.mxu0 0.0
    %v3763 = vand.u32 %v2318, 4294901760
    %3764 = vmatmul.mubr.f32.gmra.mrb[0].mxu0 %v3763
    %v3765 = vpop.f32.mrb[0].mxu0
    %v3766 = vadd.f32 %v3458, %v3765
    %v3767 = vpop.f32.mrb[0].mxu0
    %3768 = vmatprep.mubr.f32.mxu0 0.0
    %v3769 = vand.u32 %v2321, 4294901760
    %3770 = vmatmul.mubr.f32.gmra.mrb[0].mxu0 %v3769
    %v3771 = vpop.f32.mrb[0].mxu0
    %v3772 = vadd.f32 %v3466, %v3771
    %v3773 = vpop.f32.mrb[0].mxu0
    %3774 = vmatprep.mubr.f32.mxu0 0.0
    %v3775 = vand.u32 %v2324, 4294901760
    %3776 = vmatmul.mubr.f32.gmra.mrb[0].mxu0 %v3775
    %v3777 = vpop.f32.mrb[0].mxu0
    %v3778 = vadd.f32 %v3474, %v3777
    %v3779 = vpop.f32.mrb[0].mxu0
    %3780 = vmatprep.mubr.f32.mxu0 0.0
    %v3781 = vand.u32 %v2327, 4294901760
    %3782 = vmatmul.mubr.f32.gmra.mrb[0].mxu0 %v3781
    %v3783 = vpop.f32.mrb[0].mxu0
    %v3784 = vadd.f32 %v3482, %v3783
    %v3785 = vpop.f32.mrb[0].mxu0
    %3786 = vmatprep.mubr.f32.mxu0 0.0
    %v3787 = vand.u32 %v2330, 4294901760
    %3788 = vmatmul.mubr.f32.gmra.mrb[0].mxu0 %v3787
    %v3789 = vpop.f32.mrb[0].mxu0
    %v3790 = vadd.f32 %v3490, %v3789
    %v3791 = vpop.f32.mrb[0].mxu0
    %3792 = vmatprep.mubr.f32.mxu0 0.0
    %v3793 = vand.u32 %v2333, 4294901760
    %3794 = vmatmul.mubr.f32.gmra.mrb[0].mxu0 %v3793
    %v3795 = vpop.f32.mrb[0].mxu0
    %v3796 = vadd.f32 %v3498, %v3795
    %v3797 = vpop.f32.mrb[0].mxu0
    %3798 = vmatprep.mubr.f32.mxu0 0.0
    %v3799 = vand.u32 %v2336, 4294901760
    %3800 = vmatmul.mubr.f32.gmra.mrb[0].mxu0 %v3799
    %v3801 = vpop.f32.mrb[0].mxu0
    %v3802 = vadd.f32 %v3506, %v3801
    %v3803 = vpop.f32.mrb[0].mxu0
    %3804 = vmatprep.mubr.f32.mxu0 0.0
    %v3805 = vand.u32 %v2339, 4294901760
    %3806 = vmatmul.mubr.f32.gmra.mrb[0].mxu0 %v3805
    %v3807 = vpop.f32.mrb[0].mxu0
    %v3808 = vadd.f32 %v3514, %v3807
    %v3809 = vpop.f32.mrb[0].mxu0
    %3810 = vmatprep.mubr.f32.mxu0 0.0
    %v3811 = vand.u32 %v2342, 4294901760
    %3812 = vmatmul.mubr.f32.gmra.mrb[0].mxu0 %v3811
    %v3813 = vpop.f32.mrb[0].mxu0
    %v3814 = vadd.f32 %v3522, %v3813
    %v3815 = vpop.f32.mrb[0].mxu0
    %3816 = vmatprep.mubr.f32.mxu0 0.0
    %v3817 = vand.u32 %v2345, 4294901760
    %3818 = vmatmul.mubr.f32.gmra.mrb[0].mxu0 %v3817
    %v3819 = vpop.f32.mrb[0].mxu0
    %v3820 = vadd.f32 %v3530, %v3819
    %v3821 = vpop.f32.mrb[0].mxu0
    %3822 = vmatprep.mubr.f32.mxu0 0.0
    %v3823 = vand.u32 %v2348, 4294901760
    %3824 = vmatmul.mubr.f32.gmra.mrb[0].mxu0 %v3823
    %v3825 = vpop.f32.mrb[0].mxu0
    %v3826 = vadd.f32 %v3538, %v3825
    %v3827 = vpop.f32.mrb[0].mxu0
    %3828 = vmatprep.mubr.f32.mxu0 0.0
    %v3829 = vand.u32 %v2351, 4294901760
    %3830 = vmatmul.mubr.f32.gmra.mrb[0].mxu0 %v3829
    %v3831 = vpop.f32.mrb[0].mxu0
    %v3832 = vadd.f32 %v3546, %v3831
    %v3833 = vpop.f32.mrb[0].mxu0
    %3834 = vmatprep.mubr.f32.mxu0 0.0
    %v3835 = vand.u32 %v2354, 4294901760
    %3836 = vmatmul.mubr.f32.gmra.mrb[0].mxu0 %v3835
    %v3837 = vpop.f32.mrb[0].mxu0
    %v3838 = vadd.f32 %v3554, %v3837
    %v3839 = vpop.f32.mrb[0].mxu0
    %3840 = vmatprep.mubr.f32.mxu0 0.0
    %v3841 = vand.u32 %v2357, 4294901760
    %3842 = vmatmul.mubr.f32.gmra.mrb[0].mxu0 %v3841
    %v3843 = vpop.f32.mrb[0].mxu0
    %v3844 = vadd.f32 %v3562, %v3843
    %v3845 = vpop.f32.mrb[0].mxu0
    %3846 = vmatprep.mubr.f32.mxu0 0.0
    %v3847 = vand.u32 %v2360, 4294901760
    %3848 = vmatmul.mubr.f32.gmra.mrb[0].mxu0 %v3847
    %v3849 = vpop.f32.mrb[0].mxu0
    %v3850 = vadd.f32 %v3570, %v3849
    %v3851 = vpop.f32.mrb[0].mxu0
    %3852 = vmatprep.mubr.f32.mxu0 0.0
    %v3853 = vand.u32 %v2363, 4294901760
    %3854 = vmatmul.mubr.f32.gmra.mrb[0].mxu0 %v3853
    %v3855 = vpop.f32.mrb[0].mxu0
    %v3856 = vadd.f32 %v3578, %v3855
    %v3857 = vpop.f32.mrb[0].mxu0
    %3858 = vmatprep.mubr.f32.mxu0 0.0
    %v3859 = vand.u32 %v2366, 4294901760
    %3860 = vmatmul.mubr.f32.gmra.mrb[0].mxu0 %v3859
    %v3861 = vpop.f32.mrb[0].mxu0
    %v3862 = vadd.f32 %v3586, %v3861
    %v3863 = vpop.f32.mrb[0].mxu0
    %3864 = vmatprep.mubr.f32.mxu0 0.0
    %v3865 = vand.u32 %v2369, 4294901760
    %3866 = vmatmul.mubr.f32.gmra.mrb[0].mxu0 %v3865
    %v3867 = vpop.f32.mrb[0].mxu0
    %v3868 = vadd.f32 %v3594, %v3867
    %v3869 = vpop.f32.mrb[0].mxu0
    %3870 = vmatprep.mubr.f32.mxu0 0.0
    %v3871 = vand.u32 %v2372, 4294901760
    %3872 = vmatmul.mubr.f32.gmra.mrb[0].mxu0 %v3871
    %v3873 = vpop.f32.mrb[0].mxu0
    %v3874 = vadd.f32 %v3602, %v3873
    %v3875 = vpop.f32.mrb[0].mxu0
    %3876 = vmatprep.mubr.f32.mxu0 0.0
    %v3877 = vand.u32 %v2375, 4294901760
    %3878 = vmatmul.mubr.f32.gmra.mrb[0].mxu0 %v3877
    %v3879 = vpop.f32.mrb[0].mxu0
    %v3880 = vadd.f32 %v3610, %v3879
    %v3881 = vpop.f32.mrb[0].mxu0
    %3882 = vmatprep.mubr.f32.mxu0 0.0
    %v3883 = vand.u32 %v2378, 4294901760
    %3884 = vmatmul.mubr.f32.gmra.mrb[0].mxu0 %v3883
    %v3885 = vpop.f32.mrb[0].mxu0
    %v3886 = vadd.f32 %v3618, %v3885
    %v3887 = vpop.f32.mrb[0].mxu0
    %3888 = vmatprep.mubr.f32.mxu0 0.0
    %v3889 = vand.u32 %v2381, 4294901760
    %3890 = vmatmul.mubr.f32.gmra.mrb[0].mxu0 %v3889
    %v3891 = vpop.f32.mrb[0].mxu0
    %v3892 = vadd.f32 %v3626, %v3891
    %v3893 = vpop.f32.mrb[0].mxu0
    %3894 = vmatprep.mubr.f32.mxu0 0.0
    %v3895 = vand.u32 %v2384, 4294901760
    %3896 = vmatmul.mubr.f32.gmra.mrb[0].mxu0 %v3895
    %v3897 = vpop.f32.mrb[0].mxu0
    %v3898 = vadd.f32 %v3634, %v3897
    %v3899 = vpop.f32.mrb[0].mxu0
    %3900 = vmatprep.mubr.f32.mxu0 0.0
    %v3901 = vand.u32 %v2387, 4294901760
    %3902 = vmatmul.mubr.f32.gmra.mrb[0].mxu0 %v3901
    %v3903 = vpop.f32.mrb[0].mxu0
    %v3904 = vadd.f32 %v3642, %v3903
    %v3905 = vpop.f32.mrb[0].mxu0
    %3906 = vmatprep.mubr.f32.mxu0 0.0
    %v3907 = vand.u32 %v2390, 4294901760
    %3908 = vmatmul.mubr.f32.gmra.mrb[0].mxu0 %v3907
    %v3909 = vpop.f32.mrb[0].mxu0
    %v3910 = vadd.f32 %v3650, %v3909
    %v3911 = vpop.f32.mrb[0].mxu0
    %3912 = vdwg.mxu0
    %3913 = vmatprep.subr.mxu0 0.0
    %v3914 = vand.u32 %v2263, 4294901760
    %3915 = vmatpush1.msra.mxu0 %v3914
    %3916 = vmatprep.subr.mxu0 0.0
    %3917 = vmatpush1.msra.mxu0 0.0
    %3918 = vmatprep.subr.mxu0 0.0
    %3919 = vmatpush1.msra.mxu0 0.0
    %3920 = vmatprep.subr.mxu0 0.0
    %3921 = vmatpush1.msra.mxu0 0.0
    %3922 = vmatprep.subr.mxu0 0.0
    %3923 = vmatpush1.msra.mxu0 0.0
    %3924 = vmatprep.subr.mxu0 0.0
    %3925 = vmatpush1.msra.mxu0 0.0
    %3926 = vmatprep.subr.mxu0 0.0
    %3927 = vmatpush1.msra.mxu0 0.0
    %3928 = vmatprep.subr.mxu0 0.0
    %3929 = vmatpush1.msra.mxu0 0.0
    %3930 = vmatprep.subr.mxu0 0.0
    %3931 = vmatpush1.msra.mxu0 0.0
    %3932 = vmatprep.subr.mxu0 0.0
    %3933 = vmatpush1.msra.mxu0 0.0
    %3934 = vmatprep.subr.mxu0 0.0
    %3935 = vmatpush1.msra.mxu0 0.0
    %3936 = vmatprep.subr.mxu0 0.0
    %3937 = vmatpush1.msra.mxu0 0.0
    %3938 = vmatprep.subr.mxu0 0.0
    %3939 = vmatpush1.msra.mxu0 0.0
    %3940 = vmatprep.subr.mxu0 0.0
    %3941 = vmatpush1.msra.mxu0 0.0
    %3942 = vmatprep.subr.mxu0 0.0
    %3943 = vmatpush1.msra.mxu0 0.0
    %3944 = vmatprep.subr.mxu0 0.0
    %3945 = vmatpush1.msra.mxu0 0.0
    %3946 = vmatprep.subr.mxu0 0.0
    %3947 = vmatpush1.msra.mxu0 0.0
    %3948 = vmatprep.subr.mxu0 0.0
    %3949 = vmatpush1.msra.mxu0 0.0
    %3950 = vmatprep.subr.mxu0 0.0
    %3951 = vmatpush1.msra.mxu0 0.0
    %3952 = vmatprep.subr.mxu0 0.0
    %3953 = vmatpush1.msra.mxu0 0.0
    %3954 = vmatprep.subr.mxu0 0.0
    %3955 = vmatpush1.msra.mxu0 0.0
    %3956 = vmatprep.subr.mxu0 0.0
    %3957 = vmatpush1.msra.mxu0 0.0
    %3958 = vmatprep.subr.mxu0 0.0
    %3959 = vmatpush1.msra.mxu0 0.0
    %3960 = vmatprep.subr.mxu0 0.0
    %3961 = vmatpush1.msra.mxu0 0.0
    %3962 = vmatprep.subr.mxu0 0.0
    %3963 = vmatpush1.msra.mxu0 0.0
    %3964 = vmatprep.subr.mxu0 0.0
    %3965 = vmatpush1.msra.mxu0 0.0
    %3966 = vmatprep.subr.mxu0 0.0
    %3967 = vmatpush1.msra.mxu0 0.0
    %3968 = vmatprep.subr.mxu0 0.0
    %3969 = vmatpush1.msra.mxu0 0.0
    %3970 = vmatprep.subr.mxu0 0.0
    %3971 = vmatpush1.msra.mxu0 0.0
    %3972 = vmatprep.subr.mxu0 0.0
    %3973 = vmatpush1.msra.mxu0 0.0
    %3974 = vmatprep.subr.mxu0 0.0
    %3975 = vmatpush1.msra.mxu0 0.0
    %3976 = vmatprep.subr.mxu0 0.0
    %3977 = vmatpush1.msra.mxu0 0.0
    %3978 = vmatprep.mubr.f32.mxu0 0.0
    %v3979 = vand.u32 %v2297, 4294901760
    %3980 = vmatmul.mubr.f32.gmra.mrb[0].mxu0 %v3979
    %v3981 = vpop.f32.mrb[0].mxu0
    %v3982 = vadd.f32 %v3724, %v3981
    %v3983 = vpop.f32.mrb[0].mxu0
    %3984 = vmatprep.mubr.f32.mxu0 0.0
    %v3985 = vand.u32 %v2300, 4294901760
    %3986 = vmatmul.mubr.f32.gmra.mrb[0].mxu0 %v3985
    %v3987 = vpop.f32.mrb[0].mxu0
    %v3988 = vadd.f32 %v3730, %v3987
    %v3989 = vpop.f32.mrb[0].mxu0
    %3990 = vmatprep.mubr.f32.mxu0 0.0
    %v3991 = vand.u32 %v2303, 4294901760
    %3992 = vmatmul.mubr.f32.gmra.mrb[0].mxu0 %v3991
    %v3993 = vpop.f32.mrb[0].mxu0
    %v3994 = vadd.f32 %v3736, %v3993
    %v3995 = vpop.f32.mrb[0].mxu0
    %3996 = vmatprep.mubr.f32.mxu0 0.0
    %v3997 = vand.u32 %v2306, 4294901760
    %3998 = vmatmul.mubr.f32.gmra.mrb[0].mxu0 %v3997
    %v3999 = vpop.f32.mrb[0].mxu0
    %v4000 = vadd.f32 %v3742, %v3999
    %v4001 = vpop.f32.mrb[0].mxu0
    %4002 = vmatprep.mubr.f32.mxu0 0.0
    %v4003 = vand.u32 %v2309, 4294901760
    %4004 = vmatmul.mubr.f32.gmra.mrb[0].mxu0 %v4003
    %v4005 = vpop.f32.mrb[0].mxu0
    %v4006 = vadd.f32 %v3748, %v4005
    %v4007 = vpop.f32.mrb[0].mxu0
    %4008 = vmatprep.mubr.f32.mxu0 0.0
    %v4009 = vand.u32 %v2312, 4294901760
    %4010 = vmatmul.mubr.f32.gmra.mrb[0].mxu0 %v4009
    %v4011 = vpop.f32.mrb[0].mxu0
    %v4012 = vadd.f32 %v3754, %v4011
    %v4013 = vpop.f32.mrb[0].mxu0
    %4014 = vmatprep.mubr.f32.mxu0 0.0
    %v4015 = vand.u32 %v2315, 4294901760
    %4016 = vmatmul.mubr.f32.gmra.mrb[0].mxu0 %v4015
    %v4017 = vpop.f32.mrb[0].mxu0
    %v4018 = vadd.f32 %v3760, %v4017
    %v4019 = vpop.f32.mrb[0].mxu0
    %4020 = vmatprep.mubr.f32.mxu0 0.0
    %v4021 = vand.u32 %v2318, 4294901760
    %4022 = vmatmul.mubr.f32.gmra.mrb[0].mxu0 %v4021
    %v4023 = vpop.f32.mrb[0].mxu0
    %v4024 = vadd.f32 %v3766, %v4023
    %v4025 = vpop.f32.mrb[0].mxu0
    %4026 = vmatprep.mubr.f32.mxu0 0.0
    %v4027 = vand.u32 %v2321, 4294901760
    %4028 = vmatmul.mubr.f32.gmra.mrb[0].mxu0 %v4027
    %v4029 = vpop.f32.mrb[0].mxu0
    %v4030 = vadd.f32 %v3772, %v4029
    %v4031 = vpop.f32.mrb[0].mxu0
    %4032 = vmatprep.mubr.f32.mxu0 0.0
    %v4033 = vand.u32 %v2324, 4294901760
    %4034 = vmatmul.mubr.f32.gmra.mrb[0].mxu0 %v4033
    %v4035 = vpop.f32.mrb[0].mxu0
    %v4036 = vadd.f32 %v3778, %v4035
    %v4037 = vpop.f32.mrb[0].mxu0
    %4038 = vmatprep.mubr.f32.mxu0 0.0
    %v4039 = vand.u32 %v2327, 4294901760
    %4040 = vmatmul.mubr.f32.gmra.mrb[0].mxu0 %v4039
    %v4041 = vpop.f32.mrb[0].mxu0
    %v4042 = vadd.f32 %v3784, %v4041
    %v4043 = vpop.f32.mrb[0].mxu0
    %4044 = vmatprep.mubr.f32.mxu0 0.0
    %v4045 = vand.u32 %v2330, 4294901760
    %4046 = vmatmul.mubr.f32.gmra.mrb[0].mxu0 %v4045
    %v4047 = vpop.f32.mrb[0].mxu0
    %v4048 = vadd.f32 %v3790, %v4047
    %v4049 = vpop.f32.mrb[0].mxu0
    %4050 = vmatprep.mubr.f32.mxu0 0.0
    %v4051 = vand.u32 %v2333, 4294901760
    %4052 = vmatmul.mubr.f32.gmra.mrb[0].mxu0 %v4051
    %v4053 = vpop.f32.mrb[0].mxu0
    %v4054 = vadd.f32 %v3796, %v4053
    %v4055 = vpop.f32.mrb[0].mxu0
    %4056 = vmatprep.mubr.f32.mxu0 0.0
    %v4057 = vand.u32 %v2336, 4294901760
    %4058 = vmatmul.mubr.f32.gmra.mrb[0].mxu0 %v4057
    %v4059 = vpop.f32.mrb[0].mxu0
    %v4060 = vadd.f32 %v3802, %v4059
    %v4061 = vpop.f32.mrb[0].mxu0
    %4062 = vmatprep.mubr.f32.mxu0 0.0
    %v4063 = vand.u32 %v2339, 4294901760
    %4064 = vmatmul.mubr.f32.gmra.mrb[0].mxu0 %v4063
    %v4065 = vpop.f32.mrb[0].mxu0
    %v4066 = vadd.f32 %v3808, %v4065
    %v4067 = vpop.f32.mrb[0].mxu0
    %4068 = vmatprep.mubr.f32.mxu0 0.0
    %v4069 = vand.u32 %v2342, 4294901760
    %4070 = vmatmul.mubr.f32.gmra.mrb[0].mxu0 %v4069
    %v4071 = vpop.f32.mrb[0].mxu0
    %v4072 = vadd.f32 %v3814, %v4071
    %v4073 = vpop.f32.mrb[0].mxu0
    %4074 = vmatprep.mubr.f32.mxu0 0.0
    %v4075 = vand.u32 %v2345, 4294901760
    %4076 = vmatmul.mubr.f32.gmra.mrb[0].mxu0 %v4075
    %v4077 = vpop.f32.mrb[0].mxu0
    %v4078 = vadd.f32 %v3820, %v4077
    %v4079 = vpop.f32.mrb[0].mxu0
    %4080 = vmatprep.mubr.f32.mxu0 0.0
    %v4081 = vand.u32 %v2348, 4294901760
    %4082 = vmatmul.mubr.f32.gmra.mrb[0].mxu0 %v4081
    %v4083 = vpop.f32.mrb[0].mxu0
    %v4084 = vadd.f32 %v3826, %v4083
    %v4085 = vpop.f32.mrb[0].mxu0
    %4086 = vmatprep.mubr.f32.mxu0 0.0
    %v4087 = vand.u32 %v2351, 4294901760
    %4088 = vmatmul.mubr.f32.gmra.mrb[0].mxu0 %v4087
    %v4089 = vpop.f32.mrb[0].mxu0
    %v4090 = vadd.f32 %v3832, %v4089
    %v4091 = vpop.f32.mrb[0].mxu0
    %4092 = vmatprep.mubr.f32.mxu0 0.0
    %v4093 = vand.u32 %v2354, 4294901760
    %4094 = vmatmul.mubr.f32.gmra.mrb[0].mxu0 %v4093
    %v4095 = vpop.f32.mrb[0].mxu0
    %v4096 = vadd.f32 %v3838, %v4095
    %v4097 = vpop.f32.mrb[0].mxu0
    %4098 = vmatprep.mubr.f32.mxu0 0.0
    %v4099 = vand.u32 %v2357, 4294901760
    %4100 = vmatmul.mubr.f32.gmra.mrb[0].mxu0 %v4099
    %v4101 = vpop.f32.mrb[0].mxu0
    %v4102 = vadd.f32 %v3844, %v4101
    %v4103 = vpop.f32.mrb[0].mxu0
    %4104 = vmatprep.mubr.f32.mxu0 0.0
    %v4105 = vand.u32 %v2360, 4294901760
    %4106 = vmatmul.mubr.f32.gmra.mrb[0].mxu0 %v4105
    %v4107 = vpop.f32.mrb[0].mxu0
    %v4108 = vadd.f32 %v3850, %v4107
    %v4109 = vpop.f32.mrb[0].mxu0
    %4110 = vmatprep.mubr.f32.mxu0 0.0
    %v4111 = vand.u32 %v2363, 4294901760
    %4112 = vmatmul.mubr.f32.gmra.mrb[0].mxu0 %v4111
    %v4113 = vpop.f32.mrb[0].mxu0
    %v4114 = vadd.f32 %v3856, %v4113
    %v4115 = vpop.f32.mrb[0].mxu0
    %4116 = vmatprep.mubr.f32.mxu0 0.0
    %v4117 = vand.u32 %v2366, 4294901760
    %4118 = vmatmul.mubr.f32.gmra.mrb[0].mxu0 %v4117
    %v4119 = vpop.f32.mrb[0].mxu0
    %v4120 = vadd.f32 %v3862, %v4119
    %v4121 = vpop.f32.mrb[0].mxu0
    %4122 = vmatprep.mubr.f32.mxu0 0.0
    %v4123 = vand.u32 %v2369, 4294901760
    %4124 = vmatmul.mubr.f32.gmra.mrb[0].mxu0 %v4123
    %v4125 = vpop.f32.mrb[0].mxu0
    %v4126 = vadd.f32 %v3868, %v4125
    %v4127 = vpop.f32.mrb[0].mxu0
    %4128 = vmatprep.mubr.f32.mxu0 0.0
    %v4129 = vand.u32 %v2372, 4294901760
    %4130 = vmatmul.mubr.f32.gmra.mrb[0].mxu0 %v4129
    %v4131 = vpop.f32.mrb[0].mxu0
    %v4132 = vadd.f32 %v3874, %v4131
    %v4133 = vpop.f32.mrb[0].mxu0
    %4134 = vmatprep.mubr.f32.mxu0 0.0
    %v4135 = vand.u32 %v2375, 4294901760
    %4136 = vmatmul.mubr.f32.gmra.mrb[0].mxu0 %v4135
    %v4137 = vpop.f32.mrb[0].mxu0
    %v4138 = vadd.f32 %v3880, %v4137
    %v4139 = vpop.f32.mrb[0].mxu0
    %4140 = vmatprep.mubr.f32.mxu0 0.0
    %v4141 = vand.u32 %v2378, 4294901760
    %4142 = vmatmul.mubr.f32.gmra.mrb[0].mxu0 %v4141
    %v4143 = vpop.f32.mrb[0].mxu0
    %v4144 = vadd.f32 %v3886, %v4143
    %v4145 = vpop.f32.mrb[0].mxu0
    %4146 = vmatprep.mubr.f32.mxu0 0.0
    %v4147 = vand.u32 %v2381, 4294901760
    %4148 = vmatmul.mubr.f32.gmra.mrb[0].mxu0 %v4147
    %v4149 = vpop.f32.mrb[0].mxu0
    %v4150 = vadd.f32 %v3892, %v4149
    %v4151 = vpop.f32.mrb[0].mxu0
    %4152 = vmatprep.mubr.f32.mxu0 0.0
    %v4153 = vand.u32 %v2384, 4294901760
    %4154 = vmatmul.mubr.f32.gmra.mrb[0].mxu0 %v4153
    %v4155 = vpop.f32.mrb[0].mxu0
    %v4156 = vadd.f32 %v3898, %v4155
    %v4157 = vpop.f32.mrb[0].mxu0
    %4158 = vmatprep.mubr.f32.mxu0 0.0
    %v4159 = vand.u32 %v2387, 4294901760
    %4160 = vmatmul.mubr.f32.gmra.mrb[0].mxu0 %v4159
    %v4161 = vpop.f32.mrb[0].mxu0
    %v4162 = vadd.f32 %v3904, %v4161
    %v4163 = vpop.f32.mrb[0].mxu0
    %4164 = vmatprep.mubr.f32.mxu0 0.0
    %v4165 = vand.u32 %v2390, 4294901760
    %4166 = vmatmul.mubr.f32.gmra.mrb[0].mxu0 %v4165
    %v4167 = vpop.f32.mrb[0].mxu0
    %v4168 = vadd.f32 %v3910, %v4167
    %v4169 = vpop.f32.mrb[0].mxu0
    %4170 = vdwg.mxu0
    %v4171 = vmax.f32 %v3982, 0.0
    %v4172 = vmax.f32 %v3988, 0.0
    %v4173 = vmax.f32 %v3994, 0.0
    %v4174 = vmax.f32 %v4000, 0.0
    %v4175 = vmax.f32 %v4006, 0.0
    %v4176 = vmax.f32 %v4012, 0.0
    %v4177 = vmax.f32 %v4018, 0.0
    %v4178 = vmax.f32 %v4024, 0.0
    %v4179 = vmax.f32 %v4030, 0.0
    %v4180 = vmax.f32 %v4036, 0.0
    %v4181 = vmax.f32 %v4042, 0.0
    %v4182 = vmax.f32 %v4048, 0.0
    %v4183 = vmax.f32 %v4054, 0.0
    %v4184 = vmax.f32 %v4060, 0.0
    %v4185 = vmax.f32 %v4066, 0.0
    %v4186 = vmax.f32 %v4072, 0.0
    %v4187 = vmax.f32 %v4078, 0.0
    %v4188 = vmax.f32 %v4084, 0.0
    %v4189 = vmax.f32 %v4090, 0.0
    %v4190 = vmax.f32 %v4096, 0.0
    %v4191 = vmax.f32 %v4102, 0.0
    %v4192 = vmax.f32 %v4108, 0.0
    %v4193 = vmax.f32 %v4114, 0.0
    %v4194 = vmax.f32 %v4120, 0.0
    %v4195 = vmax.f32 %v4126, 0.0
    %v4196 = vmax.f32 %v4132, 0.0
    %v4197 = vmax.f32 %v4138, 0.0
    %v4198 = vmax.f32 %v4144, 0.0
    %v4199 = vmax.f32 %v4150, 0.0
    %v4200 = vmax.f32 %v4156, 0.0
    %v4201 = vmax.f32 %v4162, 0.0
    %v4202 = vmax.f32 %v4168, 0.0
    %4203 = vst [vmem:[#allocation6] sm:$0xff] %v4171
    %4204 = vst [vmem:[#allocation6 + $0x8] sm:$0xff] %v4172
    %4205 = vst [vmem:[#allocation6 + $0x10] sm:$0xff] %v4173
    %4206 = vst [vmem:[#allocation6 + $0x18] sm:$0xff] %v4174
    %4207 = vst [vmem:[#allocation6 + $0x20] sm:$0xff] %v4175
    %4208 = vst [vmem:[#allocation6 + $0x28] sm:$0xff] %v4176
    %4209 = vst [vmem:[#allocation6 + $0x30] sm:$0xff] %v4177
    %4210 = vst [vmem:[#allocation6 + $0x38] sm:$0xff] %v4178
    %4211 = vst [vmem:[#allocation6 + $0x40] sm:$0xff] %v4179
    %4212 = vst [vmem:[#allocation6 + $0x48] sm:$0xff] %v4180
    %4213 = vst [vmem:[#allocation6 + $0x50] sm:$0xff] %v4181
    %4214 = vst [vmem:[#allocation6 + $0x58] sm:$0xff] %v4182
    %4215 = vst [vmem:[#allocation6 + $0x60] sm:$0xff] %v4183
    %4216 = vst [vmem:[#allocation6 + $0x68] sm:$0xff] %v4184
    %4217 = vst [vmem:[#allocation6 + $0x70] sm:$0xff] %v4185
    %4218 = vst [vmem:[#allocation6 + $0x78] sm:$0xff] %v4186
    %4219 = vst [vmem:[#allocation6 + $0x80] sm:$0xff] %v4187
    %4220 = vst [vmem:[#allocation6 + $0x88] sm:$0xff] %v4188
    %4221 = vst [vmem:[#allocation6 + $0x90] sm:$0xff] %v4189
    %4222 = vst [vmem:[#allocation6 + $0x98] sm:$0xff] %v4190
    %4223 = vst [vmem:[#allocation6 + $0xa0] sm:$0xff] %v4191
    %4224 = vst [vmem:[#allocation6 + $0xa8] sm:$0xff] %v4192
    %4225 = vst [vmem:[#allocation6 + $0xb0] sm:$0xff] %v4193
    %4226 = vst [vmem:[#allocation6 + $0xb8] sm:$0xff] %v4194
    %4227 = vst [vmem:[#allocation6 + $0xc0] sm:$0xff] %v4195
    %4228 = vst [vmem:[#allocation6 + $0xc8] sm:$0xff] %v4196
    %4229 = vst [vmem:[#allocation6 + $0xd0] sm:$0xff] %v4197
    %4230 = vst [vmem:[#allocation6 + $0xd8] sm:$0xff] %v4198
    %4231 = vst [vmem:[#allocation6 + $0xe0] sm:$0xff] %v4199
    %4232 = vst [vmem:[#allocation6 + $0xe8] sm:$0xff] %v4200
    %4233 = vst [vmem:[#allocation6 + $0xf0] sm:$0xff] %v4201
    %4234 = vst [vmem:[#allocation6 + $0xf8] sm:$0xff] %v4202
    // Predicated region
    $region36: #{tpu_custom_call.1} parent=1 // pred_check
      _
    $region37: #{tpu_custom_call.1} parent=1 // pred_check_branch
      %4236 = sbr.rel (0) target = $region39
    $region38: #{tpu_custom_call.1} parent=1 // pred_region
      %s4238 = ssub.s32 4096, 4096
      %4239 = vsyncadd [#allocation7], %s4238
      %s4240 = sshll.u32 [#allocation6], 4
      %s4241 = int_to_ptr.vmem [resolvable:$true] %s4240
      %4246 = dma.vmem_to_hbm [thread:$0]  %s4241, 4096, %s7, [#allocation7], 128, 128, 8
    $region39: #{tpu_custom_call.1} parent=1 // pred_fallthru
      _
    // Predicated region
    $region40: #{tpu_custom_call.1} parent=1 // pred_check
      _
    $region41: #{tpu_custom_call.1} parent=1 // pred_check_branch
      %4248 = sbr.rel (0) target = $region43
    $region42: #{tpu_custom_call.1} parent=1 // pred_region
      %4249 = dma.done [#allocation7], 4096
    $region43: #{tpu_custom_call.1} parent=1 // pred_fallthru
      _
    %4250 = vsyncpa [#allocation7], 1

// kernel: tpu_custom_call.1
$region0: #{tpu_custom_call.1}
  #allocation0 [shape = 'u32[]', space=smem, size = 0x4, offset = 0x4, fixed_abs, tag = 'smem constant byte address 0x4 - core index']
  #allocation1 [shape = 'u32[144,128]{1,0:T(1,128)}', space=vmem, size = 0x12000, scoped, tag = 'internal scratch']
  #allocation2 [shape = 'f32[256,8]{1,0:T(8,128)}', space=vmem, size = 0x20000, scoped, tag = 'scratch operand']
  #allocation3 [shape = 's32[1]{0}', space=sflag, size = 0x4, scoped, tag = 'scoped memory for tpu_custom_call.1']
  #allocation4 [shape = 'u8[1536]{0}', space=smem, size = 0x600, scoped, tag = 'prefetched SMEM operand 0']
  #allocation5 [shape = 'u8[2048]{0}', space=smem, size = 0x800, scoped, tag = 'prefetched SMEM operand 1']
  %s0 = inlined_call_operand.vmem [shape: s32[257], index: 0, kind: input, shape index: {}]
  %s1 = inlined_call_operand.vmem [shape: s32[512], index: 1, kind: input, shape index: {}]
  %s2 = inlined_call_operand.vmem [shape: f32[256,8], index: 2, kind: input, shape index: {}]
  %s3 = inlined_call_operand.vmem [shape: f32[256,1], index: 3, kind: input, shape index: {}]
  %s4 = inlined_call_operand.vmem [shape: f32[8,128], index: 4, kind: input, shape index: {}]
  %s5 = inlined_call_operand.vmem [shape: f32[8,128], index: 5, kind: input, shape index: {}]
  %s6 = inlined_call_operand.vmem [shape: f32[1,128], index: 6, kind: input, shape index: {}]
  %s7 = inlined_call_operand.hbm [shape: f32[256,128], index: 7, kind: output, shape index: {}]
  %s8 = sld [smem:[#allocation0]]
  $region44: #{tpu_custom_call.1} parent=0
    _
  %s10 = ssub.s32 1, %s8
  %s11 = scalar_select 0, %s10, %s8
  %s12 = sshll.u32 %s0, 4
  %s13 = int_to_ptr.vmem [resolvable:$true] %s12
  %15 = dma.vmem_to_smem %s13, 48, [#allocation4], [#allocation3]
  %s16 = sshll.u32 %s1, 4
  %s17 = int_to_ptr.vmem [resolvable:$true] %s16
  %19 = dma.vmem_to_smem %s17, 64, [#allocation5], [#allocation3]
  %20 = dma.done [#allocation3], 112
  %21 = sfence
  $region1: #{tpu_custom_call.1} parent=0
    #allocation6 [shape = 'u8[131072]{0}', space=vmem, size = 0x20000, scoped, tag = 'output window, operand 0, single buffered']
    #allocation7 [shape = 's32[1]{0}', space=sflag, size = 0x4, scoped, tag = 'scoped memory for tpu_custom_call.1']
    %22 = vsyncpa [#allocation7], 0
    // Predicated region
    $region2: #{tpu_custom_call.1} parent=1 // pred_check
      _
    $region3: #{tpu_custom_call.1} parent=1 // pred_check_branch
      %24 = sbr.rel (0) target = $region5
    $region4: #{tpu_custom_call.1} parent=1 // pred_region
      _
    $region5: #{tpu_custom_call.1} parent=1 // pred_fallthru
      _
    // Predicated region
    $region6: #{tpu_custom_call.1} parent=1 // pred_check
      _
    $region7: #{tpu_custom_call.1} parent=1 // pred_check_branch
      %26 = sbr.rel (0) target = $region9
    $region8: #{tpu_custom_call.1} parent=1 // pred_region
      _
    $region9: #{tpu_custom_call.1} parent=1 // pred_fallthru
      _
    // Predicated region
    $region10: #{tpu_custom_call.1} parent=1 // pred_check
      _
    $region11: #{tpu_custom_call.1} parent=1 // pred_check_branch
      %28 = sbr.rel (0) target = $region13
    $region12: #{tpu_custom_call.1} parent=1 // pred_region
      _
    $region13: #{tpu_custom_call.1} parent=1 // pred_fallthru
      _
    // Predicated region
    $region14: #{tpu_custom_call.1} parent=1 // pred_check
      _
    $region15: #{tpu_custom_call.1} parent=1 // pred_check_branch
      %30 = sbr.rel (0) target = $region17
    $region16: #{tpu_custom_call.1} parent=1 // pred_region
      _
    $region17: #{tpu_custom_call.1} parent=1 // pred_fallthru
      _
    // Predicated region
    $region18: #{tpu_custom_call.1} parent=1 // pred_check
      _
    $region19: #{tpu_custom_call.1} parent=1 // pred_check_branch
      %32 = sbr.rel (0) target = $region21
    $region20: #{tpu_custom_call.1} parent=1 // pred_region
      _
    $region21: #{tpu_custom_call.1} parent=1 // pred_fallthru
      _
    %s33 = smul.u32 0, 256
    %s34 = scalar_lea.vmem %s2, %s33
    %v35 = vld [vmem:[%s34] sm:$0xff]
    %v36 = vld [vmem:[%s34 + $0x8] sm:$0xff]
    %v37 = vld [vmem:[%s34 + $0x10] sm:$0xff]
    %v38 = vld [vmem:[%s34 + $0x18] sm:$0xff]
    %v39 = vld [vmem:[%s34 + $0x20] sm:$0xff]
    %v40 = vld [vmem:[%s34 + $0x28] sm:$0xff]
    %v41 = vld [vmem:[%s34 + $0x30] sm:$0xff]
    %v42 = vld [vmem:[%s34 + $0x38] sm:$0xff]
    %v43 = vld [vmem:[%s34 + $0x40] sm:$0xff]
    %v44 = vld [vmem:[%s34 + $0x48] sm:$0xff]
    %v45 = vld [vmem:[%s34 + $0x50] sm:$0xff]
    %v46 = vld [vmem:[%s34 + $0x58] sm:$0xff]
    %v47 = vld [vmem:[%s34 + $0x60] sm:$0xff]
    %v48 = vld [vmem:[%s34 + $0x68] sm:$0xff]
    %v49 = vld [vmem:[%s34 + $0x70] sm:$0xff]
    %v50 = vld [vmem:[%s34 + $0x78] sm:$0xff]
    %v51 = vld [vmem:[%s34 + $0x80] sm:$0xff]
    %v52 = vld [vmem:[%s34 + $0x88] sm:$0xff]
    %v53 = vld [vmem:[%s34 + $0x90] sm:$0xff]
    %v54 = vld [vmem:[%s34 + $0x98] sm:$0xff]
    %v55 = vld [vmem:[%s34 + $0xa0] sm:$0xff]
    %v56 = vld [vmem:[%s34 + $0xa8] sm:$0xff]
    %v57 = vld [vmem:[%s34 + $0xb0] sm:$0xff]
    %v58 = vld [vmem:[%s34 + $0xb8] sm:$0xff]
    %v59 = vld [vmem:[%s34 + $0xc0] sm:$0xff]
    %v60 = vld [vmem:[%s34 + $0xc8] sm:$0xff]
    %v61 = vld [vmem:[%s34 + $0xd0] sm:$0xff]
    %v62 = vld [vmem:[%s34 + $0xd8] sm:$0xff]
    %v63 = vld [vmem:[%s34 + $0xe0] sm:$0xff]
    %v64 = vld [vmem:[%s34 + $0xe8] sm:$0xff]
    %v65 = vld [vmem:[%s34 + $0xf0] sm:$0xff]
    %v66 = vld [vmem:[%s34 + $0xf8] sm:$0xff]
    %v67 = vld [vmem:[%s5] sm:$0xff]
    %v68 = vld [vmem:[%s6] sm:$0x1]
    %v70 = vlaneseq
    %v71 = vshrl.u32 %v70, 7
    %v72 = vsub.s32 0, %v71
    %v73 = vrot.slane %v68, %v72
    %vm75 = vcmask 64512
    %v77 = vsel %vm75, %v35, 0
    %v80 = vsel %vm75, %v36, 0
    %v83 = vsel %vm75, %v37, 0
    %v86 = vsel %vm75, %v38, 0
    %v89 = vsel %vm75, %v39, 0
    %v92 = vsel %vm75, %v40, 0
    %v95 = vsel %vm75, %v41, 0
    %v98 = vsel %vm75, %v42, 0
    %v101 = vsel %vm75, %v43, 0
    %v104 = vsel %vm75, %v44, 0
    %v107 = vsel %vm75, %v45, 0
    %v110 = vsel %vm75, %v46, 0
    %v113 = vsel %vm75, %v47, 0
    %v116 = vsel %vm75, %v48, 0
    %v119 = vsel %vm75, %v49, 0
    %v122 = vsel %vm75, %v50, 0
    %v125 = vsel %vm75, %v51, 0
    %v128 = vsel %vm75, %v52, 0
    %v131 = vsel %vm75, %v53, 0
    %v134 = vsel %vm75, %v54, 0
    %v137 = vsel %vm75, %v55, 0
    %v140 = vsel %vm75, %v56, 0
    %v143 = vsel %vm75, %v57, 0
    %v146 = vsel %vm75, %v58, 0
    %v149 = vsel %vm75, %v59, 0
    %v152 = vsel %vm75, %v60, 0
    %v155 = vsel %vm75, %v61, 0
    %v158 = vsel %vm75, %v62, 0
    %v161 = vsel %vm75, %v63, 0
    %v164 = vsel %vm75, %v64, 0
    %v167 = vsel %vm75, %v65, 0
    %v170 = vsel %vm75, %v66, 0
    %172 = vmatprep.subr.mxu0 0.0
    %v173 = vand.u32 %v67, 4294901760
    %174 = vmatpush1.msra.mxu0 %v173
    %175 = vmatprep.subr.mxu0 0.0
    %176 = vmatpush1.msra.mxu0 0.0
    %177 = vmatprep.subr.mxu0 0.0
    %178 = vmatpush1.msra.mxu0 0.0
    %179 = vmatprep.subr.mxu0 0.0
    %180 = vmatpush1.msra.mxu0 0.0
    %181 = vmatprep.subr.mxu0 0.0
    %182 = vmatpush1.msra.mxu0 0.0
    %183 = vmatprep.subr.mxu0 0.0
    %184 = vmatpush1.msra.mxu0 0.0
    %185 = vmatprep.subr.mxu0 0.0
    %186 = vmatpush1.msra.mxu0 0.0
    %187 = vmatprep.subr.mxu0 0.0
    %188 = vmatpush1.msra.mxu0 0.0
    %189 = vmatprep.subr.mxu0 0.0
    %190 = vmatpush1.msra.mxu0 0.0
    %191 = vmatprep.subr.mxu0 0.0
    %192 = vmatpush1.msra.mxu0 0.0
    %193 = vmatprep.subr.mxu0 0.0
    %194 = vmatpush1.msra.mxu0 0.0
    %195 = vmatprep.subr.mxu0 0.0
    %196 = vmatpush1.msra.mxu0 0.0
    %197 = vmatprep.subr.mxu0 0.0
    %198 = vmatpush1.msra.mxu0 0.0
    %199 = vmatprep.subr.mxu0 0.0
    %200 = vmatpush1.msra.mxu0 0.0
    %201 = vmatprep.subr.mxu0 0.0
    %202 = vmatpush1.msra.mxu0 0.0
    %203 = vmatprep.subr.mxu0 0.0
    %204 = vmatpush1.msra.mxu0 0.0
    %205 = vmatprep.subr.mxu0 0.0
    %206 = vmatpush1.msra.mxu0 0.0
    %207 = vmatprep.subr.mxu0 0.0
    %208 = vmatpush1.msra.mxu0 0.0
    %209 = vmatprep.subr.mxu0 0.0
    %210 = vmatpush1.msra.mxu0 0.0
    %211 = vmatprep.subr.mxu0 0.0
    %212 = vmatpush1.msra.mxu0 0.0
    %213 = vmatprep.subr.mxu0 0.0
    %214 = vmatpush1.msra.mxu0 0.0
    %215 = vmatprep.subr.mxu0 0.0
    %216 = vmatpush1.msra.mxu0 0.0
    %217 = vmatprep.subr.mxu0 0.0
    %218 = vmatpush1.msra.mxu0 0.0
    %219 = vmatprep.subr.mxu0 0.0
    %220 = vmatpush1.msra.mxu0 0.0
    %221 = vmatprep.subr.mxu0 0.0
    %222 = vmatpush1.msra.mxu0 0.0
    %223 = vmatprep.subr.mxu0 0.0
    %224 = vmatpush1.msra.mxu0 0.0
    %225 = vmatprep.subr.mxu0 0.0
    %226 = vmatpush1.msra.mxu0 0.0
    %227 = vmatprep.subr.mxu0 0.0
    %228 = vmatpush1.msra.mxu0 0.0
    %229 = vmatprep.subr.mxu0 0.0
    %230 = vmatpush1.msra.mxu0 0.0
    %231 = vmatprep.subr.mxu0 0.0
    %232 = vmatpush1.msra.mxu0 0.0
    %233 = vmatprep.subr.mxu0 0.0
    %234 = vmatpush1.msra.mxu0 0.0
    %235 = vmatprep.subr.mxu0 0.0
    %236 = vmatpush1.msra.mxu0 0.0
    %237 = vmatprep.mubr.f32.mxu0 0.0
    %v238 = vand.u32 %v77, 4294901760
    %v239 = vsub.f32 %v77, %v238
    %v240 = vand.u32 %v239, 4294901760
    %v241 = vsub.f32 %v239, %v240
    %v242 = vand.u32 %v241, 4294901760
    %243 = vmatmul.mubr.f32.gmra.mrb[0].mxu0 %v242
    %v244 = vpop.f32.mrb[0].mxu0
    %v245 = vadd.f32 %v73, %v244
    %v246 = vpop.f32.mrb[0].mxu0
    %247 = vmatprep.mubr.f32.mxu0 0.0
    %v248 = vand.u32 %v80, 4294901760
    %v249 = vsub.f32 %v80, %v248
    %v250 = vand.u32 %v249, 4294901760
    %v251 = vsub.f32 %v249, %v250
    %v252 = vand.u32 %v251, 4294901760
    %253 = vmatmul.mubr.f32.gmra.mrb[0].mxu0 %v252
    %v254 = vpop.f32.mrb[0].mxu0
    %v255 = vadd.f32 %v73, %v254
    %v256 = vpop.f32.mrb[0].mxu0
    %257 = vmatprep.mubr.f32.mxu0 0.0
    %v258 = vand.u32 %v83, 4294901760
    %v259 = vsub.f32 %v83, %v258
    %v260 = vand.u32 %v259, 4294901760
    %v261 = vsub.f32 %v259, %v260
    %v262 = vand.u32 %v261, 4294901760
    %263 = vmatmul.mubr.f32.gmra.mrb[0].mxu0 %v262
    %v264 = vpop.f32.mrb[0].mxu0
    %v265 = vadd.f32 %v73, %v264
    %v266 = vpop.f32.mrb[0].mxu0
    %267 = vmatprep.mubr.f32.mxu0 0.0
    %v268 = vand.u32 %v86, 4294901760
    %v269 = vsub.f32 %v86, %v268
    %v270 = vand.u32 %v269, 4294901760
    %v271 = vsub.f32 %v269, %v270
    %v272 = vand.u32 %v271, 4294901760
    %273 = vmatmul.mubr.f32.gmra.mrb[0].mxu0 %v272
    %v274 = vpop.f32.mrb[0].mxu0
    %v275 = vadd.f32 %v73, %v274
    %v276 = vpop.f32.mrb[0].mxu0
    %277 = vmatprep.mubr.f32.mxu0 0.0
    %v278 = vand.u32 %v89, 4294901760
    %v279 = vsub.f32 %v89, %v278
    %v280 = vand.u32 %v279, 4294901760
    %v281 = vsub.f32 %v279, %v280
    %v282 = vand.u32 %v281, 4294901760
    %283 = vmatmul.mubr.f32.gmra.mrb[0].mxu0 %v282
    %v284 = vpop.f32.mrb[0].mxu0
    %v285 = vadd.f32 %v73, %v284
    %v286 = vpop.f32.mrb[0].mxu0
    %287 = vmatprep.mubr.f32.mxu0 0.0
    %v288 = vand.u32 %v92, 4294901760
    %v289 = vsub.f32 %v92, %v288
    %v290 = vand.u32 %v289, 4294901760
    %v291 = vsub.f32 %v289, %v290
    %v292 = vand.u32 %v291, 4294901760
    %293 = vmatmul.mubr.f32.gmra.mrb[0].mxu0 %v292
    %v294 = vpop.f32.mrb[0].mxu0
    %v295 = vadd.f32 %v73, %v294
    %v296 = vpop.f32.mrb[0].mxu0
    %297 = vmatprep.mubr.f32.mxu0 0.0
    %v298 = vand.u32 %v95, 4294901760
    %v299 = vsub.f32 %v95, %v298
    %v300 = vand.u32 %v299, 4294901760
    %v301 = vsub.f32 %v299, %v300
    %v302 = vand.u32 %v301, 4294901760
    %303 = vmatmul.mubr.f32.gmra.mrb[0].mxu0 %v302
    %v304 = vpop.f32.mrb[0].mxu0
    %v305 = vadd.f32 %v73, %v304
    %v306 = vpop.f32.mrb[0].mxu0
    %307 = vmatprep.mubr.f32.mxu0 0.0
    %v308 = vand.u32 %v98, 4294901760
    %v309 = vsub.f32 %v98, %v308
    %v310 = vand.u32 %v309, 4294901760
    %v311 = vsub.f32 %v309, %v310
    %v312 = vand.u32 %v311, 4294901760
    %313 = vmatmul.mubr.f32.gmra.mrb[0].mxu0 %v312
    %v314 = vpop.f32.mrb[0].mxu0
    %v315 = vadd.f32 %v73, %v314
    %v316 = vpop.f32.mrb[0].mxu0
    %317 = vmatprep.mubr.f32.mxu0 0.0
    %v318 = vand.u32 %v101, 4294901760
    %v319 = vsub.f32 %v101, %v318
    %v320 = vand.u32 %v319, 4294901760
    %v321 = vsub.f32 %v319, %v320
    %v322 = vand.u32 %v321, 4294901760
    %323 = vmatmul.mubr.f32.gmra.mrb[0].mxu0 %v322
    %v324 = vpop.f32.mrb[0].mxu0
    %v325 = vadd.f32 %v73, %v324
    %v326 = vpop.f32.mrb[0].mxu0
    %327 = vmatprep.mubr.f32.mxu0 0.0
    %v328 = vand.u32 %v104, 4294901760
    %v329 = vsub.f32 %v104, %v328
    %v330 = vand.u32 %v329, 4294901760
    %v331 = vsub.f32 %v329, %v330
    %v332 = vand.u32 %v331, 4294901760
    %333 = vmatmul.mubr.f32.gmra.mrb[0].mxu0 %v332
    %v334 = vpop.f32.mrb[0].mxu0
    %v335 = vadd.f32 %v73, %v334
    %v336 = vpop.f32.mrb[0].mxu0
    %337 = vmatprep.mubr.f32.mxu0 0.0
    %v338 = vand.u32 %v107, 4294901760
    %v339 = vsub.f32 %v107, %v338
    %v340 = vand.u32 %v339, 4294901760
    %v341 = vsub.f32 %v339, %v340
    %v342 = vand.u32 %v341, 4294901760
    %343 = vmatmul.mubr.f32.gmra.mrb[0].mxu0 %v342
    %v344 = vpop.f32.mrb[0].mxu0
    %v345 = vadd.f32 %v73, %v344
    %v346 = vpop.f32.mrb[0].mxu0
    %347 = vmatprep.mubr.f32.mxu0 0.0
    %v348 = vand.u32 %v110, 4294901760
    %v349 = vsub.f32 %v110, %v348
    %v350 = vand.u32 %v349, 4294901760
    %v351 = vsub.f32 %v349, %v350
    %v352 = vand.u32 %v351, 4294901760
    %353 = vmatmul.mubr.f32.gmra.mrb[0].mxu0 %v352
    %v354 = vpop.f32.mrb[0].mxu0
    %v355 = vadd.f32 %v73, %v354
    %v356 = vpop.f32.mrb[0].mxu0
    %357 = vmatprep.mubr.f32.mxu0 0.0
    %v358 = vand.u32 %v113, 4294901760
    %v359 = vsub.f32 %v113, %v358
    %v360 = vand.u32 %v359, 4294901760
    %v361 = vsub.f32 %v359, %v360
    %v362 = vand.u32 %v361, 4294901760
    %363 = vmatmul.mubr.f32.gmra.mrb[0].mxu0 %v362
    %v364 = vpop.f32.mrb[0].mxu0
    %v365 = vadd.f32 %v73, %v364
    %v366 = vpop.f32.mrb[0].mxu0
    %367 = vmatprep.mubr.f32.mxu0 0.0
    %v368 = vand.u32 %v116, 4294901760
    %v369 = vsub.f32 %v116, %v368
    %v370 = vand.u32 %v369, 4294901760
    %v371 = vsub.f32 %v369, %v370
    %v372 = vand.u32 %v371, 4294901760
    %373 = vmatmul.mubr.f32.gmra.mrb[0].mxu0 %v372
    %v374 = vpop.f32.mrb[0].mxu0
    %v375 = vadd.f32 %v73, %v374
    %v376 = vpop.f32.mrb[0].mxu0
    %377 = vmatprep.mubr.f32.mxu0 0.0
    %v378 = vand.u32 %v119, 4294901760
    %v379 = vsub.f32 %v119, %v378
    %v380 = vand.u32 %v379, 4294901760
    %v381 = vsub.f32 %v379, %v380
    %v382 = vand.u32 %v381, 4294901760
    %383 = vmatmul.mubr.f32.gmra.mrb[0].mxu0 %v382
    %v384 = vpop.f32.mrb[0].mxu0
    %v385 = vadd.f32 %v73, %v384
    %v386 = vpop.f32.mrb[0].mxu0
    %387 = vmatprep.mubr.f32.mxu0 0.0
    %v388 = vand.u32 %v122, 4294901760
    %v389 = vsub.f32 %v122, %v388
    %v390 = vand.u32 %v389, 4294901760
    %v391 = vsub.f32 %v389, %v390
    %v392 = vand.u32 %v391, 4294901760
    %393 = vmatmul.mubr.f32.gmra.mrb[0].mxu0 %v392
    %v394 = vpop.f32.mrb[0].mxu0
    %v395 = vadd.f32 %v73, %v394
    %v396 = vpop.f32.mrb[0].mxu0
    %397 = vmatprep.mubr.f32.mxu0 0.0
    %v398 = vand.u32 %v125, 4294901760
    %v399 = vsub.f32 %v125, %v398
    %v400 = vand.u32 %v399, 4294901760
    %v401 = vsub.f32 %v399, %v400
    %v402 = vand.u32 %v401, 4294901760
    %403 = vmatmul.mubr.f32.gmra.mrb[0].mxu0 %v402
    %v404 = vpop.f32.mrb[0].mxu0
    %v405 = vadd.f32 %v73, %v404
    %v406 = vpop.f32.mrb[0].mxu0
    %407 = vmatprep.mubr.f32.mxu0 0.0
    %v408 = vand.u32 %v128, 4294901760
    %v409 = vsub.f32 %v128, %v408
    %v410 = vand.u32 %v409, 4294901760
    %v411 = vsub.f32 %v409, %v410
    %v412 = vand.u32 %v411, 4294901760
    %413 = vmatmul.mubr.f32.gmra.mrb[0].mxu0 %v412
    %v414 = vpop.f32.mrb[0].mxu0
    %v415 = vadd.f32 %v73, %v414
    %v416 = vpop.f32.mrb[0].mxu0
    %417 = vmatprep.mubr.f32.mxu0 0.0
    %v418 = vand.u32 %v131, 4294901760
    %v419 = vsub.f32 %v131, %v418
    %v420 = vand.u32 %v419, 4294901760
    %v421 = vsub.f32 %v419, %v420
    %v422 = vand.u32 %v421, 4294901760
    %423 = vmatmul.mubr.f32.gmra.mrb[0].mxu0 %v422
    %v424 = vpop.f32.mrb[0].mxu0
    %v425 = vadd.f32 %v73, %v424
    %v426 = vpop.f32.mrb[0].mxu0
    %427 = vmatprep.mubr.f32.mxu0 0.0
    %v428 = vand.u32 %v134, 4294901760
    %v429 = vsub.f32 %v134, %v428
    %v430 = vand.u32 %v429, 4294901760
    %v431 = vsub.f32 %v429, %v430
    %v432 = vand.u32 %v431, 4294901760
    %433 = vmatmul.mubr.f32.gmra.mrb[0].mxu0 %v432
    %v434 = vpop.f32.mrb[0].mxu0
    %v435 = vadd.f32 %v73, %v434
    %v436 = vpop.f32.mrb[0].mxu0
    %437 = vmatprep.mubr.f32.mxu0 0.0
    %v438 = vand.u32 %v137, 4294901760
    %v439 = vsub.f32 %v137, %v438
    %v440 = vand.u32 %v439, 4294901760
    %v441 = vsub.f32 %v439, %v440
    %v442 = vand.u32 %v441, 4294901760
    %443 = vmatmul.mubr.f32.gmra.mrb[0].mxu0 %v442
    %v444 = vpop.f32.mrb[0].mxu0
    %v445 = vadd.f32 %v73, %v444
    %v446 = vpop.f32.mrb[0].mxu0
    %447 = vmatprep.mubr.f32.mxu0 0.0
    %v448 = vand.u32 %v140, 4294901760
    %v449 = vsub.f32 %v140, %v448
    %v450 = vand.u32 %v449, 4294901760
    %v451 = vsub.f32 %v449, %v450
    %v452 = vand.u32 %v451, 4294901760
    %453 = vmatmul.mubr.f32.gmra.mrb[0].mxu0 %v452
    %v454 = vpop.f32.mrb[0].mxu0
    %v455 = vadd.f32 %v73, %v454
    %v456 = vpop.f32.mrb[0].mxu0
    %457 = vmatprep.mubr.f32.mxu0 0.0
    %v458 = vand.u32 %v143, 4294901760
    %v459 = vsub.f32 %v143, %v458
    %v460 = vand.u32 %v459, 4294901760
    %v461 = vsub.f32 %v459, %v460
    %v462 = vand.u32 %v461, 4294901760
    %463 = vmatmul.mubr.f32.gmra.mrb[0].mxu0 %v462
    %v464 = vpop.f32.mrb[0].mxu0
    %v465 = vadd.f32 %v73, %v464
    %v466 = vpop.f32.mrb[0].mxu0
    %467 = vmatprep.mubr.f32.mxu0 0.0
    %v468 = vand.u32 %v146, 4294901760
    %v469 = vsub.f32 %v146, %v468
    %v470 = vand.u32 %v469, 4294901760
    %v471 = vsub.f32 %v469, %v470
    %v472 = vand.u32 %v471, 4294901760
    %473 = vmatmul.mubr.f32.gmra.mrb[0].mxu0 %v472
    %v474 = vpop.f32.mrb[0].mxu0
    %v475 = vadd.f32 %v73, %v474
    %v476 = vpop.f32.mrb[0].mxu0
    %477 = vmatprep.mubr.f32.mxu0 0.0
    %v478 = vand.u32 %v149, 4294901760
    %v479 = vsub.f32 %v149, %v478
    %v480 = vand.u32 %v479, 4294901760
    %v481 = vsub.f32 %v479, %v480
    %v482 = vand.u32 %v481, 4294901760
    %483 = vmatmul.mubr.f32.gmra.mrb[0].mxu0 %v482
    %v484 = vpop.f32.mrb[0].mxu0
    %v485 = vadd.f32 %v73, %v484
    %v486 = vpop.f32.mrb[0].mxu0
    %487 = vmatprep.mubr.f32.mxu0 0.0
    %v488 = vand.u32 %v152, 4294901760
    %v489 = vsub.f32 %v152, %v488
    %v490 = vand.u32 %v489, 4294901760
    %v491 = vsub.f32 %v489, %v490
    %v492 = vand.u32 %v491, 4294901760
    %493 = vmatmul.mubr.f32.gmra.mrb[0].mxu0 %v492
    %v494 = vpop.f32.mrb[0].mxu0
    %v495 = vadd.f32 %v73, %v494
    %v496 = vpop.f32.mrb[0].mxu0
    %497 = vmatprep.mubr.f32.mxu0 0.0
    %v498 = vand.u32 %v155, 4294901760
    %v499 = vsub.f32 %v155, %v498
    %v500 = vand.u32 %v499, 4294901760
    %v501 = vsub.f32 %v499, %v500
    %v502 = vand.u32 %v501, 4294901760
    %503 = vmatmul.mubr.f32.gmra.mrb[0].mxu0 %v502
    %v504 = vpop.f32.mrb[0].mxu0
    %v505 = vadd.f32 %v73, %v504
    %v506 = vpop.f32.mrb[0].mxu0
    %507 = vmatprep.mubr.f32.mxu0 0.0
    %v508 = vand.u32 %v158, 4294901760
    %v509 = vsub.f32 %v158, %v508
    %v510 = vand.u32 %v509, 4294901760
    %v511 = vsub.f32 %v509, %v510
    %v512 = vand.u32 %v511, 4294901760
    %513 = vmatmul.mubr.f32.gmra.mrb[0].mxu0 %v512
    %v514 = vpop.f32.mrb[0].mxu0
    %v515 = vadd.f32 %v73, %v514
    %v516 = vpop.f32.mrb[0].mxu0
    %517 = vmatprep.mubr.f32.mxu0 0.0
    %v518 = vand.u32 %v161, 4294901760
    %v519 = vsub.f32 %v161, %v518
    %v520 = vand.u32 %v519, 4294901760
    %v521 = vsub.f32 %v519, %v520
    %v522 = vand.u32 %v521, 4294901760
    %523 = vmatmul.mubr.f32.gmra.mrb[0].mxu0 %v522
    %v524 = vpop.f32.mrb[0].mxu0
    %v525 = vadd.f32 %v73, %v524
    %v526 = vpop.f32.mrb[0].mxu0
    %527 = vmatprep.mubr.f32.mxu0 0.0
    %v528 = vand.u32 %v164, 4294901760
    %v529 = vsub.f32 %v164, %v528
    %v530 = vand.u32 %v529, 4294901760
    %v531 = vsub.f32 %v529, %v530
    %v532 = vand.u32 %v531, 4294901760
    %533 = vmatmul.mubr.f32.gmra.mrb[0].mxu0 %v532
    %v534 = vpop.f32.mrb[0].mxu0
    %v535 = vadd.f32 %v73, %v534
    %v536 = vpop.f32.mrb[0].mxu0
    %537 = vmatprep.mubr.f32.mxu0 0.0
    %v538 = vand.u32 %v167, 4294901760
    %v539 = vsub.f32 %v167, %v538
    %v540 = vand.u32 %v539, 4294901760
    %v541 = vsub.f32 %v539, %v540
    %v542 = vand.u32 %v541, 4294901760
    %543 = vmatmul.mubr.f32.gmra.mrb[0].mxu0 %v542
    %v544 = vpop.f32.mrb[0].mxu0
    %v545 = vadd.f32 %v73, %v544
    %v546 = vpop.f32.mrb[0].mxu0
    %547 = vmatprep.mubr.f32.mxu0 0.0
    %v548 = vand.u32 %v170, 4294901760
    %v549 = vsub.f32 %v170, %v548
    %v550 = vand.u32 %v549, 4294901760
    %v551 = vsub.f32 %v549, %v550
    %v552 = vand.u32 %v551, 4294901760
    %553 = vmatmul.mubr.f32.gmra.mrb[0].mxu0 %v552
    %v554 = vpop.f32.mrb[0].mxu0
    %v555 = vadd.f32 %v73, %v554
    %v556 = vpop.f32.mrb[0].mxu0
    %557 = vdwg.mxu0
    %558 = vmatprep.subr.mxu0 0.0
    %v559 = vand.u32 %v67, 4294901760
    %v560 = vsub.f32 %v67, %v559
    %v561 = vand.u32 %v560, 4294901760
    %v562 = vsub.f32 %v560, %v561
    %v563 = vand.u32 %v562, 4294901760
    %564 = vmatpush1.msra.mxu0 %v563
    %565 = vmatprep.subr.mxu0 0.0
    %566 = vmatpush1.msra.mxu0 0.0
    %567 = vmatprep.subr.mxu0 0.0
    %568 = vmatpush1.msra.mxu0 0.0
    %569 = vmatprep.subr.mxu0 0.0
    %570 = vmatpush1.msra.mxu0 0.0
    %571 = vmatprep.subr.mxu0 0.0
    %572 = vmatpush1.msra.mxu0 0.0
    %573 = vmatprep.subr.mxu0 0.0
    %574 = vmatpush1.msra.mxu0 0.0
    %575 = vmatprep.subr.mxu0 0.0
    %576 = vmatpush1.msra.mxu0 0.0
    %577 = vmatprep.subr.mxu0 0.0
    %578 = vmatpush1.msra.mxu0 0.0
    %579 = vmatprep.subr.mxu0 0.0
    %580 = vmatpush1.msra.mxu0 0.0
    %581 = vmatprep.subr.mxu0 0.0
    %582 = vmatpush1.msra.mxu0 0.0
    %583 = vmatprep.subr.mxu0 0.0
    %584 = vmatpush1.msra.mxu0 0.0
    %585 = vmatprep.subr.mxu0 0.0
    %586 = vmatpush1.msra.mxu0 0.0
    %587 = vmatprep.subr.mxu0 0.0
    %588 = vmatpush1.msra.mxu0 0.0
    %589 = vmatprep.subr.mxu0 0.0
    %590 = vmatpush1.msra.mxu0 0.0
    %591 = vmatprep.subr.mxu0 0.0
    %592 = vmatpush1.msra.mxu0 0.0
    %593 = vmatprep.subr.mxu0 0.0
    %594 = vmatpush1.msra.mxu0 0.0
    %595 = vmatprep.subr.mxu0 0.0
    %596 = vmatpush1.msra.mxu0 0.0
    %597 = vmatprep.subr.mxu0 0.0
    %598 = vmatpush1.msra.mxu0 0.0
    %599 = vmatprep.subr.mxu0 0.0
    %600 = vmatpush1.msra.mxu0 0.0
    %601 = vmatprep.subr.mxu0 0.0
    %602 = vmatpush1.msra.mxu0 0.0
    %603 = vmatprep.subr.mxu0 0.0
    %604 = vmatpush1.msra.mxu0 0.0
    %605 = vmatprep.subr.mxu0 0.0
    %606 = vmatpush1.msra.mxu0 0.0
    %607 = vmatprep.subr.mxu0 0.0
    %608 = vmatpush1.msra.mxu0 0.0
    %609 = vmatprep.subr.mxu0 0.0
    %610 = vmatpush1.msra.mxu0 0.0
    %611 = vmatprep.subr.mxu0 0.0
    %612 = vmatpush1.msra.mxu0 0.0
    %613 = vmatprep.subr.mxu0 0.0
    %614 = vmatpush1.msra.mxu0 0.0
    %615 = vmatprep.subr.mxu0 0.0
    %616 = vmatpush1.msra.mxu0 0.0
    %617 = vmatprep.subr.mxu0 0.0
    %618 = vmatpush1.msra.mxu0 0.0
    %619 = vmatprep.subr.mxu0 0.0
    %620 = vmatpush1.msra.mxu0 0.0
    %621 = vmatprep.subr.mxu0 0.0
    %622 = vmatpush1.msra.mxu0 0.0
    %623 = vmatprep.subr.mxu0 0.0
    %624 = vmatpush1.msra.mxu0 0.0
    %625 = vmatprep.subr.mxu0 0.0
    %626 = vmatpush1.msra.mxu0 0.0
    %627 = vmatprep.mubr.f32.mxu0 0.0
    %v628 = vand.u32 %v77, 4294901760
    %629 = vmatmul.mubr.f32.gmra.mrb[0].mxu0 %v628
    %v630 = vpop.f32.mrb[0].mxu0
    %v631 = vadd.f32 %v245, %v630
    %v632 = vpop.f32.mrb[0].mxu0
    %633 = vmatprep.mubr.f32.mxu0 0.0
    %v634 = vand.u32 %v80, 4294901760
    %635 = vmatmul.mubr.f32.gmra.mrb[0].mxu0 %v634
    %v636 = vpop.f32.mrb[0].mxu0
    %v637 = vadd.f32 %v255, %v636
    %v638 = vpop.f32.mrb[0].mxu0
    %639 = vmatprep.mubr.f32.mxu0 0.0
    %v640 = vand.u32 %v83, 4294901760
    %641 = vmatmul.mubr.f32.gmra.mrb[0].mxu0 %v640
    %v642 = vpop.f32.mrb[0].mxu0
    %v643 = vadd.f32 %v265, %v642
    %v644 = vpop.f32.mrb[0].mxu0
    %645 = vmatprep.mubr.f32.mxu0 0.0
    %v646 = vand.u32 %v86, 4294901760
    %647 = vmatmul.mubr.f32.gmra.mrb[0].mxu0 %v646
    %v648 = vpop.f32.mrb[0].mxu0
    %v649 = vadd.f32 %v275, %v648
    %v650 = vpop.f32.mrb[0].mxu0
    %651 = vmatprep.mubr.f32.mxu0 0.0
    %v652 = vand.u32 %v89, 4294901760
    %653 = vmatmul.mubr.f32.gmra.mrb[0].mxu0 %v652
    %v654 = vpop.f32.mrb[0].mxu0
    %v655 = vadd.f32 %v285, %v654
    %v656 = vpop.f32.mrb[0].mxu0
    %657 = vmatprep.mubr.f32.mxu0 0.0
    %v658 = vand.u32 %v92, 4294901760
    %659 = vmatmul.mubr.f32.gmra.mrb[0].mxu0 %v658
    %v660 = vpop.f32.mrb[0].mxu0
    %v661 = vadd.f32 %v295, %v660
    %v662 = vpop.f32.mrb[0].mxu0
    %663 = vmatprep.mubr.f32.mxu0 0.0
    %v664 = vand.u32 %v95, 4294901760
    %665 = vmatmul.mubr.f32.gmra.mrb[0].mxu0 %v664
    %v666 = vpop.f32.mrb[0].mxu0
    %v667 = vadd.f32 %v305, %v666
    %v668 = vpop.f32.mrb[0].mxu0
    %669 = vmatprep.mubr.f32.mxu0 0.0
    %v670 = vand.u32 %v98, 4294901760
    %671 = vmatmul.mubr.f32.gmra.mrb[0].mxu0 %v670
    %v672 = vpop.f32.mrb[0].mxu0
    %v673 = vadd.f32 %v315, %v672
    %v674 = vpop.f32.mrb[0].mxu0
    %675 = vmatprep.mubr.f32.mxu0 0.0
    %v676 = vand.u32 %v101, 4294901760
    %677 = vmatmul.mubr.f32.gmra.mrb[0].mxu0 %v676
    %v678 = vpop.f32.mrb[0].mxu0
    %v679 = vadd.f32 %v325, %v678
    %v680 = vpop.f32.mrb[0].mxu0
    %681 = vmatprep.mubr.f32.mxu0 0.0
    %v682 = vand.u32 %v104, 4294901760
    %683 = vmatmul.mubr.f32.gmra.mrb[0].mxu0 %v682
    %v684 = vpop.f32.mrb[0].mxu0
    %v685 = vadd.f32 %v335, %v684
    %v686 = vpop.f32.mrb[0].mxu0
    %687 = vmatprep.mubr.f32.mxu0 0.0
    %v688 = vand.u32 %v107, 4294901760
    %689 = vmatmul.mubr.f32.gmra.mrb[0].mxu0 %v688
    %v690 = vpop.f32.mrb[0].mxu0
    %v691 = vadd.f32 %v345, %v690
    %v692 = vpop.f32.mrb[0].mxu0
    %693 = vmatprep.mubr.f32.mxu0 0.0
    %v694 = vand.u32 %v110, 4294901760
    %695 = vmatmul.mubr.f32.gmra.mrb[0].mxu0 %v694
    %v696 = vpop.f32.mrb[0].mxu0
    %v697 = vadd.f32 %v355, %v696
    %v698 = vpop.f32.mrb[0].mxu0
    %699 = vmatprep.mubr.f32.mxu0 0.0
    %v700 = vand.u32 %v113, 4294901760
    %701 = vmatmul.mubr.f32.gmra.mrb[0].mxu0 %v700
    %v702 = vpop.f32.mrb[0].mxu0
    %v703 = vadd.f32 %v365, %v702
    %v704 = vpop.f32.mrb[0].mxu0
    %705 = vmatprep.mubr.f32.mxu0 0.0
    %v706 = vand.u32 %v116, 4294901760
    %707 = vmatmul.mubr.f32.gmra.mrb[0].mxu0 %v706
    %v708 = vpop.f32.mrb[0].mxu0
    %v709 = vadd.f32 %v375, %v708
    %v710 = vpop.f32.mrb[0].mxu0
    %711 = vmatprep.mubr.f32.mxu0 0.0
    %v712 = vand.u32 %v119, 4294901760
    %713 = vmatmul.mubr.f32.gmra.mrb[0].mxu0 %v712
    %v714 = vpop.f32.mrb[0].mxu0
    %v715 = vadd.f32 %v385, %v714
    %v716 = vpop.f32.mrb[0].mxu0
    %717 = vmatprep.mubr.f32.mxu0 0.0
    %v718 = vand.u32 %v122, 4294901760
    %719 = vmatmul.mubr.f32.gmra.mrb[0].mxu0 %v718
    %v720 = vpop.f32.mrb[0].mxu0
    %v721 = vadd.f32 %v395, %v720
    %v722 = vpop.f32.mrb[0].mxu0
    %723 = vmatprep.mubr.f32.mxu0 0.0
    %v724 = vand.u32 %v125, 4294901760
    %725 = vmatmul.mubr.f32.gmra.mrb[0].mxu0 %v724
    %v726 = vpop.f32.mrb[0].mxu0
    %v727 = vadd.f32 %v405, %v726
    %v728 = vpop.f32.mrb[0].mxu0
    %729 = vmatprep.mubr.f32.mxu0 0.0
    %v730 = vand.u32 %v128, 4294901760
    %731 = vmatmul.mubr.f32.gmra.mrb[0].mxu0 %v730
    %v732 = vpop.f32.mrb[0].mxu0
    %v733 = vadd.f32 %v415, %v732
    %v734 = vpop.f32.mrb[0].mxu0
    %735 = vmatprep.mubr.f32.mxu0 0.0
    %v736 = vand.u32 %v131, 4294901760
    %737 = vmatmul.mubr.f32.gmra.mrb[0].mxu0 %v736
    %v738 = vpop.f32.mrb[0].mxu0
    %v739 = vadd.f32 %v425, %v738
    %v740 = vpop.f32.mrb[0].mxu0
    %741 = vmatprep.mubr.f32.mxu0 0.0
    %v742 = vand.u32 %v134, 4294901760
    %743 = vmatmul.mubr.f32.gmra.mrb[0].mxu0 %v742
    %v744 = vpop.f32.mrb[0].mxu0
    %v745 = vadd.f32 %v435, %v744
    %v746 = vpop.f32.mrb[0].mxu0
    %747 = vmatprep.mubr.f32.mxu0 0.0
    %v748 = vand.u32 %v137, 4294901760
    %749 = vmatmul.mubr.f32.gmra.mrb[0].mxu0 %v748
    %v750 = vpop.f32.mrb[0].mxu0
    %v751 = vadd.f32 %v445, %v750
    %v752 = vpop.f32.mrb[0].mxu0
    %753 = vmatprep.mubr.f32.mxu0 0.0
    %v754 = vand.u32 %v140, 4294901760
    %755 = vmatmul.mubr.f32.gmra.mrb[0].mxu0 %v754
    %v756 = vpop.f32.mrb[0].mxu0
    %v757 = vadd.f32 %v455, %v756
    %v758 = vpop.f32.mrb[0].mxu0
    %759 = vmatprep.mubr.f32.mxu0 0.0
    %v760 = vand.u32 %v143, 4294901760
    %761 = vmatmul.mubr.f32.gmra.mrb[0].mxu0 %v760
    %v762 = vpop.f32.mrb[0].mxu0
    %v763 = vadd.f32 %v465, %v762
    %v764 = vpop.f32.mrb[0].mxu0
    %765 = vmatprep.mubr.f32.mxu0 0.0
    %v766 = vand.u32 %v146, 4294901760
    %767 = vmatmul.mubr.f32.gmra.mrb[0].mxu0 %v766
    %v768 = vpop.f32.mrb[0].mxu0
    %v769 = vadd.f32 %v475, %v768
    %v770 = vpop.f32.mrb[0].mxu0
    %771 = vmatprep.mubr.f32.mxu0 0.0
    %v772 = vand.u32 %v149, 4294901760
    %773 = vmatmul.mubr.f32.gmra.mrb[0].mxu0 %v772
    %v774 = vpop.f32.mrb[0].mxu0
    %v775 = vadd.f32 %v485, %v774
    %v776 = vpop.f32.mrb[0].mxu0
    %777 = vmatprep.mubr.f32.mxu0 0.0
    %v778 = vand.u32 %v152, 4294901760
    %779 = vmatmul.mubr.f32.gmra.mrb[0].mxu0 %v778
    %v780 = vpop.f32.mrb[0].mxu0
    %v781 = vadd.f32 %v495, %v780
    %v782 = vpop.f32.mrb[0].mxu0
    %783 = vmatprep.mubr.f32.mxu0 0.0
    %v784 = vand.u32 %v155, 4294901760
    %785 = vmatmul.mubr.f32.gmra.mrb[0].mxu0 %v784
    %v786 = vpop.f32.mrb[0].mxu0
    %v787 = vadd.f32 %v505, %v786
    %v788 = vpop.f32.mrb[0].mxu0
    %789 = vmatprep.mubr.f32.mxu0 0.0
    %v790 = vand.u32 %v158, 4294901760
    %791 = vmatmul.mubr.f32.gmra.mrb[0].mxu0 %v790
    %v792 = vpop.f32.mrb[0].mxu0
    %v793 = vadd.f32 %v515, %v792
    %v794 = vpop.f32.mrb[0].mxu0
    %795 = vmatprep.mubr.f32.mxu0 0.0
    %v796 = vand.u32 %v161, 4294901760
    %797 = vmatmul.mubr.f32.gmra.mrb[0].mxu0 %v796
    %v798 = vpop.f32.mrb[0].mxu0
    %v799 = vadd.f32 %v525, %v798
    %v800 = vpop.f32.mrb[0].mxu0
    %801 = vmatprep.mubr.f32.mxu0 0.0
    %v802 = vand.u32 %v164, 4294901760
    %803 = vmatmul.mubr.f32.gmra.mrb[0].mxu0 %v802
    %v804 = vpop.f32.mrb[0].mxu0
    %v805 = vadd.f32 %v535, %v804
    %v806 = vpop.f32.mrb[0].mxu0
    %807 = vmatprep.mubr.f32.mxu0 0.0
    %v808 = vand.u32 %v167, 4294901760
    %809 = vmatmul.mubr.f32.gmra.mrb[0].mxu0 %v808
    %v810 = vpop.f32.mrb[0].mxu0
    %v811 = vadd.f32 %v545, %v810
    %v812 = vpop.f32.mrb[0].mxu0
    %813 = vmatprep.mubr.f32.mxu0 0.0
    %v814 = vand.u32 %v170, 4294901760
    %815 = vmatmul.mubr.f32.gmra.mrb[0].mxu0 %v814
    %v816 = vpop.f32.mrb[0].mxu0
    %v817 = vadd.f32 %v555, %v816
    %v818 = vpop.f32.mrb[0].mxu0
    %819 = vdwg.mxu0
    %820 = vmatprep.subr.mxu0 0.0
    %v821 = vand.u32 %v67, 4294901760
    %v822 = vsub.f32 %v67, %v821
    %823 = vmatpush1.msra.mxu0 %v822
    %824 = vmatprep.subr.mxu0 0.0
    %825 = vmatpush1.msra.mxu0 0.0
    %826 = vmatprep.subr.mxu0 0.0
    %827 = vmatpush1.msra.mxu0 0.0
    %828 = vmatprep.subr.mxu0 0.0
    %829 = vmatpush1.msra.mxu0 0.0
    %830 = vmatprep.subr.mxu0 0.0
    %831 = vmatpush1.msra.mxu0 0.0
    %832 = vmatprep.subr.mxu0 0.0
    %833 = vmatpush1.msra.mxu0 0.0
    %834 = vmatprep.subr.mxu0 0.0
    %835 = vmatpush1.msra.mxu0 0.0
    %836 = vmatprep.subr.mxu0 0.0
    %837 = vmatpush1.msra.mxu0 0.0
    %838 = vmatprep.subr.mxu0 0.0
    %839 = vmatpush1.msra.mxu0 0.0
    %840 = vmatprep.subr.mxu0 0.0
    %841 = vmatpush1.msra.mxu0 0.0
    %842 = vmatprep.subr.mxu0 0.0
    %843 = vmatpush1.msra.mxu0 0.0
    %844 = vmatprep.subr.mxu0 0.0
    %845 = vmatpush1.msra.mxu0 0.0
    %846 = vmatprep.subr.mxu0 0.0
    %847 = vmatpush1.msra.mxu0 0.0
    %848 = vmatprep.subr.mxu0 0.0
    %849 = vmatpush1.msra.mxu0 0.0
    %850 = vmatprep.subr.mxu0 0.0
    %851 = vmatpush1.msra.mxu0 0.0
    %852 = vmatprep.subr.mxu0 0.0
    %853 = vmatpush1.msra.mxu0 0.0
    %854 = vmatprep.subr.mxu0 0.0
    %855 = vmatpush1.msra.mxu0 0.0
    %856 = vmatprep.subr.mxu0 0.0
    %857 = vmatpush1.msra.mxu0 0.0
    %858 = vmatprep.subr.mxu0 0.0
    %859 = vmatpush1.msra.mxu0 0.0
    %860 = vmatprep.subr.mxu0 0.0
    %861 = vmatpush1.msra.mxu0 0.0
    %862 = vmatprep.subr.mxu0 0.0
    %863 = vmatpush1.msra.mxu0 0.0
    %864 = vmatprep.subr.mxu0 0.0
    %865 = vmatpush1.msra.mxu0 0.0
    %866 = vmatprep.subr.mxu0 0.0
    %867 = vmatpush1.msra.mxu0 0.0
    %868 = vmatprep.subr.mxu0 0.0
    %869 = vmatpush1.msra.mxu0 0.0
    %870 = vmatprep.subr.mxu0 0.0
    %871 = vmatpush1.msra.mxu0 0.0
    %872 = vmatprep.subr.mxu0 0.0
    %873 = vmatpush1.msra.mxu0 0.0
    %874 = vmatprep.subr.mxu0 0.0
    %875 = vmatpush1.msra.mxu0 0.0
    %876 = vmatprep.subr.mxu0 0.0
    %877 = vmatpush1.msra.mxu0 0.0
    %878 = vmatprep.subr.mxu0 0.0
    %879 = vmatpush1.msra.mxu0 0.0
    %880 = vmatprep.subr.mxu0 0.0
    %881 = vmatpush1.msra.mxu0 0.0
    %882 = vmatprep.subr.mxu0 0.0
    %883 = vmatpush1.msra.mxu0 0.0
    %884 = vmatprep.subr.mxu0 0.0
    %885 = vmatpush1.msra.mxu0 0.0
    %886 = vmatprep.mubr.f32.mxu0 0.0
    %v887 = vand.u32 %v77, 4294901760
    %v888 = vsub.f32 %v77, %v887
    %889 = vmatmul.mubr.f32.gmra.mrb[0].mxu0 %v888
    %v890 = vpop.f32.mrb[0].mxu0
    %v891 = vadd.f32 %v631, %v890
    %v892 = vpop.f32.mrb[0].mxu0
    %893 = vmatprep.mubr.f32.mxu0 0.0
    %v894 = vand.u32 %v80, 4294901760
    %v895 = vsub.f32 %v80, %v894
    %896 = vmatmul.mubr.f32.gmra.mrb[0].mxu0 %v895
    %v897 = vpop.f32.mrb[0].mxu0
    %v898 = vadd.f32 %v637, %v897
    %v899 = vpop.f32.mrb[0].mxu0
    %900 = vmatprep.mubr.f32.mxu0 0.0
    %v901 = vand.u32 %v83, 4294901760
    %v902 = vsub.f32 %v83, %v901
    %903 = vmatmul.mubr.f32.gmra.mrb[0].mxu0 %v902
    %v904 = vpop.f32.mrb[0].mxu0
    %v905 = vadd.f32 %v643, %v904
    %v906 = vpop.f32.mrb[0].mxu0
    %907 = vmatprep.mubr.f32.mxu0 0.0
    %v908 = vand.u32 %v86, 4294901760
    %v909 = vsub.f32 %v86, %v908
    %910 = vmatmul.mubr.f32.gmra.mrb[0].mxu0 %v909
    %v911 = vpop.f32.mrb[0].mxu0
    %v912 = vadd.f32 %v649, %v911
    %v913 = vpop.f32.mrb[0].mxu0
    %914 = vmatprep.mubr.f32.mxu0 0.0
    %v915 = vand.u32 %v89, 4294901760
    %v916 = vsub.f32 %v89, %v915
    %917 = vmatmul.mubr.f32.gmra.mrb[0].mxu0 %v916
    %v918 = vpop.f32.mrb[0].mxu0
    %v919 = vadd.f32 %v655, %v918
    %v920 = vpop.f32.mrb[0].mxu0
    %921 = vmatprep.mubr.f32.mxu0 0.0
    %v922 = vand.u32 %v92, 4294901760
    %v923 = vsub.f32 %v92, %v922
    %924 = vmatmul.mubr.f32.gmra.mrb[0].mxu0 %v923
    %v925 = vpop.f32.mrb[0].mxu0
    %v926 = vadd.f32 %v661, %v925
    %v927 = vpop.f32.mrb[0].mxu0
    %928 = vmatprep.mubr.f32.mxu0 0.0
    %v929 = vand.u32 %v95, 4294901760
    %v930 = vsub.f32 %v95, %v929
    %931 = vmatmul.mubr.f32.gmra.mrb[0].mxu0 %v930
    %v932 = vpop.f32.mrb[0].mxu0
    %v933 = vadd.f32 %v667, %v932
    %v934 = vpop.f32.mrb[0].mxu0
    %935 = vmatprep.mubr.f32.mxu0 0.0
    %v936 = vand.u32 %v98, 4294901760
    %v937 = vsub.f32 %v98, %v936
    %938 = vmatmul.mubr.f32.gmra.mrb[0].mxu0 %v937
    %v939 = vpop.f32.mrb[0].mxu0
    %v940 = vadd.f32 %v673, %v939
    %v941 = vpop.f32.mrb[0].mxu0
    %942 = vmatprep.mubr.f32.mxu0 0.0
    %v943 = vand.u32 %v101, 4294901760
    %v944 = vsub.f32 %v101, %v943
    %945 = vmatmul.mubr.f32.gmra.mrb[0].mxu0 %v944
    %v946 = vpop.f32.mrb[0].mxu0
    %v947 = vadd.f32 %v679, %v946
    %v948 = vpop.f32.mrb[0].mxu0
    %949 = vmatprep.mubr.f32.mxu0 0.0
    %v950 = vand.u32 %v104, 4294901760
    %v951 = vsub.f32 %v104, %v950
    %952 = vmatmul.mubr.f32.gmra.mrb[0].mxu0 %v951
    %v953 = vpop.f32.mrb[0].mxu0
    %v954 = vadd.f32 %v685, %v953
    %v955 = vpop.f32.mrb[0].mxu0
    %956 = vmatprep.mubr.f32.mxu0 0.0
    %v957 = vand.u32 %v107, 4294901760
    %v958 = vsub.f32 %v107, %v957
    %959 = vmatmul.mubr.f32.gmra.mrb[0].mxu0 %v958
    %v960 = vpop.f32.mrb[0].mxu0
    %v961 = vadd.f32 %v691, %v960
    %v962 = vpop.f32.mrb[0].mxu0
    %963 = vmatprep.mubr.f32.mxu0 0.0
    %v964 = vand.u32 %v110, 4294901760
    %v965 = vsub.f32 %v110, %v964
    %966 = vmatmul.mubr.f32.gmra.mrb[0].mxu0 %v965
    %v967 = vpop.f32.mrb[0].mxu0
    %v968 = vadd.f32 %v697, %v967
    %v969 = vpop.f32.mrb[0].mxu0
    %970 = vmatprep.mubr.f32.mxu0 0.0
    %v971 = vand.u32 %v113, 4294901760
    %v972 = vsub.f32 %v113, %v971
    %973 = vmatmul.mubr.f32.gmra.mrb[0].mxu0 %v972
    %v974 = vpop.f32.mrb[0].mxu0
    %v975 = vadd.f32 %v703, %v974
    %v976 = vpop.f32.mrb[0].mxu0
    %977 = vmatprep.mubr.f32.mxu0 0.0
    %v978 = vand.u32 %v116, 4294901760
    %v979 = vsub.f32 %v116, %v978
    %980 = vmatmul.mubr.f32.gmra.mrb[0].mxu0 %v979
    %v981 = vpop.f32.mrb[0].mxu0
    %v982 = vadd.f32 %v709, %v981
    %v983 = vpop.f32.mrb[0].mxu0
    %984 = vmatprep.mubr.f32.mxu0 0.0
    %v985 = vand.u32 %v119, 4294901760
    %v986 = vsub.f32 %v119, %v985
    %987 = vmatmul.mubr.f32.gmra.mrb[0].mxu0 %v986
    %v988 = vpop.f32.mrb[0].mxu0
    %v989 = vadd.f32 %v715, %v988
    %v990 = vpop.f32.mrb[0].mxu0
    %991 = vmatprep.mubr.f32.mxu0 0.0
    %v992 = vand.u32 %v122, 4294901760
    %v993 = vsub.f32 %v122, %v992
    %994 = vmatmul.mubr.f32.gmra.mrb[0].mxu0 %v993
    %v995 = vpop.f32.mrb[0].mxu0
    %v996 = vadd.f32 %v721, %v995
    %v997 = vpop.f32.mrb[0].mxu0
    %998 = vmatprep.mubr.f32.mxu0 0.0
    %v999 = vand.u32 %v125, 4294901760
    %v1000 = vsub.f32 %v125, %v999
    %1001 = vmatmul.mubr.f32.gmra.mrb[0].mxu0 %v1000
    %v1002 = vpop.f32.mrb[0].mxu0
    %v1003 = vadd.f32 %v727, %v1002
    %v1004 = vpop.f32.mrb[0].mxu0
    %1005 = vmatprep.mubr.f32.mxu0 0.0
    %v1006 = vand.u32 %v128, 4294901760
    %v1007 = vsub.f32 %v128, %v1006
    %1008 = vmatmul.mubr.f32.gmra.mrb[0].mxu0 %v1007
    %v1009 = vpop.f32.mrb[0].mxu0
    %v1010 = vadd.f32 %v733, %v1009
    %v1011 = vpop.f32.mrb[0].mxu0
    %1012 = vmatprep.mubr.f32.mxu0 0.0
    %v1013 = vand.u32 %v131, 4294901760
    %v1014 = vsub.f32 %v131, %v1013
    %1015 = vmatmul.mubr.f32.gmra.mrb[0].mxu0 %v1014
    %v1016 = vpop.f32.mrb[0].mxu0
    %v1017 = vadd.f32 %v739, %v1016
    %v1018 = vpop.f32.mrb[0].mxu0
    %1019 = vmatprep.mubr.f32.mxu0 0.0
    %v1020 = vand.u32 %v134, 4294901760
    %v1021 = vsub.f32 %v134, %v1020
    %1022 = vmatmul.mubr.f32.gmra.mrb[0].mxu0 %v1021
    %v1023 = vpop.f32.mrb[0].mxu0
    %v1024 = vadd.f32 %v745, %v1023
    %v1025 = vpop.f32.mrb[0].mxu0
    %1026 = vmatprep.mubr.f32.mxu0 0.0
    %v1027 = vand.u32 %v137, 4294901760
    %v1028 = vsub.f32 %v137, %v1027
    %1029 = vmatmul.mubr.f32.gmra.mrb[0].mxu0 %v1028
    %v1030 = vpop.f32.mrb[0].mxu0
    %v1031 = vadd.f32 %v751, %v1030
    %v1032 = vpop.f32.mrb[0].mxu0
    %1033 = vmatprep.mubr.f32.mxu0 0.0
    %v1034 = vand.u32 %v140, 4294901760
    %v1035 = vsub.f32 %v140, %v1034
    %1036 = vmatmul.mubr.f32.gmra.mrb[0].mxu0 %v1035
    %v1037 = vpop.f32.mrb[0].mxu0
    %v1038 = vadd.f32 %v757, %v1037
    %v1039 = vpop.f32.mrb[0].mxu0
    %1040 = vmatprep.mubr.f32.mxu0 0.0
    %v1041 = vand.u32 %v143, 4294901760
    %v1042 = vsub.f32 %v143, %v1041
    %1043 = vmatmul.mubr.f32.gmra.mrb[0].mxu0 %v1042
    %v1044 = vpop.f32.mrb[0].mxu0
    %v1045 = vadd.f32 %v763, %v1044
    %v1046 = vpop.f32.mrb[0].mxu0
    %1047 = vmatprep.mubr.f32.mxu0 0.0
    %v1048 = vand.u32 %v146, 4294901760
    %v1049 = vsub.f32 %v146, %v1048
    %1050 = vmatmul.mubr.f32.gmra.mrb[0].mxu0 %v1049
    %v1051 = vpop.f32.mrb[0].mxu0
    %v1052 = vadd.f32 %v769, %v1051
    %v1053 = vpop.f32.mrb[0].mxu0
    %1054 = vmatprep.mubr.f32.mxu0 0.0
    %v1055 = vand.u32 %v149, 4294901760
    %v1056 = vsub.f32 %v149, %v1055
    %1057 = vmatmul.mubr.f32.gmra.mrb[0].mxu0 %v1056
    %v1058 = vpop.f32.mrb[0].mxu0
    %v1059 = vadd.f32 %v775, %v1058
    %v1060 = vpop.f32.mrb[0].mxu0
    %1061 = vmatprep.mubr.f32.mxu0 0.0
    %v1062 = vand.u32 %v152, 4294901760
    %v1063 = vsub.f32 %v152, %v1062
    %1064 = vmatmul.mubr.f32.gmra.mrb[0].mxu0 %v1063
    %v1065 = vpop.f32.mrb[0].mxu0
    %v1066 = vadd.f32 %v781, %v1065
    %v1067 = vpop.f32.mrb[0].mxu0
    %1068 = vmatprep.mubr.f32.mxu0 0.0
    %v1069 = vand.u32 %v155, 4294901760
    %v1070 = vsub.f32 %v155, %v1069
    %1071 = vmatmul.mubr.f32.gmra.mrb[0].mxu0 %v1070
    %v1072 = vpop.f32.mrb[0].mxu0
    %v1073 = vadd.f32 %v787, %v1072
    %v1074 = vpop.f32.mrb[0].mxu0
    %1075 = vmatprep.mubr.f32.mxu0 0.0
    %v1076 = vand.u32 %v158, 4294901760
    %v1077 = vsub.f32 %v158, %v1076
    %1078 = vmatmul.mubr.f32.gmra.mrb[0].mxu0 %v1077
    %v1079 = vpop.f32.mrb[0].mxu0
    %v1080 = vadd.f32 %v793, %v1079
    %v1081 = vpop.f32.mrb[0].mxu0
    %1082 = vmatprep.mubr.f32.mxu0 0.0
    %v1083 = vand.u32 %v161, 4294901760
    %v1084 = vsub.f32 %v161, %v1083
    %1085 = vmatmul.mubr.f32.gmra.mrb[0].mxu0 %v1084
    %v1086 = vpop.f32.mrb[0].mxu0
    %v1087 = vadd.f32 %v799, %v1086
    %v1088 = vpop.f32.mrb[0].mxu0
    %1089 = vmatprep.mubr.f32.mxu0 0.0
    %v1090 = vand.u32 %v164, 4294901760
    %v1091 = vsub.f32 %v164, %v1090
    %1092 = vmatmul.mubr.f32.gmra.mrb[0].mxu0 %v1091
    %v1093 = vpop.f32.mrb[0].mxu0
    %v1094 = vadd.f32 %v805, %v1093
    %v1095 = vpop.f32.mrb[0].mxu0
    %1096 = vmatprep.mubr.f32.mxu0 0.0
    %v1097 = vand.u32 %v167, 4294901760
    %v1098 = vsub.f32 %v167, %v1097
    %1099 = vmatmul.mubr.f32.gmra.mrb[0].mxu0 %v1098
    %v1100 = vpop.f32.mrb[0].mxu0
    %v1101 = vadd.f32 %v811, %v1100
    %v1102 = vpop.f32.mrb[0].mxu0
    %1103 = vmatprep.mubr.f32.mxu0 0.0
    %v1104 = vand.u32 %v170, 4294901760
    %v1105 = vsub.f32 %v170, %v1104
    %1106 = vmatmul.mubr.f32.gmra.mrb[0].mxu0 %v1105
    %v1107 = vpop.f32.mrb[0].mxu0
    %v1108 = vadd.f32 %v817, %v1107
    %v1109 = vpop.f32.mrb[0].mxu0
    %1110 = vdwg.mxu0
    %1111 = vmatprep.subr.mxu0 0.0
    %v1112 = vand.u32 %v67, 4294901760
    %1113 = vmatpush1.msra.mxu0 %v1112
    %1114 = vmatprep.subr.mxu0 0.0
    %1115 = vmatpush1.msra.mxu0 0.0
    %1116 = vmatprep.subr.mxu0 0.0
    %1117 = vmatpush1.msra.mxu0 0.0
    %1118 = vmatprep.subr.mxu0 0.0
    %1119 = vmatpush1.msra.mxu0 0.0
    %1120 = vmatprep.subr.mxu0 0.0
    %1121 = vmatpush1.msra.mxu0 0.0
    %1122 = vmatprep.subr.mxu0 0.0
    %1123 = vmatpush1.msra.mxu0 0.0
    %1124 = vmatprep.subr.mxu0 0.0
    %1125 = vmatpush1.msra.mxu0 0.0
    %1126 = vmatprep.subr.mxu0 0.0
    %1127 = vmatpush1.msra.mxu0 0.0
    %1128 = vmatprep.subr.mxu0 0.0
    %1129 = vmatpush1.msra.mxu0 0.0
    %1130 = vmatprep.subr.mxu0 0.0
    %1131 = vmatpush1.msra.mxu0 0.0
    %1132 = vmatprep.subr.mxu0 0.0
    %1133 = vmatpush1.msra.mxu0 0.0
    %1134 = vmatprep.subr.mxu0 0.0
    %1135 = vmatpush1.msra.mxu0 0.0
    %1136 = vmatprep.subr.mxu0 0.0
    %1137 = vmatpush1.msra.mxu0 0.0
    %1138 = vmatprep.subr.mxu0 0.0
    %1139 = vmatpush1.msra.mxu0 0.0
    %1140 = vmatprep.subr.mxu0 0.0
    %1141 = vmatpush1.msra.mxu0 0.0
    %1142 = vmatprep.subr.mxu0 0.0
    %1143 = vmatpush1.msra.mxu0 0.0
    %1144 = vmatprep.subr.mxu0 0.0
    %1145 = vmatpush1.msra.mxu0 0.0
    %1146 = vmatprep.subr.mxu0 0.0
    %1147 = vmatpush1.msra.mxu0 0.0
    %1148 = vmatprep.subr.mxu0 0.0
    %1149 = vmatpush1.msra.mxu0 0.0
    %1150 = vmatprep.subr.mxu0 0.0
    %1151 = vmatpush1.msra.mxu0 0.0
    %1152 = vmatprep.subr.mxu0 0.0
    %1153 = vmatpush1.msra.mxu0 0.0
    %1154 = vmatprep.subr.mxu0 0.0
    %1155 = vmatpush1.msra.mxu0 0.0
    %1156 = vmatprep.subr.mxu0 0.0
    %1157 = vmatpush1.msra.mxu0 0.0
    %1158 = vmatprep.subr.mxu0 0.0
    %1159 = vmatpush1.msra.mxu0 0.0
    %1160 = vmatprep.subr.mxu0 0.0
    %1161 = vmatpush1.msra.mxu0 0.0
    %1162 = vmatprep.subr.mxu0 0.0
    %1163 = vmatpush1.msra.mxu0 0.0
    %1164 = vmatprep.subr.mxu0 0.0
    %1165 = vmatpush1.msra.mxu0 0.0
    %1166 = vmatprep.subr.mxu0 0.0
    %1167 = vmatpush1.msra.mxu0 0.0
    %1168 = vmatprep.subr.mxu0 0.0
    %1169 = vmatpush1.msra.mxu0 0.0
    %1170 = vmatprep.subr.mxu0 0.0
    %1171 = vmatpush1.msra.mxu0 0.0
    %1172 = vmatprep.subr.mxu0 0.0
    %1173 = vmatpush1.msra.mxu0 0.0
    %1174 = vmatprep.subr.mxu0 0.0
    %1175 = vmatpush1.msra.mxu0 0.0
    %1176 = vmatprep.mubr.f32.mxu0 0.0
    %v1177 = vand.u32 %v77, 4294901760
    %v1178 = vsub.f32 %v77, %v1177
    %v1179 = vand.u32 %v1178, 4294901760
    %1180 = vmatmul.mubr.f32.gmra.mrb[0].mxu0 %v1179
    %v1181 = vpop.f32.mrb[0].mxu0
    %v1182 = vadd.f32 %v891, %v1181
    %v1183 = vpop.f32.mrb[0].mxu0
    %1184 = vmatprep.mubr.f32.mxu0 0.0
    %v1185 = vand.u32 %v80, 4294901760
    %v1186 = vsub.f32 %v80, %v1185
    %v1187 = vand.u32 %v1186, 4294901760
    %1188 = vmatmul.mubr.f32.gmra.mrb[0].mxu0 %v1187
    %v1189 = vpop.f32.mrb[0].mxu0
    %v1190 = vadd.f32 %v898, %v1189
    %v1191 = vpop.f32.mrb[0].mxu0
    %1192 = vmatprep.mubr.f32.mxu0 0.0
    %v1193 = vand.u32 %v83, 4294901760
    %v1194 = vsub.f32 %v83, %v1193
    %v1195 = vand.u32 %v1194, 4294901760
    %1196 = vmatmul.mubr.f32.gmra.mrb[0].mxu0 %v1195
    %v1197 = vpop.f32.mrb[0].mxu0
    %v1198 = vadd.f32 %v905, %v1197
    %v1199 = vpop.f32.mrb[0].mxu0
    %1200 = vmatprep.mubr.f32.mxu0 0.0
    %v1201 = vand.u32 %v86, 4294901760
    %v1202 = vsub.f32 %v86, %v1201
    %v1203 = vand.u32 %v1202, 4294901760
    %1204 = vmatmul.mubr.f32.gmra.mrb[0].mxu0 %v1203
    %v1205 = vpop.f32.mrb[0].mxu0
    %v1206 = vadd.f32 %v912, %v1205
    %v1207 = vpop.f32.mrb[0].mxu0
    %1208 = vmatprep.mubr.f32.mxu0 0.0
    %v1209 = vand.u32 %v89, 4294901760
    %v1210 = vsub.f32 %v89, %v1209
    %v1211 = vand.u32 %v1210, 4294901760
    %1212 = vmatmul.mubr.f32.gmra.mrb[0].mxu0 %v1211
    %v1213 = vpop.f32.mrb[0].mxu0
    %v1214 = vadd.f32 %v919, %v1213
    %v1215 = vpop.f32.mrb[0].mxu0
    %1216 = vmatprep.mubr.f32.mxu0 0.0
    %v1217 = vand.u32 %v92, 4294901760
    %v1218 = vsub.f32 %v92, %v1217
    %v1219 = vand.u32 %v1218, 4294901760
    %1220 = vmatmul.mubr.f32.gmra.mrb[0].mxu0 %v1219
    %v1221 = vpop.f32.mrb[0].mxu0
    %v1222 = vadd.f32 %v926, %v1221
    %v1223 = vpop.f32.mrb[0].mxu0
    %1224 = vmatprep.mubr.f32.mxu0 0.0
    %v1225 = vand.u32 %v95, 4294901760
    %v1226 = vsub.f32 %v95, %v1225
    %v1227 = vand.u32 %v1226, 4294901760
    %1228 = vmatmul.mubr.f32.gmra.mrb[0].mxu0 %v1227
    %v1229 = vpop.f32.mrb[0].mxu0
    %v1230 = vadd.f32 %v933, %v1229
    %v1231 = vpop.f32.mrb[0].mxu0
    %1232 = vmatprep.mubr.f32.mxu0 0.0
    %v1233 = vand.u32 %v98, 4294901760
    %v1234 = vsub.f32 %v98, %v1233
    %v1235 = vand.u32 %v1234, 4294901760
    %1236 = vmatmul.mubr.f32.gmra.mrb[0].mxu0 %v1235
    %v1237 = vpop.f32.mrb[0].mxu0
    %v1238 = vadd.f32 %v940, %v1237
    %v1239 = vpop.f32.mrb[0].mxu0
    %1240 = vmatprep.mubr.f32.mxu0 0.0
    %v1241 = vand.u32 %v101, 4294901760
    %v1242 = vsub.f32 %v101, %v1241
    %v1243 = vand.u32 %v1242, 4294901760
    %1244 = vmatmul.mubr.f32.gmra.mrb[0].mxu0 %v1243
    %v1245 = vpop.f32.mrb[0].mxu0
    %v1246 = vadd.f32 %v947, %v1245
    %v1247 = vpop.f32.mrb[0].mxu0
    %1248 = vmatprep.mubr.f32.mxu0 0.0
    %v1249 = vand.u32 %v104, 4294901760
    %v1250 = vsub.f32 %v104, %v1249
    %v1251 = vand.u32 %v1250, 4294901760
    %1252 = vmatmul.mubr.f32.gmra.mrb[0].mxu0 %v1251
    %v1253 = vpop.f32.mrb[0].mxu0
    %v1254 = vadd.f32 %v954, %v1253
    %v1255 = vpop.f32.mrb[0].mxu0
    %1256 = vmatprep.mubr.f32.mxu0 0.0
    %v1257 = vand.u32 %v107, 4294901760
    %v1258 = vsub.f32 %v107, %v1257
    %v1259 = vand.u32 %v1258, 4294901760
    %1260 = vmatmul.mubr.f32.gmra.mrb[0].mxu0 %v1259
    %v1261 = vpop.f32.mrb[0].mxu0
    %v1262 = vadd.f32 %v961, %v1261
    %v1263 = vpop.f32.mrb[0].mxu0
    %1264 = vmatprep.mubr.f32.mxu0 0.0
    %v1265 = vand.u32 %v110, 4294901760
    %v1266 = vsub.f32 %v110, %v1265
    %v1267 = vand.u32 %v1266, 4294901760
    %1268 = vmatmul.mubr.f32.gmra.mrb[0].mxu0 %v1267
    %v1269 = vpop.f32.mrb[0].mxu0
    %v1270 = vadd.f32 %v968, %v1269
    %v1271 = vpop.f32.mrb[0].mxu0
    %1272 = vmatprep.mubr.f32.mxu0 0.0
    %v1273 = vand.u32 %v113, 4294901760
    %v1274 = vsub.f32 %v113, %v1273
    %v1275 = vand.u32 %v1274, 4294901760
    %1276 = vmatmul.mubr.f32.gmra.mrb[0].mxu0 %v1275
    %v1277 = vpop.f32.mrb[0].mxu0
    %v1278 = vadd.f32 %v975, %v1277
    %v1279 = vpop.f32.mrb[0].mxu0
    %1280 = vmatprep.mubr.f32.mxu0 0.0
    %v1281 = vand.u32 %v116, 4294901760
    %v1282 = vsub.f32 %v116, %v1281
    %v1283 = vand.u32 %v1282, 4294901760
    %1284 = vmatmul.mubr.f32.gmra.mrb[0].mxu0 %v1283
    %v1285 = vpop.f32.mrb[0].mxu0
    %v1286 = vadd.f32 %v982, %v1285
    %v1287 = vpop.f32.mrb[0].mxu0
    %1288 = vmatprep.mubr.f32.mxu0 0.0
    %v1289 = vand.u32 %v119, 4294901760
    %v1290 = vsub.f32 %v119, %v1289
    %v1291 = vand.u32 %v1290, 4294901760
    %1292 = vmatmul.mubr.f32.gmra.mrb[0].mxu0 %v1291
    %v1293 = vpop.f32.mrb[0].mxu0
    %v1294 = vadd.f32 %v989, %v1293
    %v1295 = vpop.f32.mrb[0].mxu0
    %1296 = vmatprep.mubr.f32.mxu0 0.0
    %v1297 = vand.u32 %v122, 4294901760
    %v1298 = vsub.f32 %v122, %v1297
    %v1299 = vand.u32 %v1298, 4294901760
    %1300 = vmatmul.mubr.f32.gmra.mrb[0].mxu0 %v1299
    %v1301 = vpop.f32.mrb[0].mxu0
    %v1302 = vadd.f32 %v996, %v1301
    %v1303 = vpop.f32.mrb[0].mxu0
    %1304 = vmatprep.mubr.f32.mxu0 0.0
    %v1305 = vand.u32 %v125, 4294901760
    %v1306 = vsub.f32 %v125, %v1305
    %v1307 = vand.u32 %v1306, 4294901760
    %1308 = vmatmul.mubr.f32.gmra.mrb[0].mxu0 %v1307
    %v1309 = vpop.f32.mrb[0].mxu0
    %v1310 = vadd.f32 %v1003, %v1309
    %v1311 = vpop.f32.mrb[0].mxu0
    %1312 = vmatprep.mubr.f32.mxu0 0.0
    %v1313 = vand.u32 %v128, 4294901760
    %v1314 = vsub.f32 %v128, %v1313
    %v1315 = vand.u32 %v1314, 4294901760
    %1316 = vmatmul.mubr.f32.gmra.mrb[0].mxu0 %v1315
    %v1317 = vpop.f32.mrb[0].mxu0
    %v1318 = vadd.f32 %v1010, %v1317
    %v1319 = vpop.f32.mrb[0].mxu0
    %1320 = vmatprep.mubr.f32.mxu0 0.0
    %v1321 = vand.u32 %v131, 4294901760
    %v1322 = vsub.f32 %v131, %v1321
    %v1323 = vand.u32 %v1322, 4294901760
    %1324 = vmatmul.mubr.f32.gmra.mrb[0].mxu0 %v1323
    %v1325 = vpop.f32.mrb[0].mxu0
    %v1326 = vadd.f32 %v1017, %v1325
    %v1327 = vpop.f32.mrb[0].mxu0
    %1328 = vmatprep.mubr.f32.mxu0 0.0
    %v1329 = vand.u32 %v134, 4294901760
    %v1330 = vsub.f32 %v134, %v1329
    %v1331 = vand.u32 %v1330, 4294901760
    %1332 = vmatmul.mubr.f32.gmra.mrb[0].mxu0 %v1331
    %v1333 = vpop.f32.mrb[0].mxu0
    %v1334 = vadd.f32 %v1024, %v1333
    %v1335 = vpop.f32.mrb[0].mxu0
    %1336 = vmatprep.mubr.f32.mxu0 0.0
    %v1337 = vand.u32 %v137, 4294901760
    %v1338 = vsub.f32 %v137, %v1337
    %v1339 = vand.u32 %v1338, 4294901760
    %1340 = vmatmul.mubr.f32.gmra.mrb[0].mxu0 %v1339
    %v1341 = vpop.f32.mrb[0].mxu0
    %v1342 = vadd.f32 %v1031, %v1341
    %v1343 = vpop.f32.mrb[0].mxu0
    %1344 = vmatprep.mubr.f32.mxu0 0.0
    %v1345 = vand.u32 %v140, 4294901760
    %v1346 = vsub.f32 %v140, %v1345
    %v1347 = vand.u32 %v1346, 4294901760
    %1348 = vmatmul.mubr.f32.gmra.mrb[0].mxu0 %v1347
    %v1349 = vpop.f32.mrb[0].mxu0
    %v1350 = vadd.f32 %v1038, %v1349
    %v1351 = vpop.f32.mrb[0].mxu0
    %1352 = vmatprep.mubr.f32.mxu0 0.0
    %v1353 = vand.u32 %v143, 4294901760
    %v1354 = vsub.f32 %v143, %v1353
    %v1355 = vand.u32 %v1354, 4294901760
    %1356 = vmatmul.mubr.f32.gmra.mrb[0].mxu0 %v1355
    %v1357 = vpop.f32.mrb[0].mxu0
    %v1358 = vadd.f32 %v1045, %v1357
    %v1359 = vpop.f32.mrb[0].mxu0
    %1360 = vmatprep.mubr.f32.mxu0 0.0
    %v1361 = vand.u32 %v146, 4294901760
    %v1362 = vsub.f32 %v146, %v1361
    %v1363 = vand.u32 %v1362, 4294901760
    %1364 = vmatmul.mubr.f32.gmra.mrb[0].mxu0 %v1363
    %v1365 = vpop.f32.mrb[0].mxu0
    %v1366 = vadd.f32 %v1052, %v1365
    %v1367 = vpop.f32.mrb[0].mxu0
    %1368 = vmatprep.mubr.f32.mxu0 0.0
    %v1369 = vand.u32 %v149, 4294901760
    %v1370 = vsub.f32 %v149, %v1369
    %v1371 = vand.u32 %v1370, 4294901760
    %1372 = vmatmul.mubr.f32.gmra.mrb[0].mxu0 %v1371
    %v1373 = vpop.f32.mrb[0].mxu0
    %v1374 = vadd.f32 %v1059, %v1373
    %v1375 = vpop.f32.mrb[0].mxu0
    %1376 = vmatprep.mubr.f32.mxu0 0.0
    %v1377 = vand.u32 %v152, 4294901760
    %v1378 = vsub.f32 %v152, %v1377
    %v1379 = vand.u32 %v1378, 4294901760
    %1380 = vmatmul.mubr.f32.gmra.mrb[0].mxu0 %v1379
    %v1381 = vpop.f32.mrb[0].mxu0
    %v1382 = vadd.f32 %v1066, %v1381
    %v1383 = vpop.f32.mrb[0].mxu0
    %1384 = vmatprep.mubr.f32.mxu0 0.0
    %v1385 = vand.u32 %v155, 4294901760
    %v1386 = vsub.f32 %v155, %v1385
    %v1387 = vand.u32 %v1386, 4294901760
    %1388 = vmatmul.mubr.f32.gmra.mrb[0].mxu0 %v1387
    %v1389 = vpop.f32.mrb[0].mxu0
    %v1390 = vadd.f32 %v1073, %v1389
    %v1391 = vpop.f32.mrb[0].mxu0
    %1392 = vmatprep.mubr.f32.mxu0 0.0
    %v1393 = vand.u32 %v158, 4294901760
    %v1394 = vsub.f32 %v158, %v1393
    %v1395 = vand.u32 %v1394, 4294901760
    %1396 = vmatmul.mubr.f32.gmra.mrb[0].mxu0 %v1395
    %v1397 = vpop.f32.mrb[0].mxu0
    %v1398 = vadd.f32 %v1080, %v1397
    %v1399 = vpop.f32.mrb[0].mxu0
    %1400 = vmatprep.mubr.f32.mxu0 0.0
    %v1401 = vand.u32 %v161, 4294901760
    %v1402 = vsub.f32 %v161, %v1401
    %v1403 = vand.u32 %v1402, 4294901760
    %1404 = vmatmul.mubr.f32.gmra.mrb[0].mxu0 %v1403
    %v1405 = vpop.f32.mrb[0].mxu0
    %v1406 = vadd.f32 %v1087, %v1405
    %v1407 = vpop.f32.mrb[0].mxu0
    %1408 = vmatprep.mubr.f32.mxu0 0.0
    %v1409 = vand.u32 %v164, 4294901760
    %v1410 = vsub.f32 %v164, %v1409
    %v1411 = vand.u32 %v1410, 4294901760
    %1412 = vmatmul.mubr.f32.gmra.mrb[0].mxu0 %v1411
    %v1413 = vpop.f32.mrb[0].mxu0
    %v1414 = vadd.f32 %v1094, %v1413
    %v1415 = vpop.f32.mrb[0].mxu0
    %1416 = vmatprep.mubr.f32.mxu0 0.0
    %v1417 = vand.u32 %v167, 4294901760
    %v1418 = vsub.f32 %v167, %v1417
    %v1419 = vand.u32 %v1418, 4294901760
    %1420 = vmatmul.mubr.f32.gmra.mrb[0].mxu0 %v1419
    %v1421 = vpop.f32.mrb[0].mxu0
    %v1422 = vadd.f32 %v1101, %v1421
    %v1423 = vpop.f32.mrb[0].mxu0
    %1424 = vmatprep.mubr.f32.mxu0 0.0
    %v1425 = vand.u32 %v170, 4294901760
    %v1426 = vsub.f32 %v170, %v1425
    %v1427 = vand.u32 %v1426, 4294901760
    %1428 = vmatmul.mubr.f32.gmra.mrb[0].mxu0 %v1427
    %v1429 = vpop.f32.mrb[0].mxu0
    %v1430 = vadd.f32 %v1108, %v1429
    %v1431 = vpop.f32.mrb[0].mxu0
    %1432 = vdwg.mxu0
    %1433 = vmatprep.subr.mxu0 0.0
    %v1434 = vand.u32 %v67, 4294901760
    %v1435 = vsub.f32 %v67, %v1434
    %v1436 = vand.u32 %v1435, 4294901760
    %1437 = vmatpush1.msra.mxu0 %v1436
    %1438 = vmatprep.subr.mxu0 0.0
    %1439 = vmatpush1.msra.mxu0 0.0
    %1440 = vmatprep.subr.mxu0 0.0
    %1441 = vmatpush1.msra.mxu0 0.0
    %1442 = vmatprep.subr.mxu0 0.0
    %1443 = vmatpush1.msra.mxu0 0.0
    %1444 = vmatprep.subr.mxu0 0.0
    %1445 = vmatpush1.msra.mxu0 0.0
    %1446 = vmatprep.subr.mxu0 0.0
    %1447 = vmatpush1.msra.mxu0 0.0
    %1448 = vmatprep.subr.mxu0 0.0
    %1449 = vmatpush1.msra.mxu0 0.0
    %1450 = vmatprep.subr.mxu0 0.0
    %1451 = vmatpush1.msra.mxu0 0.0
    %1452 = vmatprep.subr.mxu0 0.0
    %1453 = vmatpush1.msra.mxu0 0.0
    %1454 = vmatprep.subr.mxu0 0.0
    %1455 = vmatpush1.msra.mxu0 0.0
    %1456 = vmatprep.subr.mxu0 0.0
    %1457 = vmatpush1.msra.mxu0 0.0
    %1458 = vmatprep.subr.mxu0 0.0
    %1459 = vmatpush1.msra.mxu0 0.0
    %1460 = vmatprep.subr.mxu0 0.0
    %1461 = vmatpush1.msra.mxu0 0.0
    %1462 = vmatprep.subr.mxu0 0.0
    %1463 = vmatpush1.msra.mxu0 0.0
    %1464 = vmatprep.subr.mxu0 0.0
    %1465 = vmatpush1.msra.mxu0 0.0
    %1466 = vmatprep.subr.mxu0 0.0
    %1467 = vmatpush1.msra.mxu0 0.0
    %1468 = vmatprep.subr.mxu0 0.0
    %1469 = vmatpush1.msra.mxu0 0.0
    %1470 = vmatprep.subr.mxu0 0.0
    %1471 = vmatpush1.msra.mxu0 0.0
    %1472 = vmatprep.subr.mxu0 0.0
    %1473 = vmatpush1.msra.mxu0 0.0
    %1474 = vmatprep.subr.mxu0 0.0
    %1475 = vmatpush1.msra.mxu0 0.0
    %1476 = vmatprep.subr.mxu0 0.0
    %1477 = vmatpush1.msra.mxu0 0.0
    %1478 = vmatprep.subr.mxu0 0.0
    %1479 = vmatpush1.msra.mxu0 0.0
    %1480 = vmatprep.subr.mxu0 0.0
    %1481 = vmatpush1.msra.mxu0 0.0
    %1482 = vmatprep.subr.mxu0 0.0
    %1483 = vmatpush1.msra.mxu0 0.0
    %1484 = vmatprep.subr.mxu0 0.0
    %1485 = vmatpush1.msra.mxu0 0.0
    %1486 = vmatprep.subr.mxu0 0.0
    %1487 = vmatpush1.msra.mxu0 0.0
    %1488 = vmatprep.subr.mxu0 0.0
    %1489 = vmatpush1.msra.mxu0 0.0
    %1490 = vmatprep.subr.mxu0 0.0
    %1491 = vmatpush1.msra.mxu0 0.0
    %1492 = vmatprep.subr.mxu0 0.0
    %1493 = vmatpush1.msra.mxu0 0.0
    %1494 = vmatprep.subr.mxu0 0.0
    %1495 = vmatpush1.msra.mxu0 0.0
    %1496 = vmatprep.subr.mxu0 0.0
    %1497 = vmatpush1.msra.mxu0 0.0
    %1498 = vmatprep.subr.mxu0 0.0
    %1499 = vmatpush1.msra.mxu0 0.0
    %1500 = vmatprep.mubr.f32.mxu0 0.0
    %v1501 = vand.u32 %v77, 4294901760
    %1502 = vmatmul.mubr.f32.gmra.mrb[0].mxu0 %v1501
    %v1503 = vpop.f32.mrb[0].mxu0
    %v1504 = vadd.f32 %v1182, %v1503
    %v1505 = vpop.f32.mrb[0].mxu0
    %1506 = vmatprep.mubr.f32.mxu0 0.0
    %v1507 = vand.u32 %v80, 4294901760
    %1508 = vmatmul.mubr.f32.gmra.mrb[0].mxu0 %v1507
    %v1509 = vpop.f32.mrb[0].mxu0
    %v1510 = vadd.f32 %v1190, %v1509
    %v1511 = vpop.f32.mrb[0].mxu0
    %1512 = vmatprep.mubr.f32.mxu0 0.0
    %v1513 = vand.u32 %v83, 4294901760
    %1514 = vmatmul.mubr.f32.gmra.mrb[0].mxu0 %v1513
    %v1515 = vpop.f32.mrb[0].mxu0
    %v1516 = vadd.f32 %v1198, %v1515
    %v1517 = vpop.f32.mrb[0].mxu0
    %1518 = vmatprep.mubr.f32.mxu0 0.0
    %v1519 = vand.u32 %v86, 4294901760
    %1520 = vmatmul.mubr.f32.gmra.mrb[0].mxu0 %v1519
    %v1521 = vpop.f32.mrb[0].mxu0
    %v1522 = vadd.f32 %v1206, %v1521
    %v1523 = vpop.f32.mrb[0].mxu0
    %1524 = vmatprep.mubr.f32.mxu0 0.0
    %v1525 = vand.u32 %v89, 4294901760
    %1526 = vmatmul.mubr.f32.gmra.mrb[0].mxu0 %v1525
    %v1527 = vpop.f32.mrb[0].mxu0
    %v1528 = vadd.f32 %v1214, %v1527
    %v1529 = vpop.f32.mrb[0].mxu0
    %1530 = vmatprep.mubr.f32.mxu0 0.0
    %v1531 = vand.u32 %v92, 4294901760
    %1532 = vmatmul.mubr.f32.gmra.mrb[0].mxu0 %v1531
    %v1533 = vpop.f32.mrb[0].mxu0
    %v1534 = vadd.f32 %v1222, %v1533
    %v1535 = vpop.f32.mrb[0].mxu0
    %1536 = vmatprep.mubr.f32.mxu0 0.0
    %v1537 = vand.u32 %v95, 4294901760
    %1538 = vmatmul.mubr.f32.gmra.mrb[0].mxu0 %v1537
    %v1539 = vpop.f32.mrb[0].mxu0
    %v1540 = vadd.f32 %v1230, %v1539
    %v1541 = vpop.f32.mrb[0].mxu0
    %1542 = vmatprep.mubr.f32.mxu0 0.0
    %v1543 = vand.u32 %v98, 4294901760
    %1544 = vmatmul.mubr.f32.gmra.mrb[0].mxu0 %v1543
    %v1545 = vpop.f32.mrb[0].mxu0
    %v1546 = vadd.f32 %v1238, %v1545
    %v1547 = vpop.f32.mrb[0].mxu0
    %1548 = vmatprep.mubr.f32.mxu0 0.0
    %v1549 = vand.u32 %v101, 4294901760
    %1550 = vmatmul.mubr.f32.gmra.mrb[0].mxu0 %v1549
    %v1551 = vpop.f32.mrb[0].mxu0
    %v1552 = vadd.f32 %v1246, %v1551
    %v1553 = vpop.f32.mrb[0].mxu0
    %1554 = vmatprep.mubr.f32.mxu0 0.0
    %v1555 = vand.u32 %v104, 4294901760
    %1556 = vmatmul.mubr.f32.gmra.mrb[0].mxu0 %v1555
    %v1557 = vpop.f32.mrb[0].mxu0
    %v1558 = vadd.f32 %v1254, %v1557
    %v1559 = vpop.f32.mrb[0].mxu0
    %1560 = vmatprep.mubr.f32.mxu0 0.0
    %v1561 = vand.u32 %v107, 4294901760
    %1562 = vmatmul.mubr.f32.gmra.mrb[0].mxu0 %v1561
    %v1563 = vpop.f32.mrb[0].mxu0
    %v1564 = vadd.f32 %v1262, %v1563
    %v1565 = vpop.f32.mrb[0].mxu0
    %1566 = vmatprep.mubr.f32.mxu0 0.0
    %v1567 = vand.u32 %v110, 4294901760
    %1568 = vmatmul.mubr.f32.gmra.mrb[0].mxu0 %v1567
    %v1569 = vpop.f32.mrb[0].mxu0
    %v1570 = vadd.f32 %v1270, %v1569
    %v1571 = vpop.f32.mrb[0].mxu0
    %1572 = vmatprep.mubr.f32.mxu0 0.0
    %v1573 = vand.u32 %v113, 4294901760
    %1574 = vmatmul.mubr.f32.gmra.mrb[0].mxu0 %v1573
    %v1575 = vpop.f32.mrb[0].mxu0
    %v1576 = vadd.f32 %v1278, %v1575
    %v1577 = vpop.f32.mrb[0].mxu0
    %1578 = vmatprep.mubr.f32.mxu0 0.0
    %v1579 = vand.u32 %v116, 4294901760
    %1580 = vmatmul.mubr.f32.gmra.mrb[0].mxu0 %v1579
    %v1581 = vpop.f32.mrb[0].mxu0
    %v1582 = vadd.f32 %v1286, %v1581
    %v1583 = vpop.f32.mrb[0].mxu0
    %1584 = vmatprep.mubr.f32.mxu0 0.0
    %v1585 = vand.u32 %v119, 4294901760
    %1586 = vmatmul.mubr.f32.gmra.mrb[0].mxu0 %v1585
    %v1587 = vpop.f32.mrb[0].mxu0
    %v1588 = vadd.f32 %v1294, %v1587
    %v1589 = vpop.f32.mrb[0].mxu0
    %1590 = vmatprep.mubr.f32.mxu0 0.0
    %v1591 = vand.u32 %v122, 4294901760
    %1592 = vmatmul.mubr.f32.gmra.mrb[0].mxu0 %v1591
    %v1593 = vpop.f32.mrb[0].mxu0
    %v1594 = vadd.f32 %v1302, %v1593
    %v1595 = vpop.f32.mrb[0].mxu0
    %1596 = vmatprep.mubr.f32.mxu0 0.0
    %v1597 = vand.u32 %v125, 4294901760
    %1598 = vmatmul.mubr.f32.gmra.mrb[0].mxu0 %v1597
    %v1599 = vpop.f32.mrb[0].mxu0
    %v1600 = vadd.f32 %v1310, %v1599
    %v1601 = vpop.f32.mrb[0].mxu0
    %1602 = vmatprep.mubr.f32.mxu0 0.0
    %v1603 = vand.u32 %v128, 4294901760
    %1604 = vmatmul.mubr.f32.gmra.mrb[0].mxu0 %v1603
    %v1605 = vpop.f32.mrb[0].mxu0
    %v1606 = vadd.f32 %v1318, %v1605
    %v1607 = vpop.f32.mrb[0].mxu0
    %1608 = vmatprep.mubr.f32.mxu0 0.0
    %v1609 = vand.u32 %v131, 4294901760
    %1610 = vmatmul.mubr.f32.gmra.mrb[0].mxu0 %v1609
    %v1611 = vpop.f32.mrb[0].mxu0
    %v1612 = vadd.f32 %v1326, %v1611
    %v1613 = vpop.f32.mrb[0].mxu0
    %1614 = vmatprep.mubr.f32.mxu0 0.0
    %v1615 = vand.u32 %v134, 4294901760
    %1616 = vmatmul.mubr.f32.gmra.mrb[0].mxu0 %v1615
    %v1617 = vpop.f32.mrb[0].mxu0
    %v1618 = vadd.f32 %v1334, %v1617
    %v1619 = vpop.f32.mrb[0].mxu0
    %1620 = vmatprep.mubr.f32.mxu0 0.0
    %v1621 = vand.u32 %v137, 4294901760
    %1622 = vmatmul.mubr.f32.gmra.mrb[0].mxu0 %v1621
    %v1623 = vpop.f32.mrb[0].mxu0
    %v1624 = vadd.f32 %v1342, %v1623
    %v1625 = vpop.f32.mrb[0].mxu0
    %1626 = vmatprep.mubr.f32.mxu0 0.0
    %v1627 = vand.u32 %v140, 4294901760
    %1628 = vmatmul.mubr.f32.gmra.mrb[0].mxu0 %v1627
    %v1629 = vpop.f32.mrb[0].mxu0
    %v1630 = vadd.f32 %v1350, %v1629
    %v1631 = vpop.f32.mrb[0].mxu0
    %1632 = vmatprep.mubr.f32.mxu0 0.0
    %v1633 = vand.u32 %v143, 4294901760
    %1634 = vmatmul.mubr.f32.gmra.mrb[0].mxu0 %v1633
    %v1635 = vpop.f32.mrb[0].mxu0
    %v1636 = vadd.f32 %v1358, %v1635
    %v1637 = vpop.f32.mrb[0].mxu0
    %1638 = vmatprep.mubr.f32.mxu0 0.0
    %v1639 = vand.u32 %v146, 4294901760
    %1640 = vmatmul.mubr.f32.gmra.mrb[0].mxu0 %v1639
    %v1641 = vpop.f32.mrb[0].mxu0
    %v1642 = vadd.f32 %v1366, %v1641
    %v1643 = vpop.f32.mrb[0].mxu0
    %1644 = vmatprep.mubr.f32.mxu0 0.0
    %v1645 = vand.u32 %v149, 4294901760
    %1646 = vmatmul.mubr.f32.gmra.mrb[0].mxu0 %v1645
    %v1647 = vpop.f32.mrb[0].mxu0
    %v1648 = vadd.f32 %v1374, %v1647
    %v1649 = vpop.f32.mrb[0].mxu0
    %1650 = vmatprep.mubr.f32.mxu0 0.0
    %v1651 = vand.u32 %v152, 4294901760
    %1652 = vmatmul.mubr.f32.gmra.mrb[0].mxu0 %v1651
    %v1653 = vpop.f32.mrb[0].mxu0
    %v1654 = vadd.f32 %v1382, %v1653
    %v1655 = vpop.f32.mrb[0].mxu0
    %1656 = vmatprep.mubr.f32.mxu0 0.0
    %v1657 = vand.u32 %v155, 4294901760
    %1658 = vmatmul.mubr.f32.gmra.mrb[0].mxu0 %v1657
    %v1659 = vpop.f32.mrb[0].mxu0
    %v1660 = vadd.f32 %v1390, %v1659
    %v1661 = vpop.f32.mrb[0].mxu0
    %1662 = vmatprep.mubr.f32.mxu0 0.0
    %v1663 = vand.u32 %v158, 4294901760
    %1664 = vmatmul.mubr.f32.gmra.mrb[0].mxu0 %v1663
    %v1665 = vpop.f32.mrb[0].mxu0
    %v1666 = vadd.f32 %v1398, %v1665
    %v1667 = vpop.f32.mrb[0].mxu0
    %1668 = vmatprep.mubr.f32.mxu0 0.0
    %v1669 = vand.u32 %v161, 4294901760
    %1670 = vmatmul.mubr.f32.gmra.mrb[0].mxu0 %v1669
    %v1671 = vpop.f32.mrb[0].mxu0
    %v1672 = vadd.f32 %v1406, %v1671
    %v1673 = vpop.f32.mrb[0].mxu0
    %1674 = vmatprep.mubr.f32.mxu0 0.0
    %v1675 = vand.u32 %v164, 4294901760
    %1676 = vmatmul.mubr.f32.gmra.mrb[0].mxu0 %v1675
    %v1677 = vpop.f32.mrb[0].mxu0
    %v1678 = vadd.f32 %v1414, %v1677
    %v1679 = vpop.f32.mrb[0].mxu0
    %1680 = vmatprep.mubr.f32.mxu0 0.0
    %v1681 = vand.u32 %v167, 4294901760
    %1682 = vmatmul.mubr.f32.gmra.mrb[0].mxu0 %v1681
    %v1683 = vpop.f32.mrb[0].mxu0
    %v1684 = vadd.f32 %v1422, %v1683
    %v1685 = vpop.f32.mrb[0].mxu0
    %1686 = vmatprep.mubr.f32.mxu0 0.0
    %v1687 = vand.u32 %v170, 4294901760
    %1688 = vmatmul.mubr.f32.gmra.mrb[0].mxu0 %v1687
    %v1689 = vpop.f32.mrb[0].mxu0
    %v1690 = vadd.f32 %v1430, %v1689
    %v1691 = vpop.f32.mrb[0].mxu0
    %1692 = vdwg.mxu0
    %1693 = vmatprep.subr.mxu0 0.0
    %v1694 = vand.u32 %v67, 4294901760
    %1695 = vmatpush1.msra.mxu0 %v1694
    %1696 = vmatprep.subr.mxu0 0.0
    %1697 = vmatpush1.msra.mxu0 0.0
    %1698 = vmatprep.subr.mxu0 0.0
    %1699 = vmatpush1.msra.mxu0 0.0
    %1700 = vmatprep.subr.mxu0 0.0
    %1701 = vmatpush1.msra.mxu0 0.0
    %1702 = vmatprep.subr.mxu0 0.0
    %1703 = vmatpush1.msra.mxu0 0.0
    %1704 = vmatprep.subr.mxu0 0.0
    %1705 = vmatpush1.msra.mxu0 0.0
    %1706 = vmatprep.subr.mxu0 0.0
    %1707 = vmatpush1.msra.mxu0 0.0
    %1708 = vmatprep.subr.mxu0 0.0
    %1709 = vmatpush1.msra.mxu0 0.0
    %1710 = vmatprep.subr.mxu0 0.0
    %1711 = vmatpush1.msra.mxu0 0.0
    %1712 = vmatprep.subr.mxu0 0.0
    %1713 = vmatpush1.msra.mxu0 0.0
    %1714 = vmatprep.subr.mxu0 0.0
    %1715 = vmatpush1.msra.mxu0 0.0
    %1716 = vmatprep.subr.mxu0 0.0
    %1717 = vmatpush1.msra.mxu0 0.0
    %1718 = vmatprep.subr.mxu0 0.0
    %1719 = vmatpush1.msra.mxu0 0.0
    %1720 = vmatprep.subr.mxu0 0.0
    %1721 = vmatpush1.msra.mxu0 0.0
    %1722 = vmatprep.subr.mxu0 0.0
    %1723 = vmatpush1.msra.mxu0 0.0
    %1724 = vmatprep.subr.mxu0 0.0
    %1725 = vmatpush1.msra.mxu0 0.0
    %1726 = vmatprep.subr.mxu0 0.0
    %1727 = vmatpush1.msra.mxu0 0.0
    %1728 = vmatprep.subr.mxu0 0.0
    %1729 = vmatpush1.msra.mxu0 0.0
    %1730 = vmatprep.subr.mxu0 0.0
    %1731 = vmatpush1.msra.mxu0 0.0
    %1732 = vmatprep.subr.mxu0 0.0
    %1733 = vmatpush1.msra.mxu0 0.0
    %1734 = vmatprep.subr.mxu0 0.0
    %1735 = vmatpush1.msra.mxu0 0.0
    %1736 = vmatprep.subr.mxu0 0.0
    %1737 = vmatpush1.msra.mxu0 0.0
    %1738 = vmatprep.subr.mxu0 0.0
    %1739 = vmatpush1.msra.mxu0 0.0
    %1740 = vmatprep.subr.mxu0 0.0
    %1741 = vmatpush1.msra.mxu0 0.0
    %1742 = vmatprep.subr.mxu0 0.0
    %1743 = vmatpush1.msra.mxu0 0.0
    %1744 = vmatprep.subr.mxu0 0.0
    %1745 = vmatpush1.msra.mxu0 0.0
    %1746 = vmatprep.subr.mxu0 0.0
    %1747 = vmatpush1.msra.mxu0 0.0
    %1748 = vmatprep.subr.mxu0 0.0
    %1749 = vmatpush1.msra.mxu0 0.0
    %1750 = vmatprep.subr.mxu0 0.0
    %1751 = vmatpush1.msra.mxu0 0.0
    %1752 = vmatprep.subr.mxu0 0.0
    %1753 = vmatpush1.msra.mxu0 0.0
    %1754 = vmatprep.subr.mxu0 0.0
    %1755 = vmatpush1.msra.mxu0 0.0
    %1756 = vmatprep.subr.mxu0 0.0
    %1757 = vmatpush1.msra.mxu0 0.0
    %1758 = vmatprep.mubr.f32.mxu0 0.0
    %v1759 = vand.u32 %v77, 4294901760
    %1760 = vmatmul.mubr.f32.gmra.mrb[0].mxu0 %v1759
    %v1761 = vpop.f32.mrb[0].mxu0
    %v1762 = vadd.f32 %v1504, %v1761
    %v1763 = vpop.f32.mrb[0].mxu0
    %1764 = vmatprep.mubr.f32.mxu0 0.0
    %v1765 = vand.u32 %v80, 4294901760
    %1766 = vmatmul.mubr.f32.gmra.mrb[0].mxu0 %v1765
    %v1767 = vpop.f32.mrb[0].mxu0
    %v1768 = vadd.f32 %v1510, %v1767
    %v1769 = vpop.f32.mrb[0].mxu0
    %1770 = vmatprep.mubr.f32.mxu0 0.0
    %v1771 = vand.u32 %v83, 4294901760
    %1772 = vmatmul.mubr.f32.gmra.mrb[0].mxu0 %v1771
    %v1773 = vpop.f32.mrb[0].mxu0
    %v1774 = vadd.f32 %v1516, %v1773
    %v1775 = vpop.f32.mrb[0].mxu0
    %1776 = vmatprep.mubr.f32.mxu0 0.0
    %v1777 = vand.u32 %v86, 4294901760
    %1778 = vmatmul.mubr.f32.gmra.mrb[0].mxu0 %v1777
    %v1779 = vpop.f32.mrb[0].mxu0
    %v1780 = vadd.f32 %v1522, %v1779
    %v1781 = vpop.f32.mrb[0].mxu0
    %1782 = vmatprep.mubr.f32.mxu0 0.0
    %v1783 = vand.u32 %v89, 4294901760
    %1784 = vmatmul.mubr.f32.gmra.mrb[0].mxu0 %v1783
    %v1785 = vpop.f32.mrb[0].mxu0
    %v1786 = vadd.f32 %v1528, %v1785
    %v1787 = vpop.f32.mrb[0].mxu0
    %1788 = vmatprep.mubr.f32.mxu0 0.0
    %v1789 = vand.u32 %v92, 4294901760
    %1790 = vmatmul.mubr.f32.gmra.mrb[0].mxu0 %v1789
    %v1791 = vpop.f32.mrb[0].mxu0
    %v1792 = vadd.f32 %v1534, %v1791
    %v1793 = vpop.f32.mrb[0].mxu0
    %1794 = vmatprep.mubr.f32.mxu0 0.0
    %v1795 = vand.u32 %v95, 4294901760
    %1796 = vmatmul.mubr.f32.gmra.mrb[0].mxu0 %v1795
    %v1797 = vpop.f32.mrb[0].mxu0
    %v1798 = vadd.f32 %v1540, %v1797
    %v1799 = vpop.f32.mrb[0].mxu0
    %1800 = vmatprep.mubr.f32.mxu0 0.0
    %v1801 = vand.u32 %v98, 4294901760
    %1802 = vmatmul.mubr.f32.gmra.mrb[0].mxu0 %v1801
    %v1803 = vpop.f32.mrb[0].mxu0
    %v1804 = vadd.f32 %v1546, %v1803
    %v1805 = vpop.f32.mrb[0].mxu0
    %1806 = vmatprep.mubr.f32.mxu0 0.0
    %v1807 = vand.u32 %v101, 4294901760
    %1808 = vmatmul.mubr.f32.gmra.mrb[0].mxu0 %v1807
    %v1809 = vpop.f32.mrb[0].mxu0
    %v1810 = vadd.f32 %v1552, %v1809
    %v1811 = vpop.f32.mrb[0].mxu0
    %1812 = vmatprep.mubr.f32.mxu0 0.0
    %v1813 = vand.u32 %v104, 4294901760
    %1814 = vmatmul.mubr.f32.gmra.mrb[0].mxu0 %v1813
    %v1815 = vpop.f32.mrb[0].mxu0
    %v1816 = vadd.f32 %v1558, %v1815
    %v1817 = vpop.f32.mrb[0].mxu0
    %1818 = vmatprep.mubr.f32.mxu0 0.0
    %v1819 = vand.u32 %v107, 4294901760
    %1820 = vmatmul.mubr.f32.gmra.mrb[0].mxu0 %v1819
    %v1821 = vpop.f32.mrb[0].mxu0
    %v1822 = vadd.f32 %v1564, %v1821
    %v1823 = vpop.f32.mrb[0].mxu0
    %1824 = vmatprep.mubr.f32.mxu0 0.0
    %v1825 = vand.u32 %v110, 4294901760
    %1826 = vmatmul.mubr.f32.gmra.mrb[0].mxu0 %v1825
    %v1827 = vpop.f32.mrb[0].mxu0
    %v1828 = vadd.f32 %v1570, %v1827
    %v1829 = vpop.f32.mrb[0].mxu0
    %1830 = vmatprep.mubr.f32.mxu0 0.0
    %v1831 = vand.u32 %v113, 4294901760
    %1832 = vmatmul.mubr.f32.gmra.mrb[0].mxu0 %v1831
    %v1833 = vpop.f32.mrb[0].mxu0
    %v1834 = vadd.f32 %v1576, %v1833
    %v1835 = vpop.f32.mrb[0].mxu0
    %1836 = vmatprep.mubr.f32.mxu0 0.0
    %v1837 = vand.u32 %v116, 4294901760
    %1838 = vmatmul.mubr.f32.gmra.mrb[0].mxu0 %v1837
    %v1839 = vpop.f32.mrb[0].mxu0
    %v1840 = vadd.f32 %v1582, %v1839
    %v1841 = vpop.f32.mrb[0].mxu0
    %1842 = vmatprep.mubr.f32.mxu0 0.0
    %v1843 = vand.u32 %v119, 4294901760
    %1844 = vmatmul.mubr.f32.gmra.mrb[0].mxu0 %v1843
    %v1845 = vpop.f32.mrb[0].mxu0
    %v1846 = vadd.f32 %v1588, %v1845
    %v1847 = vpop.f32.mrb[0].mxu0
    %1848 = vmatprep.mubr.f32.mxu0 0.0
    %v1849 = vand.u32 %v122, 4294901760
    %1850 = vmatmul.mubr.f32.gmra.mrb[0].mxu0 %v1849
    %v1851 = vpop.f32.mrb[0].mxu0
    %v1852 = vadd.f32 %v1594, %v1851
    %v1853 = vpop.f32.mrb[0].mxu0
    %1854 = vmatprep.mubr.f32.mxu0 0.0
    %v1855 = vand.u32 %v125, 4294901760
    %1856 = vmatmul.mubr.f32.gmra.mrb[0].mxu0 %v1855
    %v1857 = vpop.f32.mrb[0].mxu0
    %v1858 = vadd.f32 %v1600, %v1857
    %v1859 = vpop.f32.mrb[0].mxu0
    %1860 = vmatprep.mubr.f32.mxu0 0.0
    %v1861 = vand.u32 %v128, 4294901760
    %1862 = vmatmul.mubr.f32.gmra.mrb[0].mxu0 %v1861
    %v1863 = vpop.f32.mrb[0].mxu0
    %v1864 = vadd.f32 %v1606, %v1863
    %v1865 = vpop.f32.mrb[0].mxu0
    %1866 = vmatprep.mubr.f32.mxu0 0.0
    %v1867 = vand.u32 %v131, 4294901760
    %1868 = vmatmul.mubr.f32.gmra.mrb[0].mxu0 %v1867
    %v1869 = vpop.f32.mrb[0].mxu0
    %v1870 = vadd.f32 %v1612, %v1869
    %v1871 = vpop.f32.mrb[0].mxu0
    %1872 = vmatprep.mubr.f32.mxu0 0.0
    %v1873 = vand.u32 %v134, 4294901760
    %1874 = vmatmul.mubr.f32.gmra.mrb[0].mxu0 %v1873
    %v1875 = vpop.f32.mrb[0].mxu0
    %v1876 = vadd.f32 %v1618, %v1875
    %v1877 = vpop.f32.mrb[0].mxu0
    %1878 = vmatprep.mubr.f32.mxu0 0.0
    %v1879 = vand.u32 %v137, 4294901760
    %1880 = vmatmul.mubr.f32.gmra.mrb[0].mxu0 %v1879
    %v1881 = vpop.f32.mrb[0].mxu0
    %v1882 = vadd.f32 %v1624, %v1881
    %v1883 = vpop.f32.mrb[0].mxu0
    %1884 = vmatprep.mubr.f32.mxu0 0.0
    %v1885 = vand.u32 %v140, 4294901760
    %1886 = vmatmul.mubr.f32.gmra.mrb[0].mxu0 %v1885
    %v1887 = vpop.f32.mrb[0].mxu0
    %v1888 = vadd.f32 %v1630, %v1887
    %v1889 = vpop.f32.mrb[0].mxu0
    %1890 = vmatprep.mubr.f32.mxu0 0.0
    %v1891 = vand.u32 %v143, 4294901760
    %1892 = vmatmul.mubr.f32.gmra.mrb[0].mxu0 %v1891
    %v1893 = vpop.f32.mrb[0].mxu0
    %v1894 = vadd.f32 %v1636, %v1893
    %v1895 = vpop.f32.mrb[0].mxu0
    %1896 = vmatprep.mubr.f32.mxu0 0.0
    %v1897 = vand.u32 %v146, 4294901760
    %1898 = vmatmul.mubr.f32.gmra.mrb[0].mxu0 %v1897
    %v1899 = vpop.f32.mrb[0].mxu0
    %v1900 = vadd.f32 %v1642, %v1899
    %v1901 = vpop.f32.mrb[0].mxu0
    %1902 = vmatprep.mubr.f32.mxu0 0.0
    %v1903 = vand.u32 %v149, 4294901760
    %1904 = vmatmul.mubr.f32.gmra.mrb[0].mxu0 %v1903
    %v1905 = vpop.f32.mrb[0].mxu0
    %v1906 = vadd.f32 %v1648, %v1905
    %v1907 = vpop.f32.mrb[0].mxu0
    %1908 = vmatprep.mubr.f32.mxu0 0.0
    %v1909 = vand.u32 %v152, 4294901760
    %1910 = vmatmul.mubr.f32.gmra.mrb[0].mxu0 %v1909
    %v1911 = vpop.f32.mrb[0].mxu0
    %v1912 = vadd.f32 %v1654, %v1911
    %v1913 = vpop.f32.mrb[0].mxu0
    %1914 = vmatprep.mubr.f32.mxu0 0.0
    %v1915 = vand.u32 %v155, 4294901760
    %1916 = vmatmul.mubr.f32.gmra.mrb[0].mxu0 %v1915
    %v1917 = vpop.f32.mrb[0].mxu0
    %v1918 = vadd.f32 %v1660, %v1917
    %v1919 = vpop.f32.mrb[0].mxu0
    %1920 = vmatprep.mubr.f32.mxu0 0.0
    %v1921 = vand.u32 %v158, 4294901760
    %1922 = vmatmul.mubr.f32.gmra.mrb[0].mxu0 %v1921
    %v1923 = vpop.f32.mrb[0].mxu0
    %v1924 = vadd.f32 %v1666, %v1923
    %v1925 = vpop.f32.mrb[0].mxu0
    %1926 = vmatprep.mubr.f32.mxu0 0.0
    %v1927 = vand.u32 %v161, 4294901760
    %1928 = vmatmul.mubr.f32.gmra.mrb[0].mxu0 %v1927
    %v1929 = vpop.f32.mrb[0].mxu0
    %v1930 = vadd.f32 %v1672, %v1929
    %v1931 = vpop.f32.mrb[0].mxu0
    %1932 = vmatprep.mubr.f32.mxu0 0.0
    %v1933 = vand.u32 %v164, 4294901760
    %1934 = vmatmul.mubr.f32.gmra.mrb[0].mxu0 %v1933
    %v1935 = vpop.f32.mrb[0].mxu0
    %v1936 = vadd.f32 %v1678, %v1935
    %v1937 = vpop.f32.mrb[0].mxu0
    %1938 = vmatprep.mubr.f32.mxu0 0.0
    %v1939 = vand.u32 %v167, 4294901760
    %1940 = vmatmul.mubr.f32.gmra.mrb[0].mxu0 %v1939
    %v1941 = vpop.f32.mrb[0].mxu0
    %v1942 = vadd.f32 %v1684, %v1941
    %v1943 = vpop.f32.mrb[0].mxu0
    %1944 = vmatprep.mubr.f32.mxu0 0.0
    %v1945 = vand.u32 %v170, 4294901760
    %1946 = vmatmul.mubr.f32.gmra.mrb[0].mxu0 %v1945
    %v1947 = vpop.f32.mrb[0].mxu0
    %v1948 = vadd.f32 %v1690, %v1947
    %v1949 = vpop.f32.mrb[0].mxu0
    %1950 = vdwg.mxu0
    %1951 = vst [vmem:[#allocation6] sm:$0xff] %v1762
    %1952 = vst [vmem:[#allocation6 + $0x8] sm:$0xff] %v1768
    %1953 = vst [vmem:[#allocation6 + $0x10] sm:$0xff] %v1774
    %1954 = vst [vmem:[#allocation6 + $0x18] sm:$0xff] %v1780
    %1955 = vst [vmem:[#allocation6 + $0x20] sm:$0xff] %v1786
    %1956 = vst [vmem:[#allocation6 + $0x28] sm:$0xff] %v1792
    %1957 = vst [vmem:[#allocation6 + $0x30] sm:$0xff] %v1798
    %1958 = vst [vmem:[#allocation6 + $0x38] sm:$0xff] %v1804
    %1959 = vst [vmem:[#allocation6 + $0x40] sm:$0xff] %v1810
    %1960 = vst [vmem:[#allocation6 + $0x48] sm:$0xff] %v1816
    %1961 = vst [vmem:[#allocation6 + $0x50] sm:$0xff] %v1822
    %1962 = vst [vmem:[#allocation6 + $0x58] sm:$0xff] %v1828
    %1963 = vst [vmem:[#allocation6 + $0x60] sm:$0xff] %v1834
    %1964 = vst [vmem:[#allocation6 + $0x68] sm:$0xff] %v1840
    %1965 = vst [vmem:[#allocation6 + $0x70] sm:$0xff] %v1846
    %1966 = vst [vmem:[#allocation6 + $0x78] sm:$0xff] %v1852
    %1967 = vst [vmem:[#allocation6 + $0x80] sm:$0xff] %v1858
    %1968 = vst [vmem:[#allocation6 + $0x88] sm:$0xff] %v1864
    %1969 = vst [vmem:[#allocation6 + $0x90] sm:$0xff] %v1870
    %1970 = vst [vmem:[#allocation6 + $0x98] sm:$0xff] %v1876
    %1971 = vst [vmem:[#allocation6 + $0xa0] sm:$0xff] %v1882
    %1972 = vst [vmem:[#allocation6 + $0xa8] sm:$0xff] %v1888
    %1973 = vst [vmem:[#allocation6 + $0xb0] sm:$0xff] %v1894
    %1974 = vst [vmem:[#allocation6 + $0xb8] sm:$0xff] %v1900
    %1975 = vst [vmem:[#allocation6 + $0xc0] sm:$0xff] %v1906
    %1976 = vst [vmem:[#allocation6 + $0xc8] sm:$0xff] %v1912
    %1977 = vst [vmem:[#allocation6 + $0xd0] sm:$0xff] %v1918
    %1978 = vst [vmem:[#allocation6 + $0xd8] sm:$0xff] %v1924
    %1979 = vst [vmem:[#allocation6 + $0xe0] sm:$0xff] %v1930
    %1980 = vst [vmem:[#allocation6 + $0xe8] sm:$0xff] %v1936
    %1981 = vst [vmem:[#allocation6 + $0xf0] sm:$0xff] %v1942
    %1982 = vst [vmem:[#allocation6 + $0xf8] sm:$0xff] %v1948
    loop: start=0, step=1, limit=256
    $region22: #{tpu_custom_call.1} parent=1 // loop_pre_header
      _
    $region23: #{tpu_custom_call.1} parent=1 // loop_header
      %s1984 = sphi 0, %s1988
      %p1985 = scmp.ge.s32.totalorder %s1984, 256
    $region24: #{tpu_custom_call.1} parent=1 // loop_header_branch
      %1987 = sbr.rel (%p1985) target = $region28
    $region25: #{tpu_custom_call.1} parent=1 // loop_body
      %s1989 = sadd.s32 %s33, %s1984
      %s1990 = sld [smem:[#allocation4 + %s1989]]
      %s1991 = sadd.s32 %s1989, 1
      %s1992 = sld [smem:[#allocation4 + %s1991]]
      // While loop
      $region29: #{tpu_custom_call.1} parent=25 // loop_pre_header
        _
      $region30: #{tpu_custom_call.1} parent=25 // loop_header
        %s1994 = sphi %s1990, %s1996
        %p1995 = scmp.ge.s32.totalorder %s1994, %s1992
        %v1999 = vphi 0.0, %v2003
      $region31: #{tpu_custom_call.1} parent=25 // loop_header_branch
        %1998 = sbr.rel (%p1995) target = $region35
      $region32: #{tpu_custom_call.1} parent=25 // loop_body
        %s2000 = sld [smem:[#allocation5 + %s1994]]
        %s2001 = scalar_lea.vmem %s2, %s2000
        %v2002 = vld [vmem:[%s2001] sm:$0x1]
        %v2003 = vadd.f32 %v1999, %v2002
      $region33: #{tpu_custom_call.1} parent=25 // loop_footer
        %s1996 = sadd.s32 %s1994, 1
      $region34: #{tpu_custom_call.1} parent=25 // loop_footer_branch
        %1993 = sbr.rel target = $region30
      $region35: #{tpu_custom_call.1} parent=25 // loop_exit
        _
      %s2004 = scalar_lea.vmem [#allocation2], %s1984
      %vm2005 = vcmask 57344
      %2006 = vst.msk [vmem:[%s2004] sm:$0x1] %vm2005, %v1999
    $region26: #{tpu_custom_call.1} parent=1 // loop_footer
      %s1988 = sadd.s32 1, %s1984
    $region27: #{tpu_custom_call.1} parent=1 // loop_footer_branch
      %1983 = sbr.rel target = $region23
    $region28: #{tpu_custom_call.1} parent=1 // loop_exit
      _
    %v2007 = vld [vmem:[#allocation2] sm:$0xff]
    %v2008 = vld [vmem:[#allocation2 + $0x8] sm:$0xff]
    %v2009 = vld [vmem:[#allocation2 + $0x10] sm:$0xff]
    %v2010 = vld [vmem:[#allocation2 + $0x18] sm:$0xff]
    %v2011 = vld [vmem:[#allocation2 + $0x20] sm:$0xff]
    %v2012 = vld [vmem:[#allocation2 + $0x28] sm:$0xff]
    %v2013 = vld [vmem:[#allocation2 + $0x30] sm:$0xff]
    %v2014 = vld [vmem:[#allocation2 + $0x38] sm:$0xff]
    %v2015 = vld [vmem:[#allocation2 + $0x40] sm:$0xff]
    %v2016 = vld [vmem:[#allocation2 + $0x48] sm:$0xff]
    %v2017 = vld [vmem:[#allocation2 + $0x50] sm:$0xff]
    %v2018 = vld [vmem:[#allocation2 + $0x58] sm:$0xff]
    %v2019 = vld [vmem:[#allocation2 + $0x60] sm:$0xff]
    %v2020 = vld [vmem:[#allocation2 + $0x68] sm:$0xff]
    %v2021 = vld [vmem:[#allocation2 + $0x70] sm:$0xff]
    %v2022 = vld [vmem:[#allocation2 + $0x78] sm:$0xff]
    %v2023 = vld [vmem:[#allocation2 + $0x80] sm:$0xff]
    %v2024 = vld [vmem:[#allocation2 + $0x88] sm:$0xff]
    %v2025 = vld [vmem:[#allocation2 + $0x90] sm:$0xff]
    %v2026 = vld [vmem:[#allocation2 + $0x98] sm:$0xff]
    %v2027 = vld [vmem:[#allocation2 + $0xa0] sm:$0xff]
    %v2028 = vld [vmem:[#allocation2 + $0xa8] sm:$0xff]
    %v2029 = vld [vmem:[#allocation2 + $0xb0] sm:$0xff]
    %v2030 = vld [vmem:[#allocation2 + $0xb8] sm:$0xff]
    %v2031 = vld [vmem:[#allocation2 + $0xc0] sm:$0xff]
    %v2032 = vld [vmem:[#allocation2 + $0xc8] sm:$0xff]
    %v2033 = vld [vmem:[#allocation2 + $0xd0] sm:$0xff]
    %v2034 = vld [vmem:[#allocation2 + $0xd8] sm:$0xff]
    %v2035 = vld [vmem:[#allocation2 + $0xe0] sm:$0xff]
    %v2036 = vld [vmem:[#allocation2 + $0xe8] sm:$0xff]
    %v2037 = vld [vmem:[#allocation2 + $0xf0] sm:$0xff]
    %v2038 = vld [vmem:[#allocation2 + $0xf8] sm:$0xff]
    %v2039 = vld [vmem:[%s3] sm:$0xff]
    %v2040 = vld [vmem:[%s3 + $0x8] sm:$0xff]
    %v2041 = vld [vmem:[%s3 + $0x10] sm:$0xff]
    %v2042 = vld [vmem:[%s3 + $0x18] sm:$0xff]
    %v2043 = vld [vmem:[%s3 + $0x20] sm:$0xff]
    %v2044 = vld [vmem:[%s3 + $0x28] sm:$0xff]
    %v2045 = vld [vmem:[%s3 + $0x30] sm:$0xff]
    %v2046 = vld [vmem:[%s3 + $0x38] sm:$0xff]
    %v2047 = vld [vmem:[%s3 + $0x40] sm:$0xff]
    %v2048 = vld [vmem:[%s3 + $0x48] sm:$0xff]
    %v2049 = vld [vmem:[%s3 + $0x50] sm:$0xff]
    %v2050 = vld [vmem:[%s3 + $0x58] sm:$0xff]
    %v2051 = vld [vmem:[%s3 + $0x60] sm:$0xff]
    %v2052 = vld [vmem:[%s3 + $0x68] sm:$0xff]
    %v2053 = vld [vmem:[%s3 + $0x70] sm:$0xff]
    %v2054 = vld [vmem:[%s3 + $0x78] sm:$0xff]
    %v2055 = vld [vmem:[%s3 + $0x80] sm:$0xff]
    %v2056 = vld [vmem:[%s3 + $0x88] sm:$0xff]
    %v2057 = vld [vmem:[%s3 + $0x90] sm:$0xff]
    %v2058 = vld [vmem:[%s3 + $0x98] sm:$0xff]
    %v2059 = vld [vmem:[%s3 + $0xa0] sm:$0xff]
    %v2060 = vld [vmem:[%s3 + $0xa8] sm:$0xff]
    %v2061 = vld [vmem:[%s3 + $0xb0] sm:$0xff]
    %v2062 = vld [vmem:[%s3 + $0xb8] sm:$0xff]
    %v2063 = vld [vmem:[%s3 + $0xc0] sm:$0xff]
    %v2064 = vld [vmem:[%s3 + $0xc8] sm:$0xff]
    %v2065 = vld [vmem:[%s3 + $0xd0] sm:$0xff]
    %v2066 = vld [vmem:[%s3 + $0xd8] sm:$0xff]
    %v2067 = vld [vmem:[%s3 + $0xe0] sm:$0xff]
    %v2068 = vld [vmem:[%s3 + $0xe8] sm:$0xff]
    %v2069 = vld [vmem:[%s3 + $0xf0] sm:$0xff]
    %v2070 = vld [vmem:[%s3 + $0xf8] sm:$0xff]
    %2072 = vset.pattern.permute.xlu0 0
    %2073 = vperm.xlu0 %2072, %v2039
    %v2074 = vpop.permute.xlu0 %2073
    %2077 = vset.pattern.permute.xlu0 0
    %2078 = vperm.xlu0 %2077, %v2040
    %v2079 = vpop.permute.xlu0 %2078
    %2082 = vset.pattern.permute.xlu0 0
    %2083 = vperm.xlu0 %2082, %v2041
    %v2084 = vpop.permute.xlu0 %2083
    %2087 = vset.pattern.permute.xlu0 0
    %2088 = vperm.xlu0 %2087, %v2042
    %v2089 = vpop.permute.xlu0 %2088
    %2092 = vset.pattern.permute.xlu0 0
    %2093 = vperm.xlu0 %2092, %v2043
    %v2094 = vpop.permute.xlu0 %2093
    %2097 = vset.pattern.permute.xlu0 0
    %2098 = vperm.xlu0 %2097, %v2044
    %v2099 = vpop.permute.xlu0 %2098
    %2102 = vset.pattern.permute.xlu0 0
    %2103 = vperm.xlu0 %2102, %v2045
    %v2104 = vpop.permute.xlu0 %2103
    %2107 = vset.pattern.permute.xlu0 0
    %2108 = vperm.xlu0 %2107, %v2046
    %v2109 = vpop.permute.xlu0 %2108
    %2112 = vset.pattern.permute.xlu0 0
    %2113 = vperm.xlu0 %2112, %v2047
    %v2114 = vpop.permute.xlu0 %2113
    %2117 = vset.pattern.permute.xlu0 0
    %2118 = vperm.xlu0 %2117, %v2048
    %v2119 = vpop.permute.xlu0 %2118
    %2122 = vset.pattern.permute.xlu0 0
    %2123 = vperm.xlu0 %2122, %v2049
    %v2124 = vpop.permute.xlu0 %2123
    %2127 = vset.pattern.permute.xlu0 0
    %2128 = vperm.xlu0 %2127, %v2050
    %v2129 = vpop.permute.xlu0 %2128
    %2132 = vset.pattern.permute.xlu0 0
    %2133 = vperm.xlu0 %2132, %v2051
    %v2134 = vpop.permute.xlu0 %2133
    %2137 = vset.pattern.permute.xlu0 0
    %2138 = vperm.xlu0 %2137, %v2052
    %v2139 = vpop.permute.xlu0 %2138
    %2142 = vset.pattern.permute.xlu0 0
    %2143 = vperm.xlu0 %2142, %v2053
    %v2144 = vpop.permute.xlu0 %2143
    %2147 = vset.pattern.permute.xlu0 0
    %2148 = vperm.xlu0 %2147, %v2054
    %v2149 = vpop.permute.xlu0 %2148
    %2152 = vset.pattern.permute.xlu0 0
    %2153 = vperm.xlu0 %2152, %v2055
    %v2154 = vpop.permute.xlu0 %2153
    %2157 = vset.pattern.permute.xlu0 0
    %2158 = vperm.xlu0 %2157, %v2056
    %v2159 = vpop.permute.xlu0 %2158
    %2162 = vset.pattern.permute.xlu0 0
    %2163 = vperm.xlu0 %2162, %v2057
    %v2164 = vpop.permute.xlu0 %2163
    %2167 = vset.pattern.permute.xlu0 0
    %2168 = vperm.xlu0 %2167, %v2058
    %v2169 = vpop.permute.xlu0 %2168
    %2172 = vset.pattern.permute.xlu0 0
    %2173 = vperm.xlu0 %2172, %v2059
    %v2174 = vpop.permute.xlu0 %2173
    %2177 = vset.pattern.permute.xlu0 0
    %2178 = vperm.xlu0 %2177, %v2060
    %v2179 = vpop.permute.xlu0 %2178
    %2182 = vset.pattern.permute.xlu0 0
    %2183 = vperm.xlu0 %2182, %v2061
    %v2184 = vpop.permute.xlu0 %2183
    %2187 = vset.pattern.permute.xlu0 0
    %2188 = vperm.xlu0 %2187, %v2062
    %v2189 = vpop.permute.xlu0 %2188
    %2192 = vset.pattern.permute.xlu0 0
    %2193 = vperm.xlu0 %2192, %v2063
    %v2194 = vpop.permute.xlu0 %2193
    %2197 = vset.pattern.permute.xlu0 0
    %2198 = vperm.xlu0 %2197, %v2064
    %v2199 = vpop.permute.xlu0 %2198
    %2202 = vset.pattern.permute.xlu0 0
    %2203 = vperm.xlu0 %2202, %v2065
    %v2204 = vpop.permute.xlu0 %2203
    %2207 = vset.pattern.permute.xlu0 0
    %2208 = vperm.xlu0 %2207, %v2066
    %v2209 = vpop.permute.xlu0 %2208
    %2212 = vset.pattern.permute.xlu0 0
    %2213 = vperm.xlu0 %2212, %v2067
    %v2214 = vpop.permute.xlu0 %2213
    %2217 = vset.pattern.permute.xlu0 0
    %2218 = vperm.xlu0 %2217, %v2068
    %v2219 = vpop.permute.xlu0 %2218
    %2222 = vset.pattern.permute.xlu0 0
    %2223 = vperm.xlu0 %2222, %v2069
    %v2224 = vpop.permute.xlu0 %2223
    %2227 = vset.pattern.permute.xlu0 0
    %2228 = vperm.xlu0 %2227, %v2070
    %v2229 = vpop.permute.xlu0 %2228
    %v2231 = vmul.f32 %v2007, %v2074
    %v2232 = vmul.f32 %v2008, %v2079
    %v2233 = vmul.f32 %v2009, %v2084
    %v2234 = vmul.f32 %v2010, %v2089
    %v2235 = vmul.f32 %v2011, %v2094
    %v2236 = vmul.f32 %v2012, %v2099
    %v2237 = vmul.f32 %v2013, %v2104
    %v2238 = vmul.f32 %v2014, %v2109
    %v2239 = vmul.f32 %v2015, %v2114
    %v2240 = vmul.f32 %v2016, %v2119
    %v2241 = vmul.f32 %v2017, %v2124
    %v2242 = vmul.f32 %v2018, %v2129
    %v2243 = vmul.f32 %v2019, %v2134
    %v2244 = vmul.f32 %v2020, %v2139
    %v2245 = vmul.f32 %v2021, %v2144
    %v2246 = vmul.f32 %v2022, %v2149
    %v2247 = vmul.f32 %v2023, %v2154
    %v2248 = vmul.f32 %v2024, %v2159
    %v2249 = vmul.f32 %v2025, %v2164
    %v2250 = vmul.f32 %v2026, %v2169
    %v2251 = vmul.f32 %v2027, %v2174
    %v2252 = vmul.f32 %v2028, %v2179
    %v2253 = vmul.f32 %v2029, %v2184
    %v2254 = vmul.f32 %v2030, %v2189
    %v2255 = vmul.f32 %v2031, %v2194
    %v2256 = vmul.f32 %v2032, %v2199
    %v2257 = vmul.f32 %v2033, %v2204
    %v2258 = vmul.f32 %v2034, %v2209
    %v2259 = vmul.f32 %v2035, %v2214
    %v2260 = vmul.f32 %v2036, %v2219
    %v2261 = vmul.f32 %v2037, %v2224
    %v2262 = vmul.f32 %v2038, %v2229
    %v2263 = vld [vmem:[%s4] sm:$0xff]
    %v2264 = vld [vmem:[#allocation6] sm:$0xff]
    %v2265 = vld [vmem:[#allocation6 + $0x8] sm:$0xff]
    %v2266 = vld [vmem:[#allocation6 + $0x10] sm:$0xff]
    %v2267 = vld [vmem:[#allocation6 + $0x18] sm:$0xff]
    %v2268 = vld [vmem:[#allocation6 + $0x20] sm:$0xff]
    %v2269 = vld [vmem:[#allocation6 + $0x28] sm:$0xff]
    %v2270 = vld [vmem:[#allocation6 + $0x30] sm:$0xff]
    %v2271 = vld [vmem:[#allocation6 + $0x38] sm:$0xff]
    %v2272 = vld [vmem:[#allocation6 + $0x40] sm:$0xff]
    %v2273 = vld [vmem:[#allocation6 + $0x48] sm:$0xff]
    %v2274 = vld [vmem:[#allocation6 + $0x50] sm:$0xff]
    %v2275 = vld [vmem:[#allocation6 + $0x58] sm:$0xff]
    %v2276 = vld [vmem:[#allocation6 + $0x60] sm:$0xff]
    %v2277 = vld [vmem:[#allocation6 + $0x68] sm:$0xff]
    %v2278 = vld [vmem:[#allocation6 + $0x70] sm:$0xff]
    %v2279 = vld [vmem:[#allocation6 + $0x78] sm:$0xff]
    %v2280 = vld [vmem:[#allocation6 + $0x80] sm:$0xff]
    %v2281 = vld [vmem:[#allocation6 + $0x88] sm:$0xff]
    %v2282 = vld [vmem:[#allocation6 + $0x90] sm:$0xff]
    %v2283 = vld [vmem:[#allocation6 + $0x98] sm:$0xff]
    %v2284 = vld [vmem:[#allocation6 + $0xa0] sm:$0xff]
    %v2285 = vld [vmem:[#allocation6 + $0xa8] sm:$0xff]
    %v2286 = vld [vmem:[#allocation6 + $0xb0] sm:$0xff]
    %v2287 = vld [vmem:[#allocation6 + $0xb8] sm:$0xff]
    %v2288 = vld [vmem:[#allocation6 + $0xc0] sm:$0xff]
    %v2289 = vld [vmem:[#allocation6 + $0xc8] sm:$0xff]
    %v2290 = vld [vmem:[#allocation6 + $0xd0] sm:$0xff]
    %v2291 = vld [vmem:[#allocation6 + $0xd8] sm:$0xff]
    %v2292 = vld [vmem:[#allocation6 + $0xe0] sm:$0xff]
    %v2293 = vld [vmem:[#allocation6 + $0xe8] sm:$0xff]
    %v2294 = vld [vmem:[#allocation6 + $0xf0] sm:$0xff]
    %v2295 = vld [vmem:[#allocation6 + $0xf8] sm:$0xff]
    %v2297 = vsel %vm75, %v2231, 0
    %v2300 = vsel %vm75, %v2232, 0
    %v2303 = vsel %vm75, %v2233, 0
    %v2306 = vsel %vm75, %v2234, 0
    %v2309 = vsel %vm75, %v2235, 0
    %v2312 = vsel %vm75, %v2236, 0
    %v2315 = vsel %vm75, %v2237, 0
    %v2318 = vsel %vm75, %v2238, 0
    %v2321 = vsel %vm75, %v2239, 0
    %v2324 = vsel %vm75, %v2240, 0
    %v2327 = vsel %vm75, %v2241, 0
    %v2330 = vsel %vm75, %v2242, 0
    %v2333 = vsel %vm75, %v2243, 0
    %v2336 = vsel %vm75, %v2244, 0
    %v2339 = vsel %vm75, %v2245, 0
    %v2342 = vsel %vm75, %v2246, 0
    %v2345 = vsel %vm75, %v2247, 0
    %v2348 = vsel %vm75, %v2248, 0
    %v2351 = vsel %vm75, %v2249, 0
    %v2354 = vsel %vm75, %v2250, 0
    %v2357 = vsel %vm75, %v2251, 0
    %v2360 = vsel %vm75, %v2252, 0
    %v2363 = vsel %vm75, %v2253, 0
    %v2366 = vsel %vm75, %v2254, 0
    %v2369 = vsel %vm75, %v2255, 0
    %v2372 = vsel %vm75, %v2256, 0
    %v2375 = vsel %vm75, %v2257, 0
    %v2378 = vsel %vm75, %v2258, 0
    %v2381 = vsel %vm75, %v2259, 0
    %v2384 = vsel %vm75, %v2260, 0
    %v2387 = vsel %vm75, %v2261, 0
    %v2390 = vsel %vm75, %v2262, 0
    %2392 = vmatprep.subr.mxu0 0.0
    %v2393 = vand.u32 %v2263, 4294901760
    %2394 = vmatpush1.msra.mxu0 %v2393
    %2395 = vmatprep.subr.mxu0 0.0
    %2396 = vmatpush1.msra.mxu0 0.0
    %2397 = vmatprep.subr.mxu0 0.0
    %2398 = vmatpush1.msra.mxu0 0.0
    %2399 = vmatprep.subr.mxu0 0.0
    %2400 = vmatpush1.msra.mxu0 0.0
    %2401 = vmatprep.subr.mxu0 0.0
    %2402 = vmatpush1.msra.mxu0 0.0
    %2403 = vmatprep.subr.mxu0 0.0
    %2404 = vmatpush1.msra.mxu0 0.0
    %2405 = vmatprep.subr.mxu0 0.0
    %2406 = vmatpush1.msra.mxu0 0.0
    %2407 = vmatprep.subr.mxu0 0.0
    %2408 = vmatpush1.msra.mxu0 0.0
    %2409 = vmatprep.subr.mxu0 0.0
    %2410 = vmatpush1.msra.mxu0 0.0
    %2411 = vmatprep.subr.mxu0 0.0
    %2412 = vmatpush1.msra.mxu0 0.0
    %2413 = vmatprep.subr.mxu0 0.0
    %2414 = vmatpush1.msra.mxu0 0.0
    %2415 = vmatprep.subr.mxu0 0.0
    %2416 = vmatpush1.msra.mxu0 0.0
    %2417 = vmatprep.subr.mxu0 0.0
    %2418 = vmatpush1.msra.mxu0 0.0
    %2419 = vmatprep.subr.mxu0 0.0
    %2420 = vmatpush1.msra.mxu0 0.0
    %2421 = vmatprep.subr.mxu0 0.0
    %2422 = vmatpush1.msra.mxu0 0.0
    %2423 = vmatprep.subr.mxu0 0.0
    %2424 = vmatpush1.msra.mxu0 0.0
    %2425 = vmatprep.subr.mxu0 0.0
    %2426 = vmatpush1.msra.mxu0 0.0
    %2427 = vmatprep.subr.mxu0 0.0
    %2428 = vmatpush1.msra.mxu0 0.0
    %2429 = vmatprep.subr.mxu0 0.0
    %2430 = vmatpush1.msra.mxu0 0.0
    %2431 = vmatprep.subr.mxu0 0.0
    %2432 = vmatpush1.msra.mxu0 0.0
    %2433 = vmatprep.subr.mxu0 0.0
    %2434 = vmatpush1.msra.mxu0 0.0
    %2435 = vmatprep.subr.mxu0 0.0
    %2436 = vmatpush1.msra.mxu0 0.0
    %2437 = vmatprep.subr.mxu0 0.0
    %2438 = vmatpush1.msra.mxu0 0.0
    %2439 = vmatprep.subr.mxu0 0.0
    %2440 = vmatpush1.msra.mxu0 0.0
    %2441 = vmatprep.subr.mxu0 0.0
    %2442 = vmatpush1.msra.mxu0 0.0
    %2443 = vmatprep.subr.mxu0 0.0
    %2444 = vmatpush1.msra.mxu0 0.0
    %2445 = vmatprep.subr.mxu0 0.0
    %2446 = vmatpush1.msra.mxu0 0.0
    %2447 = vmatprep.subr.mxu0 0.0
    %2448 = vmatpush1.msra.mxu0 0.0
    %2449 = vmatprep.subr.mxu0 0.0
    %2450 = vmatpush1.msra.mxu0 0.0
    %2451 = vmatprep.subr.mxu0 0.0
    %2452 = vmatpush1.msra.mxu0 0.0
    %2453 = vmatprep.subr.mxu0 0.0
    %2454 = vmatpush1.msra.mxu0 0.0
    %2455 = vmatprep.subr.mxu0 0.0
    %2456 = vmatpush1.msra.mxu0 0.0
    %2457 = vmatprep.mubr.f32.mxu0 0.0
    %v2458 = vand.u32 %v2297, 4294901760
    %v2459 = vsub.f32 %v2297, %v2458
    %v2460 = vand.u32 %v2459, 4294901760
    %v2461 = vsub.f32 %v2459, %v2460
    %v2462 = vand.u32 %v2461, 4294901760
    %2463 = vmatmul.mubr.f32.gmra.mrb[0].mxu0 %v2462
    %v2464 = vpop.f32.mrb[0].mxu0
    %v2465 = vadd.f32 %v2264, %v2464
    %v2466 = vpop.f32.mrb[0].mxu0
    %2467 = vmatprep.mubr.f32.mxu0 0.0
    %v2468 = vand.u32 %v2300, 4294901760
    %v2469 = vsub.f32 %v2300, %v2468
    %v2470 = vand.u32 %v2469, 4294901760
    %v2471 = vsub.f32 %v2469, %v2470
    %v2472 = vand.u32 %v2471, 4294901760
    %2473 = vmatmul.mubr.f32.gmra.mrb[0].mxu0 %v2472
    %v2474 = vpop.f32.mrb[0].mxu0
    %v2475 = vadd.f32 %v2265, %v2474
    %v2476 = vpop.f32.mrb[0].mxu0
    %2477 = vmatprep.mubr.f32.mxu0 0.0
    %v2478 = vand.u32 %v2303, 4294901760
    %v2479 = vsub.f32 %v2303, %v2478
    %v2480 = vand.u32 %v2479, 4294901760
    %v2481 = vsub.f32 %v2479, %v2480
    %v2482 = vand.u32 %v2481, 4294901760
    %2483 = vmatmul.mubr.f32.gmra.mrb[0].mxu0 %v2482
    %v2484 = vpop.f32.mrb[0].mxu0
    %v2485 = vadd.f32 %v2266, %v2484
    %v2486 = vpop.f32.mrb[0].mxu0
    %2487 = vmatprep.mubr.f32.mxu0 0.0
    %v2488 = vand.u32 %v2306, 4294901760
    %v2489 = vsub.f32 %v2306, %v2488
    %v2490 = vand.u32 %v2489, 4294901760
    %v2491 = vsub.f32 %v2489, %v2490
    %v2492 = vand.u32 %v2491, 4294901760
    %2493 = vmatmul.mubr.f32.gmra.mrb[0].mxu0 %v2492
    %v2494 = vpop.f32.mrb[0].mxu0
    %v2495 = vadd.f32 %v2267, %v2494
    %v2496 = vpop.f32.mrb[0].mxu0
    %2497 = vmatprep.mubr.f32.mxu0 0.0
    %v2498 = vand.u32 %v2309, 4294901760
    %v2499 = vsub.f32 %v2309, %v2498
    %v2500 = vand.u32 %v2499, 4294901760
    %v2501 = vsub.f32 %v2499, %v2500
    %v2502 = vand.u32 %v2501, 4294901760
    %2503 = vmatmul.mubr.f32.gmra.mrb[0].mxu0 %v2502
    %v2504 = vpop.f32.mrb[0].mxu0
    %v2505 = vadd.f32 %v2268, %v2504
    %v2506 = vpop.f32.mrb[0].mxu0
    %2507 = vmatprep.mubr.f32.mxu0 0.0
    %v2508 = vand.u32 %v2312, 4294901760
    %v2509 = vsub.f32 %v2312, %v2508
    %v2510 = vand.u32 %v2509, 4294901760
    %v2511 = vsub.f32 %v2509, %v2510
    %v2512 = vand.u32 %v2511, 4294901760
    %2513 = vmatmul.mubr.f32.gmra.mrb[0].mxu0 %v2512
    %v2514 = vpop.f32.mrb[0].mxu0
    %v2515 = vadd.f32 %v2269, %v2514
    %v2516 = vpop.f32.mrb[0].mxu0
    %2517 = vmatprep.mubr.f32.mxu0 0.0
    %v2518 = vand.u32 %v2315, 4294901760
    %v2519 = vsub.f32 %v2315, %v2518
    %v2520 = vand.u32 %v2519, 4294901760
    %v2521 = vsub.f32 %v2519, %v2520
    %v2522 = vand.u32 %v2521, 4294901760
    %2523 = vmatmul.mubr.f32.gmra.mrb[0].mxu0 %v2522
    %v2524 = vpop.f32.mrb[0].mxu0
    %v2525 = vadd.f32 %v2270, %v2524
    %v2526 = vpop.f32.mrb[0].mxu0
    %2527 = vmatprep.mubr.f32.mxu0 0.0
    %v2528 = vand.u32 %v2318, 4294901760
    %v2529 = vsub.f32 %v2318, %v2528
    %v2530 = vand.u32 %v2529, 4294901760
    %v2531 = vsub.f32 %v2529, %v2530
    %v2532 = vand.u32 %v2531, 4294901760
    %2533 = vmatmul.mubr.f32.gmra.mrb[0].mxu0 %v2532
    %v2534 = vpop.f32.mrb[0].mxu0
    %v2535 = vadd.f32 %v2271, %v2534
    %v2536 = vpop.f32.mrb[0].mxu0
    %2537 = vmatprep.mubr.f32.mxu0 0.0
    %v2538 = vand.u32 %v2321, 4294901760
    %v2539 = vsub.f32 %v2321, %v2538
    %v2540 = vand.u32 %v2539, 4294901760
    %v2541 = vsub.f32 %v2539, %v2540
    %v2542 = vand.u32 %v2541, 4294901760
    %2543 = vmatmul.mubr.f32.gmra.mrb[0].mxu0 %v2542
    %v2544 = vpop.f32.mrb[0].mxu0
    %v2545 = vadd.f32 %v2272, %v2544
    %v2546 = vpop.f32.mrb[0].mxu0
    %2547 = vmatprep.mubr.f32.mxu0 0.0
    %v2548 = vand.u32 %v2324, 4294901760
    %v2549 = vsub.f32 %v2324, %v2548
    %v2550 = vand.u32 %v2549, 4294901760
    %v2551 = vsub.f32 %v2549, %v2550
    %v2552 = vand.u32 %v2551, 4294901760
    %2553 = vmatmul.mubr.f32.gmra.mrb[0].mxu0 %v2552
    %v2554 = vpop.f32.mrb[0].mxu0
    %v2555 = vadd.f32 %v2273, %v2554
    %v2556 = vpop.f32.mrb[0].mxu0
    %2557 = vmatprep.mubr.f32.mxu0 0.0
    %v2558 = vand.u32 %v2327, 4294901760
    %v2559 = vsub.f32 %v2327, %v2558
    %v2560 = vand.u32 %v2559, 4294901760
    %v2561 = vsub.f32 %v2559, %v2560
    %v2562 = vand.u32 %v2561, 4294901760
    %2563 = vmatmul.mubr.f32.gmra.mrb[0].mxu0 %v2562
    %v2564 = vpop.f32.mrb[0].mxu0
    %v2565 = vadd.f32 %v2274, %v2564
    %v2566 = vpop.f32.mrb[0].mxu0
    %2567 = vmatprep.mubr.f32.mxu0 0.0
    %v2568 = vand.u32 %v2330, 4294901760
    %v2569 = vsub.f32 %v2330, %v2568
    %v2570 = vand.u32 %v2569, 4294901760
    %v2571 = vsub.f32 %v2569, %v2570
    %v2572 = vand.u32 %v2571, 4294901760
    %2573 = vmatmul.mubr.f32.gmra.mrb[0].mxu0 %v2572
    %v2574 = vpop.f32.mrb[0].mxu0
    %v2575 = vadd.f32 %v2275, %v2574
    %v2576 = vpop.f32.mrb[0].mxu0
    %2577 = vmatprep.mubr.f32.mxu0 0.0
    %v2578 = vand.u32 %v2333, 4294901760
    %v2579 = vsub.f32 %v2333, %v2578
    %v2580 = vand.u32 %v2579, 4294901760
    %v2581 = vsub.f32 %v2579, %v2580
    %v2582 = vand.u32 %v2581, 4294901760
    %2583 = vmatmul.mubr.f32.gmra.mrb[0].mxu0 %v2582
    %v2584 = vpop.f32.mrb[0].mxu0
    %v2585 = vadd.f32 %v2276, %v2584
    %v2586 = vpop.f32.mrb[0].mxu0
    %2587 = vmatprep.mubr.f32.mxu0 0.0
    %v2588 = vand.u32 %v2336, 4294901760
    %v2589 = vsub.f32 %v2336, %v2588
    %v2590 = vand.u32 %v2589, 4294901760
    %v2591 = vsub.f32 %v2589, %v2590
    %v2592 = vand.u32 %v2591, 4294901760
    %2593 = vmatmul.mubr.f32.gmra.mrb[0].mxu0 %v2592
    %v2594 = vpop.f32.mrb[0].mxu0
    %v2595 = vadd.f32 %v2277, %v2594
    %v2596 = vpop.f32.mrb[0].mxu0
    %2597 = vmatprep.mubr.f32.mxu0 0.0
    %v2598 = vand.u32 %v2339, 4294901760
    %v2599 = vsub.f32 %v2339, %v2598
    %v2600 = vand.u32 %v2599, 4294901760
    %v2601 = vsub.f32 %v2599, %v2600
    %v2602 = vand.u32 %v2601, 4294901760
    %2603 = vmatmul.mubr.f32.gmra.mrb[0].mxu0 %v2602
    %v2604 = vpop.f32.mrb[0].mxu0
    %v2605 = vadd.f32 %v2278, %v2604
    %v2606 = vpop.f32.mrb[0].mxu0
    %2607 = vmatprep.mubr.f32.mxu0 0.0
    %v2608 = vand.u32 %v2342, 4294901760
    %v2609 = vsub.f32 %v2342, %v2608
    %v2610 = vand.u32 %v2609, 4294901760
    %v2611 = vsub.f32 %v2609, %v2610
    %v2612 = vand.u32 %v2611, 4294901760
    %2613 = vmatmul.mubr.f32.gmra.mrb[0].mxu0 %v2612
    %v2614 = vpop.f32.mrb[0].mxu0
    %v2615 = vadd.f32 %v2279, %v2614
    %v2616 = vpop.f32.mrb[0].mxu0
    %2617 = vmatprep.mubr.f32.mxu0 0.0
    %v2618 = vand.u32 %v2345, 4294901760
    %v2619 = vsub.f32 %v2345, %v2618
    %v2620 = vand.u32 %v2619, 4294901760
    %v2621 = vsub.f32 %v2619, %v2620
    %v2622 = vand.u32 %v2621, 4294901760
    %2623 = vmatmul.mubr.f32.gmra.mrb[0].mxu0 %v2622
    %v2624 = vpop.f32.mrb[0].mxu0
    %v2625 = vadd.f32 %v2280, %v2624
    %v2626 = vpop.f32.mrb[0].mxu0
    %2627 = vmatprep.mubr.f32.mxu0 0.0
    %v2628 = vand.u32 %v2348, 4294901760
    %v2629 = vsub.f32 %v2348, %v2628
    %v2630 = vand.u32 %v2629, 4294901760
    %v2631 = vsub.f32 %v2629, %v2630
    %v2632 = vand.u32 %v2631, 4294901760
    %2633 = vmatmul.mubr.f32.gmra.mrb[0].mxu0 %v2632
    %v2634 = vpop.f32.mrb[0].mxu0
    %v2635 = vadd.f32 %v2281, %v2634
    %v2636 = vpop.f32.mrb[0].mxu0
    %2637 = vmatprep.mubr.f32.mxu0 0.0
    %v2638 = vand.u32 %v2351, 4294901760
    %v2639 = vsub.f32 %v2351, %v2638
    %v2640 = vand.u32 %v2639, 4294901760
    %v2641 = vsub.f32 %v2639, %v2640
    %v2642 = vand.u32 %v2641, 4294901760
    %2643 = vmatmul.mubr.f32.gmra.mrb[0].mxu0 %v2642
    %v2644 = vpop.f32.mrb[0].mxu0
    %v2645 = vadd.f32 %v2282, %v2644
    %v2646 = vpop.f32.mrb[0].mxu0
    %2647 = vmatprep.mubr.f32.mxu0 0.0
    %v2648 = vand.u32 %v2354, 4294901760
    %v2649 = vsub.f32 %v2354, %v2648
    %v2650 = vand.u32 %v2649, 4294901760
    %v2651 = vsub.f32 %v2649, %v2650
    %v2652 = vand.u32 %v2651, 4294901760
    %2653 = vmatmul.mubr.f32.gmra.mrb[0].mxu0 %v2652
    %v2654 = vpop.f32.mrb[0].mxu0
    %v2655 = vadd.f32 %v2283, %v2654
    %v2656 = vpop.f32.mrb[0].mxu0
    %2657 = vmatprep.mubr.f32.mxu0 0.0
    %v2658 = vand.u32 %v2357, 4294901760
    %v2659 = vsub.f32 %v2357, %v2658
    %v2660 = vand.u32 %v2659, 4294901760
    %v2661 = vsub.f32 %v2659, %v2660
    %v2662 = vand.u32 %v2661, 4294901760
    %2663 = vmatmul.mubr.f32.gmra.mrb[0].mxu0 %v2662
    %v2664 = vpop.f32.mrb[0].mxu0
    %v2665 = vadd.f32 %v2284, %v2664
    %v2666 = vpop.f32.mrb[0].mxu0
    %2667 = vmatprep.mubr.f32.mxu0 0.0
    %v2668 = vand.u32 %v2360, 4294901760
    %v2669 = vsub.f32 %v2360, %v2668
    %v2670 = vand.u32 %v2669, 4294901760
    %v2671 = vsub.f32 %v2669, %v2670
    %v2672 = vand.u32 %v2671, 4294901760
    %2673 = vmatmul.mubr.f32.gmra.mrb[0].mxu0 %v2672
    %v2674 = vpop.f32.mrb[0].mxu0
    %v2675 = vadd.f32 %v2285, %v2674
    %v2676 = vpop.f32.mrb[0].mxu0
    %2677 = vmatprep.mubr.f32.mxu0 0.0
    %v2678 = vand.u32 %v2363, 4294901760
    %v2679 = vsub.f32 %v2363, %v2678
    %v2680 = vand.u32 %v2679, 4294901760
    %v2681 = vsub.f32 %v2679, %v2680
    %v2682 = vand.u32 %v2681, 4294901760
    %2683 = vmatmul.mubr.f32.gmra.mrb[0].mxu0 %v2682
    %v2684 = vpop.f32.mrb[0].mxu0
    %v2685 = vadd.f32 %v2286, %v2684
    %v2686 = vpop.f32.mrb[0].mxu0
    %2687 = vmatprep.mubr.f32.mxu0 0.0
    %v2688 = vand.u32 %v2366, 4294901760
    %v2689 = vsub.f32 %v2366, %v2688
    %v2690 = vand.u32 %v2689, 4294901760
    %v2691 = vsub.f32 %v2689, %v2690
    %v2692 = vand.u32 %v2691, 4294901760
    %2693 = vmatmul.mubr.f32.gmra.mrb[0].mxu0 %v2692
    %v2694 = vpop.f32.mrb[0].mxu0
    %v2695 = vadd.f32 %v2287, %v2694
    %v2696 = vpop.f32.mrb[0].mxu0
    %2697 = vmatprep.mubr.f32.mxu0 0.0
    %v2698 = vand.u32 %v2369, 4294901760
    %v2699 = vsub.f32 %v2369, %v2698
    %v2700 = vand.u32 %v2699, 4294901760
    %v2701 = vsub.f32 %v2699, %v2700
    %v2702 = vand.u32 %v2701, 4294901760
    %2703 = vmatmul.mubr.f32.gmra.mrb[0].mxu0 %v2702
    %v2704 = vpop.f32.mrb[0].mxu0
    %v2705 = vadd.f32 %v2288, %v2704
    %v2706 = vpop.f32.mrb[0].mxu0
    %2707 = vmatprep.mubr.f32.mxu0 0.0
    %v2708 = vand.u32 %v2372, 4294901760
    %v2709 = vsub.f32 %v2372, %v2708
    %v2710 = vand.u32 %v2709, 4294901760
    %v2711 = vsub.f32 %v2709, %v2710
    %v2712 = vand.u32 %v2711, 4294901760
    %2713 = vmatmul.mubr.f32.gmra.mrb[0].mxu0 %v2712
    %v2714 = vpop.f32.mrb[0].mxu0
    %v2715 = vadd.f32 %v2289, %v2714
    %v2716 = vpop.f32.mrb[0].mxu0
    %2717 = vmatprep.mubr.f32.mxu0 0.0
    %v2718 = vand.u32 %v2375, 4294901760
    %v2719 = vsub.f32 %v2375, %v2718
    %v2720 = vand.u32 %v2719, 4294901760
    %v2721 = vsub.f32 %v2719, %v2720
    %v2722 = vand.u32 %v2721, 4294901760
    %2723 = vmatmul.mubr.f32.gmra.mrb[0].mxu0 %v2722
    %v2724 = vpop.f32.mrb[0].mxu0
    %v2725 = vadd.f32 %v2290, %v2724
    %v2726 = vpop.f32.mrb[0].mxu0
    %2727 = vmatprep.mubr.f32.mxu0 0.0
    %v2728 = vand.u32 %v2378, 4294901760
    %v2729 = vsub.f32 %v2378, %v2728
    %v2730 = vand.u32 %v2729, 4294901760
    %v2731 = vsub.f32 %v2729, %v2730
    %v2732 = vand.u32 %v2731, 4294901760
    %2733 = vmatmul.mubr.f32.gmra.mrb[0].mxu0 %v2732
    %v2734 = vpop.f32.mrb[0].mxu0
    %v2735 = vadd.f32 %v2291, %v2734
    %v2736 = vpop.f32.mrb[0].mxu0
    %2737 = vmatprep.mubr.f32.mxu0 0.0
    %v2738 = vand.u32 %v2381, 4294901760
    %v2739 = vsub.f32 %v2381, %v2738
    %v2740 = vand.u32 %v2739, 4294901760
    %v2741 = vsub.f32 %v2739, %v2740
    %v2742 = vand.u32 %v2741, 4294901760
    %2743 = vmatmul.mubr.f32.gmra.mrb[0].mxu0 %v2742
    %v2744 = vpop.f32.mrb[0].mxu0
    %v2745 = vadd.f32 %v2292, %v2744
    %v2746 = vpop.f32.mrb[0].mxu0
    %2747 = vmatprep.mubr.f32.mxu0 0.0
    %v2748 = vand.u32 %v2384, 4294901760
    %v2749 = vsub.f32 %v2384, %v2748
    %v2750 = vand.u32 %v2749, 4294901760
    %v2751 = vsub.f32 %v2749, %v2750
    %v2752 = vand.u32 %v2751, 4294901760
    %2753 = vmatmul.mubr.f32.gmra.mrb[0].mxu0 %v2752
    %v2754 = vpop.f32.mrb[0].mxu0
    %v2755 = vadd.f32 %v2293, %v2754
    %v2756 = vpop.f32.mrb[0].mxu0
    %2757 = vmatprep.mubr.f32.mxu0 0.0
    %v2758 = vand.u32 %v2387, 4294901760
    %v2759 = vsub.f32 %v2387, %v2758
    %v2760 = vand.u32 %v2759, 4294901760
    %v2761 = vsub.f32 %v2759, %v2760
    %v2762 = vand.u32 %v2761, 4294901760
    %2763 = vmatmul.mubr.f32.gmra.mrb[0].mxu0 %v2762
    %v2764 = vpop.f32.mrb[0].mxu0
    %v2765 = vadd.f32 %v2294, %v2764
    %v2766 = vpop.f32.mrb[0].mxu0
    %2767 = vmatprep.mubr.f32.mxu0 0.0
    %v2768 = vand.u32 %v2390, 4294901760
    %v2769 = vsub.f32 %v2390, %v2768
    %v2770 = vand.u32 %v2769, 4294901760
    %v2771 = vsub.f32 %v2769, %v2770
    %v2772 = vand.u32 %v2771, 4294901760
    %2773 = vmatmul.mubr.f32.gmra.mrb[0].mxu0 %v2772
    %v2774 = vpop.f32.mrb[0].mxu0
    %v2775 = vadd.f32 %v2295, %v2774
    %v2776 = vpop.f32.mrb[0].mxu0
    %2777 = vdwg.mxu0
    %2778 = vmatprep.subr.mxu0 0.0
    %v2779 = vand.u32 %v2263, 4294901760
    %v2780 = vsub.f32 %v2263, %v2779
    %v2781 = vand.u32 %v2780, 4294901760
    %v2782 = vsub.f32 %v2780, %v2781
    %v2783 = vand.u32 %v2782, 4294901760
    %2784 = vmatpush1.msra.mxu0 %v2783
    %2785 = vmatprep.subr.mxu0 0.0
    %2786 = vmatpush1.msra.mxu0 0.0
    %2787 = vmatprep.subr.mxu0 0.0
    %2788 = vmatpush1.msra.mxu0 0.0
    %2789 = vmatprep.subr.mxu0 0.0
    %2790 = vmatpush1.msra.mxu0 0.0
    %2791 = vmatprep.subr.mxu0 0.0
    %2792 = vmatpush1.msra.mxu0 0.0
    %2793 = vmatprep.subr.mxu0 0.0
    %2794 = vmatpush1.msra.mxu0 0.0
    %2795 = vmatprep.subr.mxu0 0.0
    %2796 = vmatpush1.msra.mxu0 0.0
    %2797 = vmatprep.subr.mxu0 0.0
    %2798 = vmatpush1.msra.mxu0 0.0
    %2799 = vmatprep.subr.mxu0 0.0
    %2800 = vmatpush1.msra.mxu0 0.0
    %2801 = vmatprep.subr.mxu0 0.0
    %2802 = vmatpush1.msra.mxu0 0.0
    %2803 = vmatprep.subr.mxu0 0.0
    %2804 = vmatpush1.msra.mxu0 0.0
    %2805 = vmatprep.subr.mxu0 0.0
    %2806 = vmatpush1.msra.mxu0 0.0
    %2807 = vmatprep.subr.mxu0 0.0
    %2808 = vmatpush1.msra.mxu0 0.0
    %2809 = vmatprep.subr.mxu0 0.0
    %2810 = vmatpush1.msra.mxu0 0.0
    %2811 = vmatprep.subr.mxu0 0.0
    %2812 = vmatpush1.msra.mxu0 0.0
    %2813 = vmatprep.subr.mxu0 0.0
    %2814 = vmatpush1.msra.mxu0 0.0
    %2815 = vmatprep.subr.mxu0 0.0
    %2816 = vmatpush1.msra.mxu0 0.0
    %2817 = vmatprep.subr.mxu0 0.0
    %2818 = vmatpush1.msra.mxu0 0.0
    %2819 = vmatprep.subr.mxu0 0.0
    %2820 = vmatpush1.msra.mxu0 0.0
    %2821 = vmatprep.subr.mxu0 0.0
    %2822 = vmatpush1.msra.mxu0 0.0
    %2823 = vmatprep.subr.mxu0 0.0
    %2824 = vmatpush1.msra.mxu0 0.0
    %2825 = vmatprep.subr.mxu0 0.0
    %2826 = vmatpush1.msra.mxu0 0.0
    %2827 = vmatprep.subr.mxu0 0.0
    %2828 = vmatpush1.msra.mxu0 0.0
    %2829 = vmatprep.subr.mxu0 0.0
    %2830 = vmatpush1.msra.mxu0 0.0
    %2831 = vmatprep.subr.mxu0 0.0
    %2832 = vmatpush1.msra.mxu0 0.0
    %2833 = vmatprep.subr.mxu0 0.0
    %2834 = vmatpush1.msra.mxu0 0.0
    %2835 = vmatprep.subr.mxu0 0.0
    %2836 = vmatpush1.msra.mxu0 0.0
    %2837 = vmatprep.subr.mxu0 0.0
    %2838 = vmatpush1.msra.mxu0 0.0
    %2839 = vmatprep.subr.mxu0 0.0
    %2840 = vmatpush1.msra.mxu0 0.0
    %2841 = vmatprep.subr.mxu0 0.0
    %2842 = vmatpush1.msra.mxu0 0.0
    %2843 = vmatprep.subr.mxu0 0.0
    %2844 = vmatpush1.msra.mxu0 0.0
    %2845 = vmatprep.subr.mxu0 0.0
    %2846 = vmatpush1.msra.mxu0 0.0
    %2847 = vmatprep.mubr.f32.mxu0 0.0
    %v2848 = vand.u32 %v2297, 4294901760
    %2849 = vmatmul.mubr.f32.gmra.mrb[0].mxu0 %v2848
    %v2850 = vpop.f32.mrb[0].mxu0
    %v2851 = vadd.f32 %v2465, %v2850
    %v2852 = vpop.f32.mrb[0].mxu0
    %2853 = vmatprep.mubr.f32.mxu0 0.0
    %v2854 = vand.u32 %v2300, 4294901760
    %2855 = vmatmul.mubr.f32.gmra.mrb[0].mxu0 %v2854
    %v2856 = vpop.f32.mrb[0].mxu0
    %v2857 = vadd.f32 %v2475, %v2856
    %v2858 = vpop.f32.mrb[0].mxu0
    %2859 = vmatprep.mubr.f32.mxu0 0.0
    %v2860 = vand.u32 %v2303, 4294901760
    %2861 = vmatmul.mubr.f32.gmra.mrb[0].mxu0 %v2860
    %v2862 = vpop.f32.mrb[0].mxu0
    %v2863 = vadd.f32 %v2485, %v2862
    %v2864 = vpop.f32.mrb[0].mxu0
    %2865 = vmatprep.mubr.f32.mxu0 0.0
    %v2866 = vand.u32 %v2306, 4294901760
    %2867 = vmatmul.mubr.f32.gmra.mrb[0].mxu0 %v2866
    %v2868 = vpop.f32.mrb[0].mxu0
    %v2869 = vadd.f32 %v2495, %v2868
    %v2870 = vpop.f32.mrb[0].mxu0
    %2871 = vmatprep.mubr.f32.mxu0 0.0
    %v2872 = vand.u32 %v2309, 4294901760
    %2873 = vmatmul.mubr.f32.gmra.mrb[0].mxu0 %v2872
    %v2874 = vpop.f32.mrb[0].mxu0
    %v2875 = vadd.f32 %v2505, %v2874
    %v2876 = vpop.f32.mrb[0].mxu0
    %2877 = vmatprep.mubr.f32.mxu0 0.0
    %v2878 = vand.u32 %v2312, 4294901760
    %2879 = vmatmul.mubr.f32.gmra.mrb[0].mxu0 %v2878
    %v2880 = vpop.f32.mrb[0].mxu0
    %v2881 = vadd.f32 %v2515, %v2880
    %v2882 = vpop.f32.mrb[0].mxu0
    %2883 = vmatprep.mubr.f32.mxu0 0.0
    %v2884 = vand.u32 %v2315, 4294901760
    %2885 = vmatmul.mubr.f32.gmra.mrb[0].mxu0 %v2884
    %v2886 = vpop.f32.mrb[0].mxu0
    %v2887 = vadd.f32 %v2525, %v2886
    %v2888 = vpop.f32.mrb[0].mxu0
    %2889 = vmatprep.mubr.f32.mxu0 0.0
    %v2890 = vand.u32 %v2318, 4294901760
    %2891 = vmatmul.mubr.f32.gmra.mrb[0].mxu0 %v2890
    %v2892 = vpop.f32.mrb[0].mxu0
    %v2893 = vadd.f32 %v2535, %v2892
    %v2894 = vpop.f32.mrb[0].mxu0
    %2895 = vmatprep.mubr.f32.mxu0 0.0
    %v2896 = vand.u32 %v2321, 4294901760
    %2897 = vmatmul.mubr.f32.gmra.mrb[0].mxu0 %v2896
    %v2898 = vpop.f32.mrb[0].mxu0
    %v2899 = vadd.f32 %v2545, %v2898
    %v2900 = vpop.f32.mrb[0].mxu0
    %2901 = vmatprep.mubr.f32.mxu0 0.0
    %v2902 = vand.u32 %v2324, 4294901760
    %2903 = vmatmul.mubr.f32.gmra.mrb[0].mxu0 %v2902
    %v2904 = vpop.f32.mrb[0].mxu0
    %v2905 = vadd.f32 %v2555, %v2904
    %v2906 = vpop.f32.mrb[0].mxu0
    %2907 = vmatprep.mubr.f32.mxu0 0.0
    %v2908 = vand.u32 %v2327, 4294901760
    %2909 = vmatmul.mubr.f32.gmra.mrb[0].mxu0 %v2908
    %v2910 = vpop.f32.mrb[0].mxu0
    %v2911 = vadd.f32 %v2565, %v2910
    %v2912 = vpop.f32.mrb[0].mxu0
    %2913 = vmatprep.mubr.f32.mxu0 0.0
    %v2914 = vand.u32 %v2330, 4294901760
    %2915 = vmatmul.mubr.f32.gmra.mrb[0].mxu0 %v2914
    %v2916 = vpop.f32.mrb[0].mxu0
    %v2917 = vadd.f32 %v2575, %v2916
    %v2918 = vpop.f32.mrb[0].mxu0
    %2919 = vmatprep.mubr.f32.mxu0 0.0
    %v2920 = vand.u32 %v2333, 4294901760
    %2921 = vmatmul.mubr.f32.gmra.mrb[0].mxu0 %v2920
    %v2922 = vpop.f32.mrb[0].mxu0
    %v2923 = vadd.f32 %v2585, %v2922
    %v2924 = vpop.f32.mrb[0].mxu0
    %2925 = vmatprep.mubr.f32.mxu0 0.0
    %v2926 = vand.u32 %v2336, 4294901760
    %2927 = vmatmul.mubr.f32.gmra.mrb[0].mxu0 %v2926
    %v2928 = vpop.f32.mrb[0].mxu0
    %v2929 = vadd.f32 %v2595, %v2928
    %v2930 = vpop.f32.mrb[0].mxu0
    %2931 = vmatprep.mubr.f32.mxu0 0.0
    %v2932 = vand.u32 %v2339, 4294901760
    %2933 = vmatmul.mubr.f32.gmra.mrb[0].mxu0 %v2932
    %v2934 = vpop.f32.mrb[0].mxu0
    %v2935 = vadd.f32 %v2605, %v2934
    %v2936 = vpop.f32.mrb[0].mxu0
    %2937 = vmatprep.mubr.f32.mxu0 0.0
    %v2938 = vand.u32 %v2342, 4294901760
    %2939 = vmatmul.mubr.f32.gmra.mrb[0].mxu0 %v2938
    %v2940 = vpop.f32.mrb[0].mxu0
    %v2941 = vadd.f32 %v2615, %v2940
    %v2942 = vpop.f32.mrb[0].mxu0
    %2943 = vmatprep.mubr.f32.mxu0 0.0
    %v2944 = vand.u32 %v2345, 4294901760
    %2945 = vmatmul.mubr.f32.gmra.mrb[0].mxu0 %v2944
    %v2946 = vpop.f32.mrb[0].mxu0
    %v2947 = vadd.f32 %v2625, %v2946
    %v2948 = vpop.f32.mrb[0].mxu0
    %2949 = vmatprep.mubr.f32.mxu0 0.0
    %v2950 = vand.u32 %v2348, 4294901760
    %2951 = vmatmul.mubr.f32.gmra.mrb[0].mxu0 %v2950
    %v2952 = vpop.f32.mrb[0].mxu0
    %v2953 = vadd.f32 %v2635, %v2952
    %v2954 = vpop.f32.mrb[0].mxu0
    %2955 = vmatprep.mubr.f32.mxu0 0.0
    %v2956 = vand.u32 %v2351, 4294901760
    %2957 = vmatmul.mubr.f32.gmra.mrb[0].mxu0 %v2956
    %v2958 = vpop.f32.mrb[0].mxu0
    %v2959 = vadd.f32 %v2645, %v2958
    %v2960 = vpop.f32.mrb[0].mxu0
    %2961 = vmatprep.mubr.f32.mxu0 0.0
    %v2962 = vand.u32 %v2354, 4294901760
    %2963 = vmatmul.mubr.f32.gmra.mrb[0].mxu0 %v2962
    %v2964 = vpop.f32.mrb[0].mxu0
    %v2965 = vadd.f32 %v2655, %v2964
    %v2966 = vpop.f32.mrb[0].mxu0
    %2967 = vmatprep.mubr.f32.mxu0 0.0
    %v2968 = vand.u32 %v2357, 4294901760
    %2969 = vmatmul.mubr.f32.gmra.mrb[0].mxu0 %v2968
    %v2970 = vpop.f32.mrb[0].mxu0
    %v2971 = vadd.f32 %v2665, %v2970
    %v2972 = vpop.f32.mrb[0].mxu0
    %2973 = vmatprep.mubr.f32.mxu0 0.0
    %v2974 = vand.u32 %v2360, 4294901760
    %2975 = vmatmul.mubr.f32.gmra.mrb[0].mxu0 %v2974
    %v2976 = vpop.f32.mrb[0].mxu0
    %v2977 = vadd.f32 %v2675, %v2976
    %v2978 = vpop.f32.mrb[0].mxu0
    %2979 = vmatprep.mubr.f32.mxu0 0.0
    %v2980 = vand.u32 %v2363, 4294901760
    %2981 = vmatmul.mubr.f32.gmra.mrb[0].mxu0 %v2980
    %v2982 = vpop.f32.mrb[0].mxu0
    %v2983 = vadd.f32 %v2685, %v2982
    %v2984 = vpop.f32.mrb[0].mxu0
    %2985 = vmatprep.mubr.f32.mxu0 0.0
    %v2986 = vand.u32 %v2366, 4294901760
    %2987 = vmatmul.mubr.f32.gmra.mrb[0].mxu0 %v2986
    %v2988 = vpop.f32.mrb[0].mxu0
    %v2989 = vadd.f32 %v2695, %v2988
    %v2990 = vpop.f32.mrb[0].mxu0
    %2991 = vmatprep.mubr.f32.mxu0 0.0
    %v2992 = vand.u32 %v2369, 4294901760
    %2993 = vmatmul.mubr.f32.gmra.mrb[0].mxu0 %v2992
    %v2994 = vpop.f32.mrb[0].mxu0
    %v2995 = vadd.f32 %v2705, %v2994
    %v2996 = vpop.f32.mrb[0].mxu0
    %2997 = vmatprep.mubr.f32.mxu0 0.0
    %v2998 = vand.u32 %v2372, 4294901760
    %2999 = vmatmul.mubr.f32.gmra.mrb[0].mxu0 %v2998
    %v3000 = vpop.f32.mrb[0].mxu0
    %v3001 = vadd.f32 %v2715, %v3000
    %v3002 = vpop.f32.mrb[0].mxu0
    %3003 = vmatprep.mubr.f32.mxu0 0.0
    %v3004 = vand.u32 %v2375, 4294901760
    %3005 = vmatmul.mubr.f32.gmra.mrb[0].mxu0 %v3004
    %v3006 = vpop.f32.mrb[0].mxu0
    %v3007 = vadd.f32 %v2725, %v3006
    %v3008 = vpop.f32.mrb[0].mxu0
    %3009 = vmatprep.mubr.f32.mxu0 0.0
    %v3010 = vand.u32 %v2378, 4294901760
    %3011 = vmatmul.mubr.f32.gmra.mrb[0].mxu0 %v3010
    %v3012 = vpop.f32.mrb[0].mxu0
    %v3013 = vadd.f32 %v2735, %v3012
    %v3014 = vpop.f32.mrb[0].mxu0
    %3015 = vmatprep.mubr.f32.mxu0 0.0
    %v3016 = vand.u32 %v2381, 4294901760
    %3017 = vmatmul.mubr.f32.gmra.mrb[0].mxu0 %v3016
    %v3018 = vpop.f32.mrb[0].mxu0
    %v3019 = vadd.f32 %v2745, %v3018
    %v3020 = vpop.f32.mrb[0].mxu0
    %3021 = vmatprep.mubr.f32.mxu0 0.0
    %v3022 = vand.u32 %v2384, 4294901760
    %3023 = vmatmul.mubr.f32.gmra.mrb[0].mxu0 %v3022
    %v3024 = vpop.f32.mrb[0].mxu0
    %v3025 = vadd.f32 %v2755, %v3024
    %v3026 = vpop.f32.mrb[0].mxu0
    %3027 = vmatprep.mubr.f32.mxu0 0.0
    %v3028 = vand.u32 %v2387, 4294901760
    %3029 = vmatmul.mubr.f32.gmra.mrb[0].mxu0 %v3028
    %v3030 = vpop.f32.mrb[0].mxu0
    %v3031 = vadd.f32 %v2765, %v3030
    %v3032 = vpop.f32.mrb[0].mxu0
    %3033 = vmatprep.mubr.f32.mxu0 0.0
    %v3034 = vand.u32 %v2390, 4294901760
    %3035 = vmatmul.mubr.f32.gmra.mrb[0].mxu0 %v3034
    %v3036 = vpop.f32.mrb[0].mxu0
    %v3037 = vadd.f32 %v2775, %v3036
    %v3038 = vpop.f32.mrb[0].mxu0
    %3039 = vdwg.mxu0
    %3040 = vmatprep.subr.mxu0 0.0
    %v3041 = vand.u32 %v2263, 4294901760
    %v3042 = vsub.f32 %v2263, %v3041
    %3043 = vmatpush1.msra.mxu0 %v3042
    %3044 = vmatprep.subr.mxu0 0.0
    %3045 = vmatpush1.msra.mxu0 0.0
    %3046 = vmatprep.subr.mxu0 0.0
    %3047 = vmatpush1.msra.mxu0 0.0
    %3048 = vmatprep.subr.mxu0 0.0
    %3049 = vmatpush1.msra.mxu0 0.0
    %3050 = vmatprep.subr.mxu0 0.0
    %3051 = vmatpush1.msra.mxu0 0.0
    %3052 = vmatprep.subr.mxu0 0.0
    %3053 = vmatpush1.msra.mxu0 0.0
    %3054 = vmatprep.subr.mxu0 0.0
    %3055 = vmatpush1.msra.mxu0 0.0
    %3056 = vmatprep.subr.mxu0 0.0
    %3057 = vmatpush1.msra.mxu0 0.0
    %3058 = vmatprep.subr.mxu0 0.0
    %3059 = vmatpush1.msra.mxu0 0.0
    %3060 = vmatprep.subr.mxu0 0.0
    %3061 = vmatpush1.msra.mxu0 0.0
    %3062 = vmatprep.subr.mxu0 0.0
    %3063 = vmatpush1.msra.mxu0 0.0
    %3064 = vmatprep.subr.mxu0 0.0
    %3065 = vmatpush1.msra.mxu0 0.0
    %3066 = vmatprep.subr.mxu0 0.0
    %3067 = vmatpush1.msra.mxu0 0.0
    %3068 = vmatprep.subr.mxu0 0.0
    %3069 = vmatpush1.msra.mxu0 0.0
    %3070 = vmatprep.subr.mxu0 0.0
    %3071 = vmatpush1.msra.mxu0 0.0
    %3072 = vmatprep.subr.mxu0 0.0
    %3073 = vmatpush1.msra.mxu0 0.0
    %3074 = vmatprep.subr.mxu0 0.0
    %3075 = vmatpush1.msra.mxu0 0.0
    %3076 = vmatprep.subr.mxu0 0.0
    %3077 = vmatpush1.msra.mxu0 0.0
    %3078 = vmatprep.subr.mxu0 0.0
    %3079 = vmatpush1.msra.mxu0 0.0
    %3080 = vmatprep.subr.mxu0 0.0
    %3081 = vmatpush1.msra.mxu0 0.0
    %3082 = vmatprep.subr.mxu0 0.0
    %3083 = vmatpush1.msra.mxu0 0.0
    %3084 = vmatprep.subr.mxu0 0.0
    %3085 = vmatpush1.msra.mxu0 0.0
    %3086 = vmatprep.subr.mxu0 0.0
    %3087 = vmatpush1.msra.mxu0 0.0
    %3088 = vmatprep.subr.mxu0 0.0
    %3089 = vmatpush1.msra.mxu0 0.0
    %3090 = vmatprep.subr.mxu0 0.0
    %3091 = vmatpush1.msra.mxu0 0.0
    %3092 = vmatprep.subr.mxu0 0.0
    %3093 = vmatpush1.msra.mxu0 0.0
    %3094 = vmatprep.subr.mxu0 0.0
    %3095 = vmatpush1.msra.mxu0 0.0
    %3096 = vmatprep.subr.mxu0 0.0
    %3097 = vmatpush1.msra.mxu0 0.0
    %3098 = vmatprep.subr.mxu0 0.0
    %3099 = vmatpush1.msra.mxu0 0.0
    %3100 = vmatprep.subr.mxu0 0.0
    %3101 = vmatpush1.msra.mxu0 0.0
    %3102 = vmatprep.subr.mxu0 0.0
    %3103 = vmatpush1.msra.mxu0 0.0
    %3104 = vmatprep.subr.mxu0 0.0
    %3105 = vmatpush1.msra.mxu0 0.0
    %3106 = vmatprep.mubr.f32.mxu0 0.0
    %v3107 = vand.u32 %v2297, 4294901760
    %v3108 = vsub.f32 %v2297, %v3107
    %3109 = vmatmul.mubr.f32.gmra.mrb[0].mxu0 %v3108
    %v3110 = vpop.f32.mrb[0].mxu0
    %v3111 = vadd.f32 %v2851, %v3110
    %v3112 = vpop.f32.mrb[0].mxu0
    %3113 = vmatprep.mubr.f32.mxu0 0.0
    %v3114 = vand.u32 %v2300, 4294901760
    %v3115 = vsub.f32 %v2300, %v3114
    %3116 = vmatmul.mubr.f32.gmra.mrb[0].mxu0 %v3115
    %v3117 = vpop.f32.mrb[0].mxu0
    %v3118 = vadd.f32 %v2857, %v3117
    %v3119 = vpop.f32.mrb[0].mxu0
    %3120 = vmatprep.mubr.f32.mxu0 0.0
    %v3121 = vand.u32 %v2303, 4294901760
    %v3122 = vsub.f32 %v2303, %v3121
    %3123 = vmatmul.mubr.f32.gmra.mrb[0].mxu0 %v3122
    %v3124 = vpop.f32.mrb[0].mxu0
    %v3125 = vadd.f32 %v2863, %v3124
    %v3126 = vpop.f32.mrb[0].mxu0
    %3127 = vmatprep.mubr.f32.mxu0 0.0
    %v3128 = vand.u32 %v2306, 4294901760
    %v3129 = vsub.f32 %v2306, %v3128
    %3130 = vmatmul.mubr.f32.gmra.mrb[0].mxu0 %v3129
    %v3131 = vpop.f32.mrb[0].mxu0
    %v3132 = vadd.f32 %v2869, %v3131
    %v3133 = vpop.f32.mrb[0].mxu0
    %3134 = vmatprep.mubr.f32.mxu0 0.0
    %v3135 = vand.u32 %v2309, 4294901760
    %v3136 = vsub.f32 %v2309, %v3135
    %3137 = vmatmul.mubr.f32.gmra.mrb[0].mxu0 %v3136
    %v3138 = vpop.f32.mrb[0].mxu0
    %v3139 = vadd.f32 %v2875, %v3138
    %v3140 = vpop.f32.mrb[0].mxu0
    %3141 = vmatprep.mubr.f32.mxu0 0.0
    %v3142 = vand.u32 %v2312, 4294901760
    %v3143 = vsub.f32 %v2312, %v3142
    %3144 = vmatmul.mubr.f32.gmra.mrb[0].mxu0 %v3143
    %v3145 = vpop.f32.mrb[0].mxu0
    %v3146 = vadd.f32 %v2881, %v3145
    %v3147 = vpop.f32.mrb[0].mxu0
    %3148 = vmatprep.mubr.f32.mxu0 0.0
    %v3149 = vand.u32 %v2315, 4294901760
    %v3150 = vsub.f32 %v2315, %v3149
    %3151 = vmatmul.mubr.f32.gmra.mrb[0].mxu0 %v3150
    %v3152 = vpop.f32.mrb[0].mxu0
    %v3153 = vadd.f32 %v2887, %v3152
    %v3154 = vpop.f32.mrb[0].mxu0
    %3155 = vmatprep.mubr.f32.mxu0 0.0
    %v3156 = vand.u32 %v2318, 4294901760
    %v3157 = vsub.f32 %v2318, %v3156
    %3158 = vmatmul.mubr.f32.gmra.mrb[0].mxu0 %v3157
    %v3159 = vpop.f32.mrb[0].mxu0
    %v3160 = vadd.f32 %v2893, %v3159
    %v3161 = vpop.f32.mrb[0].mxu0
    %3162 = vmatprep.mubr.f32.mxu0 0.0
    %v3163 = vand.u32 %v2321, 4294901760
    %v3164 = vsub.f32 %v2321, %v3163
    %3165 = vmatmul.mubr.f32.gmra.mrb[0].mxu0 %v3164
    %v3166 = vpop.f32.mrb[0].mxu0
    %v3167 = vadd.f32 %v2899, %v3166
    %v3168 = vpop.f32.mrb[0].mxu0
    %3169 = vmatprep.mubr.f32.mxu0 0.0
    %v3170 = vand.u32 %v2324, 4294901760
    %v3171 = vsub.f32 %v2324, %v3170
    %3172 = vmatmul.mubr.f32.gmra.mrb[0].mxu0 %v3171
    %v3173 = vpop.f32.mrb[0].mxu0
    %v3174 = vadd.f32 %v2905, %v3173
    %v3175 = vpop.f32.mrb[0].mxu0
    %3176 = vmatprep.mubr.f32.mxu0 0.0
    %v3177 = vand.u32 %v2327, 4294901760
    %v3178 = vsub.f32 %v2327, %v3177
    %3179 = vmatmul.mubr.f32.gmra.mrb[0].mxu0 %v3178
    %v3180 = vpop.f32.mrb[0].mxu0
    %v3181 = vadd.f32 %v2911, %v3180
    %v3182 = vpop.f32.mrb[0].mxu0
    %3183 = vmatprep.mubr.f32.mxu0 0.0
    %v3184 = vand.u32 %v2330, 4294901760
    %v3185 = vsub.f32 %v2330, %v3184
    %3186 = vmatmul.mubr.f32.gmra.mrb[0].mxu0 %v3185
    %v3187 = vpop.f32.mrb[0].mxu0
    %v3188 = vadd.f32 %v2917, %v3187
    %v3189 = vpop.f32.mrb[0].mxu0
    %3190 = vmatprep.mubr.f32.mxu0 0.0
    %v3191 = vand.u32 %v2333, 4294901760
    %v3192 = vsub.f32 %v2333, %v3191
    %3193 = vmatmul.mubr.f32.gmra.mrb[0].mxu0 %v3192
    %v3194 = vpop.f32.mrb[0].mxu0
    %v3195 = vadd.f32 %v2923, %v3194
    %v3196 = vpop.f32.mrb[0].mxu0
    %3197 = vmatprep.mubr.f32.mxu0 0.0
    %v3198 = vand.u32 %v2336, 4294901760
    %v3199 = vsub.f32 %v2336, %v3198
    %3200 = vmatmul.mubr.f32.gmra.mrb[0].mxu0 %v3199
    %v3201 = vpop.f32.mrb[0].mxu0
    %v3202 = vadd.f32 %v2929, %v3201
    %v3203 = vpop.f32.mrb[0].mxu0
    %3204 = vmatprep.mubr.f32.mxu0 0.0
    %v3205 = vand.u32 %v2339, 4294901760
    %v3206 = vsub.f32 %v2339, %v3205
    %3207 = vmatmul.mubr.f32.gmra.mrb[0].mxu0 %v3206
    %v3208 = vpop.f32.mrb[0].mxu0
    %v3209 = vadd.f32 %v2935, %v3208
    %v3210 = vpop.f32.mrb[0].mxu0
    %3211 = vmatprep.mubr.f32.mxu0 0.0
    %v3212 = vand.u32 %v2342, 4294901760
    %v3213 = vsub.f32 %v2342, %v3212
    %3214 = vmatmul.mubr.f32.gmra.mrb[0].mxu0 %v3213
    %v3215 = vpop.f32.mrb[0].mxu0
    %v3216 = vadd.f32 %v2941, %v3215
    %v3217 = vpop.f32.mrb[0].mxu0
    %3218 = vmatprep.mubr.f32.mxu0 0.0
    %v3219 = vand.u32 %v2345, 4294901760
    %v3220 = vsub.f32 %v2345, %v3219
    %3221 = vmatmul.mubr.f32.gmra.mrb[0].mxu0 %v3220
    %v3222 = vpop.f32.mrb[0].mxu0
    %v3223 = vadd.f32 %v2947, %v3222
    %v3224 = vpop.f32.mrb[0].mxu0
    %3225 = vmatprep.mubr.f32.mxu0 0.0
    %v3226 = vand.u32 %v2348, 4294901760
    %v3227 = vsub.f32 %v2348, %v3226
    %3228 = vmatmul.mubr.f32.gmra.mrb[0].mxu0 %v3227
    %v3229 = vpop.f32.mrb[0].mxu0
    %v3230 = vadd.f32 %v2953, %v3229
    %v3231 = vpop.f32.mrb[0].mxu0
    %3232 = vmatprep.mubr.f32.mxu0 0.0
    %v3233 = vand.u32 %v2351, 4294901760
    %v3234 = vsub.f32 %v2351, %v3233
    %3235 = vmatmul.mubr.f32.gmra.mrb[0].mxu0 %v3234
    %v3236 = vpop.f32.mrb[0].mxu0
    %v3237 = vadd.f32 %v2959, %v3236
    %v3238 = vpop.f32.mrb[0].mxu0
    %3239 = vmatprep.mubr.f32.mxu0 0.0
    %v3240 = vand.u32 %v2354, 4294901760
    %v3241 = vsub.f32 %v2354, %v3240
    %3242 = vmatmul.mubr.f32.gmra.mrb[0].mxu0 %v3241
    %v3243 = vpop.f32.mrb[0].mxu0
    %v3244 = vadd.f32 %v2965, %v3243
    %v3245 = vpop.f32.mrb[0].mxu0
    %3246 = vmatprep.mubr.f32.mxu0 0.0
    %v3247 = vand.u32 %v2357, 4294901760
    %v3248 = vsub.f32 %v2357, %v3247
    %3249 = vmatmul.mubr.f32.gmra.mrb[0].mxu0 %v3248
    %v3250 = vpop.f32.mrb[0].mxu0
    %v3251 = vadd.f32 %v2971, %v3250
    %v3252 = vpop.f32.mrb[0].mxu0
    %3253 = vmatprep.mubr.f32.mxu0 0.0
    %v3254 = vand.u32 %v2360, 4294901760
    %v3255 = vsub.f32 %v2360, %v3254
    %3256 = vmatmul.mubr.f32.gmra.mrb[0].mxu0 %v3255
    %v3257 = vpop.f32.mrb[0].mxu0
    %v3258 = vadd.f32 %v2977, %v3257
    %v3259 = vpop.f32.mrb[0].mxu0
    %3260 = vmatprep.mubr.f32.mxu0 0.0
    %v3261 = vand.u32 %v2363, 4294901760
    %v3262 = vsub.f32 %v2363, %v3261
    %3263 = vmatmul.mubr.f32.gmra.mrb[0].mxu0 %v3262
    %v3264 = vpop.f32.mrb[0].mxu0
    %v3265 = vadd.f32 %v2983, %v3264
    %v3266 = vpop.f32.mrb[0].mxu0
    %3267 = vmatprep.mubr.f32.mxu0 0.0
    %v3268 = vand.u32 %v2366, 4294901760
    %v3269 = vsub.f32 %v2366, %v3268
    %3270 = vmatmul.mubr.f32.gmra.mrb[0].mxu0 %v3269
    %v3271 = vpop.f32.mrb[0].mxu0
    %v3272 = vadd.f32 %v2989, %v3271
    %v3273 = vpop.f32.mrb[0].mxu0
    %3274 = vmatprep.mubr.f32.mxu0 0.0
    %v3275 = vand.u32 %v2369, 4294901760
    %v3276 = vsub.f32 %v2369, %v3275
    %3277 = vmatmul.mubr.f32.gmra.mrb[0].mxu0 %v3276
    %v3278 = vpop.f32.mrb[0].mxu0
    %v3279 = vadd.f32 %v2995, %v3278
    %v3280 = vpop.f32.mrb[0].mxu0
    %3281 = vmatprep.mubr.f32.mxu0 0.0
    %v3282 = vand.u32 %v2372, 4294901760
    %v3283 = vsub.f32 %v2372, %v3282
    %3284 = vmatmul.mubr.f32.gmra.mrb[0].mxu0 %v3283
    %v3285 = vpop.f32.mrb[0].mxu0
    %v3286 = vadd.f32 %v3001, %v3285
    %v3287 = vpop.f32.mrb[0].mxu0
    %3288 = vmatprep.mubr.f32.mxu0 0.0
    %v3289 = vand.u32 %v2375, 4294901760
    %v3290 = vsub.f32 %v2375, %v3289
    %3291 = vmatmul.mubr.f32.gmra.mrb[0].mxu0 %v3290
    %v3292 = vpop.f32.mrb[0].mxu0
    %v3293 = vadd.f32 %v3007, %v3292
    %v3294 = vpop.f32.mrb[0].mxu0
    %3295 = vmatprep.mubr.f32.mxu0 0.0
    %v3296 = vand.u32 %v2378, 4294901760
    %v3297 = vsub.f32 %v2378, %v3296
    %3298 = vmatmul.mubr.f32.gmra.mrb[0].mxu0 %v3297
    %v3299 = vpop.f32.mrb[0].mxu0
    %v3300 = vadd.f32 %v3013, %v3299
    %v3301 = vpop.f32.mrb[0].mxu0
    %3302 = vmatprep.mubr.f32.mxu0 0.0
    %v3303 = vand.u32 %v2381, 4294901760
    %v3304 = vsub.f32 %v2381, %v3303
    %3305 = vmatmul.mubr.f32.gmra.mrb[0].mxu0 %v3304
    %v3306 = vpop.f32.mrb[0].mxu0
    %v3307 = vadd.f32 %v3019, %v3306
    %v3308 = vpop.f32.mrb[0].mxu0
    %3309 = vmatprep.mubr.f32.mxu0 0.0
    %v3310 = vand.u32 %v2384, 4294901760
    %v3311 = vsub.f32 %v2384, %v3310
    %3312 = vmatmul.mubr.f32.gmra.mrb[0].mxu0 %v3311
    %v3313 = vpop.f32.mrb[0].mxu0
    %v3314 = vadd.f32 %v3025, %v3313
    %v3315 = vpop.f32.mrb[0].mxu0
    %3316 = vmatprep.mubr.f32.mxu0 0.0
    %v3317 = vand.u32 %v2387, 4294901760
    %v3318 = vsub.f32 %v2387, %v3317
    %3319 = vmatmul.mubr.f32.gmra.mrb[0].mxu0 %v3318
    %v3320 = vpop.f32.mrb[0].mxu0
    %v3321 = vadd.f32 %v3031, %v3320
    %v3322 = vpop.f32.mrb[0].mxu0
    %3323 = vmatprep.mubr.f32.mxu0 0.0
    %v3324 = vand.u32 %v2390, 4294901760
    %v3325 = vsub.f32 %v2390, %v3324
    %3326 = vmatmul.mubr.f32.gmra.mrb[0].mxu0 %v3325
    %v3327 = vpop.f32.mrb[0].mxu0
    %v3328 = vadd.f32 %v3037, %v3327
    %v3329 = vpop.f32.mrb[0].mxu0
    %3330 = vdwg.mxu0
    %3331 = vmatprep.subr.mxu0 0.0
    %v3332 = vand.u32 %v2263, 4294901760
    %3333 = vmatpush1.msra.mxu0 %v3332
    %3334 = vmatprep.subr.mxu0 0.0
    %3335 = vmatpush1.msra.mxu0 0.0
    %3336 = vmatprep.subr.mxu0 0.0
    %3337 = vmatpush1.msra.mxu0 0.0
    %3338 = vmatprep.subr.mxu0 0.0
    %3339 = vmatpush1.msra.mxu0 0.0
    %3340 = vmatprep.subr.mxu0 0.0
    %3341 = vmatpush1.msra.mxu0 0.0
    %3342 = vmatprep.subr.mxu0 0.0
    %3343 = vmatpush1.msra.mxu0 0.0
    %3344 = vmatprep.subr.mxu0 0.0
    %3345 = vmatpush1.msra.mxu0 0.0
    %3346 = vmatprep.subr.mxu0 0.0
    %3347 = vmatpush1.msra.mxu0 0.0
    %3348 = vmatprep.subr.mxu0 0.0
    %3349 = vmatpush1.msra.mxu0 0.0
    %3350 = vmatprep.subr.mxu0 0.0
    %3351 = vmatpush1.msra.mxu0 0.0
    %3352 = vmatprep.subr.mxu0 0.0
    %3353 = vmatpush1.msra.mxu0 0.0
    %3354 = vmatprep.subr.mxu0 0.0
    %3355 = vmatpush1.msra.mxu0 0.0
    %3356 = vmatprep.subr.mxu0 0.0
    %3357 = vmatpush1.msra.mxu0 0.0
    %3358 = vmatprep.subr.mxu0 0.0
    %3359 = vmatpush1.msra.mxu0 0.0
    %3360 = vmatprep.subr.mxu0 0.0
    %3361 = vmatpush1.msra.mxu0 0.0
    %3362 = vmatprep.subr.mxu0 0.0
    %3363 = vmatpush1.msra.mxu0 0.0
    %3364 = vmatprep.subr.mxu0 0.0
    %3365 = vmatpush1.msra.mxu0 0.0
    %3366 = vmatprep.subr.mxu0 0.0
    %3367 = vmatpush1.msra.mxu0 0.0
    %3368 = vmatprep.subr.mxu0 0.0
    %3369 = vmatpush1.msra.mxu0 0.0
    %3370 = vmatprep.subr.mxu0 0.0
    %3371 = vmatpush1.msra.mxu0 0.0
    %3372 = vmatprep.subr.mxu0 0.0
    %3373 = vmatpush1.msra.mxu0 0.0
    %3374 = vmatprep.subr.mxu0 0.0
    %3375 = vmatpush1.msra.mxu0 0.0
    %3376 = vmatprep.subr.mxu0 0.0
    %3377 = vmatpush1.msra.mxu0 0.0
    %3378 = vmatprep.subr.mxu0 0.0
    %3379 = vmatpush1.msra.mxu0 0.0
    %3380 = vmatprep.subr.mxu0 0.0
    %3381 = vmatpush1.msra.mxu0 0.0
    %3382 = vmatprep.subr.mxu0 0.0
    %3383 = vmatpush1.msra.mxu0 0.0
    %3384 = vmatprep.subr.mxu0 0.0
    %3385 = vmatpush1.msra.mxu0 0.0
    %3386 = vmatprep.subr.mxu0 0.0
    %3387 = vmatpush1.msra.mxu0 0.0
    %3388 = vmatprep.subr.mxu0 0.0
    %3389 = vmatpush1.msra.mxu0 0.0
    %3390 = vmatprep.subr.mxu0 0.0
    %3391 = vmatpush1.msra.mxu0 0.0
    %3392 = vmatprep.subr.mxu0 0.0
    %3393 = vmatpush1.msra.mxu0 0.0
    %3394 = vmatprep.subr.mxu0 0.0
    %3395 = vmatpush1.msra.mxu0 0.0
    %3396 = vmatprep.mubr.f32.mxu0 0.0
    %v3397 = vand.u32 %v2297, 4294901760
    %v3398 = vsub.f32 %v2297, %v3397
    %v3399 = vand.u32 %v3398, 4294901760
    %3400 = vmatmul.mubr.f32.gmra.mrb[0].mxu0 %v3399
    %v3401 = vpop.f32.mrb[0].mxu0
    %v3402 = vadd.f32 %v3111, %v3401
    %v3403 = vpop.f32.mrb[0].mxu0
    %3404 = vmatprep.mubr.f32.mxu0 0.0
    %v3405 = vand.u32 %v2300, 4294901760
    %v3406 = vsub.f32 %v2300, %v3405
    %v3407 = vand.u32 %v3406, 4294901760
    %3408 = vmatmul.mubr.f32.gmra.mrb[0].mxu0 %v3407
    %v3409 = vpop.f32.mrb[0].mxu0
    %v3410 = vadd.f32 %v3118, %v3409
    %v3411 = vpop.f32.mrb[0].mxu0
    %3412 = vmatprep.mubr.f32.mxu0 0.0
    %v3413 = vand.u32 %v2303, 4294901760
    %v3414 = vsub.f32 %v2303, %v3413
    %v3415 = vand.u32 %v3414, 4294901760
    %3416 = vmatmul.mubr.f32.gmra.mrb[0].mxu0 %v3415
    %v3417 = vpop.f32.mrb[0].mxu0
    %v3418 = vadd.f32 %v3125, %v3417
    %v3419 = vpop.f32.mrb[0].mxu0
    %3420 = vmatprep.mubr.f32.mxu0 0.0
    %v3421 = vand.u32 %v2306, 4294901760
    %v3422 = vsub.f32 %v2306, %v3421
    %v3423 = vand.u32 %v3422, 4294901760
    %3424 = vmatmul.mubr.f32.gmra.mrb[0].mxu0 %v3423
    %v3425 = vpop.f32.mrb[0].mxu0
    %v3426 = vadd.f32 %v3132, %v3425
    %v3427 = vpop.f32.mrb[0].mxu0
    %3428 = vmatprep.mubr.f32.mxu0 0.0
    %v3429 = vand.u32 %v2309, 4294901760
    %v3430 = vsub.f32 %v2309, %v3429
    %v3431 = vand.u32 %v3430, 4294901760
    %3432 = vmatmul.mubr.f32.gmra.mrb[0].mxu0 %v3431
    %v3433 = vpop.f32.mrb[0].mxu0
    %v3434 = vadd.f32 %v3139, %v3433
    %v3435 = vpop.f32.mrb[0].mxu0
    %3436 = vmatprep.mubr.f32.mxu0 0.0
    %v3437 = vand.u32 %v2312, 4294901760
    %v3438 = vsub.f32 %v2312, %v3437
    %v3439 = vand.u32 %v3438, 4294901760
    %3440 = vmatmul.mubr.f32.gmra.mrb[0].mxu0 %v3439
    %v3441 = vpop.f32.mrb[0].mxu0
    %v3442 = vadd.f32 %v3146, %v3441
    %v3443 = vpop.f32.mrb[0].mxu0
    %3444 = vmatprep.mubr.f32.mxu0 0.0
    %v3445 = vand.u32 %v2315, 4294901760
    %v3446 = vsub.f32 %v2315, %v3445
    %v3447 = vand.u32 %v3446, 4294901760
    %3448 = vmatmul.mubr.f32.gmra.mrb[0].mxu0 %v3447
    %v3449 = vpop.f32.mrb[0].mxu0
    %v3450 = vadd.f32 %v3153, %v3449
    %v3451 = vpop.f32.mrb[0].mxu0
    %3452 = vmatprep.mubr.f32.mxu0 0.0
    %v3453 = vand.u32 %v2318, 4294901760
    %v3454 = vsub.f32 %v2318, %v3453
    %v3455 = vand.u32 %v3454, 4294901760
    %3456 = vmatmul.mubr.f32.gmra.mrb[0].mxu0 %v3455
    %v3457 = vpop.f32.mrb[0].mxu0
    %v3458 = vadd.f32 %v3160, %v3457
    %v3459 = vpop.f32.mrb[0].mxu0
    %3460 = vmatprep.mubr.f32.mxu0 0.0
    %v3461 = vand.u32 %v2321, 4294901760
    %v3462 = vsub.f32 %v2321, %v3461
    %v3463 = vand.u32 %v3462, 4294901760
    %3464 = vmatmul.mubr.f32.gmra.mrb[0].mxu0 %v3463
    %v3465 = vpop.f32.mrb[0].mxu0
    %v3466 = vadd.f32 %v3167, %v3465
    %v3467 = vpop.f32.mrb[0].mxu0
    %3468 = vmatprep.mubr.f32.mxu0 0.0
    %v3469 = vand.u32 %v2324, 4294901760
    %v3470 = vsub.f32 %v2324, %v3469
    %v3471 = vand.u32 %v3470, 4294901760
    %3472 = vmatmul.mubr.f32.gmra.mrb[0].mxu0 %v3471
    %v3473 = vpop.f32.mrb[0].mxu0
    %v3474 = vadd.f32 %v3174, %v3473
    %v3475 = vpop.f32.mrb[0].mxu0
    %3476 = vmatprep.mubr.f32.mxu0 0.0
    %v3477 = vand.u32 %v2327, 4294901760
    %v3478 = vsub.f32 %v2327, %v3477
    %v3479 = vand.u32 %v3478, 4294901760
    %3480 = vmatmul.mubr.f32.gmra.mrb[0].mxu0 %v3479
    %v3481 = vpop.f32.mrb[0].mxu0
    %v3482 = vadd.f32 %v3181, %v3481
    %v3483 = vpop.f32.mrb[0].mxu0
    %3484 = vmatprep.mubr.f32.mxu0 0.0
    %v3485 = vand.u32 %v2330, 4294901760
    %v3486 = vsub.f32 %v2330, %v3485
    %v3487 = vand.u32 %v3486, 4294901760
    %3488 = vmatmul.mubr.f32.gmra.mrb[0].mxu0 %v3487
    %v3489 = vpop.f32.mrb[0].mxu0
    %v3490 = vadd.f32 %v3188, %v3489
    %v3491 = vpop.f32.mrb[0].mxu0
    %3492 = vmatprep.mubr.f32.mxu0 0.0
    %v3493 = vand.u32 %v2333, 4294901760
    %v3494 = vsub.f32 %v2333, %v3493
    %v3495 = vand.u32 %v3494, 4294901760
    %3496 = vmatmul.mubr.f32.gmra.mrb[0].mxu0 %v3495
    %v3497 = vpop.f32.mrb[0].mxu0
    %v3498 = vadd.f32 %v3195, %v3497
    %v3499 = vpop.f32.mrb[0].mxu0
    %3500 = vmatprep.mubr.f32.mxu0 0.0
    %v3501 = vand.u32 %v2336, 4294901760
    %v3502 = vsub.f32 %v2336, %v3501
    %v3503 = vand.u32 %v3502, 4294901760
    %3504 = vmatmul.mubr.f32.gmra.mrb[0].mxu0 %v3503
    %v3505 = vpop.f32.mrb[0].mxu0
    %v3506 = vadd.f32 %v3202, %v3505
    %v3507 = vpop.f32.mrb[0].mxu0
    %3508 = vmatprep.mubr.f32.mxu0 0.0
    %v3509 = vand.u32 %v2339, 4294901760
    %v3510 = vsub.f32 %v2339, %v3509
    %v3511 = vand.u32 %v3510, 4294901760
    %3512 = vmatmul.mubr.f32.gmra.mrb[0].mxu0 %v3511
    %v3513 = vpop.f32.mrb[0].mxu0
    %v3514 = vadd.f32 %v3209, %v3513
    %v3515 = vpop.f32.mrb[0].mxu0
    %3516 = vmatprep.mubr.f32.mxu0 0.0
    %v3517 = vand.u32 %v2342, 4294901760
    %v3518 = vsub.f32 %v2342, %v3517
    %v3519 = vand.u32 %v3518, 4294901760
    %3520 = vmatmul.mubr.f32.gmra.mrb[0].mxu0 %v3519
    %v3521 = vpop.f32.mrb[0].mxu0
    %v3522 = vadd.f32 %v3216, %v3521
    %v3523 = vpop.f32.mrb[0].mxu0
    %3524 = vmatprep.mubr.f32.mxu0 0.0
    %v3525 = vand.u32 %v2345, 4294901760
    %v3526 = vsub.f32 %v2345, %v3525
    %v3527 = vand.u32 %v3526, 4294901760
    %3528 = vmatmul.mubr.f32.gmra.mrb[0].mxu0 %v3527
    %v3529 = vpop.f32.mrb[0].mxu0
    %v3530 = vadd.f32 %v3223, %v3529
    %v3531 = vpop.f32.mrb[0].mxu0
    %3532 = vmatprep.mubr.f32.mxu0 0.0
    %v3533 = vand.u32 %v2348, 4294901760
    %v3534 = vsub.f32 %v2348, %v3533
    %v3535 = vand.u32 %v3534, 4294901760
    %3536 = vmatmul.mubr.f32.gmra.mrb[0].mxu0 %v3535
    %v3537 = vpop.f32.mrb[0].mxu0
    %v3538 = vadd.f32 %v3230, %v3537
    %v3539 = vpop.f32.mrb[0].mxu0
    %3540 = vmatprep.mubr.f32.mxu0 0.0
    %v3541 = vand.u32 %v2351, 4294901760
    %v3542 = vsub.f32 %v2351, %v3541
    %v3543 = vand.u32 %v3542, 4294901760
    %3544 = vmatmul.mubr.f32.gmra.mrb[0].mxu0 %v3543
    %v3545 = vpop.f32.mrb[0].mxu0
    %v3546 = vadd.f32 %v3237, %v3545
    %v3547 = vpop.f32.mrb[0].mxu0
    %3548 = vmatprep.mubr.f32.mxu0 0.0
    %v3549 = vand.u32 %v2354, 4294901760
    %v3550 = vsub.f32 %v2354, %v3549
    %v3551 = vand.u32 %v3550, 4294901760
    %3552 = vmatmul.mubr.f32.gmra.mrb[0].mxu0 %v3551
    %v3553 = vpop.f32.mrb[0].mxu0
    %v3554 = vadd.f32 %v3244, %v3553
    %v3555 = vpop.f32.mrb[0].mxu0
    %3556 = vmatprep.mubr.f32.mxu0 0.0
    %v3557 = vand.u32 %v2357, 4294901760
    %v3558 = vsub.f32 %v2357, %v3557
    %v3559 = vand.u32 %v3558, 4294901760
    %3560 = vmatmul.mubr.f32.gmra.mrb[0].mxu0 %v3559
    %v3561 = vpop.f32.mrb[0].mxu0
    %v3562 = vadd.f32 %v3251, %v3561
    %v3563 = vpop.f32.mrb[0].mxu0
    %3564 = vmatprep.mubr.f32.mxu0 0.0
    %v3565 = vand.u32 %v2360, 4294901760
    %v3566 = vsub.f32 %v2360, %v3565
    %v3567 = vand.u32 %v3566, 4294901760
    %3568 = vmatmul.mubr.f32.gmra.mrb[0].mxu0 %v3567
    %v3569 = vpop.f32.mrb[0].mxu0
    %v3570 = vadd.f32 %v3258, %v3569
    %v3571 = vpop.f32.mrb[0].mxu0
    %3572 = vmatprep.mubr.f32.mxu0 0.0
    %v3573 = vand.u32 %v2363, 4294901760
    %v3574 = vsub.f32 %v2363, %v3573
    %v3575 = vand.u32 %v3574, 4294901760
    %3576 = vmatmul.mubr.f32.gmra.mrb[0].mxu0 %v3575
    %v3577 = vpop.f32.mrb[0].mxu0
    %v3578 = vadd.f32 %v3265, %v3577
    %v3579 = vpop.f32.mrb[0].mxu0
    %3580 = vmatprep.mubr.f32.mxu0 0.0
    %v3581 = vand.u32 %v2366, 4294901760
    %v3582 = vsub.f32 %v2366, %v3581
    %v3583 = vand.u32 %v3582, 4294901760
    %3584 = vmatmul.mubr.f32.gmra.mrb[0].mxu0 %v3583
    %v3585 = vpop.f32.mrb[0].mxu0
    %v3586 = vadd.f32 %v3272, %v3585
    %v3587 = vpop.f32.mrb[0].mxu0
    %3588 = vmatprep.mubr.f32.mxu0 0.0
    %v3589 = vand.u32 %v2369, 4294901760
    %v3590 = vsub.f32 %v2369, %v3589
    %v3591 = vand.u32 %v3590, 4294901760
    %3592 = vmatmul.mubr.f32.gmra.mrb[0].mxu0 %v3591
    %v3593 = vpop.f32.mrb[0].mxu0
    %v3594 = vadd.f32 %v3279, %v3593
    %v3595 = vpop.f32.mrb[0].mxu0
    %3596 = vmatprep.mubr.f32.mxu0 0.0
    %v3597 = vand.u32 %v2372, 4294901760
    %v3598 = vsub.f32 %v2372, %v3597
    %v3599 = vand.u32 %v3598, 4294901760
    %3600 = vmatmul.mubr.f32.gmra.mrb[0].mxu0 %v3599
    %v3601 = vpop.f32.mrb[0].mxu0
    %v3602 = vadd.f32 %v3286, %v3601
    %v3603 = vpop.f32.mrb[0].mxu0
    %3604 = vmatprep.mubr.f32.mxu0 0.0
    %v3605 = vand.u32 %v2375, 4294901760
    %v3606 = vsub.f32 %v2375, %v3605
    %v3607 = vand.u32 %v3606, 4294901760
    %3608 = vmatmul.mubr.f32.gmra.mrb[0].mxu0 %v3607
    %v3609 = vpop.f32.mrb[0].mxu0
    %v3610 = vadd.f32 %v3293, %v3609
    %v3611 = vpop.f32.mrb[0].mxu0
    %3612 = vmatprep.mubr.f32.mxu0 0.0
    %v3613 = vand.u32 %v2378, 4294901760
    %v3614 = vsub.f32 %v2378, %v3613
    %v3615 = vand.u32 %v3614, 4294901760
    %3616 = vmatmul.mubr.f32.gmra.mrb[0].mxu0 %v3615
    %v3617 = vpop.f32.mrb[0].mxu0
    %v3618 = vadd.f32 %v3300, %v3617
    %v3619 = vpop.f32.mrb[0].mxu0
    %3620 = vmatprep.mubr.f32.mxu0 0.0
    %v3621 = vand.u32 %v2381, 4294901760
    %v3622 = vsub.f32 %v2381, %v3621
    %v3623 = vand.u32 %v3622, 4294901760
    %3624 = vmatmul.mubr.f32.gmra.mrb[0].mxu0 %v3623
    %v3625 = vpop.f32.mrb[0].mxu0
    %v3626 = vadd.f32 %v3307, %v3625
    %v3627 = vpop.f32.mrb[0].mxu0
    %3628 = vmatprep.mubr.f32.mxu0 0.0
    %v3629 = vand.u32 %v2384, 4294901760
    %v3630 = vsub.f32 %v2384, %v3629
    %v3631 = vand.u32 %v3630, 4294901760
    %3632 = vmatmul.mubr.f32.gmra.mrb[0].mxu0 %v3631
    %v3633 = vpop.f32.mrb[0].mxu0
    %v3634 = vadd.f32 %v3314, %v3633
    %v3635 = vpop.f32.mrb[0].mxu0
    %3636 = vmatprep.mubr.f32.mxu0 0.0
    %v3637 = vand.u32 %v2387, 4294901760
    %v3638 = vsub.f32 %v2387, %v3637
    %v3639 = vand.u32 %v3638, 4294901760
    %3640 = vmatmul.mubr.f32.gmra.mrb[0].mxu0 %v3639
    %v3641 = vpop.f32.mrb[0].mxu0
    %v3642 = vadd.f32 %v3321, %v3641
    %v3643 = vpop.f32.mrb[0].mxu0
    %3644 = vmatprep.mubr.f32.mxu0 0.0
    %v3645 = vand.u32 %v2390, 4294901760
    %v3646 = vsub.f32 %v2390, %v3645
    %v3647 = vand.u32 %v3646, 4294901760
    %3648 = vmatmul.mubr.f32.gmra.mrb[0].mxu0 %v3647
    %v3649 = vpop.f32.mrb[0].mxu0
    %v3650 = vadd.f32 %v3328, %v3649
    %v3651 = vpop.f32.mrb[0].mxu0
    %3652 = vdwg.mxu0
    %3653 = vmatprep.subr.mxu0 0.0
    %v3654 = vand.u32 %v2263, 4294901760
    %v3655 = vsub.f32 %v2263, %v3654
    %v3656 = vand.u32 %v3655, 4294901760
    %3657 = vmatpush1.msra.mxu0 %v3656
    %3658 = vmatprep.subr.mxu0 0.0
    %3659 = vmatpush1.msra.mxu0 0.0
    %3660 = vmatprep.subr.mxu0 0.0
    %3661 = vmatpush1.msra.mxu0 0.0
    %3662 = vmatprep.subr.mxu0 0.0
    %3663 = vmatpush1.msra.mxu0 0.0
    %3664 = vmatprep.subr.mxu0 0.0
    %3665 = vmatpush1.msra.mxu0 0.0
    %3666 = vmatprep.subr.mxu0 0.0
    %3667 = vmatpush1.msra.mxu0 0.0
    %3668 = vmatprep.subr.mxu0 0.0
    %3669 = vmatpush1.msra.mxu0 0.0
    %3670 = vmatprep.subr.mxu0 0.0
    %3671 = vmatpush1.msra.mxu0 0.0
    %3672 = vmatprep.subr.mxu0 0.0
    %3673 = vmatpush1.msra.mxu0 0.0
    %3674 = vmatprep.subr.mxu0 0.0
    %3675 = vmatpush1.msra.mxu0 0.0
    %3676 = vmatprep.subr.mxu0 0.0
    %3677 = vmatpush1.msra.mxu0 0.0
    %3678 = vmatprep.subr.mxu0 0.0
    %3679 = vmatpush1.msra.mxu0 0.0
    %3680 = vmatprep.subr.mxu0 0.0
    %3681 = vmatpush1.msra.mxu0 0.0
    %3682 = vmatprep.subr.mxu0 0.0
    %3683 = vmatpush1.msra.mxu0 0.0
    %3684 = vmatprep.subr.mxu0 0.0
    %3685 = vmatpush1.msra.mxu0 0.0
    %3686 = vmatprep.subr.mxu0 0.0
    %3687 = vmatpush1.msra.mxu0 0.0
    %3688 = vmatprep.subr.mxu0 0.0
    %3689 = vmatpush1.msra.mxu0 0.0
    %3690 = vmatprep.subr.mxu0 0.0
    %3691 = vmatpush1.msra.mxu0 0.0
    %3692 = vmatprep.subr.mxu0 0.0
    %3693 = vmatpush1.msra.mxu0 0.0
    %3694 = vmatprep.subr.mxu0 0.0
    %3695 = vmatpush1.msra.mxu0 0.0
    %3696 = vmatprep.subr.mxu0 0.0
    %3697 = vmatpush1.msra.mxu0 0.0
    %3698 = vmatprep.subr.mxu0 0.0
    %3699 = vmatpush1.msra.mxu0 0.0
    %3700 = vmatprep.subr.mxu0 0.0
    %3701 = vmatpush1.msra.mxu0 0.0
    %3702 = vmatprep.subr.mxu0 0.0
    %3703 = vmatpush1.msra.mxu0 0.0
    %3704 = vmatprep.subr.mxu0 0.0
    %3705 = vmatpush1.msra.mxu0 0.0
    %3706 = vmatprep.subr.mxu0 0.0
    %3707 = vmatpush1.msra.mxu0 0.0
    %3708 = vmatprep.subr.mxu0 0.0
    %3709 = vmatpush1.msra.mxu0 0.0
    %3710 = vmatprep.subr.mxu0 0.0
    %3711 = vmatpush1.msra.mxu0 0.0
    %3712 = vmatprep.subr.mxu0 0.0
    %3713 = vmatpush1.msra.mxu0 0.0
    %3714 = vmatprep.subr.mxu0 0.0
    %3715 = vmatpush1.msra.mxu0 0.0
    %3716 = vmatprep.subr.mxu0 0.0
    %3717 = vmatpush1.msra.mxu0 0.0
    %3718 = vmatprep.subr.mxu0 0.0
    %3719 = vmatpush1.msra.mxu0 0.0
    %3720 = vmatprep.mubr.f32.mxu0 0.0
    %v3721 = vand.u32 %v2297, 4294901760
    %3722 = vmatmul.mubr.f32.gmra.mrb[0].mxu0 %v3721
    %v3723 = vpop.f32.mrb[0].mxu0
    %v3724 = vadd.f32 %v3402, %v3723
    %v3725 = vpop.f32.mrb[0].mxu0
    %3726 = vmatprep.mubr.f32.mxu0 0.0
    %v3727 = vand.u32 %v2300, 4294901760
    %3728 = vmatmul.mubr.f32.gmra.mrb[0].mxu0 %v3727
    %v3729 = vpop.f32.mrb[0].mxu0
    %v3730 = vadd.f32 %v3410, %v3729
    %v3731 = vpop.f32.mrb[0].mxu0
    %3732 = vmatprep.mubr.f32.mxu0 0.0
    %v3733 = vand.u32 %v2303, 4294901760
    %3734 = vmatmul.mubr.f32.gmra.mrb[0].mxu0 %v3733
    %v3735 = vpop.f32.mrb[0].mxu0
    %v3736 = vadd.f32 %v3418, %v3735
    %v3737 = vpop.f32.mrb[0].mxu0
    %3738 = vmatprep.mubr.f32.mxu0 0.0
    %v3739 = vand.u32 %v2306, 4294901760
    %3740 = vmatmul.mubr.f32.gmra.mrb[0].mxu0 %v3739
    %v3741 = vpop.f32.mrb[0].mxu0
    %v3742 = vadd.f32 %v3426, %v3741
    %v3743 = vpop.f32.mrb[0].mxu0
    %3744 = vmatprep.mubr.f32.mxu0 0.0
    %v3745 = vand.u32 %v2309, 4294901760
    %3746 = vmatmul.mubr.f32.gmra.mrb[0].mxu0 %v3745
    %v3747 = vpop.f32.mrb[0].mxu0
    %v3748 = vadd.f32 %v3434, %v3747
    %v3749 = vpop.f32.mrb[0].mxu0
    %3750 = vmatprep.mubr.f32.mxu0 0.0
    %v3751 = vand.u32 %v2312, 4294901760
    %3752 = vmatmul.mubr.f32.gmra.mrb[0].mxu0 %v3751
    %v3753 = vpop.f32.mrb[0].mxu0
    %v3754 = vadd.f32 %v3442, %v3753
    %v3755 = vpop.f32.mrb[0].mxu0
    %3756 = vmatprep.mubr.f32.mxu0 0.0
    %v3757 = vand.u32 %v2315, 4294901760
    %3758 = vmatmul.mubr.f32.gmra.mrb[0].mxu0 %v3757
    %v3759 = vpop.f32.mrb[0].mxu0
    %v3760 = vadd.f32 %v3450, %v3759
    %v3761 = vpop.f32.mrb[0].mxu0
    %3762 = vmatprep.mubr.f32.mxu0 0.0
    %v3763 = vand.u32 %v2318, 4294901760
    %3764 = vmatmul.mubr.f32.gmra.mrb[0].mxu0 %v3763
    %v3765 = vpop.f32.mrb[0].mxu0
    %v3766 = vadd.f32 %v3458, %v3765
    %v3767 = vpop.f32.mrb[0].mxu0
    %3768 = vmatprep.mubr.f32.mxu0 0.0
    %v3769 = vand.u32 %v2321, 4294901760
    %3770 = vmatmul.mubr.f32.gmra.mrb[0].mxu0 %v3769
    %v3771 = vpop.f32.mrb[0].mxu0
    %v3772 = vadd.f32 %v3466, %v3771
    %v3773 = vpop.f32.mrb[0].mxu0
    %3774 = vmatprep.mubr.f32.mxu0 0.0
    %v3775 = vand.u32 %v2324, 4294901760
    %3776 = vmatmul.mubr.f32.gmra.mrb[0].mxu0 %v3775
    %v3777 = vpop.f32.mrb[0].mxu0
    %v3778 = vadd.f32 %v3474, %v3777
    %v3779 = vpop.f32.mrb[0].mxu0
    %3780 = vmatprep.mubr.f32.mxu0 0.0
    %v3781 = vand.u32 %v2327, 4294901760
    %3782 = vmatmul.mubr.f32.gmra.mrb[0].mxu0 %v3781
    %v3783 = vpop.f32.mrb[0].mxu0
    %v3784 = vadd.f32 %v3482, %v3783
    %v3785 = vpop.f32.mrb[0].mxu0
    %3786 = vmatprep.mubr.f32.mxu0 0.0
    %v3787 = vand.u32 %v2330, 4294901760
    %3788 = vmatmul.mubr.f32.gmra.mrb[0].mxu0 %v3787
    %v3789 = vpop.f32.mrb[0].mxu0
    %v3790 = vadd.f32 %v3490, %v3789
    %v3791 = vpop.f32.mrb[0].mxu0
    %3792 = vmatprep.mubr.f32.mxu0 0.0
    %v3793 = vand.u32 %v2333, 4294901760
    %3794 = vmatmul.mubr.f32.gmra.mrb[0].mxu0 %v3793
    %v3795 = vpop.f32.mrb[0].mxu0
    %v3796 = vadd.f32 %v3498, %v3795
    %v3797 = vpop.f32.mrb[0].mxu0
    %3798 = vmatprep.mubr.f32.mxu0 0.0
    %v3799 = vand.u32 %v2336, 4294901760
    %3800 = vmatmul.mubr.f32.gmra.mrb[0].mxu0 %v3799
    %v3801 = vpop.f32.mrb[0].mxu0
    %v3802 = vadd.f32 %v3506, %v3801
    %v3803 = vpop.f32.mrb[0].mxu0
    %3804 = vmatprep.mubr.f32.mxu0 0.0
    %v3805 = vand.u32 %v2339, 4294901760
    %3806 = vmatmul.mubr.f32.gmra.mrb[0].mxu0 %v3805
    %v3807 = vpop.f32.mrb[0].mxu0
    %v3808 = vadd.f32 %v3514, %v3807
    %v3809 = vpop.f32.mrb[0].mxu0
    %3810 = vmatprep.mubr.f32.mxu0 0.0
    %v3811 = vand.u32 %v2342, 4294901760
    %3812 = vmatmul.mubr.f32.gmra.mrb[0].mxu0 %v3811
    %v3813 = vpop.f32.mrb[0].mxu0
    %v3814 = vadd.f32 %v3522, %v3813
    %v3815 = vpop.f32.mrb[0].mxu0
    %3816 = vmatprep.mubr.f32.mxu0 0.0
    %v3817 = vand.u32 %v2345, 4294901760
    %3818 = vmatmul.mubr.f32.gmra.mrb[0].mxu0 %v3817
    %v3819 = vpop.f32.mrb[0].mxu0
    %v3820 = vadd.f32 %v3530, %v3819
    %v3821 = vpop.f32.mrb[0].mxu0
    %3822 = vmatprep.mubr.f32.mxu0 0.0
    %v3823 = vand.u32 %v2348, 4294901760
    %3824 = vmatmul.mubr.f32.gmra.mrb[0].mxu0 %v3823
    %v3825 = vpop.f32.mrb[0].mxu0
    %v3826 = vadd.f32 %v3538, %v3825
    %v3827 = vpop.f32.mrb[0].mxu0
    %3828 = vmatprep.mubr.f32.mxu0 0.0
    %v3829 = vand.u32 %v2351, 4294901760
    %3830 = vmatmul.mubr.f32.gmra.mrb[0].mxu0 %v3829
    %v3831 = vpop.f32.mrb[0].mxu0
    %v3832 = vadd.f32 %v3546, %v3831
    %v3833 = vpop.f32.mrb[0].mxu0
    %3834 = vmatprep.mubr.f32.mxu0 0.0
    %v3835 = vand.u32 %v2354, 4294901760
    %3836 = vmatmul.mubr.f32.gmra.mrb[0].mxu0 %v3835
    %v3837 = vpop.f32.mrb[0].mxu0
    %v3838 = vadd.f32 %v3554, %v3837
    %v3839 = vpop.f32.mrb[0].mxu0
    %3840 = vmatprep.mubr.f32.mxu0 0.0
    %v3841 = vand.u32 %v2357, 4294901760
    %3842 = vmatmul.mubr.f32.gmra.mrb[0].mxu0 %v3841
    %v3843 = vpop.f32.mrb[0].mxu0
    %v3844 = vadd.f32 %v3562, %v3843
    %v3845 = vpop.f32.mrb[0].mxu0
    %3846 = vmatprep.mubr.f32.mxu0 0.0
    %v3847 = vand.u32 %v2360, 4294901760
    %3848 = vmatmul.mubr.f32.gmra.mrb[0].mxu0 %v3847
    %v3849 = vpop.f32.mrb[0].mxu0
    %v3850 = vadd.f32 %v3570, %v3849
    %v3851 = vpop.f32.mrb[0].mxu0
    %3852 = vmatprep.mubr.f32.mxu0 0.0
    %v3853 = vand.u32 %v2363, 4294901760
    %3854 = vmatmul.mubr.f32.gmra.mrb[0].mxu0 %v3853
    %v3855 = vpop.f32.mrb[0].mxu0
    %v3856 = vadd.f32 %v3578, %v3855
    %v3857 = vpop.f32.mrb[0].mxu0
    %3858 = vmatprep.mubr.f32.mxu0 0.0
    %v3859 = vand.u32 %v2366, 4294901760
    %3860 = vmatmul.mubr.f32.gmra.mrb[0].mxu0 %v3859
    %v3861 = vpop.f32.mrb[0].mxu0
    %v3862 = vadd.f32 %v3586, %v3861
    %v3863 = vpop.f32.mrb[0].mxu0
    %3864 = vmatprep.mubr.f32.mxu0 0.0
    %v3865 = vand.u32 %v2369, 4294901760
    %3866 = vmatmul.mubr.f32.gmra.mrb[0].mxu0 %v3865
    %v3867 = vpop.f32.mrb[0].mxu0
    %v3868 = vadd.f32 %v3594, %v3867
    %v3869 = vpop.f32.mrb[0].mxu0
    %3870 = vmatprep.mubr.f32.mxu0 0.0
    %v3871 = vand.u32 %v2372, 4294901760
    %3872 = vmatmul.mubr.f32.gmra.mrb[0].mxu0 %v3871
    %v3873 = vpop.f32.mrb[0].mxu0
    %v3874 = vadd.f32 %v3602, %v3873
    %v3875 = vpop.f32.mrb[0].mxu0
    %3876 = vmatprep.mubr.f32.mxu0 0.0
    %v3877 = vand.u32 %v2375, 4294901760
    %3878 = vmatmul.mubr.f32.gmra.mrb[0].mxu0 %v3877
    %v3879 = vpop.f32.mrb[0].mxu0
    %v3880 = vadd.f32 %v3610, %v3879
    %v3881 = vpop.f32.mrb[0].mxu0
    %3882 = vmatprep.mubr.f32.mxu0 0.0
    %v3883 = vand.u32 %v2378, 4294901760
    %3884 = vmatmul.mubr.f32.gmra.mrb[0].mxu0 %v3883
    %v3885 = vpop.f32.mrb[0].mxu0
    %v3886 = vadd.f32 %v3618, %v3885
    %v3887 = vpop.f32.mrb[0].mxu0
    %3888 = vmatprep.mubr.f32.mxu0 0.0
    %v3889 = vand.u32 %v2381, 4294901760
    %3890 = vmatmul.mubr.f32.gmra.mrb[0].mxu0 %v3889
    %v3891 = vpop.f32.mrb[0].mxu0
    %v3892 = vadd.f32 %v3626, %v3891
    %v3893 = vpop.f32.mrb[0].mxu0
    %3894 = vmatprep.mubr.f32.mxu0 0.0
    %v3895 = vand.u32 %v2384, 4294901760
    %3896 = vmatmul.mubr.f32.gmra.mrb[0].mxu0 %v3895
    %v3897 = vpop.f32.mrb[0].mxu0
    %v3898 = vadd.f32 %v3634, %v3897
    %v3899 = vpop.f32.mrb[0].mxu0
    %3900 = vmatprep.mubr.f32.mxu0 0.0
    %v3901 = vand.u32 %v2387, 4294901760
    %3902 = vmatmul.mubr.f32.gmra.mrb[0].mxu0 %v3901
    %v3903 = vpop.f32.mrb[0].mxu0
    %v3904 = vadd.f32 %v3642, %v3903
    %v3905 = vpop.f32.mrb[0].mxu0
    %3906 = vmatprep.mubr.f32.mxu0 0.0
    %v3907 = vand.u32 %v2390, 4294901760
    %3908 = vmatmul.mubr.f32.gmra.mrb[0].mxu0 %v3907
    %v3909 = vpop.f32.mrb[0].mxu0
    %v3910 = vadd.f32 %v3650, %v3909
    %v3911 = vpop.f32.mrb[0].mxu0
    %3912 = vdwg.mxu0
    %3913 = vmatprep.subr.mxu0 0.0
    %v3914 = vand.u32 %v2263, 4294901760
    %3915 = vmatpush1.msra.mxu0 %v3914
    %3916 = vmatprep.subr.mxu0 0.0
    %3917 = vmatpush1.msra.mxu0 0.0
    %3918 = vmatprep.subr.mxu0 0.0
    %3919 = vmatpush1.msra.mxu0 0.0
    %3920 = vmatprep.subr.mxu0 0.0
    %3921 = vmatpush1.msra.mxu0 0.0
    %3922 = vmatprep.subr.mxu0 0.0
    %3923 = vmatpush1.msra.mxu0 0.0
    %3924 = vmatprep.subr.mxu0 0.0
    %3925 = vmatpush1.msra.mxu0 0.0
    %3926 = vmatprep.subr.mxu0 0.0
    %3927 = vmatpush1.msra.mxu0 0.0
    %3928 = vmatprep.subr.mxu0 0.0
    %3929 = vmatpush1.msra.mxu0 0.0
    %3930 = vmatprep.subr.mxu0 0.0
    %3931 = vmatpush1.msra.mxu0 0.0
    %3932 = vmatprep.subr.mxu0 0.0
    %3933 = vmatpush1.msra.mxu0 0.0
    %3934 = vmatprep.subr.mxu0 0.0
    %3935 = vmatpush1.msra.mxu0 0.0
    %3936 = vmatprep.subr.mxu0 0.0
    %3937 = vmatpush1.msra.mxu0 0.0
    %3938 = vmatprep.subr.mxu0 0.0
    %3939 = vmatpush1.msra.mxu0 0.0
    %3940 = vmatprep.subr.mxu0 0.0
    %3941 = vmatpush1.msra.mxu0 0.0
    %3942 = vmatprep.subr.mxu0 0.0
    %3943 = vmatpush1.msra.mxu0 0.0
    %3944 = vmatprep.subr.mxu0 0.0
    %3945 = vmatpush1.msra.mxu0 0.0
    %3946 = vmatprep.subr.mxu0 0.0
    %3947 = vmatpush1.msra.mxu0 0.0
    %3948 = vmatprep.subr.mxu0 0.0
    %3949 = vmatpush1.msra.mxu0 0.0
    %3950 = vmatprep.subr.mxu0 0.0
    %3951 = vmatpush1.msra.mxu0 0.0
    %3952 = vmatprep.subr.mxu0 0.0
    %3953 = vmatpush1.msra.mxu0 0.0
    %3954 = vmatprep.subr.mxu0 0.0
    %3955 = vmatpush1.msra.mxu0 0.0
    %3956 = vmatprep.subr.mxu0 0.0
    %3957 = vmatpush1.msra.mxu0 0.0
    %3958 = vmatprep.subr.mxu0 0.0
    %3959 = vmatpush1.msra.mxu0 0.0
    %3960 = vmatprep.subr.mxu0 0.0
    %3961 = vmatpush1.msra.mxu0 0.0
    %3962 = vmatprep.subr.mxu0 0.0
    %3963 = vmatpush1.msra.mxu0 0.0
    %3964 = vmatprep.subr.mxu0 0.0
    %3965 = vmatpush1.msra.mxu0 0.0
    %3966 = vmatprep.subr.mxu0 0.0
    %3967 = vmatpush1.msra.mxu0 0.0
    %3968 = vmatprep.subr.mxu0 0.0
    %3969 = vmatpush1.msra.mxu0 0.0
    %3970 = vmatprep.subr.mxu0 0.0
    %3971 = vmatpush1.msra.mxu0 0.0
    %3972 = vmatprep.subr.mxu0 0.0
    %3973 = vmatpush1.msra.mxu0 0.0
    %3974 = vmatprep.subr.mxu0 0.0
    %3975 = vmatpush1.msra.mxu0 0.0
    %3976 = vmatprep.subr.mxu0 0.0
    %3977 = vmatpush1.msra.mxu0 0.0
    %3978 = vmatprep.mubr.f32.mxu0 0.0
    %v3979 = vand.u32 %v2297, 4294901760
    %3980 = vmatmul.mubr.f32.gmra.mrb[0].mxu0 %v3979
    %v3981 = vpop.f32.mrb[0].mxu0
    %v3982 = vadd.f32 %v3724, %v3981
    %v3983 = vpop.f32.mrb[0].mxu0
    %3984 = vmatprep.mubr.f32.mxu0 0.0
    %v3985 = vand.u32 %v2300, 4294901760
    %3986 = vmatmul.mubr.f32.gmra.mrb[0].mxu0 %v3985
    %v3987 = vpop.f32.mrb[0].mxu0
    %v3988 = vadd.f32 %v3730, %v3987
    %v3989 = vpop.f32.mrb[0].mxu0
    %3990 = vmatprep.mubr.f32.mxu0 0.0
    %v3991 = vand.u32 %v2303, 4294901760
    %3992 = vmatmul.mubr.f32.gmra.mrb[0].mxu0 %v3991
    %v3993 = vpop.f32.mrb[0].mxu0
    %v3994 = vadd.f32 %v3736, %v3993
    %v3995 = vpop.f32.mrb[0].mxu0
    %3996 = vmatprep.mubr.f32.mxu0 0.0
    %v3997 = vand.u32 %v2306, 4294901760
    %3998 = vmatmul.mubr.f32.gmra.mrb[0].mxu0 %v3997
    %v3999 = vpop.f32.mrb[0].mxu0
    %v4000 = vadd.f32 %v3742, %v3999
    %v4001 = vpop.f32.mrb[0].mxu0
    %4002 = vmatprep.mubr.f32.mxu0 0.0
    %v4003 = vand.u32 %v2309, 4294901760
    %4004 = vmatmul.mubr.f32.gmra.mrb[0].mxu0 %v4003
    %v4005 = vpop.f32.mrb[0].mxu0
    %v4006 = vadd.f32 %v3748, %v4005
    %v4007 = vpop.f32.mrb[0].mxu0
    %4008 = vmatprep.mubr.f32.mxu0 0.0
    %v4009 = vand.u32 %v2312, 4294901760
    %4010 = vmatmul.mubr.f32.gmra.mrb[0].mxu0 %v4009
    %v4011 = vpop.f32.mrb[0].mxu0
    %v4012 = vadd.f32 %v3754, %v4011
    %v4013 = vpop.f32.mrb[0].mxu0
    %4014 = vmatprep.mubr.f32.mxu0 0.0
    %v4015 = vand.u32 %v2315, 4294901760
    %4016 = vmatmul.mubr.f32.gmra.mrb[0].mxu0 %v4015
    %v4017 = vpop.f32.mrb[0].mxu0
    %v4018 = vadd.f32 %v3760, %v4017
    %v4019 = vpop.f32.mrb[0].mxu0
    %4020 = vmatprep.mubr.f32.mxu0 0.0
    %v4021 = vand.u32 %v2318, 4294901760
    %4022 = vmatmul.mubr.f32.gmra.mrb[0].mxu0 %v4021
    %v4023 = vpop.f32.mrb[0].mxu0
    %v4024 = vadd.f32 %v3766, %v4023
    %v4025 = vpop.f32.mrb[0].mxu0
    %4026 = vmatprep.mubr.f32.mxu0 0.0
    %v4027 = vand.u32 %v2321, 4294901760
    %4028 = vmatmul.mubr.f32.gmra.mrb[0].mxu0 %v4027
    %v4029 = vpop.f32.mrb[0].mxu0
    %v4030 = vadd.f32 %v3772, %v4029
    %v4031 = vpop.f32.mrb[0].mxu0
    %4032 = vmatprep.mubr.f32.mxu0 0.0
    %v4033 = vand.u32 %v2324, 4294901760
    %4034 = vmatmul.mubr.f32.gmra.mrb[0].mxu0 %v4033
    %v4035 = vpop.f32.mrb[0].mxu0
    %v4036 = vadd.f32 %v3778, %v4035
    %v4037 = vpop.f32.mrb[0].mxu0
    %4038 = vmatprep.mubr.f32.mxu0 0.0
    %v4039 = vand.u32 %v2327, 4294901760
    %4040 = vmatmul.mubr.f32.gmra.mrb[0].mxu0 %v4039
    %v4041 = vpop.f32.mrb[0].mxu0
    %v4042 = vadd.f32 %v3784, %v4041
    %v4043 = vpop.f32.mrb[0].mxu0
    %4044 = vmatprep.mubr.f32.mxu0 0.0
    %v4045 = vand.u32 %v2330, 4294901760
    %4046 = vmatmul.mubr.f32.gmra.mrb[0].mxu0 %v4045
    %v4047 = vpop.f32.mrb[0].mxu0
    %v4048 = vadd.f32 %v3790, %v4047
    %v4049 = vpop.f32.mrb[0].mxu0
    %4050 = vmatprep.mubr.f32.mxu0 0.0
    %v4051 = vand.u32 %v2333, 4294901760
    %4052 = vmatmul.mubr.f32.gmra.mrb[0].mxu0 %v4051
    %v4053 = vpop.f32.mrb[0].mxu0
    %v4054 = vadd.f32 %v3796, %v4053
    %v4055 = vpop.f32.mrb[0].mxu0
    %4056 = vmatprep.mubr.f32.mxu0 0.0
    %v4057 = vand.u32 %v2336, 4294901760
    %4058 = vmatmul.mubr.f32.gmra.mrb[0].mxu0 %v4057
    %v4059 = vpop.f32.mrb[0].mxu0
    %v4060 = vadd.f32 %v3802, %v4059
    %v4061 = vpop.f32.mrb[0].mxu0
    %4062 = vmatprep.mubr.f32.mxu0 0.0
    %v4063 = vand.u32 %v2339, 4294901760
    %4064 = vmatmul.mubr.f32.gmra.mrb[0].mxu0 %v4063
    %v4065 = vpop.f32.mrb[0].mxu0
    %v4066 = vadd.f32 %v3808, %v4065
    %v4067 = vpop.f32.mrb[0].mxu0
    %4068 = vmatprep.mubr.f32.mxu0 0.0
    %v4069 = vand.u32 %v2342, 4294901760
    %4070 = vmatmul.mubr.f32.gmra.mrb[0].mxu0 %v4069
    %v4071 = vpop.f32.mrb[0].mxu0
    %v4072 = vadd.f32 %v3814, %v4071
    %v4073 = vpop.f32.mrb[0].mxu0
    %4074 = vmatprep.mubr.f32.mxu0 0.0
    %v4075 = vand.u32 %v2345, 4294901760
    %4076 = vmatmul.mubr.f32.gmra.mrb[0].mxu0 %v4075
    %v4077 = vpop.f32.mrb[0].mxu0
    %v4078 = vadd.f32 %v3820, %v4077
    %v4079 = vpop.f32.mrb[0].mxu0
    %4080 = vmatprep.mubr.f32.mxu0 0.0
    %v4081 = vand.u32 %v2348, 4294901760
    %4082 = vmatmul.mubr.f32.gmra.mrb[0].mxu0 %v4081
    %v4083 = vpop.f32.mrb[0].mxu0
    %v4084 = vadd.f32 %v3826, %v4083
    %v4085 = vpop.f32.mrb[0].mxu0
    %4086 = vmatprep.mubr.f32.mxu0 0.0
    %v4087 = vand.u32 %v2351, 4294901760
    %4088 = vmatmul.mubr.f32.gmra.mrb[0].mxu0 %v4087
    %v4089 = vpop.f32.mrb[0].mxu0
    %v4090 = vadd.f32 %v3832, %v4089
    %v4091 = vpop.f32.mrb[0].mxu0
    %4092 = vmatprep.mubr.f32.mxu0 0.0
    %v4093 = vand.u32 %v2354, 4294901760
    %4094 = vmatmul.mubr.f32.gmra.mrb[0].mxu0 %v4093
    %v4095 = vpop.f32.mrb[0].mxu0
    %v4096 = vadd.f32 %v3838, %v4095
    %v4097 = vpop.f32.mrb[0].mxu0
    %4098 = vmatprep.mubr.f32.mxu0 0.0
    %v4099 = vand.u32 %v2357, 4294901760
    %4100 = vmatmul.mubr.f32.gmra.mrb[0].mxu0 %v4099
    %v4101 = vpop.f32.mrb[0].mxu0
    %v4102 = vadd.f32 %v3844, %v4101
    %v4103 = vpop.f32.mrb[0].mxu0
    %4104 = vmatprep.mubr.f32.mxu0 0.0
    %v4105 = vand.u32 %v2360, 4294901760
    %4106 = vmatmul.mubr.f32.gmra.mrb[0].mxu0 %v4105
    %v4107 = vpop.f32.mrb[0].mxu0
    %v4108 = vadd.f32 %v3850, %v4107
    %v4109 = vpop.f32.mrb[0].mxu0
    %4110 = vmatprep.mubr.f32.mxu0 0.0
    %v4111 = vand.u32 %v2363, 4294901760
    %4112 = vmatmul.mubr.f32.gmra.mrb[0].mxu0 %v4111
    %v4113 = vpop.f32.mrb[0].mxu0
    %v4114 = vadd.f32 %v3856, %v4113
    %v4115 = vpop.f32.mrb[0].mxu0
    %4116 = vmatprep.mubr.f32.mxu0 0.0
    %v4117 = vand.u32 %v2366, 4294901760
    %4118 = vmatmul.mubr.f32.gmra.mrb[0].mxu0 %v4117
    %v4119 = vpop.f32.mrb[0].mxu0
    %v4120 = vadd.f32 %v3862, %v4119
    %v4121 = vpop.f32.mrb[0].mxu0
    %4122 = vmatprep.mubr.f32.mxu0 0.0
    %v4123 = vand.u32 %v2369, 4294901760
    %4124 = vmatmul.mubr.f32.gmra.mrb[0].mxu0 %v4123
    %v4125 = vpop.f32.mrb[0].mxu0
    %v4126 = vadd.f32 %v3868, %v4125
    %v4127 = vpop.f32.mrb[0].mxu0
    %4128 = vmatprep.mubr.f32.mxu0 0.0
    %v4129 = vand.u32 %v2372, 4294901760
    %4130 = vmatmul.mubr.f32.gmra.mrb[0].mxu0 %v4129
    %v4131 = vpop.f32.mrb[0].mxu0
    %v4132 = vadd.f32 %v3874, %v4131
    %v4133 = vpop.f32.mrb[0].mxu0
    %4134 = vmatprep.mubr.f32.mxu0 0.0
    %v4135 = vand.u32 %v2375, 4294901760
    %4136 = vmatmul.mubr.f32.gmra.mrb[0].mxu0 %v4135
    %v4137 = vpop.f32.mrb[0].mxu0
    %v4138 = vadd.f32 %v3880, %v4137
    %v4139 = vpop.f32.mrb[0].mxu0
    %4140 = vmatprep.mubr.f32.mxu0 0.0
    %v4141 = vand.u32 %v2378, 4294901760
    %4142 = vmatmul.mubr.f32.gmra.mrb[0].mxu0 %v4141
    %v4143 = vpop.f32.mrb[0].mxu0
    %v4144 = vadd.f32 %v3886, %v4143
    %v4145 = vpop.f32.mrb[0].mxu0
    %4146 = vmatprep.mubr.f32.mxu0 0.0
    %v4147 = vand.u32 %v2381, 4294901760
    %4148 = vmatmul.mubr.f32.gmra.mrb[0].mxu0 %v4147
    %v4149 = vpop.f32.mrb[0].mxu0
    %v4150 = vadd.f32 %v3892, %v4149
    %v4151 = vpop.f32.mrb[0].mxu0
    %4152 = vmatprep.mubr.f32.mxu0 0.0
    %v4153 = vand.u32 %v2384, 4294901760
    %4154 = vmatmul.mubr.f32.gmra.mrb[0].mxu0 %v4153
    %v4155 = vpop.f32.mrb[0].mxu0
    %v4156 = vadd.f32 %v3898, %v4155
    %v4157 = vpop.f32.mrb[0].mxu0
    %4158 = vmatprep.mubr.f32.mxu0 0.0
    %v4159 = vand.u32 %v2387, 4294901760
    %4160 = vmatmul.mubr.f32.gmra.mrb[0].mxu0 %v4159
    %v4161 = vpop.f32.mrb[0].mxu0
    %v4162 = vadd.f32 %v3904, %v4161
    %v4163 = vpop.f32.mrb[0].mxu0
    %4164 = vmatprep.mubr.f32.mxu0 0.0
    %v4165 = vand.u32 %v2390, 4294901760
    %4166 = vmatmul.mubr.f32.gmra.mrb[0].mxu0 %v4165
    %v4167 = vpop.f32.mrb[0].mxu0
    %v4168 = vadd.f32 %v3910, %v4167
    %v4169 = vpop.f32.mrb[0].mxu0
    %4170 = vdwg.mxu0
    %v4171 = vmax.f32 %v3982, 0.0
    %v4172 = vmax.f32 %v3988, 0.0
    %v4173 = vmax.f32 %v3994, 0.0
    %v4174 = vmax.f32 %v4000, 0.0
    %v4175 = vmax.f32 %v4006, 0.0
    %v4176 = vmax.f32 %v4012, 0.0
    %v4177 = vmax.f32 %v4018, 0.0
    %v4178 = vmax.f32 %v4024, 0.0
    %v4179 = vmax.f32 %v4030, 0.0
    %v4180 = vmax.f32 %v4036, 0.0
    %v4181 = vmax.f32 %v4042, 0.0
    %v4182 = vmax.f32 %v4048, 0.0
    %v4183 = vmax.f32 %v4054, 0.0
    %v4184 = vmax.f32 %v4060, 0.0
    %v4185 = vmax.f32 %v4066, 0.0
    %v4186 = vmax.f32 %v4072, 0.0
    %v4187 = vmax.f32 %v4078, 0.0
    %v4188 = vmax.f32 %v4084, 0.0
    %v4189 = vmax.f32 %v4090, 0.0
    %v4190 = vmax.f32 %v4096, 0.0
    %v4191 = vmax.f32 %v4102, 0.0
    %v4192 = vmax.f32 %v4108, 0.0
    %v4193 = vmax.f32 %v4114, 0.0
    %v4194 = vmax.f32 %v4120, 0.0
    %v4195 = vmax.f32 %v4126, 0.0
    %v4196 = vmax.f32 %v4132, 0.0
    %v4197 = vmax.f32 %v4138, 0.0
    %v4198 = vmax.f32 %v4144, 0.0
    %v4199 = vmax.f32 %v4150, 0.0
    %v4200 = vmax.f32 %v4156, 0.0
    %v4201 = vmax.f32 %v4162, 0.0
    %v4202 = vmax.f32 %v4168, 0.0
    %4203 = vst [vmem:[#allocation6] sm:$0xff] %v4171
    %4204 = vst [vmem:[#allocation6 + $0x8] sm:$0xff] %v4172
    %4205 = vst [vmem:[#allocation6 + $0x10] sm:$0xff] %v4173
    %4206 = vst [vmem:[#allocation6 + $0x18] sm:$0xff] %v4174
    %4207 = vst [vmem:[#allocation6 + $0x20] sm:$0xff] %v4175
    %4208 = vst [vmem:[#allocation6 + $0x28] sm:$0xff] %v4176
    %4209 = vst [vmem:[#allocation6 + $0x30] sm:$0xff] %v4177
    %4210 = vst [vmem:[#allocation6 + $0x38] sm:$0xff] %v4178
    %4211 = vst [vmem:[#allocation6 + $0x40] sm:$0xff] %v4179
    %4212 = vst [vmem:[#allocation6 + $0x48] sm:$0xff] %v4180
    %4213 = vst [vmem:[#allocation6 + $0x50] sm:$0xff] %v4181
    %4214 = vst [vmem:[#allocation6 + $0x58] sm:$0xff] %v4182
    %4215 = vst [vmem:[#allocation6 + $0x60] sm:$0xff] %v4183
    %4216 = vst [vmem:[#allocation6 + $0x68] sm:$0xff] %v4184
    %4217 = vst [vmem:[#allocation6 + $0x70] sm:$0xff] %v4185
    %4218 = vst [vmem:[#allocation6 + $0x78] sm:$0xff] %v4186
    %4219 = vst [vmem:[#allocation6 + $0x80] sm:$0xff] %v4187
    %4220 = vst [vmem:[#allocation6 + $0x88] sm:$0xff] %v4188
    %4221 = vst [vmem:[#allocation6 + $0x90] sm:$0xff] %v4189
    %4222 = vst [vmem:[#allocation6 + $0x98] sm:$0xff] %v4190
    %4223 = vst [vmem:[#allocation6 + $0xa0] sm:$0xff] %v4191
    %4224 = vst [vmem:[#allocation6 + $0xa8] sm:$0xff] %v4192
    %4225 = vst [vmem:[#allocation6 + $0xb0] sm:$0xff] %v4193
    %4226 = vst [vmem:[#allocation6 + $0xb8] sm:$0xff] %v4194
    %4227 = vst [vmem:[#allocation6 + $0xc0] sm:$0xff] %v4195
    %4228 = vst [vmem:[#allocation6 + $0xc8] sm:$0xff] %v4196
    %4229 = vst [vmem:[#allocation6 + $0xd0] sm:$0xff] %v4197
    %4230 = vst [vmem:[#allocation6 + $0xd8] sm:$0xff] %v4198
    %4231 = vst [vmem:[#allocation6 + $0xe0] sm:$0xff] %v4199
    %4232 = vst [vmem:[#allocation6 + $0xe8] sm:$0xff] %v4200
    %4233 = vst [vmem:[#allocation6 + $0xf0] sm:$0xff] %v4201
    %4234 = vst [vmem:[#allocation6 + $0xf8] sm:$0xff] %v4202
    // Predicated region
    $region36: #{tpu_custom_call.1} parent=1 // pred_check
      _
    $region37: #{tpu_custom_call.1} parent=1 // pred_check_branch
      %4236 = sbr.rel (0) target = $region39
    $region38: #{tpu_custom_call.1} parent=1 // pred_region
      %s4238 = ssub.s32 4096, 4096
      %4239 = vsyncadd [#allocation7], %s4238
      %s4240 = sshll.u32 [#allocation6], 4
      %s4241 = int_to_ptr.vmem [resolvable:$true] %s4240
      %4246 = dma.vmem_to_hbm [thread:$0]  %s4241, 4096, %s7, [#allocation7], 128, 128, 8
    $region39: #{tpu_custom_call.1} parent=1 // pred_fallthru
      _
    // Predicated region
    $region40: #{tpu_custom_call.1} parent=1 // pred_check
      _
    $region41: #{tpu_custom_call.1} parent=1 // pred_check_branch
      %4248 = sbr.rel (0) target = $region43
    $region42: #{tpu_custom_call.1} parent=1 // pred_region
      %4249 = dma.done [#allocation7], 4096
    $region43: #{tpu_custom_call.1} parent=1 // pred_fallthru
      _
    %4250 = vsyncpa [#allocation7], 1

</llo_original>
